<compile_context>
chip_gen: v5e
topology: v5e:2x2
jax: 0.10.0
libtpu: 0.0.40
codegen_flags: <defaults>
</compile_context>

<pallas_src>
import functools

import numpy as np
import jax
import jax.numpy as jnp
from jax import lax
from jax.experimental import pallas as pl
from jax.experimental.pallas import tpu as pltpu


def _round_up(x, m):
    return ((x + m - 1) // m) * m


def _pick_time_chunk(T, max_chunk=4):
    """Largest divisor of T that is <= max_chunk (time-chunk for the gx scratch)."""
    tc = min(T, max_chunk)
    while T % tc:
        tc -= 1
    return tc


# ------------------------------ Pallas kernel --------------------------------

def _bilstm_linear_kernel(x_ref, wih_f_ref, wih_b_ref, whh_f_ref, whh_b_ref,
                          bg_f_ref, bg_b_ref, wlin_ref, blin_ref,
                          out_ref, gxf_ref, gxb_ref, hseq_ref,
                          *, T, Bp, Hp, TC):
    """Fused bidirectional LSTM + output Linear (single invocation, no grid).

    x_ref   : [T*Bp, Din]  bf16 packed (time-major) input, batch padded to Bp
    wih_*   : [Din, 4*Hp]  bf16 input->gate weights (gate blocks 128-lane aligned)
    whh_*   : [Hp, 4*Hp]   bf16 hidden->gate weights
    bg_*    : [1, 4*Hp]    f32 folded (b_ih + b_hh) gate bias
    wlin    : [2*Hp, Hlp]  bf16 lin_*_h weight (fwd rows, then bwd rows)
    blin    : [1, Hlp]     f32 lin_*_h bias
    out_ref : [T*Bp, Hlp]  f32 lin_*_h(concat(h_fwd, h_bwd)), packed order
    gx*_ref : [TC*Bp, 4Hp] f32 per-chunk input-projection scratch
    hseq_ref: [T*Bp, 2Hp]  f32 hidden-sequence scratch
    """
    NC = T // TC
    TCB = TC * Bp
    f32 = jnp.float32
    bf16 = jnp.bfloat16

    def sigm(v):
        # sigmoid(x) = 0.5*(tanh(x/2)+1): one EUP op per gate (no exp + recip).
        return 0.5 * jnp.tanh(0.5 * v) + 0.5

    def cell(gates, c):
        # gate blocks are 128-lane aligned (Hp = 128k): pure lane-block slices.
        i = sigm(gates[:, 0 * Hp:1 * Hp])
        f = sigm(gates[:, 1 * Hp:2 * Hp])
        g = jnp.tanh(gates[:, 2 * Hp:3 * Hp])
        o = sigm(gates[:, 3 * Hp:4 * Hp])
        c = f * c + i * g
        h = o * jnp.tanh(c)
        return h, c

    zeros = jnp.zeros((Bp, Hp), f32)

    def chunk_body(cidx, carry):
        h_f, c_f, h_b, c_b = carry
        # forward direction consumes chunk cidx, backward consumes chunk NC-1-cidx
        fwd_base = pl.multiple_of(cidx * TCB, TCB)
        bwd_base = pl.multiple_of((NC - 1 - cidx) * TCB, TCB)

        # ---- time-chunked hoisted input projection (bf16 MXU, f32 accumulate),
        #      bias folded in; gx scratch bounded to one chunk ----
        gxf_ref[...] = (jnp.dot(x_ref[pl.ds(fwd_base, TCB), :], wih_f_ref[...],
                                preferred_element_type=f32) + bg_f_ref[...])
        gxb_ref[...] = (jnp.dot(x_ref[pl.ds(bwd_base, TCB), :], wih_b_ref[...],
                                preferred_element_type=f32) + bg_b_ref[...])

        # ---- TC recurrent steps (short static unroll inside the chunk loop);
        #      forward & backward interleaved; W_hh streamed from VMEM per dot ----
        for s in range(TC):
            rf = s * Bp
            rb = (TC - 1 - s) * Bp
            gates_f = gxf_ref[rf:rf + Bp, :] + jnp.dot(
                h_f.astype(bf16), whh_f_ref[...], preferred_element_type=f32)
            gates_b = gxb_ref[rb:rb + Bp, :] + jnp.dot(
                h_b.astype(bf16), whh_b_ref[...], preferred_element_type=f32)
            h_f, c_f = cell(gates_f, c_f)
            h_b, c_b = cell(gates_b, c_b)
            hseq_ref[pl.ds(pl.multiple_of(fwd_base + rf, Bp), Bp), 0:Hp] = h_f
            hseq_ref[pl.ds(pl.multiple_of(bwd_base + rb, Bp), Bp), Hp:2 * Hp] = h_b
        return h_f, c_f, h_b, c_b

    _ = lax.fori_loop(0, NC, chunk_body, (zeros, zeros, zeros, zeros))

    # ---- fused lin_obj_h / lin_edge_h epilogue: bf16 operands, f32 accumulate,
    #      single lane-dense output ----
    out_ref[...] = (jnp.dot(hseq_ref[...].astype(bf16), wlin_ref[...],
                            preferred_element_type=f32) + blin_ref[...])


# --------------------------- parameter preparation ----------------------------

def _pad_gate_cols(w2d, H, Hp):
    """[R, 4H] (torch gate order i,f,g,o) -> [R, 4Hp]: each gate block padded with
    zero columns so every gate starts on a 128-lane boundary (exact padding)."""
    R = w2d.shape[0]
    w4 = w2d.reshape(R, 4, H)
    return jnp.zeros((R, 4, Hp), w2d.dtype).at[:, :, :H].set(w4).reshape(R, 4 * Hp)


def _prep_bilstm(p, lin_w, lin_b):
    """One-time re-layout of one bi-LSTM + Linear: pad gates to 128-lane blocks,
    transpose, fold biases, cast matmul operands to bf16."""
    H = p["whh_f"].shape[1]
    Din = p["wih_f"].shape[1]
    Hout = lin_w.shape[0]
    Hp = _round_up(H, 128)
    Hlp = _round_up(Hout, 128)

    def prep_dir(wih, whh, bih, bhh):
        wih_t = _pad_gate_cols(wih.T.astype(jnp.float32), H, Hp)            # [Din, 4Hp]
        whh_t = jnp.zeros((Hp, 4 * Hp), jnp.float32).at[:H, :].set(
            _pad_gate_cols(whh.T.astype(jnp.float32), H, Hp))               # [Hp, 4Hp]
        bg = _pad_gate_cols((bih + bhh).reshape(1, 4 * H).astype(jnp.float32), H, Hp)
        return wih_t.astype(jnp.bfloat16), whh_t.astype(jnp.bfloat16), bg

    wih_f, whh_f, bg_f = prep_dir(p["wih_f"], p["whh_f"], p["bih_f"], p["bhh_f"])
    wih_b, whh_b, bg_b = prep_dir(p["wih_b"], p["whh_b"], p["bih_b"], p["bhh_b"])

    wt = lin_w.T.astype(jnp.float32)                                         # [2H, Hout]
    wlin = (jnp.zeros((2 * Hp, Hlp), jnp.float32)
            .at[:H, :Hout].set(wt[:H])
            .at[Hp:Hp + H, :Hout].set(wt[H:])).astype(jnp.bfloat16)
    blin = jnp.zeros((1, Hlp), jnp.float32).at[0, :Hout].set(lin_b.astype(jnp.float32))
    return dict(wih_f=wih_f, wih_b=wih_b, whh_f=whh_f, whh_b=whh_b,
                bg_f=bg_f, bg_b=bg_b, wlin=wlin, blin=blin,
                H=H, Hout=Hout, Hp=Hp, Hlp=Hlp, Din=Din)


def prepare_params(params):
    """Hoisted out of the per-call path: pad/transpose/bf16-cast once."""
    return {
        "obj_embed1": params["obj_embed1"].astype(jnp.float32),
        "obj_embed2": params["obj_embed2"].astype(jnp.float32),
        "obj_rnn": _prep_bilstm(params["obj_ctx_rnn"],
                                params["lin_obj_w"], params["lin_obj_b"]),
        "edge_rnn": _prep_bilstm(params["edge_ctx_rnn"],
                                 params["lin_edge_w"], params["lin_edge_b"]),
    }


# ------------------------------ Pallas wrapper --------------------------------

def bilstm_linear(x_packed, prep, T, B):
    """lin(concat(biLSTM(x))) over a packed [T*B, Din] sequence in ONE pallas_call.

    Returns [T*B, Hout] (f32) in the same packed (time-major) order.
    """
    N, Din = x_packed.shape
    assert N == T * B
    assert Din == prep["Din"]
    H, Hout, Hp, Hlp = prep["H"], prep["Hout"], prep["Hp"], prep["Hlp"]
    Bp = _round_up(max(B, 1), 8)          # batch padded to a full sublane group
    Np = T * Bp
    TC = _pick_time_chunk(T)              # time-chunk for the gx scratch
    TCB = TC * Bp

    # batch padded to Bp sublanes; packed row index inside the kernel = t*Bp + b.
    # padding is exact (padded rows/lanes stay numerically inert, sliced off below).
    xp = (jnp.zeros((T, Bp, Din), jnp.float32)
          .at[:, :B, :].set(x_packed.reshape(T, B, Din))
          .reshape(Np, Din)).astype(jnp.bfloat16)

    operands = (xp, prep["wih_f"], prep["wih_b"], prep["whh_f"], prep["whh_b"],
                prep["bg_f"], prep["bg_b"], prep["wlin"], prep["blin"])

    # ---- VMEM budget from the actual resident set (no pipelining => ~1x) ----
    def nbytes(a):
        return int(np.prod(a.shape)) * jnp.dtype(a.dtype).itemsize
    resident = (sum(nbytes(a) for a in operands)
                + Np * Hlp * 4                      # output
                + 2 * TCB * 4 * Hp * 4              # gxf/gxb scratch
                + Np * 2 * Hp * 4)                  # hseq scratch
    vmem_limit = int(min(int(resident * 1.5) + (4 << 20), 128 << 20))

    flops = int(2 * (2 * Np * Din * 4 * Hp)         # hoisted input projections
                + 2 * (2 * T * Bp * Hp * 4 * Hp)    # recurrent h @ W_hh
                + 2 * Np * (2 * Hp) * Hlp)          # fused lin epilogue
    cost = pl.CostEstimate(flops=flops,
                           transcendentals=int(2 * T * Bp * Hp * 5),
                           bytes_accessed=int(sum(nbytes(a) for a in operands)
                                              + Np * Hlp * 4))

    vspec = pl.BlockSpec(memory_space=pltpu.MemorySpace.VMEM)   # whole array, no
    kernel = functools.partial(_bilstm_linear_kernel,           # double-buffering
                               T=T, Bp=Bp, Hp=Hp, TC=TC)
    out = pl.pallas_call(
        kernel,
        out_shape=jax.ShapeDtypeStruct((Np, Hlp), jnp.float32),
        in_specs=[vspec] * len(operands),
        out_specs=vspec,
        scratch_shapes=[pltpu.VMEM((TCB, 4 * Hp), jnp.float32),   # gx fwd (chunk)
                        pltpu.VMEM((TCB, 4 * Hp), jnp.float32),   # gx bwd (chunk)
                        pltpu.VMEM((Np, 2 * Hp), jnp.float32)],   # h sequence
        compiler_params=pltpu.CompilerParams(vmem_limit_bytes=vmem_limit),
        cost_estimate=cost,
    )(*operands)

    # drop batch / lane padding, back to packed [T*B, Hout]
    return out.reshape(T, Bp, Hlp)[:, :B, :Hout].reshape(T * B, Hout)


# ---------------------------------- glue --------------------------------------

def to_onehot(labels, num_classes, fill=1000.0):
    # tiny; plain XLA per the perf review (a dedicated pallas_call is pure launch cost)
    cls = jnp.arange(num_classes, dtype=labels.dtype)[None, :]
    return jnp.where(cls == labels[:, None], fill, -fill).astype(jnp.float32)


def sort_rois(boxes, num_images, objs_per_image):
    """center_x + sort_by_score (neural-motifs), specialized to equal-length images."""
    cx = 0.5 * (boxes[:, 0] + boxes[:, 2])
    scores = cx / (cx.max() + 1.0)
    scores_2d = scores.reshape(num_images, objs_per_image)
    order = jnp.argsort(-scores_2d, axis=1)                      # desc within image
    perm_img_major = order + (jnp.arange(num_images) * objs_per_image)[:, None]
    perm = perm_img_major.T.reshape(-1)                          # transposed TxB order
    inv_perm = jnp.argsort(perm)
    ls_transposed = jnp.full((objs_per_image,), num_images, jnp.int32)
    return perm, inv_perm, ls_transposed


def lstm_context_semantic_forward(prep, x, boxes, obj_labels,
                                  num_images, objs_per_image, num_obj_classes):
    """Mirrors LSTMContext_semantic.forward (predcls, eval, no effect analysis).
    `x` (roi visual features) is unused on this path, as in the PyTorch module."""
    del x
    T, B = objs_per_image, num_images

    obj_embed = jnp.take(prep["obj_embed1"], obj_labels, axis=0)        # [N, E]
    perm, inv_perm, _ = sort_rois(boxes, num_images, objs_per_image)

    # ----- obj_ctx: obj_ctx_rnn + lin_obj_h fused in one Pallas kernel -----
    encoder_rep = bilstm_linear(obj_embed[perm], prep["obj_rnn"], T, B)
    obj_preds = obj_labels                       # predcls: decoder_rnn bypassed
    obj_dists = to_onehot(obj_labels, num_obj_classes)
    obj_ctx = encoder_rep[inv_perm]

    # ----- edge_ctx: edge_ctx_rnn + lin_edge_h fused in one Pallas kernel -----
    obj_embed2 = jnp.take(prep["obj_embed2"], obj_preds, axis=0)
    obj_rel_rep = jnp.concatenate([obj_embed2, obj_ctx], axis=-1)
    edge_reps = bilstm_linear(obj_rel_rep[perm], prep["edge_rnn"], T, B)
    edge_ctx = edge_reps[inv_perm]
    return obj_dists, obj_preds, edge_ctx, None


# ------------------------------ parameter init ---------------------------------

def _lstm_dir_params(key, in_dim, hidden):
    bound = 1.0 / np.sqrt(hidden)
    ks = jax.random.split(key, 8)
    u = lambda k_, s: jax.random.uniform(k_, s, jnp.float32, -bound, bound)
    return {"wih_f": u(ks[0], (4 * hidden, in_dim)),
            "whh_f": u(ks[1], (4 * hidden, hidden)),
            "bih_f": u(ks[2], (4 * hidden,)),
            "bhh_f": u(ks[3], (4 * hidden,)),
            "wih_b": u(ks[4], (4 * hidden, in_dim)),
            "whh_b": u(ks[5], (4 * hidden, hidden)),
            "bih_b": u(ks[6], (4 * hidden,)),
            "bhh_b": u(ks[7], (4 * hidden,))}


def init_params(key, embed_dim, hidden, num_obj_classes):
    ks = jax.random.split(key, 8)
    bound = 1.0 / np.sqrt(2 * hidden)
    u = lambda k_, s: jax.random.uniform(k_, s, jnp.float32, -bound, bound)
    return {
        # TODO(synk): GloVe-initialized embeddings in the original; random here.
        "obj_embed1": 0.1 * jax.random.normal(ks[0], (num_obj_classes, embed_dim),
                                              jnp.float32),
        "obj_embed2": 0.1 * jax.random.normal(ks[1], (num_obj_classes, embed_dim),
                                              jnp.float32),
        "obj_ctx_rnn": _lstm_dir_params(ks[2], embed_dim, hidden),
        "edge_ctx_rnn": _lstm_dir_params(ks[3], hidden + embed_dim, hidden),
        "lin_obj_w": u(ks[4], (hidden, 2 * hidden)),
        "lin_obj_b": u(ks[5], (hidden,)),
        "lin_edge_w": u(ks[6], (hidden, 2 * hidden)),
        "lin_edge_b": u(ks[7], (hidden,)),
    }


# ---------------------------- pure-JAX reference --------------------------------
# Mirrors the kernel's precision policy (bf16 matmul operands, f32 accumulation,
# f32 gate elementwise math) so the comparison is apples-to-apples.

def _ref_bilstm_lin(x_tb, p, lin_w, lin_b):
    bf = jnp.bfloat16
    H = p["whh_f"].shape[1]

    def sigm(v):
        return 0.5 * jnp.tanh(0.5 * v) + 0.5

    def run(wih, whh, bih, bhh, xs):
        B = xs.shape[1]
        wih_t = wih.T.astype(bf)
        whh_t = whh.T.astype(bf)
        bias = (bih + bhh).astype(jnp.float32)

        def step(carry, xt):
            h, c = carry
            g = (jnp.dot(xt, wih_t, preferred_element_type=jnp.float32) + bias
                 + jnp.dot(h.astype(bf), whh_t, preferred_element_type=jnp.float32))
            i = sigm(g[:, :H])
            f = sigm(g[:, H:2 * H])
            gg = jnp.tanh(g[:, 2 * H:3 * H])
            o = sigm(g[:, 3 * H:])
            c = f * c + i * gg
            h = o * jnp.tanh(c)
            return (h, c), h

        init = (jnp.zeros((B, H), jnp.float32), jnp.zeros((B, H), jnp.float32))
        _, ys = lax.scan(step, init, xs)
        return ys

    xb = x_tb.astype(bf)
    out_f = run(p["wih_f"], p["whh_f"], p["bih_f"], p["bhh_f"], xb)
    out_b = run(p["wih_b"], p["whh_b"], p["bih_b"], p["bhh_b"], xb[::-1])[::-1]
    T, B = x_tb.shape[0], x_tb.shape[1]
    hcat = jnp.concatenate([out_f, out_b], axis=-1).reshape(T * B, 2 * H).astype(bf)
    return (jnp.dot(hcat, lin_w.T.astype(bf), preferred_element_type=jnp.float32)
            + lin_b.astype(jnp.float32))


def reference_forward(params, x, boxes, obj_labels,
                      num_images, objs_per_image, num_obj_classes):
    del x
    N = obj_labels.shape[0]
    obj_embed = params["obj_embed1"][obj_labels]
    perm, inv_perm, _ = sort_rois(boxes, num_images, objs_per_image)
    encoder_rep = _ref_bilstm_lin(
        obj_embed[perm].reshape(objs_per_image, num_images, -1),
        params["obj_ctx_rnn"], params["lin_obj_w"], params["lin_obj_b"])
    obj_preds = obj_labels
    obj_dists = jnp.full((N, num_obj_classes), -1000.0, jnp.float32)
    obj_dists = obj_dists.at[jnp.arange(N), obj_labels].set(1000.0)
    obj_ctx = encoder_rep[inv_perm]
    obj_embed2 = params["obj_embed2"][obj_preds]
    obj_rel_rep = jnp.concatenate([obj_embed2, obj_ctx], axis=-1)
    edge_reps = _ref_bilstm_lin(
        obj_rel_rep[perm].reshape(objs_per_image, num_images, -1),
        params["edge_ctx_rnn"], params["lin_edge_w"], params["lin_edge_b"])
    edge_ctx = edge_reps[inv_perm]
    return obj_dists, obj_preds, edge_ctx, None


# ------------------------------------ main --------------------------------------

if __name__ == "__main__":
    num_images, objs_per_image = 2, 8             # 2 "proposal" lists of 8 boxes
    num_obj = num_images * objs_per_image
    in_channels = 64                               # visual feat dim (unused: predcls)
    embed_dim = 32                                 # EMBED_DIM (small demo size)
    hidden_dim = 32                                # CONTEXT_HIDDEN_DIM
    num_obj_classes = 16                           # len(obj_classes)

    key = jax.random.PRNGKey(0)
    keys = jax.random.split(key, 8)
    x = jax.random.normal(keys[0], (num_obj, in_channels), jnp.float32) * 0.5
    bx1 = jax.random.uniform(keys[1], (num_obj,), jnp.float32) * 100.0
    bw = jax.random.uniform(keys[2], (num_obj,), jnp.float32) * 50.0 + 1.0
    by1 = jax.random.uniform(keys[3], (num_obj,), jnp.float32) * 100.0
    bh = jax.random.uniform(keys[4], (num_obj,), jnp.float32) * 50.0 + 1.0
    boxes = jnp.stack([bx1, by1, bx1 + bw, by1 + bh], axis=1)   # xyxy
    obj_labels = jax.random.randint(keys[5], (num_obj,), 0, num_obj_classes)

    params = init_params(keys[6], embed_dim, hidden_dim, num_obj_classes)
    prepped = prepare_params(params)               # one-time weight re-layout

    fwd = jax.jit(lambda xx, bb, ll: lstm_context_semantic_forward(
        prepped, xx, bb, ll, num_images, objs_per_image, num_obj_classes))
    obj_dists, obj_preds, edge_ctx, _ = fwd(x, boxes, obj_labels)
    jax.block_until_ready((obj_dists, obj_preds, edge_ctx))

    # correctness check against a pure-JAX reference with the same precision policy
    r_dists, r_preds, r_edge, _ = reference_forward(
        params, x, boxes, obj_labels, num_images, objs_per_image, num_obj_classes)
    np.testing.assert_allclose(np.asarray(obj_dists), np.asarray(r_dists),
                               rtol=1e-5, atol=1e-5)
    np.testing.assert_array_equal(np.asarray(obj_preds), np.asarray(r_preds))
    np.testing.assert_allclose(np.asarray(edge_ctx), np.asarray(r_edge),
                               rtol=1e-2, atol=1e-2)

    print("KERNEL_OK")
</pallas_src>

<mosaic_0001>
module attributes {stable_mosaic.version = 11 : i64} {
  func.func @_bilstm_linear_kernel(%arg0: memref<64x32xbf16, #tpu.memory_space<vmem>>, %arg1: memref<32x512xbf16, #tpu.memory_space<vmem>>, %arg2: memref<32x512xbf16, #tpu.memory_space<vmem>>, %arg3: memref<128x512xbf16, #tpu.memory_space<vmem>>, %arg4: memref<128x512xbf16, #tpu.memory_space<vmem>>, %arg5: memref<1x512xf32, #tpu.memory_space<vmem>>, %arg6: memref<1x512xf32, #tpu.memory_space<vmem>>, %arg7: memref<256x128xbf16, #tpu.memory_space<vmem>>, %arg8: memref<1x128xf32, #tpu.memory_space<vmem>>, %arg9: memref<64x128xf32, #tpu.memory_space<vmem>>, %arg10: memref<32x512xf32, #tpu.memory_space<vmem>>, %arg11: memref<32x512xf32, #tpu.memory_space<vmem>>, %arg12: memref<64x256xf32, #tpu.memory_space<vmem>>) attributes {dimension_semantics = [], scalar_prefetch = 0 : i64, scratch_operands = 3 : i64, tpu.core_type = #tpu.core_type<tc>} {
    %cst = arith.constant 0.000000e+00 : f32
    %0 = vector.broadcast %cst : f32 to vector<8x128xf32>
    %c0_i32 = arith.constant 0 : i32
    %c2_i32 = arith.constant 2 : i32
    %1 = arith.addi %c0_i32, %c2_i32 : i32
    %c1_i32 = arith.constant 1 : i32
    %2:4 = scf.for %arg13 = %c0_i32 to %1 step %c1_i32 iter_args(%arg14 = %0, %arg15 = %0, %arg16 = %0, %arg17 = %0) -> (vector<8x128xf32>, vector<8x128xf32>, vector<8x128xf32>, vector<8x128xf32>)  : i32 {
      %c32_i32 = arith.constant 32 : i32
      %11 = arith.muli %arg13, %c32_i32 : i32
      %12 = tpu.assume_multiple %11, 32 : i32
      %c1_i32_9 = arith.constant 1 : i32
      %13 = arith.subi %c1_i32_9, %arg13 : i32
      %c32_i32_10 = arith.constant 32 : i32
      %14 = arith.muli %13, %c32_i32_10 : i32
      %15 = tpu.assume_multiple %14, 32 : i32
      %16 = arith.index_cast %12 : i32 to index
      %c0_11 = arith.constant 0 : index
      %17 = vector.load %arg0[%16, %c0_11] : memref<64x32xbf16, #tpu.memory_space<vmem>>, vector<32x32xbf16>
      %c0_12 = arith.constant 0 : index
      %c0_13 = arith.constant 0 : index
      %18 = vector.load %arg1[%c0_12, %c0_13] : memref<32x512xbf16, #tpu.memory_space<vmem>>, vector<32x512xbf16>
      %cst_14 = arith.constant dense<0.000000e+00> : vector<32x512xf32>
      %19 = tpu.matmul %17, %18, %cst_14 {dimension_numbers = #tpu.dot_dimension_numbers<[1], [0], [0], [1], [0, 0, 1, 1], [], []>} : vector<32x32xbf16>, vector<32x512xbf16>, vector<32x512xf32> -> vector<32x512xf32>
      %c0_15 = arith.constant 0 : index
      %c0_16 = arith.constant 0 : index
      %20 = vector.load %arg5[%c0_15, %c0_16] : memref<1x512xf32, #tpu.memory_space<vmem>>, vector<1x512xf32>
      %21 = vector.broadcast %20 : vector<1x512xf32> to vector<32x512xf32>
      %22 = arith.addf %19, %21 : vector<32x512xf32>
      %c0_17 = arith.constant 0 : index
      %c0_18 = arith.constant 0 : index
      %23 = vector.load %arg10[%c0_17, %c0_18] : memref<32x512xf32, #tpu.memory_space<vmem>>, vector<32x512xf32>
      tpu.vector_store %arg10[%c0_17, %c0_18], %22 {strides = array<i32>} : memref<32x512xf32, #tpu.memory_space<vmem>>, vector<32x512xf32>,
      %24 = arith.index_cast %15 : i32 to index
      %c0_19 = arith.constant 0 : index
      %25 = vector.load %arg0[%24, %c0_19] : memref<64x32xbf16, #tpu.memory_space<vmem>>, vector<32x32xbf16>
      %c0_20 = arith.constant 0 : index
      %c0_21 = arith.constant 0 : index
      %26 = vector.load %arg2[%c0_20, %c0_21] : memref<32x512xbf16, #tpu.memory_space<vmem>>, vector<32x512xbf16>
      %cst_22 = arith.constant dense<0.000000e+00> : vector<32x512xf32>
      %27 = tpu.matmul %25, %26, %cst_22 {dimension_numbers = #tpu.dot_dimension_numbers<[1], [0], [0], [1], [0, 0, 1, 1], [], []>} : vector<32x32xbf16>, vector<32x512xbf16>, vector<32x512xf32> -> vector<32x512xf32>
      %c0_23 = arith.constant 0 : index
      %c0_24 = arith.constant 0 : index
      %28 = vector.load %arg6[%c0_23, %c0_24] : memref<1x512xf32, #tpu.memory_space<vmem>>, vector<1x512xf32>
      %29 = vector.broadcast %28 : vector<1x512xf32> to vector<32x512xf32>
      %30 = arith.addf %27, %29 : vector<32x512xf32>
      %c0_25 = arith.constant 0 : index
      %c0_26 = arith.constant 0 : index
      %31 = vector.load %arg11[%c0_25, %c0_26] : memref<32x512xf32, #tpu.memory_space<vmem>>, vector<32x512xf32>
      tpu.vector_store %arg11[%c0_25, %c0_26], %30 {strides = array<i32>} : memref<32x512xf32, #tpu.memory_space<vmem>>, vector<32x512xf32>,
      %c0_27 = arith.constant 0 : index
      %c0_28 = arith.constant 0 : index
      %32 = vector.load %arg10[%c0_27, %c0_28] : memref<32x512xf32, #tpu.memory_space<vmem>>, vector<8x512xf32>
      %33 = arith.truncf %arg14 : vector<8x128xf32> to vector<8x128xbf16>
      %c0_29 = arith.constant 0 : index
      %c0_30 = arith.constant 0 : index
      %34 = vector.load %arg3[%c0_29, %c0_30] : memref<128x512xbf16, #tpu.memory_space<vmem>>, vector<128x512xbf16>
      %cst_31 = arith.constant dense<0.000000e+00> : vector<8x512xf32>
      %35 = tpu.matmul %33, %34, %cst_31 {dimension_numbers = #tpu.dot_dimension_numbers<[1], [0], [0], [1], [0, 0, 1, 1], [], []>} : vector<8x128xbf16>, vector<128x512xbf16>, vector<8x512xf32> -> vector<8x512xf32>
      %36 = arith.addf %32, %35 : vector<8x512xf32>
      %c24 = arith.constant 24 : index
      %c0_32 = arith.constant 0 : index
      %37 = vector.load %arg11[%c24, %c0_32] : memref<32x512xf32, #tpu.memory_space<vmem>>, vector<8x512xf32>
      %38 = arith.truncf %arg16 : vector<8x128xf32> to vector<8x128xbf16>
      %c0_33 = arith.constant 0 : index
      %c0_34 = arith.constant 0 : index
      %39 = vector.load %arg4[%c0_33, %c0_34] : memref<128x512xbf16, #tpu.memory_space<vmem>>, vector<128x512xbf16>
      %cst_35 = arith.constant dense<0.000000e+00> : vector<8x512xf32>
      %40 = tpu.matmul %38, %39, %cst_35 {dimension_numbers = #tpu.dot_dimension_numbers<[1], [0], [0], [1], [0, 0, 1, 1], [], []>} : vector<8x128xbf16>, vector<128x512xbf16>, vector<8x512xf32> -> vector<8x512xf32>
      %41 = arith.addf %37, %40 : vector<8x512xf32>
      %42 = vector.extract_strided_slice %36 {offsets = [0, 0], sizes = [8, 128], strides = [1, 1]} : vector<8x512xf32> to vector<8x128xf32>
      %cst_36 = arith.constant 5.000000e-01 : f32
      %43 = vector.broadcast %cst_36 : f32 to vector<8x128xf32>
      %44 = arith.mulf %43, %42 : vector<8x128xf32>
      %45 = math.tanh %44 : vector<8x128xf32>
      %cst_37 = arith.constant 5.000000e-01 : f32
      %46 = vector.broadcast %cst_37 : f32 to vector<8x128xf32>
      %47 = arith.mulf %46, %45 : vector<8x128xf32>
      %cst_38 = arith.constant 5.000000e-01 : f32
      %48 = vector.broadcast %cst_38 : f32 to vector<8x128xf32>
      %49 = arith.addf %47, %48 : vector<8x128xf32>
      %50 = vector.extract_strided_slice %36 {offsets = [0, 128], sizes = [8, 128], strides = [1, 1]} : vector<8x512xf32> to vector<8x128xf32>
      %cst_39 = arith.constant 5.000000e-01 : f32
      %51 = vector.broadcast %cst_39 : f32 to vector<8x128xf32>
      %52 = arith.mulf %51, %50 : vector<8x128xf32>
      %53 = math.tanh %52 : vector<8x128xf32>
      %cst_40 = arith.constant 5.000000e-01 : f32
      %54 = vector.broadcast %cst_40 : f32 to vector<8x128xf32>
      %55 = arith.mulf %54, %53 : vector<8x128xf32>
      %cst_41 = arith.constant 5.000000e-01 : f32
      %56 = vector.broadcast %cst_41 : f32 to vector<8x128xf32>
      %57 = arith.addf %55, %56 : vector<8x128xf32>
      %58 = vector.extract_strided_slice %36 {offsets = [0, 256], sizes = [8, 128], strides = [1, 1]} : vector<8x512xf32> to vector<8x128xf32>
      %59 = math.tanh %58 : vector<8x128xf32>
      %60 = vector.extract_strided_slice %36 {offsets = [0, 384], sizes = [8, 128], strides = [1, 1]} : vector<8x512xf32> to vector<8x128xf32>
      %cst_42 = arith.constant 5.000000e-01 : f32
      %61 = vector.broadcast %cst_42 : f32 to vector<8x128xf32>
      %62 = arith.mulf %61, %60 : vector<8x128xf32>
      %63 = math.tanh %62 : vector<8x128xf32>
      %cst_43 = arith.constant 5.000000e-01 : f32
      %64 = vector.broadcast %cst_43 : f32 to vector<8x128xf32>
      %65 = arith.mulf %64, %63 : vector<8x128xf32>
      %cst_44 = arith.constant 5.000000e-01 : f32
      %66 = vector.broadcast %cst_44 : f32 to vector<8x128xf32>
      %67 = arith.addf %65, %66 : vector<8x128xf32>
      %68 = arith.mulf %57, %arg15 : vector<8x128xf32>
      %69 = arith.mulf %49, %59 : vector<8x128xf32>
      %70 = arith.addf %68, %69 : vector<8x128xf32>
      %71 = math.tanh %70 : vector<8x128xf32>
      %72 = arith.mulf %67, %71 : vector<8x128xf32>
      %73 = vector.extract_strided_slice %41 {offsets = [0, 0], sizes = [8, 128], strides = [1, 1]} : vector<8x512xf32> to vector<8x128xf32>
      %cst_45 = arith.constant 5.000000e-01 : f32
      %74 = vector.broadcast %cst_45 : f32 to vector<8x128xf32>
      %75 = arith.mulf %74, %73 : vector<8x128xf32>
      %76 = math.tanh %75 : vector<8x128xf32>
      %cst_46 = arith.constant 5.000000e-01 : f32
      %77 = vector.broadcast %cst_46 : f32 to vector<8x128xf32>
      %78 = arith.mulf %77, %76 : vector<8x128xf32>
      %cst_47 = arith.constant 5.000000e-01 : f32
      %79 = vector.broadcast %cst_47 : f32 to vector<8x128xf32>
      %80 = arith.addf %78, %79 : vector<8x128xf32>
      %81 = vector.extract_strided_slice %41 {offsets = [0, 128], sizes = [8, 128], strides = [1, 1]} : vector<8x512xf32> to vector<8x128xf32>
      %cst_48 = arith.constant 5.000000e-01 : f32
      %82 = vector.broadcast %cst_48 : f32 to vector<8x128xf32>
      %83 = arith.mulf %82, %81 : vector<8x128xf32>
      %84 = math.tanh %83 : vector<8x128xf32>
      %cst_49 = arith.constant 5.000000e-01 : f32
      %85 = vector.broadcast %cst_49 : f32 to vector<8x128xf32>
      %86 = arith.mulf %85, %84 : vector<8x128xf32>
      %cst_50 = arith.constant 5.000000e-01 : f32
      %87 = vector.broadcast %cst_50 : f32 to vector<8x128xf32>
      %88 = arith.addf %86, %87 : vector<8x128xf32>
      %89 = vector.extract_strided_slice %41 {offsets = [0, 256], sizes = [8, 128], strides = [1, 1]} : vector<8x512xf32> to vector<8x128xf32>
      %90 = math.tanh %89 : vector<8x128xf32>
      %91 = vector.extract_strided_slice %41 {offsets = [0, 384], sizes = [8, 128], strides = [1, 1]} : vector<8x512xf32> to vector<8x128xf32>
      %cst_51 = arith.constant 5.000000e-01 : f32
      %92 = vector.broadcast %cst_51 : f32 to vector<8x128xf32>
      %93 = arith.mulf %92, %91 : vector<8x128xf32>
      %94 = math.tanh %93 : vector<8x128xf32>
      %cst_52 = arith.constant 5.000000e-01 : f32
      %95 = vector.broadcast %cst_52 : f32 to vector<8x128xf32>
      %96 = arith.mulf %95, %94 : vector<8x128xf32>
      %cst_53 = arith.constant 5.000000e-01 : f32
      %97 = vector.broadcast %cst_53 : f32 to vector<8x128xf32>
      %98 = arith.addf %96, %97 : vector<8x128xf32>
      %99 = arith.mulf %88, %arg17 : vector<8x128xf32>
      %100 = arith.mulf %80, %90 : vector<8x128xf32>
      %101 = arith.addf %99, %100 : vector<8x128xf32>
      %102 = math.tanh %101 : vector<8x128xf32>
      %103 = arith.mulf %98, %102 : vector<8x128xf32>
      %c0_i32_54 = arith.constant 0 : i32
      %104 = arith.addi %12, %c0_i32_54 : i32
      %105 = tpu.assume_multiple %104, 8 : i32
      %106 = arith.index_cast %105 : i32 to index
      %c0_55 = arith.constant 0 : index
      %107 = vector.load %arg12[%106, %c0_55] : memref<64x256xf32, #tpu.memory_space<vmem>>, vector<8x128xf32>
      tpu.vector_store %arg12[%106, %c0_55], %72 {strides = array<i32>} : memref<64x256xf32, #tpu.memory_space<vmem>>, vector<8x128xf32>,
      %c24_i32 = arith.constant 24 : i32
      %108 = arith.addi %15, %c24_i32 : i32
      %109 = tpu.assume_multiple %108, 8 : i32
      %110 = arith.index_cast %109 : i32 to index
      %c128 = arith.constant 128 : index
      %111 = vector.load %arg12[%110, %c128] : memref<64x256xf32, #tpu.memory_space<vmem>>, vector<8x128xf32>
      tpu.vector_store %arg12[%110, %c128], %103 {strides = array<i32>} : memref<64x256xf32, #tpu.memory_space<vmem>>, vector<8x128xf32>,
      %c8 = arith.constant 8 : index
      %c0_56 = arith.constant 0 : index
      %112 = vector.load %arg10[%c8, %c0_56] : memref<32x512xf32, #tpu.memory_space<vmem>>, vector<8x512xf32>
      %113 = arith.truncf %72 : vector<8x128xf32> to vector<8x128xbf16>
      %c0_57 = arith.constant 0 : index
      %c0_58 = arith.constant 0 : index
      %114 = vector.load %arg3[%c0_57, %c0_58] : memref<128x512xbf16, #tpu.memory_space<vmem>>, vector<128x512xbf16>
      %cst_59 = arith.constant dense<0.000000e+00> : vector<8x512xf32>
      %115 = tpu.matmul %113, %114, %cst_59 {dimension_numbers = #tpu.dot_dimension_numbers<[1], [0], [0], [1], [0, 0, 1, 1], [], []>} : vector<8x128xbf16>, vector<128x512xbf16>, vector<8x512xf32> -> vector<8x512xf32>
      %116 = arith.addf %112, %115 : vector<8x512xf32>
      %c16 = arith.constant 16 : index
      %c0_60 = arith.constant 0 : index
      %117 = vector.load %arg11[%c16, %c0_60] : memref<32x512xf32, #tpu.memory_space<vmem>>, vector<8x512xf32>
      %118 = arith.truncf %103 : vector<8x128xf32> to vector<8x128xbf16>
      %c0_61 = arith.constant 0 : index
      %c0_62 = arith.constant 0 : index
      %119 = vector.load %arg4[%c0_61, %c0_62] : memref<128x512xbf16, #tpu.memory_space<vmem>>, vector<128x512xbf16>
      %cst_63 = arith.constant dense<0.000000e+00> : vector<8x512xf32>
      %120 = tpu.matmul %118, %119, %cst_63 {dimension_numbers = #tpu.dot_dimension_numbers<[1], [0], [0], [1], [0, 0, 1, 1], [], []>} : vector<8x128xbf16>, vector<128x512xbf16>, vector<8x512xf32> -> vector<8x512xf32>
      %121 = arith.addf %117, %120 : vector<8x512xf32>
      %122 = vector.extract_strided_slice %116 {offsets = [0, 0], sizes = [8, 128], strides = [1, 1]} : vector<8x512xf32> to vector<8x128xf32>
      %cst_64 = arith.constant 5.000000e-01 : f32
      %123 = vector.broadcast %cst_64 : f32 to vector<8x128xf32>
      %124 = arith.mulf %123, %122 : vector<8x128xf32>
      %125 = math.tanh %124 : vector<8x128xf32>
      %cst_65 = arith.constant 5.000000e-01 : f32
      %126 = vector.broadcast %cst_65 : f32 to vector<8x128xf32>
      %127 = arith.mulf %126, %125 : vector<8x128xf32>
      %cst_66 = arith.constant 5.000000e-01 : f32
      %128 = vector.broadcast %cst_66 : f32 to vector<8x128xf32>
      %129 = arith.addf %127, %128 : vector<8x128xf32>
      %130 = vector.extract_strided_slice %116 {offsets = [0, 128], sizes = [8, 128], strides = [1, 1]} : vector<8x512xf32> to vector<8x128xf32>
      %cst_67 = arith.constant 5.000000e-01 : f32
      %131 = vector.broadcast %cst_67 : f32 to vector<8x128xf32>
      %132 = arith.mulf %131, %130 : vector<8x128xf32>
      %133 = math.tanh %132 : vector<8x128xf32>
      %cst_68 = arith.constant 5.000000e-01 : f32
      %134 = vector.broadcast %cst_68 : f32 to vector<8x128xf32>
      %135 = arith.mulf %134, %133 : vector<8x128xf32>
      %cst_69 = arith.constant 5.000000e-01 : f32
      %136 = vector.broadcast %cst_69 : f32 to vector<8x128xf32>
      %137 = arith.addf %135, %136 : vector<8x128xf32>
      %138 = vector.extract_strided_slice %116 {offsets = [0, 256], sizes = [8, 128], strides = [1, 1]} : vector<8x512xf32> to vector<8x128xf32>
      %139 = math.tanh %138 : vector<8x128xf32>
      %140 = vector.extract_strided_slice %116 {offsets = [0, 384], sizes = [8, 128], strides = [1, 1]} : vector<8x512xf32> to vector<8x128xf32>
      %cst_70 = arith.constant 5.000000e-01 : f32
      %141 = vector.broadcast %cst_70 : f32 to vector<8x128xf32>
      %142 = arith.mulf %141, %140 : vector<8x128xf32>
      %143 = math.tanh %142 : vector<8x128xf32>
      %cst_71 = arith.constant 5.000000e-01 : f32
      %144 = vector.broadcast %cst_71 : f32 to vector<8x128xf32>
      %145 = arith.mulf %144, %143 : vector<8x128xf32>
      %cst_72 = arith.constant 5.000000e-01 : f32
      %146 = vector.broadcast %cst_72 : f32 to vector<8x128xf32>
      %147 = arith.addf %145, %146 : vector<8x128xf32>
      %148 = arith.mulf %137, %70 : vector<8x128xf32>
      %149 = arith.mulf %129, %139 : vector<8x128xf32>
      %150 = arith.addf %148, %149 : vector<8x128xf32>
      %151 = math.tanh %150 : vector<8x128xf32>
      %152 = arith.mulf %147, %151 : vector<8x128xf32>
      %153 = vector.extract_strided_slice %121 {offsets = [0, 0], sizes = [8, 128], strides = [1, 1]} : vector<8x512xf32> to vector<8x128xf32>
      %cst_73 = arith.constant 5.000000e-01 : f32
      %154 = vector.broadcast %cst_73 : f32 to vector<8x128xf32>
      %155 = arith.mulf %154, %153 : vector<8x128xf32>
      %156 = math.tanh %155 : vector<8x128xf32>
      %cst_74 = arith.constant 5.000000e-01 : f32
      %157 = vector.broadcast %cst_74 : f32 to vector<8x128xf32>
      %158 = arith.mulf %157, %156 : vector<8x128xf32>
      %cst_75 = arith.constant 5.000000e-01 : f32
      %159 = vector.broadcast %cst_75 : f32 to vector<8x128xf32>
      %160 = arith.addf %158, %159 : vector<8x128xf32>
      %161 = vector.extract_strided_slice %121 {offsets = [0, 128], sizes = [8, 128], strides = [1, 1]} : vector<8x512xf32> to vector<8x128xf32>
      %cst_76 = arith.constant 5.000000e-01 : f32
      %162 = vector.broadcast %cst_76 : f32 to vector<8x128xf32>
      %163 = arith.mulf %162, %161 : vector<8x128xf32>
      %164 = math.tanh %163 : vector<8x128xf32>
      %cst_77 = arith.constant 5.000000e-01 : f32
      %165 = vector.broadcast %cst_77 : f32 to vector<8x128xf32>
      %166 = arith.mulf %165, %164 : vector<8x128xf32>
      %cst_78 = arith.constant 5.000000e-01 : f32
      %167 = vector.broadcast %cst_78 : f32 to vector<8x128xf32>
      %168 = arith.addf %166, %167 : vector<8x128xf32>
      %169 = vector.extract_strided_slice %121 {offsets = [0, 256], sizes = [8, 128], strides = [1, 1]} : vector<8x512xf32> to vector<8x128xf32>
      %170 = math.tanh %169 : vector<8x128xf32>
      %171 = vector.extract_strided_slice %121 {offsets = [0, 384], sizes = [8, 128], strides = [1, 1]} : vector<8x512xf32> to vector<8x128xf32>
      %cst_79 = arith.constant 5.000000e-01 : f32
      %172 = vector.broadcast %cst_79 : f32 to vector<8x128xf32>
      %173 = arith.mulf %172, %171 : vector<8x128xf32>
      %174 = math.tanh %173 : vector<8x128xf32>
      %cst_80 = arith.constant 5.000000e-01 : f32
      %175 = vector.broadcast %cst_80 : f32 to vector<8x128xf32>
      %176 = arith.mulf %175, %174 : vector<8x128xf32>
      %cst_81 = arith.constant 5.000000e-01 : f32
      %177 = vector.broadcast %cst_81 : f32 to vector<8x128xf32>
      %178 = arith.addf %176, %177 : vector<8x128xf32>
      %179 = arith.mulf %168, %101 : vector<8x128xf32>
      %180 = arith.mulf %160, %170 : vector<8x128xf32>
      %181 = arith.addf %179, %180 : vector<8x128xf32>
      %182 = math.tanh %181 : vector<8x128xf32>
      %183 = arith.mulf %178, %182 : vector<8x128xf32>
      %c8_i32 = arith.constant 8 : i32
      %184 = arith.addi %12, %c8_i32 : i32
      %185 = tpu.assume_multiple %184, 8 : i32
      %186 = arith.index_cast %185 : i32 to index
      %c0_82 = arith.constant 0 : index
      %187 = vector.load %arg12[%186, %c0_82] : memref<64x256xf32, #tpu.memory_space<vmem>>, vector<8x128xf32>
      tpu.vector_store %arg12[%186, %c0_82], %152 {strides = array<i32>} : memref<64x256xf32, #tpu.memory_space<vmem>>, vector<8x128xf32>,
      %c16_i32 = arith.constant 16 : i32
      %188 = arith.addi %15, %c16_i32 : i32
      %189 = tpu.assume_multiple %188, 8 : i32
      %190 = arith.index_cast %189 : i32 to index
      %c128_83 = arith.constant 128 : index
      %191 = vector.load %arg12[%190, %c128_83] : memref<64x256xf32, #tpu.memory_space<vmem>>, vector<8x128xf32>
      tpu.vector_store %arg12[%190, %c128_83], %183 {strides = array<i32>} : memref<64x256xf32, #tpu.memory_space<vmem>>, vector<8x128xf32>,
      %c16_84 = arith.constant 16 : index
      %c0_85 = arith.constant 0 : index
      %192 = vector.load %arg10[%c16_84, %c0_85] : memref<32x512xf32, #tpu.memory_space<vmem>>, vector<8x512xf32>
      %193 = arith.truncf %152 : vector<8x128xf32> to vector<8x128xbf16>
      %c0_86 = arith.constant 0 : index
      %c0_87 = arith.constant 0 : index
      %194 = vector.load %arg3[%c0_86, %c0_87] : memref<128x512xbf16, #tpu.memory_space<vmem>>, vector<128x512xbf16>
      %cst_88 = arith.constant dense<0.000000e+00> : vector<8x512xf32>
      %195 = tpu.matmul %193, %194, %cst_88 {dimension_numbers = #tpu.dot_dimension_numbers<[1], [0], [0], [1], [0, 0, 1, 1], [], []>} : vector<8x128xbf16>, vector<128x512xbf16>, vector<8x512xf32> -> vector<8x512xf32>
      %196 = arith.addf %192, %195 : vector<8x512xf32>
      %c8_89 = arith.constant 8 : index
      %c0_90 = arith.constant 0 : index
      %197 = vector.load %arg11[%c8_89, %c0_90] : memref<32x512xf32, #tpu.memory_space<vmem>>, vector<8x512xf32>
      %198 = arith.truncf %183 : vector<8x128xf32> to vector<8x128xbf16>
      %c0_91 = arith.constant 0 : index
      %c0_92 = arith.constant 0 : index
      %199 = vector.load %arg4[%c0_91, %c0_92] : memref<128x512xbf16, #tpu.memory_space<vmem>>, vector<128x512xbf16>
      %cst_93 = arith.constant dense<0.000000e+00> : vector<8x512xf32>
      %200 = tpu.matmul %198, %199, %cst_93 {dimension_numbers = #tpu.dot_dimension_numbers<[1], [0], [0], [1], [0, 0, 1, 1], [], []>} : vector<8x128xbf16>, vector<128x512xbf16>, vector<8x512xf32> -> vector<8x512xf32>
      %201 = arith.addf %197, %200 : vector<8x512xf32>
      %202 = vector.extract_strided_slice %196 {offsets = [0, 0], sizes = [8, 128], strides = [1, 1]} : vector<8x512xf32> to vector<8x128xf32>
      %cst_94 = arith.constant 5.000000e-01 : f32
      %203 = vector.broadcast %cst_94 : f32 to vector<8x128xf32>
      %204 = arith.mulf %203, %202 : vector<8x128xf32>
      %205 = math.tanh %204 : vector<8x128xf32>
      %cst_95 = arith.constant 5.000000e-01 : f32
      %206 = vector.broadcast %cst_95 : f32 to vector<8x128xf32>
      %207 = arith.mulf %206, %205 : vector<8x128xf32>
      %cst_96 = arith.constant 5.000000e-01 : f32
      %208 = vector.broadcast %cst_96 : f32 to vector<8x128xf32>
      %209 = arith.addf %207, %208 : vector<8x128xf32>
      %210 = vector.extract_strided_slice %196 {offsets = [0, 128], sizes = [8, 128], strides = [1, 1]} : vector<8x512xf32> to vector<8x128xf32>
      %cst_97 = arith.constant 5.000000e-01 : f32
      %211 = vector.broadcast %cst_97 : f32 to vector<8x128xf32>
      %212 = arith.mulf %211, %210 : vector<8x128xf32>
      %213 = math.tanh %212 : vector<8x128xf32>
      %cst_98 = arith.constant 5.000000e-01 : f32
      %214 = vector.broadcast %cst_98 : f32 to vector<8x128xf32>
      %215 = arith.mulf %214, %213 : vector<8x128xf32>
      %cst_99 = arith.constant 5.000000e-01 : f32
      %216 = vector.broadcast %cst_99 : f32 to vector<8x128xf32>
      %217 = arith.addf %215, %216 : vector<8x128xf32>
      %218 = vector.extract_strided_slice %196 {offsets = [0, 256], sizes = [8, 128], strides = [1, 1]} : vector<8x512xf32> to vector<8x128xf32>
      %219 = math.tanh %218 : vector<8x128xf32>
      %220 = vector.extract_strided_slice %196 {offsets = [0, 384], sizes = [8, 128], strides = [1, 1]} : vector<8x512xf32> to vector<8x128xf32>
      %cst_100 = arith.constant 5.000000e-01 : f32
      %221 = vector.broadcast %cst_100 : f32 to vector<8x128xf32>
      %222 = arith.mulf %221, %220 : vector<8x128xf32>
      %223 = math.tanh %222 : vector<8x128xf32>
      %cst_101 = arith.constant 5.000000e-01 : f32
      %224 = vector.broadcast %cst_101 : f32 to vector<8x128xf32>
      %225 = arith.mulf %224, %223 : vector<8x128xf32>
      %cst_102 = arith.constant 5.000000e-01 : f32
      %226 = vector.broadcast %cst_102 : f32 to vector<8x128xf32>
      %227 = arith.addf %225, %226 : vector<8x128xf32>
      %228 = arith.mulf %217, %150 : vector<8x128xf32>
      %229 = arith.mulf %209, %219 : vector<8x128xf32>
      %230 = arith.addf %228, %229 : vector<8x128xf32>
      %231 = math.tanh %230 : vector<8x128xf32>
      %232 = arith.mulf %227, %231 : vector<8x128xf32>
      %233 = vector.extract_strided_slice %201 {offsets = [0, 0], sizes = [8, 128], strides = [1, 1]} : vector<8x512xf32> to vector<8x128xf32>
      %cst_103 = arith.constant 5.000000e-01 : f32
      %234 = vector.broadcast %cst_103 : f32 to vector<8x128xf32>
      %235 = arith.mulf %234, %233 : vector<8x128xf32>
      %236 = math.tanh %235 : vector<8x128xf32>
      %cst_104 = arith.constant 5.000000e-01 : f32
      %237 = vector.broadcast %cst_104 : f32 to vector<8x128xf32>
      %238 = arith.mulf %237, %236 : vector<8x128xf32>
      %cst_105 = arith.constant 5.000000e-01 : f32
      %239 = vector.broadcast %cst_105 : f32 to vector<8x128xf32>
      %240 = arith.addf %238, %239 : vector<8x128xf32>
      %241 = vector.extract_strided_slice %201 {offsets = [0, 128], sizes = [8, 128], strides = [1, 1]} : vector<8x512xf32> to vector<8x128xf32>
      %cst_106 = arith.constant 5.000000e-01 : f32
      %242 = vector.broadcast %cst_106 : f32 to vector<8x128xf32>
      %243 = arith.mulf %242, %241 : vector<8x128xf32>
      %244 = math.tanh %243 : vector<8x128xf32>
      %cst_107 = arith.constant 5.000000e-01 : f32
      %245 = vector.broadcast %cst_107 : f32 to vector<8x128xf32>
      %246 = arith.mulf %245, %244 : vector<8x128xf32>
      %cst_108 = arith.constant 5.000000e-01 : f32
      %247 = vector.broadcast %cst_108 : f32 to vector<8x128xf32>
      %248 = arith.addf %246, %247 : vector<8x128xf32>
      %249 = vector.extract_strided_slice %201 {offsets = [0, 256], sizes = [8, 128], strides = [1, 1]} : vector<8x512xf32> to vector<8x128xf32>
      %250 = math.tanh %249 : vector<8x128xf32>
      %251 = vector.extract_strided_slice %201 {offsets = [0, 384], sizes = [8, 128], strides = [1, 1]} : vector<8x512xf32> to vector<8x128xf32>
      %cst_109 = arith.constant 5.000000e-01 : f32
      %252 = vector.broadcast %cst_109 : f32 to vector<8x128xf32>
      %253 = arith.mulf %252, %251 : vector<8x128xf32>
      %254 = math.tanh %253 : vector<8x128xf32>
      %cst_110 = arith.constant 5.000000e-01 : f32
      %255 = vector.broadcast %cst_110 : f32 to vector<8x128xf32>
      %256 = arith.mulf %255, %254 : vector<8x128xf32>
      %cst_111 = arith.constant 5.000000e-01 : f32
      %257 = vector.broadcast %cst_111 : f32 to vector<8x128xf32>
      %258 = arith.addf %256, %257 : vector<8x128xf32>
      %259 = arith.mulf %248, %181 : vector<8x128xf32>
      %260 = arith.mulf %240, %250 : vector<8x128xf32>
      %261 = arith.addf %259, %260 : vector<8x128xf32>
      %262 = math.tanh %261 : vector<8x128xf32>
      %263 = arith.mulf %258, %262 : vector<8x128xf32>
      %c16_i32_112 = arith.constant 16 : i32
      %264 = arith.addi %12, %c16_i32_112 : i32
      %265 = tpu.assume_multiple %264, 8 : i32
      %266 = arith.index_cast %265 : i32 to index
      %c0_113 = arith.constant 0 : index
      %267 = vector.load %arg12[%266, %c0_113] : memref<64x256xf32, #tpu.memory_space<vmem>>, vector<8x128xf32>
      tpu.vector_store %arg12[%266, %c0_113], %232 {strides = array<i32>} : memref<64x256xf32, #tpu.memory_space<vmem>>, vector<8x128xf32>,
      %c8_i32_114 = arith.constant 8 : i32
      %268 = arith.addi %15, %c8_i32_114 : i32
      %269 = tpu.assume_multiple %268, 8 : i32
      %270 = arith.index_cast %269 : i32 to index
      %c128_115 = arith.constant 128 : index
      %271 = vector.load %arg12[%270, %c128_115] : memref<64x256xf32, #tpu.memory_space<vmem>>, vector<8x128xf32>
      tpu.vector_store %arg12[%270, %c128_115], %263 {strides = array<i32>} : memref<64x256xf32, #tpu.memory_space<vmem>>, vector<8x128xf32>,
      %c24_116 = arith.constant 24 : index
      %c0_117 = arith.constant 0 : index
      %272 = vector.load %arg10[%c24_116, %c0_117] : memref<32x512xf32, #tpu.memory_space<vmem>>, vector<8x512xf32>
      %273 = arith.truncf %232 : vector<8x128xf32> to vector<8x128xbf16>
      %c0_118 = arith.constant 0 : index
      %c0_119 = arith.constant 0 : index
      %274 = vector.load %arg3[%c0_118, %c0_119] : memref<128x512xbf16, #tpu.memory_space<vmem>>, vector<128x512xbf16>
      %cst_120 = arith.constant dense<0.000000e+00> : vector<8x512xf32>
      %275 = tpu.matmul %273, %274, %cst_120 {dimension_numbers = #tpu.dot_dimension_numbers<[1], [0], [0], [1], [0, 0, 1, 1], [], []>} : vector<8x128xbf16>, vector<128x512xbf16>, vector<8x512xf32> -> vector<8x512xf32>
      %276 = arith.addf %272, %275 : vector<8x512xf32>
      %c0_121 = arith.constant 0 : index
      %c0_122 = arith.constant 0 : index
      %277 = vector.load %arg11[%c0_121, %c0_122] : memref<32x512xf32, #tpu.memory_space<vmem>>, vector<8x512xf32>
      %278 = arith.truncf %263 : vector<8x128xf32> to vector<8x128xbf16>
      %c0_123 = arith.constant 0 : index
      %c0_124 = arith.constant 0 : index
      %279 = vector.load %arg4[%c0_123, %c0_124] : memref<128x512xbf16, #tpu.memory_space<vmem>>, vector<128x512xbf16>
      %cst_125 = arith.constant dense<0.000000e+00> : vector<8x512xf32>
      %280 = tpu.matmul %278, %279, %cst_125 {dimension_numbers = #tpu.dot_dimension_numbers<[1], [0], [0], [1], [0, 0, 1, 1], [], []>} : vector<8x128xbf16>, vector<128x512xbf16>, vector<8x512xf32> -> vector<8x512xf32>
      %281 = arith.addf %277, %280 : vector<8x512xf32>
      %282 = vector.extract_strided_slice %276 {offsets = [0, 0], sizes = [8, 128], strides = [1, 1]} : vector<8x512xf32> to vector<8x128xf32>
      %cst_126 = arith.constant 5.000000e-01 : f32
      %283 = vector.broadcast %cst_126 : f32 to vector<8x128xf32>
      %284 = arith.mulf %283, %282 : vector<8x128xf32>
      %285 = math.tanh %284 : vector<8x128xf32>
      %cst_127 = arith.constant 5.000000e-01 : f32
      %286 = vector.broadcast %cst_127 : f32 to vector<8x128xf32>
      %287 = arith.mulf %286, %285 : vector<8x128xf32>
      %cst_128 = arith.constant 5.000000e-01 : f32
      %288 = vector.broadcast %cst_128 : f32 to vector<8x128xf32>
      %289 = arith.addf %287, %288 : vector<8x128xf32>
      %290 = vector.extract_strided_slice %276 {offsets = [0, 128], sizes = [8, 128], strides = [1, 1]} : vector<8x512xf32> to vector<8x128xf32>
      %cst_129 = arith.constant 5.000000e-01 : f32
      %291 = vector.broadcast %cst_129 : f32 to vector<8x128xf32>
      %292 = arith.mulf %291, %290 : vector<8x128xf32>
      %293 = math.tanh %292 : vector<8x128xf32>
      %cst_130 = arith.constant 5.000000e-01 : f32
      %294 = vector.broadcast %cst_130 : f32 to vector<8x128xf32>
      %295 = arith.mulf %294, %293 : vector<8x128xf32>
      %cst_131 = arith.constant 5.000000e-01 : f32
      %296 = vector.broadcast %cst_131 : f32 to vector<8x128xf32>
      %297 = arith.addf %295, %296 : vector<8x128xf32>
      %298 = vector.extract_strided_slice %276 {offsets = [0, 256], sizes = [8, 128], strides = [1, 1]} : vector<8x512xf32> to vector<8x128xf32>
      %299 = math.tanh %298 : vector<8x128xf32>
      %300 = vector.extract_strided_slice %276 {offsets = [0, 384], sizes = [8, 128], strides = [1, 1]} : vector<8x512xf32> to vector<8x128xf32>
      %cst_132 = arith.constant 5.000000e-01 : f32
      %301 = vector.broadcast %cst_132 : f32 to vector<8x128xf32>
      %302 = arith.mulf %301, %300 : vector<8x128xf32>
      %303 = math.tanh %302 : vector<8x128xf32>
      %cst_133 = arith.constant 5.000000e-01 : f32
      %304 = vector.broadcast %cst_133 : f32 to vector<8x128xf32>
      %305 = arith.mulf %304, %303 : vector<8x128xf32>
      %cst_134 = arith.constant 5.000000e-01 : f32
      %306 = vector.broadcast %cst_134 : f32 to vector<8x128xf32>
      %307 = arith.addf %305, %306 : vector<8x128xf32>
      %308 = arith.mulf %297, %230 : vector<8x128xf32>
      %309 = arith.mulf %289, %299 : vector<8x128xf32>
      %310 = arith.addf %308, %309 : vector<8x128xf32>
      %311 = math.tanh %310 : vector<8x128xf32>
      %312 = arith.mulf %307, %311 : vector<8x128xf32>
      %313 = vector.extract_strided_slice %281 {offsets = [0, 0], sizes = [8, 128], strides = [1, 1]} : vector<8x512xf32> to vector<8x128xf32>
      %cst_135 = arith.constant 5.000000e-01 : f32
      %314 = vector.broadcast %cst_135 : f32 to vector<8x128xf32>
      %315 = arith.mulf %314, %313 : vector<8x128xf32>
      %316 = math.tanh %315 : vector<8x128xf32>
      %cst_136 = arith.constant 5.000000e-01 : f32
      %317 = vector.broadcast %cst_136 : f32 to vector<8x128xf32>
      %318 = arith.mulf %317, %316 : vector<8x128xf32>
      %cst_137 = arith.constant 5.000000e-01 : f32
      %319 = vector.broadcast %cst_137 : f32 to vector<8x128xf32>
      %320 = arith.addf %318, %319 : vector<8x128xf32>
      %321 = vector.extract_strided_slice %281 {offsets = [0, 128], sizes = [8, 128], strides = [1, 1]} : vector<8x512xf32> to vector<8x128xf32>
      %cst_138 = arith.constant 5.000000e-01 : f32
      %322 = vector.broadcast %cst_138 : f32 to vector<8x128xf32>
      %323 = arith.mulf %322, %321 : vector<8x128xf32>
      %324 = math.tanh %323 : vector<8x128xf32>
      %cst_139 = arith.constant 5.000000e-01 : f32
      %325 = vector.broadcast %cst_139 : f32 to vector<8x128xf32>
      %326 = arith.mulf %325, %324 : vector<8x128xf32>
      %cst_140 = arith.constant 5.000000e-01 : f32
      %327 = vector.broadcast %cst_140 : f32 to vector<8x128xf32>
      %328 = arith.addf %326, %327 : vector<8x128xf32>
      %329 = vector.extract_strided_slice %281 {offsets = [0, 256], sizes = [8, 128], strides = [1, 1]} : vector<8x512xf32> to vector<8x128xf32>
      %330 = math.tanh %329 : vector<8x128xf32>
      %331 = vector.extract_strided_slice %281 {offsets = [0, 384], sizes = [8, 128], strides = [1, 1]} : vector<8x512xf32> to vector<8x128xf32>
      %cst_141 = arith.constant 5.000000e-01 : f32
      %332 = vector.broadcast %cst_141 : f32 to vector<8x128xf32>
      %333 = arith.mulf %332, %331 : vector<8x128xf32>
      %334 = math.tanh %333 : vector<8x128xf32>
      %cst_142 = arith.constant 5.000000e-01 : f32
      %335 = vector.broadcast %cst_142 : f32 to vector<8x128xf32>
      %336 = arith.mulf %335, %334 : vector<8x128xf32>
      %cst_143 = arith.constant 5.000000e-01 : f32
      %337 = vector.broadcast %cst_143 : f32 to vector<8x128xf32>
      %338 = arith.addf %336, %337 : vector<8x128xf32>
      %339 = arith.mulf %328, %261 : vector<8x128xf32>
      %340 = arith.mulf %320, %330 : vector<8x128xf32>
      %341 = arith.addf %339, %340 : vector<8x128xf32>
      %342 = math.tanh %341 : vector<8x128xf32>
      %343 = arith.mulf %338, %342 : vector<8x128xf32>
      %c24_i32_144 = arith.constant 24 : i32
      %344 = arith.addi %12, %c24_i32_144 : i32
      %345 = tpu.assume_multiple %344, 8 : i32
      %346 = arith.index_cast %345 : i32 to index
      %c0_145 = arith.constant 0 : index
      %347 = vector.load %arg12[%346, %c0_145] : memref<64x256xf32, #tpu.memory_space<vmem>>, vector<8x128xf32>
      tpu.vector_store %arg12[%346, %c0_145], %312 {strides = array<i32>} : memref<64x256xf32, #tpu.memory_space<vmem>>, vector<8x128xf32>,
      %c0_i32_146 = arith.constant 0 : i32
      %348 = arith.addi %15, %c0_i32_146 : i32
      %349 = tpu.assume_multiple %348, 8 : i32
      %350 = arith.index_cast %349 : i32 to index
      %c128_147 = arith.constant 128 : index
      %351 = vector.load %arg12[%350, %c128_147] : memref<64x256xf32, #tpu.memory_space<vmem>>, vector<8x128xf32>
      tpu.vector_store %arg12[%350, %c128_147], %343 {strides = array<i32>} : memref<64x256xf32, #tpu.memory_space<vmem>>, vector<8x128xf32>,
      scf.yield %312, %310, %343, %341 : vector<8x128xf32>, vector<8x128xf32>, vector<8x128xf32>, vector<8x128xf32>
    }
    %c2_i32_0 = arith.constant 2 : i32
    %c0 = arith.constant 0 : index
    %c0_1 = arith.constant 0 : index
    %3 = vector.load %arg12[%c0, %c0_1] : memref<64x256xf32, #tpu.memory_space<vmem>>, vector<64x256xf32>
    %4 = arith.truncf %3 : vector<64x256xf32> to vector<64x256xbf16>
    %c0_2 = arith.constant 0 : index
    %c0_3 = arith.constant 0 : index
    %5 = vector.load %arg7[%c0_2, %c0_3] : memref<256x128xbf16, #tpu.memory_space<vmem>>, vector<256x128xbf16>
    %cst_4 = arith.constant dense<0.000000e+00> : vector<64x128xf32>
    %6 = tpu.matmul %4, %5, %cst_4 {dimension_numbers = #tpu.dot_dimension_numbers<[1], [0], [0], [1], [0, 0, 1, 1], [], []>} : vector<64x256xbf16>, vector<256x128xbf16>, vector<64x128xf32> -> vector<64x128xf32>
    %c0_5 = arith.constant 0 : index
    %c0_6 = arith.constant 0 : index
    %7 = vector.load %arg8[%c0_5, %c0_6] : memref<1x128xf32, #tpu.memory_space<vmem>>, vector<1x128xf32>
    %8 = vector.broadcast %7 : vector<1x128xf32> to vector<64x128xf32>
    %9 = arith.addf %6, %8 : vector<64x128xf32>
    %c0_7 = arith.constant 0 : index
    %c0_8 = arith.constant 0 : index
    %10 = vector.load %arg9[%c0_7, %c0_8] : memref<64x128xf32, #tpu.memory_space<vmem>>, vector<64x128xf32>
    tpu.vector_store %arg9[%c0_7, %c0_8], %9 {strides = array<i32>} : memref<64x128xf32, #tpu.memory_space<vmem>>, vector<64x128xf32>,
    return
  }
}

module attributes {stable_mosaic.version = 11 : i64} {
  func.func @_bilstm_linear_kernel(%arg0: memref<64x64xbf16, #tpu.memory_space<vmem>>, %arg1: memref<64x512xbf16, #tpu.memory_space<vmem>>, %arg2: memref<64x512xbf16, #tpu.memory_space<vmem>>, %arg3: memref<128x512xbf16, #tpu.memory_space<vmem>>, %arg4: memref<128x512xbf16, #tpu.memory_space<vmem>>, %arg5: memref<1x512xf32, #tpu.memory_space<vmem>>, %arg6: memref<1x512xf32, #tpu.memory_space<vmem>>, %arg7: memref<256x128xbf16, #tpu.memory_space<vmem>>, %arg8: memref<1x128xf32, #tpu.memory_space<vmem>>, %arg9: memref<64x128xf32, #tpu.memory_space<vmem>>, %arg10: memref<32x512xf32, #tpu.memory_space<vmem>>, %arg11: memref<32x512xf32, #tpu.memory_space<vmem>>, %arg12: memref<64x256xf32, #tpu.memory_space<vmem>>) attributes {dimension_semantics = [], scalar_prefetch = 0 : i64, scratch_operands = 3 : i64, tpu.core_type = #tpu.core_type<tc>} {
    %cst = arith.constant 0.000000e+00 : f32
    %0 = vector.broadcast %cst : f32 to vector<8x128xf32>
    %c0_i32 = arith.constant 0 : i32
    %c2_i32 = arith.constant 2 : i32
    %1 = arith.addi %c0_i32, %c2_i32 : i32
    %c1_i32 = arith.constant 1 : i32
    %2:4 = scf.for %arg13 = %c0_i32 to %1 step %c1_i32 iter_args(%arg14 = %0, %arg15 = %0, %arg16 = %0, %arg17 = %0) -> (vector<8x128xf32>, vector<8x128xf32>, vector<8x128xf32>, vector<8x128xf32>)  : i32 {
      %c32_i32 = arith.constant 32 : i32
      %11 = arith.muli %arg13, %c32_i32 : i32
      %12 = tpu.assume_multiple %11, 32 : i32
      %c1_i32_9 = arith.constant 1 : i32
      %13 = arith.subi %c1_i32_9, %arg13 : i32
      %c32_i32_10 = arith.constant 32 : i32
      %14 = arith.muli %13, %c32_i32_10 : i32
      %15 = tpu.assume_multiple %14, 32 : i32
      %16 = arith.index_cast %12 : i32 to index
      %c0_11 = arith.constant 0 : index
      %17 = vector.load %arg0[%16, %c0_11] : memref<64x64xbf16, #tpu.memory_space<vmem>>, vector<32x64xbf16>
      %c0_12 = arith.constant 0 : index
      %c0_13 = arith.constant 0 : index
      %18 = vector.load %arg1[%c0_12, %c0_13] : memref<64x512xbf16, #tpu.memory_space<vmem>>, vector<64x512xbf16>
      %cst_14 = arith.constant dense<0.000000e+00> : vector<32x512xf32>
      %19 = tpu.matmul %17, %18, %cst_14 {dimension_numbers = #tpu.dot_dimension_numbers<[1], [0], [0], [1], [0, 0, 1, 1], [], []>} : vector<32x64xbf16>, vector<64x512xbf16>, vector<32x512xf32> -> vector<32x512xf32>
      %c0_15 = arith.constant 0 : index
      %c0_16 = arith.constant 0 : index
      %20 = vector.load %arg5[%c0_15, %c0_16] : memref<1x512xf32, #tpu.memory_space<vmem>>, vector<1x512xf32>
      %21 = vector.broadcast %20 : vector<1x512xf32> to vector<32x512xf32>
      %22 = arith.addf %19, %21 : vector<32x512xf32>
      %c0_17 = arith.constant 0 : index
      %c0_18 = arith.constant 0 : index
      %23 = vector.load %arg10[%c0_17, %c0_18] : memref<32x512xf32, #tpu.memory_space<vmem>>, vector<32x512xf32>
      tpu.vector_store %arg10[%c0_17, %c0_18], %22 {strides = array<i32>} : memref<32x512xf32, #tpu.memory_space<vmem>>, vector<32x512xf32>,
      %24 = arith.index_cast %15 : i32 to index
      %c0_19 = arith.constant 0 : index
      %25 = vector.load %arg0[%24, %c0_19] : memref<64x64xbf16, #tpu.memory_space<vmem>>, vector<32x64xbf16>
      %c0_20 = arith.constant 0 : index
      %c0_21 = arith.constant 0 : index
      %26 = vector.load %arg2[%c0_20, %c0_21] : memref<64x512xbf16, #tpu.memory_space<vmem>>, vector<64x512xbf16>
      %cst_22 = arith.constant dense<0.000000e+00> : vector<32x512xf32>
      %27 = tpu.matmul %25, %26, %cst_22 {dimension_numbers = #tpu.dot_dimension_numbers<[1], [0], [0], [1], [0, 0, 1, 1], [], []>} : vector<32x64xbf16>, vector<64x512xbf16>, vector<32x512xf32> -> vector<32x512xf32>
      %c0_23 = arith.constant 0 : index
      %c0_24 = arith.constant 0 : index
      %28 = vector.load %arg6[%c0_23, %c0_24] : memref<1x512xf32, #tpu.memory_space<vmem>>, vector<1x512xf32>
      %29 = vector.broadcast %28 : vector<1x512xf32> to vector<32x512xf32>
      %30 = arith.addf %27, %29 : vector<32x512xf32>
      %c0_25 = arith.constant 0 : index
      %c0_26 = arith.constant 0 : index
      %31 = vector.load %arg11[%c0_25, %c0_26] : memref<32x512xf32, #tpu.memory_space<vmem>>, vector<32x512xf32>
      tpu.vector_store %arg11[%c0_25, %c0_26], %30 {strides = array<i32>} : memref<32x512xf32, #tpu.memory_space<vmem>>, vector<32x512xf32>,
      %c0_27 = arith.constant 0 : index
      %c0_28 = arith.constant 0 : index
      %32 = vector.load %arg10[%c0_27, %c0_28] : memref<32x512xf32, #tpu.memory_space<vmem>>, vector<8x512xf32>
      %33 = arith.truncf %arg14 : vector<8x128xf32> to vector<8x128xbf16>
      %c0_29 = arith.constant 0 : index
      %c0_30 = arith.constant 0 : index
      %34 = vector.load %arg3[%c0_29, %c0_30] : memref<128x512xbf16, #tpu.memory_space<vmem>>, vector<128x512xbf16>
      %cst_31 = arith.constant dense<0.000000e+00> : vector<8x512xf32>
      %35 = tpu.matmul %33, %34, %cst_31 {dimension_numbers = #tpu.dot_dimension_numbers<[1], [0], [0], [1], [0, 0, 1, 1], [], []>} : vector<8x128xbf16>, vector<128x512xbf16>, vector<8x512xf32> -> vector<8x512xf32>
      %36 = arith.addf %32, %35 : vector<8x512xf32>
      %c24 = arith.constant 24 : index
      %c0_32 = arith.constant 0 : index
      %37 = vector.load %arg11[%c24, %c0_32] : memref<32x512xf32, #tpu.memory_space<vmem>>, vector<8x512xf32>
      %38 = arith.truncf %arg16 : vector<8x128xf32> to vector<8x128xbf16>
      %c0_33 = arith.constant 0 : index
      %c0_34 = arith.constant 0 : index
      %39 = vector.load %arg4[%c0_33, %c0_34] : memref<128x512xbf16, #tpu.memory_space<vmem>>, vector<128x512xbf16>
      %cst_35 = arith.constant dense<0.000000e+00> : vector<8x512xf32>
      %40 = tpu.matmul %38, %39, %cst_35 {dimension_numbers = #tpu.dot_dimension_numbers<[1], [0], [0], [1], [0, 0, 1, 1], [], []>} : vector<8x128xbf16>, vector<128x512xbf16>, vector<8x512xf32> -> vector<8x512xf32>
      %41 = arith.addf %37, %40 : vector<8x512xf32>
      %42 = vector.extract_strided_slice %36 {offsets = [0, 0], sizes = [8, 128], strides = [1, 1]} : vector<8x512xf32> to vector<8x128xf32>
      %cst_36 = arith.constant 5.000000e-01 : f32
      %43 = vector.broadcast %cst_36 : f32 to vector<8x128xf32>
      %44 = arith.mulf %43, %42 : vector<8x128xf32>
      %45 = math.tanh %44 : vector<8x128xf32>
      %cst_37 = arith.constant 5.000000e-01 : f32
      %46 = vector.broadcast %cst_37 : f32 to vector<8x128xf32>
      %47 = arith.mulf %46, %45 : vector<8x128xf32>
      %cst_38 = arith.constant 5.000000e-01 : f32
      %48 = vector.broadcast %cst_38 : f32 to vector<8x128xf32>
      %49 = arith.addf %47, %48 : vector<8x128xf32>
      %50 = vector.extract_strided_slice %36 {offsets = [0, 128], sizes = [8, 128], strides = [1, 1]} : vector<8x512xf32> to vector<8x128xf32>
      %cst_39 = arith.constant 5.000000e-01 : f32
      %51 = vector.broadcast %cst_39 : f32 to vector<8x128xf32>
      %52 = arith.mulf %51, %50 : vector<8x128xf32>
      %53 = math.tanh %52 : vector<8x128xf32>
      %cst_40 = arith.constant 5.000000e-01 : f32
      %54 = vector.broadcast %cst_40 : f32 to vector<8x128xf32>
      %55 = arith.mulf %54, %53 : vector<8x128xf32>
      %cst_41 = arith.constant 5.000000e-01 : f32
      %56 = vector.broadcast %cst_41 : f32 to vector<8x128xf32>
      %57 = arith.addf %55, %56 : vector<8x128xf32>
      %58 = vector.extract_strided_slice %36 {offsets = [0, 256], sizes = [8, 128], strides = [1, 1]} : vector<8x512xf32> to vector<8x128xf32>
      %59 = math.tanh %58 : vector<8x128xf32>
      %60 = vector.extract_strided_slice %36 {offsets = [0, 384], sizes = [8, 128], strides = [1, 1]} : vector<8x512xf32> to vector<8x128xf32>
      %cst_42 = arith.constant 5.000000e-01 : f32
      %61 = vector.broadcast %cst_42 : f32 to vector<8x128xf32>
      %62 = arith.mulf %61, %60 : vector<8x128xf32>
      %63 = math.tanh %62 : vector<8x128xf32>
      %cst_43 = arith.constant 5.000000e-01 : f32
      %64 = vector.broadcast %cst_43 : f32 to vector<8x128xf32>
      %65 = arith.mulf %64, %63 : vector<8x128xf32>
      %cst_44 = arith.constant 5.000000e-01 : f32
      %66 = vector.broadcast %cst_44 : f32 to vector<8x128xf32>
      %67 = arith.addf %65, %66 : vector<8x128xf32>
      %68 = arith.mulf %57, %arg15 : vector<8x128xf32>
      %69 = arith.mulf %49, %59 : vector<8x128xf32>
      %70 = arith.addf %68, %69 : vector<8x128xf32>
      %71 = math.tanh %70 : vector<8x128xf32>
      %72 = arith.mulf %67, %71 : vector<8x128xf32>
      %73 = vector.extract_strided_slice %41 {offsets = [0, 0], sizes = [8, 128], strides = [1, 1]} : vector<8x512xf32> to vector<8x128xf32>
      %cst_45 = arith.constant 5.000000e-01 : f32
      %74 = vector.broadcast %cst_45 : f32 to vector<8x128xf32>
      %75 = arith.mulf %74, %73 : vector<8x128xf32>
      %76 = math.tanh %75 : vector<8x128xf32>
      %cst_46 = arith.constant 5.000000e-01 : f32
      %77 = vector.broadcast %cst_46 : f32 to vector<8x128xf32>
      %78 = arith.mulf %77, %76 : vector<8x128xf32>
      %cst_47 = arith.constant 5.000000e-01 : f32
      %79 = vector.broadcast %cst_47 : f32 to vector<8x128xf32>
      %80 = arith.addf %78, %79 : vector<8x128xf32>
      %81 = vector.extract_strided_slice %41 {offsets = [0, 128], sizes = [8, 128], strides = [1, 1]} : vector<8x512xf32> to vector<8x128xf32>
      %cst_48 = arith.constant 5.000000e-01 : f32
      %82 = vector.broadcast %cst_48 : f32 to vector<8x128xf32>
      %83 = arith.mulf %82, %81 : vector<8x128xf32>
      %84 = math.tanh %83 : vector<8x128xf32>
      %cst_49 = arith.constant 5.000000e-01 : f32
      %85 = vector.broadcast %cst_49 : f32 to vector<8x128xf32>
      %86 = arith.mulf %85, %84 : vector<8x128xf32>
      %cst_50 = arith.constant 5.000000e-01 : f32
      %87 = vector.broadcast %cst_50 : f32 to vector<8x128xf32>
      %88 = arith.addf %86, %87 : vector<8x128xf32>
      %89 = vector.extract_strided_slice %41 {offsets = [0, 256], sizes = [8, 128], strides = [1, 1]} : vector<8x512xf32> to vector<8x128xf32>
      %90 = math.tanh %89 : vector<8x128xf32>
      %91 = vector.extract_strided_slice %41 {offsets = [0, 384], sizes = [8, 128], strides = [1, 1]} : vector<8x512xf32> to vector<8x128xf32>
      %cst_51 = arith.constant 5.000000e-01 : f32
      %92 = vector.broadcast %cst_51 : f32 to vector<8x128xf32>
      %93 = arith.mulf %92, %91 : vector<8x128xf32>
      %94 = math.tanh %93 : vector<8x128xf32>
      %cst_52 = arith.constant 5.000000e-01 : f32
      %95 = vector.broadcast %cst_52 : f32 to vector<8x128xf32>
      %96 = arith.mulf %95, %94 : vector<8x128xf32>
      %cst_53 = arith.constant 5.000000e-01 : f32
      %97 = vector.broadcast %cst_53 : f32 to vector<8x128xf32>
      %98 = arith.addf %96, %97 : vector<8x128xf32>
      %99 = arith.mulf %88, %arg17 : vector<8x128xf32>
      %100 = arith.mulf %80, %90 : vector<8x128xf32>
      %101 = arith.addf %99, %100 : vector<8x128xf32>
      %102 = math.tanh %101 : vector<8x128xf32>
      %103 = arith.mulf %98, %102 : vector<8x128xf32>
      %c0_i32_54 = arith.constant 0 : i32
      %104 = arith.addi %12, %c0_i32_54 : i32
      %105 = tpu.assume_multiple %104, 8 : i32
      %106 = arith.index_cast %105 : i32 to index
      %c0_55 = arith.constant 0 : index
      %107 = vector.load %arg12[%106, %c0_55] : memref<64x256xf32, #tpu.memory_space<vmem>>, vector<8x128xf32>
      tpu.vector_store %arg12[%106, %c0_55], %72 {strides = array<i32>} : memref<64x256xf32, #tpu.memory_space<vmem>>, vector<8x128xf32>,
      %c24_i32 = arith.constant 24 : i32
      %108 = arith.addi %15, %c24_i32 : i32
      %109 = tpu.assume_multiple %108, 8 : i32
      %110 = arith.index_cast %109 : i32 to index
      %c128 = arith.constant 128 : index
      %111 = vector.load %arg12[%110, %c128] : memref<64x256xf32, #tpu.memory_space<vmem>>, vector<8x128xf32>
      tpu.vector_store %arg12[%110, %c128], %103 {strides = array<i32>} : memref<64x256xf32, #tpu.memory_space<vmem>>, vector<8x128xf32>,
      %c8 = arith.constant 8 : index
      %c0_56 = arith.constant 0 : index
      %112 = vector.load %arg10[%c8, %c0_56] : memref<32x512xf32, #tpu.memory_space<vmem>>, vector<8x512xf32>
      %113 = arith.truncf %72 : vector<8x128xf32> to vector<8x128xbf16>
      %c0_57 = arith.constant 0 : index
      %c0_58 = arith.constant 0 : index
      %114 = vector.load %arg3[%c0_57, %c0_58] : memref<128x512xbf16, #tpu.memory_space<vmem>>, vector<128x512xbf16>
      %cst_59 = arith.constant dense<0.000000e+00> : vector<8x512xf32>
      %115 = tpu.matmul %113, %114, %cst_59 {dimension_numbers = #tpu.dot_dimension_numbers<[1], [0], [0], [1], [0, 0, 1, 1], [], []>} : vector<8x128xbf16>, vector<128x512xbf16>, vector<8x512xf32> -> vector<8x512xf32>
      %116 = arith.addf %112, %115 : vector<8x512xf32>
      %c16 = arith.constant 16 : index
      %c0_60 = arith.constant 0 : index
      %117 = vector.load %arg11[%c16, %c0_60] : memref<32x512xf32, #tpu.memory_space<vmem>>, vector<8x512xf32>
      %118 = arith.truncf %103 : vector<8x128xf32> to vector<8x128xbf16>
      %c0_61 = arith.constant 0 : index
      %c0_62 = arith.constant 0 : index
      %119 = vector.load %arg4[%c0_61, %c0_62] : memref<128x512xbf16, #tpu.memory_space<vmem>>, vector<128x512xbf16>
      %cst_63 = arith.constant dense<0.000000e+00> : vector<8x512xf32>
      %120 = tpu.matmul %118, %119, %cst_63 {dimension_numbers = #tpu.dot_dimension_numbers<[1], [0], [0], [1], [0, 0, 1, 1], [], []>} : vector<8x128xbf16>, vector<128x512xbf16>, vector<8x512xf32> -> vector<8x512xf32>
      %121 = arith.addf %117, %120 : vector<8x512xf32>
      %122 = vector.extract_strided_slice %116 {offsets = [0, 0], sizes = [8, 128], strides = [1, 1]} : vector<8x512xf32> to vector<8x128xf32>
      %cst_64 = arith.constant 5.000000e-01 : f32
      %123 = vector.broadcast %cst_64 : f32 to vector<8x128xf32>
      %124 = arith.mulf %123, %122 : vector<8x128xf32>
      %125 = math.tanh %124 : vector<8x128xf32>
      %cst_65 = arith.constant 5.000000e-01 : f32
      %126 = vector.broadcast %cst_65 : f32 to vector<8x128xf32>
      %127 = arith.mulf %126, %125 : vector<8x128xf32>
      %cst_66 = arith.constant 5.000000e-01 : f32
      %128 = vector.broadcast %cst_66 : f32 to vector<8x128xf32>
      %129 = arith.addf %127, %128 : vector<8x128xf32>
      %130 = vector.extract_strided_slice %116 {offsets = [0, 128], sizes = [8, 128], strides = [1, 1]} : vector<8x512xf32> to vector<8x128xf32>
      %cst_67 = arith.constant 5.000000e-01 : f32
      %131 = vector.broadcast %cst_67 : f32 to vector<8x128xf32>
      %132 = arith.mulf %131, %130 : vector<8x128xf32>
      %133 = math.tanh %132 : vector<8x128xf32>
      %cst_68 = arith.constant 5.000000e-01 : f32
      %134 = vector.broadcast %cst_68 : f32 to vector<8x128xf32>
      %135 = arith.mulf %134, %133 : vector<8x128xf32>
      %cst_69 = arith.constant 5.000000e-01 : f32
      %136 = vector.broadcast %cst_69 : f32 to vector<8x128xf32>
      %137 = arith.addf %135, %136 : vector<8x128xf32>
      %138 = vector.extract_strided_slice %116 {offsets = [0, 256], sizes = [8, 128], strides = [1, 1]} : vector<8x512xf32> to vector<8x128xf32>
      %139 = math.tanh %138 : vector<8x128xf32>
      %140 = vector.extract_strided_slice %116 {offsets = [0, 384], sizes = [8, 128], strides = [1, 1]} : vector<8x512xf32> to vector<8x128xf32>
      %cst_70 = arith.constant 5.000000e-01 : f32
      %141 = vector.broadcast %cst_70 : f32 to vector<8x128xf32>
      %142 = arith.mulf %141, %140 : vector<8x128xf32>
      %143 = math.tanh %142 : vector<8x128xf32>
      %cst_71 = arith.constant 5.000000e-01 : f32
      %144 = vector.broadcast %cst_71 : f32 to vector<8x128xf32>
      %145 = arith.mulf %144, %143 : vector<8x128xf32>
      %cst_72 = arith.constant 5.000000e-01 : f32
      %146 = vector.broadcast %cst_72 : f32 to vector<8x128xf32>
      %147 = arith.addf %145, %146 : vector<8x128xf32>
      %148 = arith.mulf %137, %70 : vector<8x128xf32>
      %149 = arith.mulf %129, %139 : vector<8x128xf32>
      %150 = arith.addf %148, %149 : vector<8x128xf32>
      %151 = math.tanh %150 : vector<8x128xf32>
      %152 = arith.mulf %147, %151 : vector<8x128xf32>
      %153 = vector.extract_strided_slice %121 {offsets = [0, 0], sizes = [8, 128], strides = [1, 1]} : vector<8x512xf32> to vector<8x128xf32>
      %cst_73 = arith.constant 5.000000e-01 : f32
      %154 = vector.broadcast %cst_73 : f32 to vector<8x128xf32>
      %155 = arith.mulf %154, %153 : vector<8x128xf32>
      %156 = math.tanh %155 : vector<8x128xf32>
      %cst_74 = arith.constant 5.000000e-01 : f32
      %157 = vector.broadcast %cst_74 : f32 to vector<8x128xf32>
      %158 = arith.mulf %157, %156 : vector<8x128xf32>
      %cst_75 = arith.constant 5.000000e-01 : f32
      %159 = vector.broadcast %cst_75 : f32 to vector<8x128xf32>
      %160 = arith.addf %158, %159 : vector<8x128xf32>
      %161 = vector.extract_strided_slice %121 {offsets = [0, 128], sizes = [8, 128], strides = [1, 1]} : vector<8x512xf32> to vector<8x128xf32>
      %cst_76 = arith.constant 5.000000e-01 : f32
      %162 = vector.broadcast %cst_76 : f32 to vector<8x128xf32>
      %163 = arith.mulf %162, %161 : vector<8x128xf32>
      %164 = math.tanh %163 : vector<8x128xf32>
      %cst_77 = arith.constant 5.000000e-01 : f32
      %165 = vector.broadcast %cst_77 : f32 to vector<8x128xf32>
      %166 = arith.mulf %165, %164 : vector<8x128xf32>
      %cst_78 = arith.constant 5.000000e-01 : f32
      %167 = vector.broadcast %cst_78 : f32 to vector<8x128xf32>
      %168 = arith.addf %166, %167 : vector<8x128xf32>
      %169 = vector.extract_strided_slice %121 {offsets = [0, 256], sizes = [8, 128], strides = [1, 1]} : vector<8x512xf32> to vector<8x128xf32>
      %170 = math.tanh %169 : vector<8x128xf32>
      %171 = vector.extract_strided_slice %121 {offsets = [0, 384], sizes = [8, 128], strides = [1, 1]} : vector<8x512xf32> to vector<8x128xf32>
      %cst_79 = arith.constant 5.000000e-01 : f32
      %172 = vector.broadcast %cst_79 : f32 to vector<8x128xf32>
      %173 = arith.mulf %172, %171 : vector<8x128xf32>
      %174 = math.tanh %173 : vector<8x128xf32>
      %cst_80 = arith.constant 5.000000e-01 : f32
      %175 = vector.broadcast %cst_80 : f32 to vector<8x128xf32>
      %176 = arith.mulf %175, %174 : vector<8x128xf32>
      %cst_81 = arith.constant 5.000000e-01 : f32
      %177 = vector.broadcast %cst_81 : f32 to vector<8x128xf32>
      %178 = arith.addf %176, %177 : vector<8x128xf32>
      %179 = arith.mulf %168, %101 : vector<8x128xf32>
      %180 = arith.mulf %160, %170 : vector<8x128xf32>
      %181 = arith.addf %179, %180 : vector<8x128xf32>
      %182 = math.tanh %181 : vector<8x128xf32>
      %183 = arith.mulf %178, %182 : vector<8x128xf32>
      %c8_i32 = arith.constant 8 : i32
      %184 = arith.addi %12, %c8_i32 : i32
      %185 = tpu.assume_multiple %184, 8 : i32
      %186 = arith.index_cast %185 : i32 to index
      %c0_82 = arith.constant 0 : index
      %187 = vector.load %arg12[%186, %c0_82] : memref<64x256xf32, #tpu.memory_space<vmem>>, vector<8x128xf32>
      tpu.vector_store %arg12[%186, %c0_82], %152 {strides = array<i32>} : memref<64x256xf32, #tpu.memory_space<vmem>>, vector<8x128xf32>,
      %c16_i32 = arith.constant 16 : i32
      %188 = arith.addi %15, %c16_i32 : i32
      %189 = tpu.assume_multiple %188, 8 : i32
      %190 = arith.index_cast %189 : i32 to index
      %c128_83 = arith.constant 128 : index
      %191 = vector.load %arg12[%190, %c128_83] : memref<64x256xf32, #tpu.memory_space<vmem>>, vector<8x128xf32>
      tpu.vector_store %arg12[%190, %c128_83], %183 {strides = array<i32>} : memref<64x256xf32, #tpu.memory_space<vmem>>, vector<8x128xf32>,
      %c16_84 = arith.constant 16 : index
      %c0_85 = arith.constant 0 : index
      %192 = vector.load %arg10[%c16_84, %c0_85] : memref<32x512xf32, #tpu.memory_space<vmem>>, vector<8x512xf32>
      %193 = arith.truncf %152 : vector<8x128xf32> to vector<8x128xbf16>
      %c0_86 = arith.constant 0 : index
      %c0_87 = arith.constant 0 : index
      %194 = vector.load %arg3[%c0_86, %c0_87] : memref<128x512xbf16, #tpu.memory_space<vmem>>, vector<128x512xbf16>
      %cst_88 = arith.constant dense<0.000000e+00> : vector<8x512xf32>
      %195 = tpu.matmul %193, %194, %cst_88 {dimension_numbers = #tpu.dot_dimension_numbers<[1], [0], [0], [1], [0, 0, 1, 1], [], []>} : vector<8x128xbf16>, vector<128x512xbf16>, vector<8x512xf32> -> vector<8x512xf32>
      %196 = arith.addf %192, %195 : vector<8x512xf32>
      %c8_89 = arith.constant 8 : index
      %c0_90 = arith.constant 0 : index
      %197 = vector.load %arg11[%c8_89, %c0_90] : memref<32x512xf32, #tpu.memory_space<vmem>>, vector<8x512xf32>
      %198 = arith.truncf %183 : vector<8x128xf32> to vector<8x128xbf16>
      %c0_91 = arith.constant 0 : index
      %c0_92 = arith.constant 0 : index
      %199 = vector.load %arg4[%c0_91, %c0_92] : memref<128x512xbf16, #tpu.memory_space<vmem>>, vector<128x512xbf16>
      %cst_93 = arith.constant dense<0.000000e+00> : vector<8x512xf32>
      %200 = tpu.matmul %198, %199, %cst_93 {dimension_numbers = #tpu.dot_dimension_numbers<[1], [0], [0], [1], [0, 0, 1, 1], [], []>} : vector<8x128xbf16>, vector<128x512xbf16>, vector<8x512xf32> -> vector<8x512xf32>
      %201 = arith.addf %197, %200 : vector<8x512xf32>
      %202 = vector.extract_strided_slice %196 {offsets = [0, 0], sizes = [8, 128], strides = [1, 1]} : vector<8x512xf32> to vector<8x128xf32>
      %cst_94 = arith.constant 5.000000e-01 : f32
      %203 = vector.broadcast %cst_94 : f32 to vector<8x128xf32>
      %204 = arith.mulf %203, %202 : vector<8x128xf32>
      %205 = math.tanh %204 : vector<8x128xf32>
      %cst_95 = arith.constant 5.000000e-01 : f32
      %206 = vector.broadcast %cst_95 : f32 to vector<8x128xf32>
      %207 = arith.mulf %206, %205 : vector<8x128xf32>
      %cst_96 = arith.constant 5.000000e-01 : f32
      %208 = vector.broadcast %cst_96 : f32 to vector<8x128xf32>
      %209 = arith.addf %207, %208 : vector<8x128xf32>
      %210 = vector.extract_strided_slice %196 {offsets = [0, 128], sizes = [8, 128], strides = [1, 1]} : vector<8x512xf32> to vector<8x128xf32>
      %cst_97 = arith.constant 5.000000e-01 : f32
      %211 = vector.broadcast %cst_97 : f32 to vector<8x128xf32>
      %212 = arith.mulf %211, %210 : vector<8x128xf32>
      %213 = math.tanh %212 : vector<8x128xf32>
      %cst_98 = arith.constant 5.000000e-01 : f32
      %214 = vector.broadcast %cst_98 : f32 to vector<8x128xf32>
      %215 = arith.mulf %214, %213 : vector<8x128xf32>
      %cst_99 = arith.constant 5.000000e-01 : f32
      %216 = vector.broadcast %cst_99 : f32 to vector<8x128xf32>
      %217 = arith.addf %215, %216 : vector<8x128xf32>
      %218 = vector.extract_strided_slice %196 {offsets = [0, 256], sizes = [8, 128], strides = [1, 1]} : vector<8x512xf32> to vector<8x128xf32>
      %219 = math.tanh %218 : vector<8x128xf32>
      %220 = vector.extract_strided_slice %196 {offsets = [0, 384], sizes = [8, 128], strides = [1, 1]} : vector<8x512xf32> to vector<8x128xf32>
      %cst_100 = arith.constant 5.000000e-01 : f32
      %221 = vector.broadcast %cst_100 : f32 to vector<8x128xf32>
      %222 = arith.mulf %221, %220 : vector<8x128xf32>
      %223 = math.tanh %222 : vector<8x128xf32>
      %cst_101 = arith.constant 5.000000e-01 : f32
      %224 = vector.broadcast %cst_101 : f32 to vector<8x128xf32>
      %225 = arith.mulf %224, %223 : vector<8x128xf32>
      %cst_102 = arith.constant 5.000000e-01 : f32
      %226 = vector.broadcast %cst_102 : f32 to vector<8x128xf32>
      %227 = arith.addf %225, %226 : vector<8x128xf32>
      %228 = arith.mulf %217, %150 : vector<8x128xf32>
      %229 = arith.mulf %209, %219 : vector<8x128xf32>
      %230 = arith.addf %228, %229 : vector<8x128xf32>
      %231 = math.tanh %230 : vector<8x128xf32>
      %232 = arith.mulf %227, %231 : vector<8x128xf32>
      %233 = vector.extract_strided_slice %201 {offsets = [0, 0], sizes = [8, 128], strides = [1, 1]} : vector<8x512xf32> to vector<8x128xf32>
      %cst_103 = arith.constant 5.000000e-01 : f32
      %234 = vector.broadcast %cst_103 : f32 to vector<8x128xf32>
      %235 = arith.mulf %234, %233 : vector<8x128xf32>
      %236 = math.tanh %235 : vector<8x128xf32>
      %cst_104 = arith.constant 5.000000e-01 : f32
      %237 = vector.broadcast %cst_104 : f32 to vector<8x128xf32>
      %238 = arith.mulf %237, %236 : vector<8x128xf32>
      %cst_105 = arith.constant 5.000000e-01 : f32
      %239 = vector.broadcast %cst_105 : f32 to vector<8x128xf32>
      %240 = arith.addf %238, %239 : vector<8x128xf32>
      %241 = vector.extract_strided_slice %201 {offsets = [0, 128], sizes = [8, 128], strides = [1, 1]} : vector<8x512xf32> to vector<8x128xf32>
      %cst_106 = arith.constant 5.000000e-01 : f32
      %242 = vector.broadcast %cst_106 : f32 to vector<8x128xf32>
      %243 = arith.mulf %242, %241 : vector<8x128xf32>
      %244 = math.tanh %243 : vector<8x128xf32>
      %cst_107 = arith.constant 5.000000e-01 : f32
      %245 = vector.broadcast %cst_107 : f32 to vector<8x128xf32>
      %246 = arith.mulf %245, %244 : vector<8x128xf32>
      %cst_108 = arith.constant 5.000000e-01 : f32
      %247 = vector.broadcast %cst_108 : f32 to vector<8x128xf32>
      %248 = arith.addf %246, %247 : vector<8x128xf32>
      %249 = vector.extract_strided_slice %201 {offsets = [0, 256], sizes = [8, 128], strides = [1, 1]} : vector<8x512xf32> to vector<8x128xf32>
      %250 = math.tanh %249 : vector<8x128xf32>
      %251 = vector.extract_strided_slice %201 {offsets = [0, 384], sizes = [8, 128], strides = [1, 1]} : vector<8x512xf32> to vector<8x128xf32>
      %cst_109 = arith.constant 5.000000e-01 : f32
      %252 = vector.broadcast %cst_109 : f32 to vector<8x128xf32>
      %253 = arith.mulf %252, %251 : vector<8x128xf32>
      %254 = math.tanh %253 : vector<8x128xf32>
      %cst_110 = arith.constant 5.000000e-01 : f32
      %255 = vector.broadcast %cst_110 : f32 to vector<8x128xf32>
      %256 = arith.mulf %255, %254 : vector<8x128xf32>
      %cst_111 = arith.constant 5.000000e-01 : f32
      %257 = vector.broadcast %cst_111 : f32 to vector<8x128xf32>
      %258 = arith.addf %256, %257 : vector<8x128xf32>
      %259 = arith.mulf %248, %181 : vector<8x128xf32>
      %260 = arith.mulf %240, %250 : vector<8x128xf32>
      %261 = arith.addf %259, %260 : vector<8x128xf32>
      %262 = math.tanh %261 : vector<8x128xf32>
      %263 = arith.mulf %258, %262 : vector<8x128xf32>
      %c16_i32_112 = arith.constant 16 : i32
      %264 = arith.addi %12, %c16_i32_112 : i32
      %265 = tpu.assume_multiple %264, 8 : i32
      %266 = arith.index_cast %265 : i32 to index
      %c0_113 = arith.constant 0 : index
      %267 = vector.load %arg12[%266, %c0_113] : memref<64x256xf32, #tpu.memory_space<vmem>>, vector<8x128xf32>
      tpu.vector_store %arg12[%266, %c0_113], %232 {strides = array<i32>} : memref<64x256xf32, #tpu.memory_space<vmem>>, vector<8x128xf32>,
      %c8_i32_114 = arith.constant 8 : i32
      %268 = arith.addi %15, %c8_i32_114 : i32
      %269 = tpu.assume_multiple %268, 8 : i32
      %270 = arith.index_cast %269 : i32 to index
      %c128_115 = arith.constant 128 : index
      %271 = vector.load %arg12[%270, %c128_115] : memref<64x256xf32, #tpu.memory_space<vmem>>, vector<8x128xf32>
      tpu.vector_store %arg12[%270, %c128_115], %263 {strides = array<i32>} : memref<64x256xf32, #tpu.memory_space<vmem>>, vector<8x128xf32>,
      %c24_116 = arith.constant 24 : index
      %c0_117 = arith.constant 0 : index
      %272 = vector.load %arg10[%c24_116, %c0_117] : memref<32x512xf32, #tpu.memory_space<vmem>>, vector<8x512xf32>
      %273 = arith.truncf %232 : vector<8x128xf32> to vector<8x128xbf16>
      %c0_118 = arith.constant 0 : index
      %c0_119 = arith.constant 0 : index
      %274 = vector.load %arg3[%c0_118, %c0_119] : memref<128x512xbf16, #tpu.memory_space<vmem>>, vector<128x512xbf16>
      %cst_120 = arith.constant dense<0.000000e+00> : vector<8x512xf32>
      %275 = tpu.matmul %273, %274, %cst_120 {dimension_numbers = #tpu.dot_dimension_numbers<[1], [0], [0], [1], [0, 0, 1, 1], [], []>} : vector<8x128xbf16>, vector<128x512xbf16>, vector<8x512xf32> -> vector<8x512xf32>
      %276 = arith.addf %272, %275 : vector<8x512xf32>
      %c0_121 = arith.constant 0 : index
      %c0_122 = arith.constant 0 : index
      %277 = vector.load %arg11[%c0_121, %c0_122] : memref<32x512xf32, #tpu.memory_space<vmem>>, vector<8x512xf32>
      %278 = arith.truncf %263 : vector<8x128xf32> to vector<8x128xbf16>
      %c0_123 = arith.constant 0 : index
      %c0_124 = arith.constant 0 : index
      %279 = vector.load %arg4[%c0_123, %c0_124] : memref<128x512xbf16, #tpu.memory_space<vmem>>, vector<128x512xbf16>
      %cst_125 = arith.constant dense<0.000000e+00> : vector<8x512xf32>
      %280 = tpu.matmul %278, %279, %cst_125 {dimension_numbers = #tpu.dot_dimension_numbers<[1], [0], [0], [1], [0, 0, 1, 1], [], []>} : vector<8x128xbf16>, vector<128x512xbf16>, vector<8x512xf32> -> vector<8x512xf32>
      %281 = arith.addf %277, %280 : vector<8x512xf32>
      %282 = vector.extract_strided_slice %276 {offsets = [0, 0], sizes = [8, 128], strides = [1, 1]} : vector<8x512xf32> to vector<8x128xf32>
      %cst_126 = arith.constant 5.000000e-01 : f32
      %283 = vector.broadcast %cst_126 : f32 to vector<8x128xf32>
      %284 = arith.mulf %283, %282 : vector<8x128xf32>
      %285 = math.tanh %284 : vector<8x128xf32>
      %cst_127 = arith.constant 5.000000e-01 : f32
      %286 = vector.broadcast %cst_127 : f32 to vector<8x128xf32>
      %287 = arith.mulf %286, %285 : vector<8x128xf32>
      %cst_128 = arith.constant 5.000000e-01 : f32
      %288 = vector.broadcast %cst_128 : f32 to vector<8x128xf32>
      %289 = arith.addf %287, %288 : vector<8x128xf32>
      %290 = vector.extract_strided_slice %276 {offsets = [0, 128], sizes = [8, 128], strides = [1, 1]} : vector<8x512xf32> to vector<8x128xf32>
      %cst_129 = arith.constant 5.000000e-01 : f32
      %291 = vector.broadcast %cst_129 : f32 to vector<8x128xf32>
      %292 = arith.mulf %291, %290 : vector<8x128xf32>
      %293 = math.tanh %292 : vector<8x128xf32>
      %cst_130 = arith.constant 5.000000e-01 : f32
      %294 = vector.broadcast %cst_130 : f32 to vector<8x128xf32>
      %295 = arith.mulf %294, %293 : vector<8x128xf32>
      %cst_131 = arith.constant 5.000000e-01 : f32
      %296 = vector.broadcast %cst_131 : f32 to vector<8x128xf32>
      %297 = arith.addf %295, %296 : vector<8x128xf32>
      %298 = vector.extract_strided_slice %276 {offsets = [0, 256], sizes = [8, 128], strides = [1, 1]} : vector<8x512xf32> to vector<8x128xf32>
      %299 = math.tanh %298 : vector<8x128xf32>
      %300 = vector.extract_strided_slice %276 {offsets = [0, 384], sizes = [8, 128], strides = [1, 1]} : vector<8x512xf32> to vector<8x128xf32>
      %cst_132 = arith.constant 5.000000e-01 : f32
      %301 = vector.broadcast %cst_132 : f32 to vector<8x128xf32>
      %302 = arith.mulf %301, %300 : vector<8x128xf32>
      %303 = math.tanh %302 : vector<8x128xf32>
      %cst_133 = arith.constant 5.000000e-01 : f32
      %304 = vector.broadcast %cst_133 : f32 to vector<8x128xf32>
      %305 = arith.mulf %304, %303 : vector<8x128xf32>
      %cst_134 = arith.constant 5.000000e-01 : f32
      %306 = vector.broadcast %cst_134 : f32 to vector<8x128xf32>
      %307 = arith.addf %305, %306 : vector<8x128xf32>
      %308 = arith.mulf %297, %230 : vector<8x128xf32>
      %309 = arith.mulf %289, %299 : vector<8x128xf32>
      %310 = arith.addf %308, %309 : vector<8x128xf32>
      %311 = math.tanh %310 : vector<8x128xf32>
      %312 = arith.mulf %307, %311 : vector<8x128xf32>
      %313 = vector.extract_strided_slice %281 {offsets = [0, 0], sizes = [8, 128], strides = [1, 1]} : vector<8x512xf32> to vector<8x128xf32>
      %cst_135 = arith.constant 5.000000e-01 : f32
      %314 = vector.broadcast %cst_135 : f32 to vector<8x128xf32>
      %315 = arith.mulf %314, %313 : vector<8x128xf32>
      %316 = math.tanh %315 : vector<8x128xf32>
      %cst_136 = arith.constant 5.000000e-01 : f32
      %317 = vector.broadcast %cst_136 : f32 to vector<8x128xf32>
      %318 = arith.mulf %317, %316 : vector<8x128xf32>
      %cst_137 = arith.constant 5.000000e-01 : f32
      %319 = vector.broadcast %cst_137 : f32 to vector<8x128xf32>
      %320 = arith.addf %318, %319 : vector<8x128xf32>
      %321 = vector.extract_strided_slice %281 {offsets = [0, 128], sizes = [8, 128], strides = [1, 1]} : vector<8x512xf32> to vector<8x128xf32>
      %cst_138 = arith.constant 5.000000e-01 : f32
      %322 = vector.broadcast %cst_138 : f32 to vector<8x128xf32>
      %323 = arith.mulf %322, %321 : vector<8x128xf32>
      %324 = math.tanh %323 : vector<8x128xf32>
      %cst_139 = arith.constant 5.000000e-01 : f32
      %325 = vector.broadcast %cst_139 : f32 to vector<8x128xf32>
      %326 = arith.mulf %325, %324 : vector<8x128xf32>
      %cst_140 = arith.constant 5.000000e-01 : f32
      %327 = vector.broadcast %cst_140 : f32 to vector<8x128xf32>
      %328 = arith.addf %326, %327 : vector<8x128xf32>
      %329 = vector.extract_strided_slice %281 {offsets = [0, 256], sizes = [8, 128], strides = [1, 1]} : vector<8x512xf32> to vector<8x128xf32>
      %330 = math.tanh %329 : vector<8x128xf32>
      %331 = vector.extract_strided_slice %281 {offsets = [0, 384], sizes = [8, 128], strides = [1, 1]} : vector<8x512xf32> to vector<8x128xf32>
      %cst_141 = arith.constant 5.000000e-01 : f32
      %332 = vector.broadcast %cst_141 : f32 to vector<8x128xf32>
      %333 = arith.mulf %332, %331 : vector<8x128xf32>
      %334 = math.tanh %333 : vector<8x128xf32>
      %cst_142 = arith.constant 5.000000e-01 : f32
      %335 = vector.broadcast %cst_142 : f32 to vector<8x128xf32>
      %336 = arith.mulf %335, %334 : vector<8x128xf32>
      %cst_143 = arith.constant 5.000000e-01 : f32
      %337 = vector.broadcast %cst_143 : f32 to vector<8x128xf32>
      %338 = arith.addf %336, %337 : vector<8x128xf32>
      %339 = arith.mulf %328, %261 : vector<8x128xf32>
      %340 = arith.mulf %320, %330 : vector<8x128xf32>
      %341 = arith.addf %339, %340 : vector<8x128xf32>
      %342 = math.tanh %341 : vector<8x128xf32>
      %343 = arith.mulf %338, %342 : vector<8x128xf32>
      %c24_i32_144 = arith.constant 24 : i32
      %344 = arith.addi %12, %c24_i32_144 : i32
      %345 = tpu.assume_multiple %344, 8 : i32
      %346 = arith.index_cast %345 : i32 to index
      %c0_145 = arith.constant 0 : index
      %347 = vector.load %arg12[%346, %c0_145] : memref<64x256xf32, #tpu.memory_space<vmem>>, vector<8x128xf32>
      tpu.vector_store %arg12[%346, %c0_145], %312 {strides = array<i32>} : memref<64x256xf32, #tpu.memory_space<vmem>>, vector<8x128xf32>,
      %c0_i32_146 = arith.constant 0 : i32
      %348 = arith.addi %15, %c0_i32_146 : i32
      %349 = tpu.assume_multiple %348, 8 : i32
      %350 = arith.index_cast %349 : i32 to index
      %c128_147 = arith.constant 128 : index
      %351 = vector.load %arg12[%350, %c128_147] : memref<64x256xf32, #tpu.memory_space<vmem>>, vector<8x128xf32>
      tpu.vector_store %arg12[%350, %c128_147], %343 {strides = array<i32>} : memref<64x256xf32, #tpu.memory_space<vmem>>, vector<8x128xf32>,
      scf.yield %312, %310, %343, %341 : vector<8x128xf32>, vector<8x128xf32>, vector<8x128xf32>, vector<8x128xf32>
    }
    %c2_i32_0 = arith.constant 2 : i32
    %c0 = arith.constant 0 : index
    %c0_1 = arith.constant 0 : index
    %3 = vector.load %arg12[%c0, %c0_1] : memref<64x256xf32, #tpu.memory_space<vmem>>, vector<64x256xf32>
    %4 = arith.truncf %3 : vector<64x256xf32> to vector<64x256xbf16>
    %c0_2 = arith.constant 0 : index
    %c0_3 = arith.constant 0 : index
    %5 = vector.load %arg7[%c0_2, %c0_3] : memref<256x128xbf16, #tpu.memory_space<vmem>>, vector<256x128xbf16>
    %cst_4 = arith.constant dense<0.000000e+00> : vector<64x128xf32>
    %6 = tpu.matmul %4, %5, %cst_4 {dimension_numbers = #tpu.dot_dimension_numbers<[1], [0], [0], [1], [0, 0, 1, 1], [], []>} : vector<64x256xbf16>, vector<256x128xbf16>, vector<64x128xf32> -> vector<64x128xf32>
    %c0_5 = arith.constant 0 : index
    %c0_6 = arith.constant 0 : index
    %7 = vector.load %arg8[%c0_5, %c0_6] : memref<1x128xf32, #tpu.memory_space<vmem>>, vector<1x128xf32>
    %8 = vector.broadcast %7 : vector<1x128xf32> to vector<64x128xf32>
    %9 = arith.addf %6, %8 : vector<64x128xf32>
    %c0_7 = arith.constant 0 : index
    %c0_8 = arith.constant 0 : index
    %10 = vector.load %arg9[%c0_7, %c0_8] : memref<64x128xf32, #tpu.memory_space<vmem>>, vector<64x128xf32>
    tpu.vector_store %arg9[%c0_7, %c0_8], %9 {strides = array<i32>} : memref<64x128xf32, #tpu.memory_space<vmem>>, vector<64x128xf32>,
    return
  }
}

</mosaic_0001>

<llo_original>
// kernel: _lambda_.2
$region0: #{_lambda_.2}
  #allocation0 [shape = 'u32[]', space=smem, size = 0x4, offset = 0x4, fixed_abs, tag = 'smem constant byte address 0x4 - core index']
  #allocation1 [shape = 'u32[72,128]{1,0:T(1,128)}', space=vmem, size = 0x9000, scoped, tag = 'internal scratch']
  #allocation2 [shape = 'f32[32,512]{1,0:T(8,128)}', space=vmem, size = 0x10000, scoped, tag = 'scratch operand']
  #allocation3 [shape = 'f32[32,512]{1,0:T(8,128)}', space=vmem, size = 0x10000, scoped, tag = 'scratch operand']
  #allocation4 [shape = 'f32[64,256]{1,0:T(8,128)}', space=vmem, size = 0x10000, scoped, tag = 'scratch operand']
  %s0 = inlined_call_operand.vmem [shape: bf16[64,32], index: 0, kind: input, shape index: {}]
  %s1 = inlined_call_operand.hbm [shape: bf16[32,512], index: 1, kind: input, shape index: {}]
  %s2 = inlined_call_operand.hbm [shape: bf16[32,512], index: 2, kind: input, shape index: {}]
  %s3 = inlined_call_operand.vmem [shape: bf16[128,512], index: 3, kind: input, shape index: {}]
  %s4 = inlined_call_operand.hbm [shape: bf16[128,512], index: 4, kind: input, shape index: {}]
  %s5 = inlined_call_operand.vmem [shape: f32[1,512], index: 5, kind: input, shape index: {}]
  %s6 = inlined_call_operand.vmem [shape: f32[1,512], index: 6, kind: input, shape index: {}]
  %s7 = inlined_call_operand.vmem [shape: bf16[256,128], index: 7, kind: input, shape index: {}]
  %s8 = inlined_call_operand.vmem [shape: f32[1,128], index: 8, kind: input, shape index: {}]
  %s9 = inlined_call_operand.vmem [shape: f32[64,128], index: 9, kind: output, shape index: {}]
  %s10 = sld [smem:[#allocation0]]
  $region65: #{_lambda_.2} parent=0
    _
  %s12 = ssub.s32 1, %s10
  %s13 = scalar_select 0, %s12, %s10
  $region1: #{_lambda_.2} parent=0
    #allocation5 [shape = 'u8[32768]{0}', space=vmem, size = 0x8000, scoped, tag = 'input window, operand 1, single buffered']
    #allocation6 [shape = 's32[1]{0}', space=sflag, size = 0x4, scoped, tag = 'scoped memory for _lambda_.2']
    #allocation7 [shape = 'u8[32768]{0}', space=vmem, size = 0x8000, scoped, tag = 'input window, operand 2, single buffered']
    #allocation8 [shape = 's32[1]{0}', space=sflag, size = 0x4, scoped, tag = 'scoped memory for _lambda_.2']
    #allocation9 [shape = 'u8[131072]{0}', space=vmem, size = 0x20000, scoped, tag = 'input window, operand 4, single buffered']
    %14 = vsyncpa [#allocation6], 0
    %15 = vsyncpa [#allocation8], 0
    // Predicated region
    $region2: #{_lambda_.2} parent=1 // pred_check
      _
    $region3: #{_lambda_.2} parent=1 // pred_check_branch
      %17 = sbr.rel (0) target = $region5
    $region4: #{_lambda_.2} parent=1 // pred_region
      _
    $region5: #{_lambda_.2} parent=1 // pred_fallthru
      _
    // Predicated region
    $region6: #{_lambda_.2} parent=1 // pred_check
      _
    $region7: #{_lambda_.2} parent=1 // pred_check_branch
      %19 = sbr.rel (0) target = $region9
    $region8: #{_lambda_.2} parent=1 // pred_region
      %21 = vsyncadd [#allocation6], 0
      %s22 = sshll.u32 %s1, 4
      %s23 = int_to_ptr.hbm [resolvable:$true] %s22
      %s24 = sshll.u32 [#allocation5], 4
      %s25 = int_to_ptr.vmem [resolvable:$true] %s24
      %30 = dma.hbm_to_vmem [thread:$0]  %s23, 1024, %s25, [#allocation6], 256, 256, 16
    $region9: #{_lambda_.2} parent=1 // pred_fallthru
      _
    // Predicated region
    $region10: #{_lambda_.2} parent=1 // pred_check
      _
    $region11: #{_lambda_.2} parent=1 // pred_check_branch
      %32 = sbr.rel (0) target = $region13
    $region12: #{_lambda_.2} parent=1 // pred_region
      %34 = vsyncadd [#allocation8], 0
      %s35 = sshll.u32 %s2, 4
      %s36 = int_to_ptr.hbm [resolvable:$true] %s35
      %s37 = sshll.u32 [#allocation7], 4
      %s38 = int_to_ptr.vmem [resolvable:$true] %s37
      %43 = dma.hbm_to_vmem [thread:$0]  %s36, 1024, %s38, [#allocation8], 256, 256, 16
    $region13: #{_lambda_.2} parent=1 // pred_fallthru
      _
    // Predicated region
    $region14: #{_lambda_.2} parent=1 // pred_check
      _
    $region15: #{_lambda_.2} parent=1 // pred_check_branch
      %45 = sbr.rel (0) target = $region17
    $region16: #{_lambda_.2} parent=1 // pred_region
      _
    $region17: #{_lambda_.2} parent=1 // pred_fallthru
      _
    // Predicated region
    $region18: #{_lambda_.2} parent=1 // pred_check
      _
    $region19: #{_lambda_.2} parent=1 // pred_check_branch
      %47 = sbr.rel (0) target = $region21
    $region20: #{_lambda_.2} parent=1 // pred_region
      %49 = vsyncadd [#allocation8], 0
      %s50 = sshll.u32 %s4, 4
      %s51 = int_to_ptr.hbm [resolvable:$true] %s50
      %s52 = sshll.u32 [#allocation9], 4
      %s53 = int_to_ptr.vmem [resolvable:$true] %s52
      %58 = dma.hbm_to_vmem [thread:$0]  %s51, 4096, %s53, [#allocation8], 256, 256, 16
    $region21: #{_lambda_.2} parent=1 // pred_fallthru
      _
    // Predicated region
    $region22: #{_lambda_.2} parent=1 // pred_check
      _
    $region23: #{_lambda_.2} parent=1 // pred_check_branch
      %60 = sbr.rel (0) target = $region25
    $region24: #{_lambda_.2} parent=1 // pred_region
      _
    $region25: #{_lambda_.2} parent=1 // pred_fallthru
      _
    // Predicated region
    $region26: #{_lambda_.2} parent=1 // pred_check
      _
    $region27: #{_lambda_.2} parent=1 // pred_check_branch
      %62 = sbr.rel (0) target = $region29
    $region28: #{_lambda_.2} parent=1 // pred_region
      _
    $region29: #{_lambda_.2} parent=1 // pred_fallthru
      _
    // Predicated region
    $region30: #{_lambda_.2} parent=1 // pred_check
      _
    $region31: #{_lambda_.2} parent=1 // pred_check_branch
      %64 = sbr.rel (0) target = $region33
    $region32: #{_lambda_.2} parent=1 // pred_region
      _
    $region33: #{_lambda_.2} parent=1 // pred_fallthru
      _
    // Predicated region
    $region34: #{_lambda_.2} parent=1 // pred_check
      _
    $region35: #{_lambda_.2} parent=1 // pred_check_branch
      %66 = sbr.rel (0) target = $region37
    $region36: #{_lambda_.2} parent=1 // pred_region
      _
    $region37: #{_lambda_.2} parent=1 // pred_fallthru
      _
    // Predicated region
    $region38: #{_lambda_.2} parent=1 // pred_check
      _
    $region39: #{_lambda_.2} parent=1 // pred_check_branch
      %68 = sbr.rel (0) target = $region41
    $region40: #{_lambda_.2} parent=1 // pred_region
      %70 = dma.done [#allocation6], 1024
    $region41: #{_lambda_.2} parent=1 // pred_fallthru
      _
    // Predicated region
    $region42: #{_lambda_.2} parent=1 // pred_check
      _
    $region43: #{_lambda_.2} parent=1 // pred_check_branch
      %72 = sbr.rel (0) target = $region45
    $region44: #{_lambda_.2} parent=1 // pred_region
      %74 = dma.done [#allocation8], 1024
    $region45: #{_lambda_.2} parent=1 // pred_fallthru
      _
    // Predicated region
    $region46: #{_lambda_.2} parent=1 // pred_check
      _
    $region47: #{_lambda_.2} parent=1 // pred_check_branch
      %76 = sbr.rel (0) target = $region49
    $region48: #{_lambda_.2} parent=1 // pred_region
      %78 = dma.done [#allocation8], 4096
    $region49: #{_lambda_.2} parent=1 // pred_fallthru
      _
    loop: start=0, step=1, limit=2
    $region50: #{_lambda_.2} parent=1 // loop_pre_header
      _
    $region51: #{_lambda_.2} parent=1 // loop_header
      %s81 = sphi 0, %s85
      %p82 = scmp.ge.s32.totalorder %s81, 2
      %v86 = vphi 0.0, %v2632
      %v87 = vphi 0.0, %v2630
      %v88 = vphi 0.0, %v2650
      %v89 = vphi 0.0, %v2648
    $region52: #{_lambda_.2} parent=1 // loop_header_branch
      %84 = sbr.rel (%p82) target = $region56
    $region53: #{_lambda_.2} parent=1 // loop_body
      %s90 = smul.u32 %s81, 32
      %s91 = ssub.s32 1, %s81
      %s92 = smul.u32 %s91, 32
      %s93 = sshra.s32 %s90, 3
      %s94 = sand.u32 %s90, 7
      %s95 = smul.addr %s93, 4
      %s96 = scalar_lea.vmem %s0, %s95
      %v97 = vld [vmem:[%s96] sm:$0xf]
      %v98 = vld [vmem:[%s96 + $0x4] sm:$0xf]
      %v99 = vld [vmem:[%s96 + $0x8] sm:$0xf]
      %v100 = vld [vmem:[%s96 + $0xc] sm:$0xf]
      %v101 = vld [vmem:[#allocation5] sm:$0xff]
      %v102 = vld [vmem:[#allocation5 + $0x8] sm:$0xff]
      %v103 = vld [vmem:[#allocation5 + $0x10] sm:$0xff]
      %v104 = vld [vmem:[#allocation5 + $0x18] sm:$0xff]
      %v105 = vld [vmem:[#allocation5 + $0x20] sm:$0xff]
      %v106 = vld [vmem:[#allocation5 + $0x28] sm:$0xff]
      %v107 = vld [vmem:[#allocation5 + $0x30] sm:$0xff]
      %v108 = vld [vmem:[#allocation5 + $0x38] sm:$0xff]
      %v109 = vld [vmem:[%s5] sm:$0xf]
      %v111 = vperm.slane %v109, 0
      %v112 = vperm.slane %v109, 1
      %v113 = vperm.slane %v109, 2
      %v114 = vperm.slane %v109, 3
      %v123 = vunpack.c.l.b16 %v97
      %v124 = vunpack.c.l.b16 %v98
      %v125 = vunpack.c.l.b16 %v99
      %v126 = vunpack.c.l.b16 %v100
      %v127 = vpack.c.b16 %v124, %v123
      %v128 = vpack.c.b16 %v126, %v125
      %v137 = vunpack.c.l.b16 %v101
      %v138 = vunpack.c.h.b16 %v101
      %v139 = vunpack.c.l.b16 %v102
      %v140 = vunpack.c.h.b16 %v102
      %v141 = vunpack.c.l.b16 %v103
      %v142 = vunpack.c.h.b16 %v103
      %v143 = vunpack.c.l.b16 %v104
      %v144 = vunpack.c.h.b16 %v104
      %v145 = vunpack.c.l.b16 %v105
      %v146 = vunpack.c.h.b16 %v105
      %v147 = vunpack.c.l.b16 %v106
      %v148 = vunpack.c.h.b16 %v106
      %v149 = vunpack.c.l.b16 %v107
      %v150 = vunpack.c.h.b16 %v107
      %v151 = vunpack.c.l.b16 %v108
      %v152 = vunpack.c.h.b16 %v108
      %v153 = vpack.c.b16 %v141, %v137
      %v154 = vpack.c.b16 %v142, %v138
      %v155 = vpack.c.b16 %v143, %v139
      %v156 = vpack.c.b16 %v144, %v140
      %v157 = vpack.c.b16 %v149, %v145
      %v158 = vpack.c.b16 %v150, %v146
      %v159 = vpack.c.b16 %v151, %v147
      %v160 = vpack.c.b16 %v152, %v148
      %vm169 = vcmask 261120
      %v171 = vsel %vm169, %v127, 0
      %v174 = vsel %vm169, %v128, 0
      %176 = vmatpush.bf16.msra.mxu0 0
      %177 = vmatpush.bf16.msra.mxu0 0
      %178 = vmatpush.bf16.msra.mxu0 0
      %179 = vmatpush.bf16.msra.mxu0 0
      %180 = vmatpush.bf16.msra.mxu0 0
      %181 = vmatpush.bf16.msra.mxu0 0
      %182 = vmatpush.bf16.msra.mxu0 %v157
      %183 = vmatpush.bf16.msra.mxu0 %v153
      %184 = vmatmul.bf16.gmra.mxu0 %v171
      %v185 = vpop.f32.mrf.mxu0
      %v186 = vadd.f32 %v111, %v185
      %v187 = vpop.f32.mrf.mxu0
      %v188 = vadd.f32 %v111, %v187
      %189 = vmatmul.bf16.gmra.mxu0 %v174
      %v190 = vpop.f32.mrf.mxu0
      %v191 = vadd.f32 %v111, %v190
      %v192 = vpop.f32.mrf.mxu0
      %v193 = vadd.f32 %v111, %v192
      %194 = vdwg.mxu0
      %195 = vmatpush.bf16.msra.mxu0 0
      %196 = vmatpush.bf16.msra.mxu0 0
      %197 = vmatpush.bf16.msra.mxu0 0
      %198 = vmatpush.bf16.msra.mxu0 0
      %199 = vmatpush.bf16.msra.mxu0 0
      %200 = vmatpush.bf16.msra.mxu0 0
      %201 = vmatpush.bf16.msra.mxu0 %v158
      %202 = vmatpush.bf16.msra.mxu0 %v154
      %203 = vmatmul.bf16.gmra.mxu0 %v171
      %v204 = vpop.f32.mrf.mxu0
      %v205 = vadd.f32 %v112, %v204
      %v206 = vpop.f32.mrf.mxu0
      %v207 = vadd.f32 %v112, %v206
      %208 = vmatmul.bf16.gmra.mxu0 %v174
      %v209 = vpop.f32.mrf.mxu0
      %v210 = vadd.f32 %v112, %v209
      %v211 = vpop.f32.mrf.mxu0
      %v212 = vadd.f32 %v112, %v211
      %213 = vdwg.mxu0
      %214 = vmatpush.bf16.msra.mxu0 0
      %215 = vmatpush.bf16.msra.mxu0 0
      %216 = vmatpush.bf16.msra.mxu0 0
      %217 = vmatpush.bf16.msra.mxu0 0
      %218 = vmatpush.bf16.msra.mxu0 0
      %219 = vmatpush.bf16.msra.mxu0 0
      %220 = vmatpush.bf16.msra.mxu0 %v159
      %221 = vmatpush.bf16.msra.mxu0 %v155
      %222 = vmatmul.bf16.gmra.mxu0 %v171
      %v223 = vpop.f32.mrf.mxu0
      %v224 = vadd.f32 %v113, %v223
      %v225 = vpop.f32.mrf.mxu0
      %v226 = vadd.f32 %v113, %v225
      %227 = vmatmul.bf16.gmra.mxu0 %v174
      %v228 = vpop.f32.mrf.mxu0
      %v229 = vadd.f32 %v113, %v228
      %v230 = vpop.f32.mrf.mxu0
      %v231 = vadd.f32 %v113, %v230
      %232 = vdwg.mxu0
      %233 = vmatpush.bf16.msra.mxu0 0
      %234 = vmatpush.bf16.msra.mxu0 0
      %235 = vmatpush.bf16.msra.mxu0 0
      %236 = vmatpush.bf16.msra.mxu0 0
      %237 = vmatpush.bf16.msra.mxu0 0
      %238 = vmatpush.bf16.msra.mxu0 0
      %239 = vmatpush.bf16.msra.mxu0 %v160
      %240 = vmatpush.bf16.msra.mxu0 %v156
      %241 = vmatmul.bf16.gmra.mxu0 %v171
      %v242 = vpop.f32.mrf.mxu0
      %v243 = vadd.f32 %v114, %v242
      %v244 = vpop.f32.mrf.mxu0
      %v245 = vadd.f32 %v114, %v244
      %246 = vmatmul.bf16.gmra.mxu0 %v174
      %v247 = vpop.f32.mrf.mxu0
      %v248 = vadd.f32 %v114, %v247
      %v249 = vpop.f32.mrf.mxu0
      %v250 = vadd.f32 %v114, %v249
      %251 = vdwg.mxu0
      %252 = vst [vmem:[#allocation2] sm:$0xff] %v186
      %253 = vst [vmem:[#allocation2 + $0x8] sm:$0xff] %v205
      %254 = vst [vmem:[#allocation2 + $0x10] sm:$0xff] %v224
      %255 = vst [vmem:[#allocation2 + $0x18] sm:$0xff] %v243
      %256 = vst [vmem:[#allocation2 + $0x20] sm:$0xff] %v188
      %257 = vst [vmem:[#allocation2 + $0x28] sm:$0xff] %v207
      %258 = vst [vmem:[#allocation2 + $0x30] sm:$0xff] %v226
      %259 = vst [vmem:[#allocation2 + $0x38] sm:$0xff] %v245
      %260 = vst [vmem:[#allocation2 + $0x40] sm:$0xff] %v191
      %261 = vst [vmem:[#allocation2 + $0x48] sm:$0xff] %v210
      %262 = vst [vmem:[#allocation2 + $0x50] sm:$0xff] %v229
      %263 = vst [vmem:[#allocation2 + $0x58] sm:$0xff] %v248
      %264 = vst [vmem:[#allocation2 + $0x60] sm:$0xff] %v193
      %265 = vst [vmem:[#allocation2 + $0x68] sm:$0xff] %v212
      %266 = vst [vmem:[#allocation2 + $0x70] sm:$0xff] %v231
      %267 = vst [vmem:[#allocation2 + $0x78] sm:$0xff] %v250
      %s268 = sshra.s32 %s92, 3
      %s269 = sand.u32 %s92, 7
      %s270 = smul.addr %s268, 4
      %s271 = scalar_lea.vmem %s0, %s270
      %v272 = vld [vmem:[%s271] sm:$0xf]
      %v273 = vld [vmem:[%s271 + $0x4] sm:$0xf]
      %v274 = vld [vmem:[%s271 + $0x8] sm:$0xf]
      %v275 = vld [vmem:[%s271 + $0xc] sm:$0xf]
      %v276 = vld [vmem:[#allocation7] sm:$0xff]
      %v277 = vld [vmem:[#allocation7 + $0x8] sm:$0xff]
      %v278 = vld [vmem:[#allocation7 + $0x10] sm:$0xff]
      %v279 = vld [vmem:[#allocation7 + $0x18] sm:$0xff]
      %v280 = vld [vmem:[#allocation7 + $0x20] sm:$0xff]
      %v281 = vld [vmem:[#allocation7 + $0x28] sm:$0xff]
      %v282 = vld [vmem:[#allocation7 + $0x30] sm:$0xff]
      %v283 = vld [vmem:[#allocation7 + $0x38] sm:$0xff]
      %v284 = vld [vmem:[%s6] sm:$0xf]
      %v286 = vperm.slane %v284, 0
      %v287 = vperm.slane %v284, 1
      %v288 = vperm.slane %v284, 2
      %v289 = vperm.slane %v284, 3
      %v298 = vunpack.c.l.b16 %v272
      %v299 = vunpack.c.l.b16 %v273
      %v300 = vunpack.c.l.b16 %v274
      %v301 = vunpack.c.l.b16 %v275
      %v302 = vpack.c.b16 %v299, %v298
      %v303 = vpack.c.b16 %v301, %v300
      %v312 = vunpack.c.l.b16 %v276
      %v313 = vunpack.c.h.b16 %v276
      %v314 = vunpack.c.l.b16 %v277
      %v315 = vunpack.c.h.b16 %v277
      %v316 = vunpack.c.l.b16 %v278
      %v317 = vunpack.c.h.b16 %v278
      %v318 = vunpack.c.l.b16 %v279
      %v319 = vunpack.c.h.b16 %v279
      %v320 = vunpack.c.l.b16 %v280
      %v321 = vunpack.c.h.b16 %v280
      %v322 = vunpack.c.l.b16 %v281
      %v323 = vunpack.c.h.b16 %v281
      %v324 = vunpack.c.l.b16 %v282
      %v325 = vunpack.c.h.b16 %v282
      %v326 = vunpack.c.l.b16 %v283
      %v327 = vunpack.c.h.b16 %v283
      %v328 = vpack.c.b16 %v316, %v312
      %v329 = vpack.c.b16 %v317, %v313
      %v330 = vpack.c.b16 %v318, %v314
      %v331 = vpack.c.b16 %v319, %v315
      %v332 = vpack.c.b16 %v324, %v320
      %v333 = vpack.c.b16 %v325, %v321
      %v334 = vpack.c.b16 %v326, %v322
      %v335 = vpack.c.b16 %v327, %v323
      %v345 = vsel %vm169, %v302, 0
      %v348 = vsel %vm169, %v303, 0
      %350 = vmatpush.bf16.msra.mxu0 0
      %351 = vmatpush.bf16.msra.mxu0 0
      %352 = vmatpush.bf16.msra.mxu0 0
      %353 = vmatpush.bf16.msra.mxu0 0
      %354 = vmatpush.bf16.msra.mxu0 0
      %355 = vmatpush.bf16.msra.mxu0 0
      %356 = vmatpush.bf16.msra.mxu0 %v332
      %357 = vmatpush.bf16.msra.mxu0 %v328
      %358 = vmatmul.bf16.gmra.mxu0 %v345
      %v359 = vpop.f32.mrf.mxu0
      %v360 = vadd.f32 %v286, %v359
      %v361 = vpop.f32.mrf.mxu0
      %v362 = vadd.f32 %v286, %v361
      %363 = vmatmul.bf16.gmra.mxu0 %v348
      %v364 = vpop.f32.mrf.mxu0
      %v365 = vadd.f32 %v286, %v364
      %v366 = vpop.f32.mrf.mxu0
      %v367 = vadd.f32 %v286, %v366
      %368 = vdwg.mxu0
      %369 = vmatpush.bf16.msra.mxu0 0
      %370 = vmatpush.bf16.msra.mxu0 0
      %371 = vmatpush.bf16.msra.mxu0 0
      %372 = vmatpush.bf16.msra.mxu0 0
      %373 = vmatpush.bf16.msra.mxu0 0
      %374 = vmatpush.bf16.msra.mxu0 0
      %375 = vmatpush.bf16.msra.mxu0 %v333
      %376 = vmatpush.bf16.msra.mxu0 %v329
      %377 = vmatmul.bf16.gmra.mxu0 %v345
      %v378 = vpop.f32.mrf.mxu0
      %v379 = vadd.f32 %v287, %v378
      %v380 = vpop.f32.mrf.mxu0
      %v381 = vadd.f32 %v287, %v380
      %382 = vmatmul.bf16.gmra.mxu0 %v348
      %v383 = vpop.f32.mrf.mxu0
      %v384 = vadd.f32 %v287, %v383
      %v385 = vpop.f32.mrf.mxu0
      %v386 = vadd.f32 %v287, %v385
      %387 = vdwg.mxu0
      %388 = vmatpush.bf16.msra.mxu0 0
      %389 = vmatpush.bf16.msra.mxu0 0
      %390 = vmatpush.bf16.msra.mxu0 0
      %391 = vmatpush.bf16.msra.mxu0 0
      %392 = vmatpush.bf16.msra.mxu0 0
      %393 = vmatpush.bf16.msra.mxu0 0
      %394 = vmatpush.bf16.msra.mxu0 %v334
      %395 = vmatpush.bf16.msra.mxu0 %v330
      %396 = vmatmul.bf16.gmra.mxu0 %v345
      %v397 = vpop.f32.mrf.mxu0
      %v398 = vadd.f32 %v288, %v397
      %v399 = vpop.f32.mrf.mxu0
      %v400 = vadd.f32 %v288, %v399
      %401 = vmatmul.bf16.gmra.mxu0 %v348
      %v402 = vpop.f32.mrf.mxu0
      %v403 = vadd.f32 %v288, %v402
      %v404 = vpop.f32.mrf.mxu0
      %v405 = vadd.f32 %v288, %v404
      %406 = vdwg.mxu0
      %407 = vmatpush.bf16.msra.mxu0 0
      %408 = vmatpush.bf16.msra.mxu0 0
      %409 = vmatpush.bf16.msra.mxu0 0
      %410 = vmatpush.bf16.msra.mxu0 0
      %411 = vmatpush.bf16.msra.mxu0 0
      %412 = vmatpush.bf16.msra.mxu0 0
      %413 = vmatpush.bf16.msra.mxu0 %v335
      %414 = vmatpush.bf16.msra.mxu0 %v331
      %415 = vmatmul.bf16.gmra.mxu0 %v345
      %v416 = vpop.f32.mrf.mxu0
      %v417 = vadd.f32 %v289, %v416
      %v418 = vpop.f32.mrf.mxu0
      %v419 = vadd.f32 %v289, %v418
      %420 = vmatmul.bf16.gmra.mxu0 %v348
      %v421 = vpop.f32.mrf.mxu0
      %v422 = vadd.f32 %v289, %v421
      %v423 = vpop.f32.mrf.mxu0
      %v424 = vadd.f32 %v289, %v423
      %425 = vdwg.mxu0
      %426 = vst [vmem:[#allocation3] sm:$0xff] %v360
      %427 = vst [vmem:[#allocation3 + $0x8] sm:$0xff] %v379
      %428 = vst [vmem:[#allocation3 + $0x10] sm:$0xff] %v398
      %429 = vst [vmem:[#allocation3 + $0x18] sm:$0xff] %v417
      %430 = vst [vmem:[#allocation3 + $0x20] sm:$0xff] %v362
      %431 = vst [vmem:[#allocation3 + $0x28] sm:$0xff] %v381
      %432 = vst [vmem:[#allocation3 + $0x30] sm:$0xff] %v400
      %433 = vst [vmem:[#allocation3 + $0x38] sm:$0xff] %v419
      %434 = vst [vmem:[#allocation3 + $0x40] sm:$0xff] %v365
      %435 = vst [vmem:[#allocation3 + $0x48] sm:$0xff] %v384
      %436 = vst [vmem:[#allocation3 + $0x50] sm:$0xff] %v403
      %437 = vst [vmem:[#allocation3 + $0x58] sm:$0xff] %v422
      %438 = vst [vmem:[#allocation3 + $0x60] sm:$0xff] %v367
      %439 = vst [vmem:[#allocation3 + $0x68] sm:$0xff] %v386
      %440 = vst [vmem:[#allocation3 + $0x70] sm:$0xff] %v405
      %441 = vst [vmem:[#allocation3 + $0x78] sm:$0xff] %v424
      %v442 = vld [vmem:[#allocation2] sm:$0xff]
      %v443 = vld [vmem:[#allocation2 + $0x8] sm:$0xff]
      %v444 = vld [vmem:[#allocation2 + $0x10] sm:$0xff]
      %v445 = vld [vmem:[#allocation2 + $0x18] sm:$0xff]
      %v446 = vpack.c.bf16 %v86, %v86
      %v447 = vld [vmem:[%s3] sm:$0xff]
      %v448 = vld [vmem:[%s3 + $0x8] sm:$0xff]
      %v449 = vld [vmem:[%s3 + $0x10] sm:$0xff]
      %v450 = vld [vmem:[%s3 + $0x18] sm:$0xff]
      %v451 = vld [vmem:[%s3 + $0x20] sm:$0xff]
      %v452 = vld [vmem:[%s3 + $0x28] sm:$0xff]
      %v453 = vld [vmem:[%s3 + $0x30] sm:$0xff]
      %v454 = vld [vmem:[%s3 + $0x38] sm:$0xff]
      %v455 = vld [vmem:[%s3 + $0x40] sm:$0xff]
      %v456 = vld [vmem:[%s3 + $0x48] sm:$0xff]
      %v457 = vld [vmem:[%s3 + $0x50] sm:$0xff]
      %v458 = vld [vmem:[%s3 + $0x58] sm:$0xff]
      %v459 = vld [vmem:[%s3 + $0x60] sm:$0xff]
      %v460 = vld [vmem:[%s3 + $0x68] sm:$0xff]
      %v461 = vld [vmem:[%s3 + $0x70] sm:$0xff]
      %v462 = vld [vmem:[%s3 + $0x78] sm:$0xff]
      %v463 = vld [vmem:[%s3 + $0x80] sm:$0xff]
      %v464 = vld [vmem:[%s3 + $0x88] sm:$0xff]
      %v465 = vld [vmem:[%s3 + $0x90] sm:$0xff]
      %v466 = vld [vmem:[%s3 + $0x98] sm:$0xff]
      %v467 = vld [vmem:[%s3 + $0xa0] sm:$0xff]
      %v468 = vld [vmem:[%s3 + $0xa8] sm:$0xff]
      %v469 = vld [vmem:[%s3 + $0xb0] sm:$0xff]
      %v470 = vld [vmem:[%s3 + $0xb8] sm:$0xff]
      %v471 = vld [vmem:[%s3 + $0xc0] sm:$0xff]
      %v472 = vld [vmem:[%s3 + $0xc8] sm:$0xff]
      %v473 = vld [vmem:[%s3 + $0xd0] sm:$0xff]
      %v474 = vld [vmem:[%s3 + $0xd8] sm:$0xff]
      %v475 = vld [vmem:[%s3 + $0xe0] sm:$0xff]
      %v476 = vld [vmem:[%s3 + $0xe8] sm:$0xff]
      %v477 = vld [vmem:[%s3 + $0xf0] sm:$0xff]
      %v478 = vld [vmem:[%s3 + $0xf8] sm:$0xff]
      %v511 = vunpack.c.l.b16 %v447
      %v512 = vunpack.c.h.b16 %v447
      %v513 = vunpack.c.l.b16 %v448
      %v514 = vunpack.c.h.b16 %v448
      %v515 = vunpack.c.l.b16 %v449
      %v516 = vunpack.c.h.b16 %v449
      %v517 = vunpack.c.l.b16 %v450
      %v518 = vunpack.c.h.b16 %v450
      %v519 = vunpack.c.l.b16 %v451
      %v520 = vunpack.c.h.b16 %v451
      %v521 = vunpack.c.l.b16 %v452
      %v522 = vunpack.c.h.b16 %v452
      %v523 = vunpack.c.l.b16 %v453
      %v524 = vunpack.c.h.b16 %v453
      %v525 = vunpack.c.l.b16 %v454
      %v526 = vunpack.c.h.b16 %v454
      %v527 = vunpack.c.l.b16 %v455
      %v528 = vunpack.c.h.b16 %v455
      %v529 = vunpack.c.l.b16 %v456
      %v530 = vunpack.c.h.b16 %v456
      %v531 = vunpack.c.l.b16 %v457
      %v532 = vunpack.c.h.b16 %v457
      %v533 = vunpack.c.l.b16 %v458
      %v534 = vunpack.c.h.b16 %v458
      %v535 = vunpack.c.l.b16 %v459
      %v536 = vunpack.c.h.b16 %v459
      %v537 = vunpack.c.l.b16 %v460
      %v538 = vunpack.c.h.b16 %v460
      %v539 = vunpack.c.l.b16 %v461
      %v540 = vunpack.c.h.b16 %v461
      %v541 = vunpack.c.l.b16 %v462
      %v542 = vunpack.c.h.b16 %v462
      %v543 = vunpack.c.l.b16 %v463
      %v544 = vunpack.c.h.b16 %v463
      %v545 = vunpack.c.l.b16 %v464
      %v546 = vunpack.c.h.b16 %v464
      %v547 = vunpack.c.l.b16 %v465
      %v548 = vunpack.c.h.b16 %v465
      %v549 = vunpack.c.l.b16 %v466
      %v550 = vunpack.c.h.b16 %v466
      %v551 = vunpack.c.l.b16 %v467
      %v552 = vunpack.c.h.b16 %v467
      %v553 = vunpack.c.l.b16 %v468
      %v554 = vunpack.c.h.b16 %v468
      %v555 = vunpack.c.l.b16 %v469
      %v556 = vunpack.c.h.b16 %v469
      %v557 = vunpack.c.l.b16 %v470
      %v558 = vunpack.c.h.b16 %v470
      %v559 = vunpack.c.l.b16 %v471
      %v560 = vunpack.c.h.b16 %v471
      %v561 = vunpack.c.l.b16 %v472
      %v562 = vunpack.c.h.b16 %v472
      %v563 = vunpack.c.l.b16 %v473
      %v564 = vunpack.c.h.b16 %v473
      %v565 = vunpack.c.l.b16 %v474
      %v566 = vunpack.c.h.b16 %v474
      %v567 = vunpack.c.l.b16 %v475
      %v568 = vunpack.c.h.b16 %v475
      %v569 = vunpack.c.l.b16 %v476
      %v570 = vunpack.c.h.b16 %v476
      %v571 = vunpack.c.l.b16 %v477
      %v572 = vunpack.c.h.b16 %v477
      %v573 = vunpack.c.l.b16 %v478
      %v574 = vunpack.c.h.b16 %v478
      %v575 = vpack.c.b16 %v515, %v511
      %v576 = vpack.c.b16 %v516, %v512
      %v577 = vpack.c.b16 %v517, %v513
      %v578 = vpack.c.b16 %v518, %v514
      %v579 = vpack.c.b16 %v523, %v519
      %v580 = vpack.c.b16 %v524, %v520
      %v581 = vpack.c.b16 %v525, %v521
      %v582 = vpack.c.b16 %v526, %v522
      %v583 = vpack.c.b16 %v531, %v527
      %v584 = vpack.c.b16 %v532, %v528
      %v585 = vpack.c.b16 %v533, %v529
      %v586 = vpack.c.b16 %v534, %v530
      %v587 = vpack.c.b16 %v539, %v535
      %v588 = vpack.c.b16 %v540, %v536
      %v589 = vpack.c.b16 %v541, %v537
      %v590 = vpack.c.b16 %v542, %v538
      %v591 = vpack.c.b16 %v547, %v543
      %v592 = vpack.c.b16 %v548, %v544
      %v593 = vpack.c.b16 %v549, %v545
      %v594 = vpack.c.b16 %v550, %v546
      %v595 = vpack.c.b16 %v555, %v551
      %v596 = vpack.c.b16 %v556, %v552
      %v597 = vpack.c.b16 %v557, %v553
      %v598 = vpack.c.b16 %v558, %v554
      %v599 = vpack.c.b16 %v563, %v559
      %v600 = vpack.c.b16 %v564, %v560
      %v601 = vpack.c.b16 %v565, %v561
      %v602 = vpack.c.b16 %v566, %v562
      %v603 = vpack.c.b16 %v571, %v567
      %v604 = vpack.c.b16 %v572, %v568
      %v605 = vpack.c.b16 %v573, %v569
      %v606 = vpack.c.b16 %v574, %v570
      %639 = vmatpush.bf16.msra.mxu0 %v603
      %640 = vmatpush.bf16.msra.mxu0 %v599
      %641 = vmatpush.bf16.msra.mxu0 %v595
      %642 = vmatpush.bf16.msra.mxu0 %v591
      %643 = vmatpush.bf16.msra.mxu0 %v587
      %644 = vmatpush.bf16.msra.mxu0 %v583
      %645 = vmatpush.bf16.msra.mxu0 %v579
      %646 = vmatpush.bf16.msra.mxu0 %v575
      %647 = vmatmul.bf16.gmra.mxu0 %v446
      %v648 = vpop.f32.mrf.mxu0
      %v649 = vadd.f32 0.0, %v648
      %v650 = vpop.f32.mrf.mxu0
      %651 = vdwg.mxu0
      %652 = vmatpush.bf16.msra.mxu0 %v604
      %653 = vmatpush.bf16.msra.mxu0 %v600
      %654 = vmatpush.bf16.msra.mxu0 %v596
      %655 = vmatpush.bf16.msra.mxu0 %v592
      %656 = vmatpush.bf16.msra.mxu0 %v588
      %657 = vmatpush.bf16.msra.mxu0 %v584
      %658 = vmatpush.bf16.msra.mxu0 %v580
      %659 = vmatpush.bf16.msra.mxu0 %v576
      %660 = vmatmul.bf16.gmra.mxu0 %v446
      %v661 = vpop.f32.mrf.mxu0
      %v662 = vadd.f32 0.0, %v661
      %v663 = vpop.f32.mrf.mxu0
      %664 = vdwg.mxu0
      %665 = vmatpush.bf16.msra.mxu0 %v605
      %666 = vmatpush.bf16.msra.mxu0 %v601
      %667 = vmatpush.bf16.msra.mxu0 %v597
      %668 = vmatpush.bf16.msra.mxu0 %v593
      %669 = vmatpush.bf16.msra.mxu0 %v589
      %670 = vmatpush.bf16.msra.mxu0 %v585
      %671 = vmatpush.bf16.msra.mxu0 %v581
      %672 = vmatpush.bf16.msra.mxu0 %v577
      %673 = vmatmul.bf16.gmra.mxu0 %v446
      %v674 = vpop.f32.mrf.mxu0
      %v675 = vadd.f32 0.0, %v674
      %v676 = vpop.f32.mrf.mxu0
      %677 = vdwg.mxu0
      %678 = vmatpush.bf16.msra.mxu0 %v606
      %679 = vmatpush.bf16.msra.mxu0 %v602
      %680 = vmatpush.bf16.msra.mxu0 %v598
      %681 = vmatpush.bf16.msra.mxu0 %v594
      %682 = vmatpush.bf16.msra.mxu0 %v590
      %683 = vmatpush.bf16.msra.mxu0 %v586
      %684 = vmatpush.bf16.msra.mxu0 %v582
      %685 = vmatpush.bf16.msra.mxu0 %v578
      %686 = vmatmul.bf16.gmra.mxu0 %v446
      %v687 = vpop.f32.mrf.mxu0
      %v688 = vadd.f32 0.0, %v687
      %v689 = vpop.f32.mrf.mxu0
      %690 = vdwg.mxu0
      %v691 = vadd.f32 %v442, %v649
      %v692 = vadd.f32 %v443, %v662
      %v693 = vadd.f32 %v444, %v675
      %v694 = vadd.f32 %v445, %v688
      %v695 = vld [vmem:[#allocation3 + $0x60] sm:$0xff]
      %v696 = vld [vmem:[#allocation3 + $0x68] sm:$0xff]
      %v697 = vld [vmem:[#allocation3 + $0x70] sm:$0xff]
      %v698 = vld [vmem:[#allocation3 + $0x78] sm:$0xff]
      %v699 = vpack.c.bf16 %v88, %v88
      %v700 = vld [vmem:[#allocation9] sm:$0xff]
      %v701 = vld [vmem:[#allocation9 + $0x8] sm:$0xff]
      %v702 = vld [vmem:[#allocation9 + $0x10] sm:$0xff]
      %v703 = vld [vmem:[#allocation9 + $0x18] sm:$0xff]
      %v704 = vld [vmem:[#allocation9 + $0x20] sm:$0xff]
      %v705 = vld [vmem:[#allocation9 + $0x28] sm:$0xff]
      %v706 = vld [vmem:[#allocation9 + $0x30] sm:$0xff]
      %v707 = vld [vmem:[#allocation9 + $0x38] sm:$0xff]
      %v708 = vld [vmem:[#allocation9 + $0x40] sm:$0xff]
      %v709 = vld [vmem:[#allocation9 + $0x48] sm:$0xff]
      %v710 = vld [vmem:[#allocation9 + $0x50] sm:$0xff]
      %v711 = vld [vmem:[#allocation9 + $0x58] sm:$0xff]
      %v712 = vld [vmem:[#allocation9 + $0x60] sm:$0xff]
      %v713 = vld [vmem:[#allocation9 + $0x68] sm:$0xff]
      %v714 = vld [vmem:[#allocation9 + $0x70] sm:$0xff]
      %v715 = vld [vmem:[#allocation9 + $0x78] sm:$0xff]
      %v716 = vld [vmem:[#allocation9 + $0x80] sm:$0xff]
      %v717 = vld [vmem:[#allocation9 + $0x88] sm:$0xff]
      %v718 = vld [vmem:[#allocation9 + $0x90] sm:$0xff]
      %v719 = vld [vmem:[#allocation9 + $0x98] sm:$0xff]
      %v720 = vld [vmem:[#allocation9 + $0xa0] sm:$0xff]
      %v721 = vld [vmem:[#allocation9 + $0xa8] sm:$0xff]
      %v722 = vld [vmem:[#allocation9 + $0xb0] sm:$0xff]
      %v723 = vld [vmem:[#allocation9 + $0xb8] sm:$0xff]
      %v724 = vld [vmem:[#allocation9 + $0xc0] sm:$0xff]
      %v725 = vld [vmem:[#allocation9 + $0xc8] sm:$0xff]
      %v726 = vld [vmem:[#allocation9 + $0xd0] sm:$0xff]
      %v727 = vld [vmem:[#allocation9 + $0xd8] sm:$0xff]
      %v728 = vld [vmem:[#allocation9 + $0xe0] sm:$0xff]
      %v729 = vld [vmem:[#allocation9 + $0xe8] sm:$0xff]
      %v730 = vld [vmem:[#allocation9 + $0xf0] sm:$0xff]
      %v731 = vld [vmem:[#allocation9 + $0xf8] sm:$0xff]
      %v764 = vunpack.c.l.b16 %v700
      %v765 = vunpack.c.h.b16 %v700
      %v766 = vunpack.c.l.b16 %v701
      %v767 = vunpack.c.h.b16 %v701
      %v768 = vunpack.c.l.b16 %v702
      %v769 = vunpack.c.h.b16 %v702
      %v770 = vunpack.c.l.b16 %v703
      %v771 = vunpack.c.h.b16 %v703
      %v772 = vunpack.c.l.b16 %v704
      %v773 = vunpack.c.h.b16 %v704
      %v774 = vunpack.c.l.b16 %v705
      %v775 = vunpack.c.h.b16 %v705
      %v776 = vunpack.c.l.b16 %v706
      %v777 = vunpack.c.h.b16 %v706
      %v778 = vunpack.c.l.b16 %v707
      %v779 = vunpack.c.h.b16 %v707
      %v780 = vunpack.c.l.b16 %v708
      %v781 = vunpack.c.h.b16 %v708
      %v782 = vunpack.c.l.b16 %v709
      %v783 = vunpack.c.h.b16 %v709
      %v784 = vunpack.c.l.b16 %v710
      %v785 = vunpack.c.h.b16 %v710
      %v786 = vunpack.c.l.b16 %v711
      %v787 = vunpack.c.h.b16 %v711
      %v788 = vunpack.c.l.b16 %v712
      %v789 = vunpack.c.h.b16 %v712
      %v790 = vunpack.c.l.b16 %v713
      %v791 = vunpack.c.h.b16 %v713
      %v792 = vunpack.c.l.b16 %v714
      %v793 = vunpack.c.h.b16 %v714
      %v794 = vunpack.c.l.b16 %v715
      %v795 = vunpack.c.h.b16 %v715
      %v796 = vunpack.c.l.b16 %v716
      %v797 = vunpack.c.h.b16 %v716
      %v798 = vunpack.c.l.b16 %v717
      %v799 = vunpack.c.h.b16 %v717
      %v800 = vunpack.c.l.b16 %v718
      %v801 = vunpack.c.h.b16 %v718
      %v802 = vunpack.c.l.b16 %v719
      %v803 = vunpack.c.h.b16 %v719
      %v804 = vunpack.c.l.b16 %v720
      %v805 = vunpack.c.h.b16 %v720
      %v806 = vunpack.c.l.b16 %v721
      %v807 = vunpack.c.h.b16 %v721
      %v808 = vunpack.c.l.b16 %v722
      %v809 = vunpack.c.h.b16 %v722
      %v810 = vunpack.c.l.b16 %v723
      %v811 = vunpack.c.h.b16 %v723
      %v812 = vunpack.c.l.b16 %v724
      %v813 = vunpack.c.h.b16 %v724
      %v814 = vunpack.c.l.b16 %v725
      %v815 = vunpack.c.h.b16 %v725
      %v816 = vunpack.c.l.b16 %v726
      %v817 = vunpack.c.h.b16 %v726
      %v818 = vunpack.c.l.b16 %v727
      %v819 = vunpack.c.h.b16 %v727
      %v820 = vunpack.c.l.b16 %v728
      %v821 = vunpack.c.h.b16 %v728
      %v822 = vunpack.c.l.b16 %v729
      %v823 = vunpack.c.h.b16 %v729
      %v824 = vunpack.c.l.b16 %v730
      %v825 = vunpack.c.h.b16 %v730
      %v826 = vunpack.c.l.b16 %v731
      %v827 = vunpack.c.h.b16 %v731
      %v828 = vpack.c.b16 %v768, %v764
      %v829 = vpack.c.b16 %v769, %v765
      %v830 = vpack.c.b16 %v770, %v766
      %v831 = vpack.c.b16 %v771, %v767
      %v832 = vpack.c.b16 %v776, %v772
      %v833 = vpack.c.b16 %v777, %v773
      %v834 = vpack.c.b16 %v778, %v774
      %v835 = vpack.c.b16 %v779, %v775
      %v836 = vpack.c.b16 %v784, %v780
      %v837 = vpack.c.b16 %v785, %v781
      %v838 = vpack.c.b16 %v786, %v782
      %v839 = vpack.c.b16 %v787, %v783
      %v840 = vpack.c.b16 %v792, %v788
      %v841 = vpack.c.b16 %v793, %v789
      %v842 = vpack.c.b16 %v794, %v790
      %v843 = vpack.c.b16 %v795, %v791
      %v844 = vpack.c.b16 %v800, %v796
      %v845 = vpack.c.b16 %v801, %v797
      %v846 = vpack.c.b16 %v802, %v798
      %v847 = vpack.c.b16 %v803, %v799
      %v848 = vpack.c.b16 %v808, %v804
      %v849 = vpack.c.b16 %v809, %v805
      %v850 = vpack.c.b16 %v810, %v806
      %v851 = vpack.c.b16 %v811, %v807
      %v852 = vpack.c.b16 %v816, %v812
      %v853 = vpack.c.b16 %v817, %v813
      %v854 = vpack.c.b16 %v818, %v814
      %v855 = vpack.c.b16 %v819, %v815
      %v856 = vpack.c.b16 %v824, %v820
      %v857 = vpack.c.b16 %v825, %v821
      %v858 = vpack.c.b16 %v826, %v822
      %v859 = vpack.c.b16 %v827, %v823
      %892 = vmatpush.bf16.msra.mxu0 %v856
      %893 = vmatpush.bf16.msra.mxu0 %v852
      %894 = vmatpush.bf16.msra.mxu0 %v848
      %895 = vmatpush.bf16.msra.mxu0 %v844
      %896 = vmatpush.bf16.msra.mxu0 %v840
      %897 = vmatpush.bf16.msra.mxu0 %v836
      %898 = vmatpush.bf16.msra.mxu0 %v832
      %899 = vmatpush.bf16.msra.mxu0 %v828
      %900 = vmatmul.bf16.gmra.mxu0 %v699
      %v901 = vpop.f32.mrf.mxu0
      %v902 = vadd.f32 0.0, %v901
      %v903 = vpop.f32.mrf.mxu0
      %904 = vdwg.mxu0
      %905 = vmatpush.bf16.msra.mxu0 %v857
      %906 = vmatpush.bf16.msra.mxu0 %v853
      %907 = vmatpush.bf16.msra.mxu0 %v849
      %908 = vmatpush.bf16.msra.mxu0 %v845
      %909 = vmatpush.bf16.msra.mxu0 %v841
      %910 = vmatpush.bf16.msra.mxu0 %v837
      %911 = vmatpush.bf16.msra.mxu0 %v833
      %912 = vmatpush.bf16.msra.mxu0 %v829
      %913 = vmatmul.bf16.gmra.mxu0 %v699
      %v914 = vpop.f32.mrf.mxu0
      %v915 = vadd.f32 0.0, %v914
      %v916 = vpop.f32.mrf.mxu0
      %917 = vdwg.mxu0
      %918 = vmatpush.bf16.msra.mxu0 %v858
      %919 = vmatpush.bf16.msra.mxu0 %v854
      %920 = vmatpush.bf16.msra.mxu0 %v850
      %921 = vmatpush.bf16.msra.mxu0 %v846
      %922 = vmatpush.bf16.msra.mxu0 %v842
      %923 = vmatpush.bf16.msra.mxu0 %v838
      %924 = vmatpush.bf16.msra.mxu0 %v834
      %925 = vmatpush.bf16.msra.mxu0 %v830
      %926 = vmatmul.bf16.gmra.mxu0 %v699
      %v927 = vpop.f32.mrf.mxu0
      %v928 = vadd.f32 0.0, %v927
      %v929 = vpop.f32.mrf.mxu0
      %930 = vdwg.mxu0
      %931 = vmatpush.bf16.msra.mxu0 %v859
      %932 = vmatpush.bf16.msra.mxu0 %v855
      %933 = vmatpush.bf16.msra.mxu0 %v851
      %934 = vmatpush.bf16.msra.mxu0 %v847
      %935 = vmatpush.bf16.msra.mxu0 %v843
      %936 = vmatpush.bf16.msra.mxu0 %v839
      %937 = vmatpush.bf16.msra.mxu0 %v835
      %938 = vmatpush.bf16.msra.mxu0 %v831
      %939 = vmatmul.bf16.gmra.mxu0 %v699
      %v940 = vpop.f32.mrf.mxu0
      %v941 = vadd.f32 0.0, %v940
      %v942 = vpop.f32.mrf.mxu0
      %943 = vdwg.mxu0
      %v944 = vadd.f32 %v695, %v902
      %v945 = vadd.f32 %v696, %v915
      %v946 = vadd.f32 %v697, %v928
      %v947 = vadd.f32 %v698, %v941
      %v948 = vmul.f32 %v691, 0.5
      %v949 = vtanh.pop %v948
      %v950 = vmul.f32 %v949, 0.5
      %v951 = vadd.f32 %v950, 0.5
      %v952 = vmul.f32 %v692, 0.5
      %v953 = vtanh.pop %v952
      %v954 = vmul.f32 %v953, 0.5
      %v955 = vadd.f32 %v954, 0.5
      %v956 = vtanh.pop %v693
      %v957 = vmul.f32 %v694, 0.5
      %v958 = vtanh.pop %v957
      %v959 = vmul.f32 %v958, 0.5
      %v960 = vadd.f32 %v959, 0.5
      %v961 = vmul.f32 %v955, %v87
      %v962 = vmul.f32 %v951, %v956
      %v963 = vadd.f32 %v961, %v962
      %v964 = vtanh.pop %v963
      %v965 = vmul.f32 %v960, %v964
      %v966 = vmul.f32 %v944, 0.5
      %v967 = vtanh.pop %v966
      %v968 = vmul.f32 %v967, 0.5
      %v969 = vadd.f32 %v968, 0.5
      %v970 = vmul.f32 %v945, 0.5
      %v971 = vtanh.pop %v970
      %v972 = vmul.f32 %v971, 0.5
      %v973 = vadd.f32 %v972, 0.5
      %v974 = vtanh.pop %v946
      %v975 = vmul.f32 %v947, 0.5
      %v976 = vtanh.pop %v975
      %v977 = vmul.f32 %v976, 0.5
      %v978 = vadd.f32 %v977, 0.5
      %v979 = vmul.f32 %v973, %v89
      %v980 = vmul.f32 %v969, %v974
      %v981 = vadd.f32 %v979, %v980
      %v982 = vtanh.pop %v981
      %v983 = vmul.f32 %v978, %v982
      %s984 = sshra.s32 %s90, 3
      %s985 = sand.u32 %s90, 7
      %s986 = smul.u32 %s984, 2
      %s987 = smul.addr %s986, 8
      %s988 = scalar_lea.vmem [#allocation4], %s987
      %989 = vst [vmem:[%s988] sm:$0xff] %v965
      %s990 = sadd.s32 %s92, 24
      %s991 = sshra.s32 %s990, 3
      %s992 = sand.u32 %s990, 7
      %s993 = smul.u32 %s991, 2
      %s994 = smul.addr %s993, 8
      %s995 = scalar_lea.vmem [#allocation4], %s994
      %996 = vst [vmem:[%s995 + $0x8] sm:$0xff] %v983
      %v997 = vld [vmem:[#allocation2 + $0x20] sm:$0xff]
      %v998 = vld [vmem:[#allocation2 + $0x28] sm:$0xff]
      %v999 = vld [vmem:[#allocation2 + $0x30] sm:$0xff]
      %v1000 = vld [vmem:[#allocation2 + $0x38] sm:$0xff]
      %v1001 = vpack.c.bf16 %v965, %v965
      %v1002 = vld [vmem:[%s3] sm:$0xff]
      %v1003 = vld [vmem:[%s3 + $0x8] sm:$0xff]
      %v1004 = vld [vmem:[%s3 + $0x10] sm:$0xff]
      %v1005 = vld [vmem:[%s3 + $0x18] sm:$0xff]
      %v1006 = vld [vmem:[%s3 + $0x20] sm:$0xff]
      %v1007 = vld [vmem:[%s3 + $0x28] sm:$0xff]
      %v1008 = vld [vmem:[%s3 + $0x30] sm:$0xff]
      %v1009 = vld [vmem:[%s3 + $0x38] sm:$0xff]
      %v1010 = vld [vmem:[%s3 + $0x40] sm:$0xff]
      %v1011 = vld [vmem:[%s3 + $0x48] sm:$0xff]
      %v1012 = vld [vmem:[%s3 + $0x50] sm:$0xff]
      %v1013 = vld [vmem:[%s3 + $0x58] sm:$0xff]
      %v1014 = vld [vmem:[%s3 + $0x60] sm:$0xff]
      %v1015 = vld [vmem:[%s3 + $0x68] sm:$0xff]
      %v1016 = vld [vmem:[%s3 + $0x70] sm:$0xff]
      %v1017 = vld [vmem:[%s3 + $0x78] sm:$0xff]
      %v1018 = vld [vmem:[%s3 + $0x80] sm:$0xff]
      %v1019 = vld [vmem:[%s3 + $0x88] sm:$0xff]
      %v1020 = vld [vmem:[%s3 + $0x90] sm:$0xff]
      %v1021 = vld [vmem:[%s3 + $0x98] sm:$0xff]
      %v1022 = vld [vmem:[%s3 + $0xa0] sm:$0xff]
      %v1023 = vld [vmem:[%s3 + $0xa8] sm:$0xff]
      %v1024 = vld [vmem:[%s3 + $0xb0] sm:$0xff]
      %v1025 = vld [vmem:[%s3 + $0xb8] sm:$0xff]
      %v1026 = vld [vmem:[%s3 + $0xc0] sm:$0xff]
      %v1027 = vld [vmem:[%s3 + $0xc8] sm:$0xff]
      %v1028 = vld [vmem:[%s3 + $0xd0] sm:$0xff]
      %v1029 = vld [vmem:[%s3 + $0xd8] sm:$0xff]
      %v1030 = vld [vmem:[%s3 + $0xe0] sm:$0xff]
      %v1031 = vld [vmem:[%s3 + $0xe8] sm:$0xff]
      %v1032 = vld [vmem:[%s3 + $0xf0] sm:$0xff]
      %v1033 = vld [vmem:[%s3 + $0xf8] sm:$0xff]
      %v1066 = vunpack.c.l.b16 %v1002
      %v1067 = vunpack.c.h.b16 %v1002
      %v1068 = vunpack.c.l.b16 %v1003
      %v1069 = vunpack.c.h.b16 %v1003
      %v1070 = vunpack.c.l.b16 %v1004
      %v1071 = vunpack.c.h.b16 %v1004
      %v1072 = vunpack.c.l.b16 %v1005
      %v1073 = vunpack.c.h.b16 %v1005
      %v1074 = vunpack.c.l.b16 %v1006
      %v1075 = vunpack.c.h.b16 %v1006
      %v1076 = vunpack.c.l.b16 %v1007
      %v1077 = vunpack.c.h.b16 %v1007
      %v1078 = vunpack.c.l.b16 %v1008
      %v1079 = vunpack.c.h.b16 %v1008
      %v1080 = vunpack.c.l.b16 %v1009
      %v1081 = vunpack.c.h.b16 %v1009
      %v1082 = vunpack.c.l.b16 %v1010
      %v1083 = vunpack.c.h.b16 %v1010
      %v1084 = vunpack.c.l.b16 %v1011
      %v1085 = vunpack.c.h.b16 %v1011
      %v1086 = vunpack.c.l.b16 %v1012
      %v1087 = vunpack.c.h.b16 %v1012
      %v1088 = vunpack.c.l.b16 %v1013
      %v1089 = vunpack.c.h.b16 %v1013
      %v1090 = vunpack.c.l.b16 %v1014
      %v1091 = vunpack.c.h.b16 %v1014
      %v1092 = vunpack.c.l.b16 %v1015
      %v1093 = vunpack.c.h.b16 %v1015
      %v1094 = vunpack.c.l.b16 %v1016
      %v1095 = vunpack.c.h.b16 %v1016
      %v1096 = vunpack.c.l.b16 %v1017
      %v1097 = vunpack.c.h.b16 %v1017
      %v1098 = vunpack.c.l.b16 %v1018
      %v1099 = vunpack.c.h.b16 %v1018
      %v1100 = vunpack.c.l.b16 %v1019
      %v1101 = vunpack.c.h.b16 %v1019
      %v1102 = vunpack.c.l.b16 %v1020
      %v1103 = vunpack.c.h.b16 %v1020
      %v1104 = vunpack.c.l.b16 %v1021
      %v1105 = vunpack.c.h.b16 %v1021
      %v1106 = vunpack.c.l.b16 %v1022
      %v1107 = vunpack.c.h.b16 %v1022
      %v1108 = vunpack.c.l.b16 %v1023
      %v1109 = vunpack.c.h.b16 %v1023
      %v1110 = vunpack.c.l.b16 %v1024
      %v1111 = vunpack.c.h.b16 %v1024
      %v1112 = vunpack.c.l.b16 %v1025
      %v1113 = vunpack.c.h.b16 %v1025
      %v1114 = vunpack.c.l.b16 %v1026
      %v1115 = vunpack.c.h.b16 %v1026
      %v1116 = vunpack.c.l.b16 %v1027
      %v1117 = vunpack.c.h.b16 %v1027
      %v1118 = vunpack.c.l.b16 %v1028
      %v1119 = vunpack.c.h.b16 %v1028
      %v1120 = vunpack.c.l.b16 %v1029
      %v1121 = vunpack.c.h.b16 %v1029
      %v1122 = vunpack.c.l.b16 %v1030
      %v1123 = vunpack.c.h.b16 %v1030
      %v1124 = vunpack.c.l.b16 %v1031
      %v1125 = vunpack.c.h.b16 %v1031
      %v1126 = vunpack.c.l.b16 %v1032
      %v1127 = vunpack.c.h.b16 %v1032
      %v1128 = vunpack.c.l.b16 %v1033
      %v1129 = vunpack.c.h.b16 %v1033
      %v1130 = vpack.c.b16 %v1070, %v1066
      %v1131 = vpack.c.b16 %v1071, %v1067
      %v1132 = vpack.c.b16 %v1072, %v1068
      %v1133 = vpack.c.b16 %v1073, %v1069
      %v1134 = vpack.c.b16 %v1078, %v1074
      %v1135 = vpack.c.b16 %v1079, %v1075
      %v1136 = vpack.c.b16 %v1080, %v1076
      %v1137 = vpack.c.b16 %v1081, %v1077
      %v1138 = vpack.c.b16 %v1086, %v1082
      %v1139 = vpack.c.b16 %v1087, %v1083
      %v1140 = vpack.c.b16 %v1088, %v1084
      %v1141 = vpack.c.b16 %v1089, %v1085
      %v1142 = vpack.c.b16 %v1094, %v1090
      %v1143 = vpack.c.b16 %v1095, %v1091
      %v1144 = vpack.c.b16 %v1096, %v1092
      %v1145 = vpack.c.b16 %v1097, %v1093
      %v1146 = vpack.c.b16 %v1102, %v1098
      %v1147 = vpack.c.b16 %v1103, %v1099
      %v1148 = vpack.c.b16 %v1104, %v1100
      %v1149 = vpack.c.b16 %v1105, %v1101
      %v1150 = vpack.c.b16 %v1110, %v1106
      %v1151 = vpack.c.b16 %v1111, %v1107
      %v1152 = vpack.c.b16 %v1112, %v1108
      %v1153 = vpack.c.b16 %v1113, %v1109
      %v1154 = vpack.c.b16 %v1118, %v1114
      %v1155 = vpack.c.b16 %v1119, %v1115
      %v1156 = vpack.c.b16 %v1120, %v1116
      %v1157 = vpack.c.b16 %v1121, %v1117
      %v1158 = vpack.c.b16 %v1126, %v1122
      %v1159 = vpack.c.b16 %v1127, %v1123
      %v1160 = vpack.c.b16 %v1128, %v1124
      %v1161 = vpack.c.b16 %v1129, %v1125
      %1194 = vmatpush.bf16.msra.mxu0 %v1158
      %1195 = vmatpush.bf16.msra.mxu0 %v1154
      %1196 = vmatpush.bf16.msra.mxu0 %v1150
      %1197 = vmatpush.bf16.msra.mxu0 %v1146
      %1198 = vmatpush.bf16.msra.mxu0 %v1142
      %1199 = vmatpush.bf16.msra.mxu0 %v1138
      %1200 = vmatpush.bf16.msra.mxu0 %v1134
      %1201 = vmatpush.bf16.msra.mxu0 %v1130
      %1202 = vmatmul.bf16.gmra.mxu0 %v1001
      %v1203 = vpop.f32.mrf.mxu0
      %v1204 = vadd.f32 0.0, %v1203
      %v1205 = vpop.f32.mrf.mxu0
      %1206 = vdwg.mxu0
      %1207 = vmatpush.bf16.msra.mxu0 %v1159
      %1208 = vmatpush.bf16.msra.mxu0 %v1155
      %1209 = vmatpush.bf16.msra.mxu0 %v1151
      %1210 = vmatpush.bf16.msra.mxu0 %v1147
      %1211 = vmatpush.bf16.msra.mxu0 %v1143
      %1212 = vmatpush.bf16.msra.mxu0 %v1139
      %1213 = vmatpush.bf16.msra.mxu0 %v1135
      %1214 = vmatpush.bf16.msra.mxu0 %v1131
      %1215 = vmatmul.bf16.gmra.mxu0 %v1001
      %v1216 = vpop.f32.mrf.mxu0
      %v1217 = vadd.f32 0.0, %v1216
      %v1218 = vpop.f32.mrf.mxu0
      %1219 = vdwg.mxu0
      %1220 = vmatpush.bf16.msra.mxu0 %v1160
      %1221 = vmatpush.bf16.msra.mxu0 %v1156
      %1222 = vmatpush.bf16.msra.mxu0 %v1152
      %1223 = vmatpush.bf16.msra.mxu0 %v1148
      %1224 = vmatpush.bf16.msra.mxu0 %v1144
      %1225 = vmatpush.bf16.msra.mxu0 %v1140
      %1226 = vmatpush.bf16.msra.mxu0 %v1136
      %1227 = vmatpush.bf16.msra.mxu0 %v1132
      %1228 = vmatmul.bf16.gmra.mxu0 %v1001
      %v1229 = vpop.f32.mrf.mxu0
      %v1230 = vadd.f32 0.0, %v1229
      %v1231 = vpop.f32.mrf.mxu0
      %1232 = vdwg.mxu0
      %1233 = vmatpush.bf16.msra.mxu0 %v1161
      %1234 = vmatpush.bf16.msra.mxu0 %v1157
      %1235 = vmatpush.bf16.msra.mxu0 %v1153
      %1236 = vmatpush.bf16.msra.mxu0 %v1149
      %1237 = vmatpush.bf16.msra.mxu0 %v1145
      %1238 = vmatpush.bf16.msra.mxu0 %v1141
      %1239 = vmatpush.bf16.msra.mxu0 %v1137
      %1240 = vmatpush.bf16.msra.mxu0 %v1133
      %1241 = vmatmul.bf16.gmra.mxu0 %v1001
      %v1242 = vpop.f32.mrf.mxu0
      %v1243 = vadd.f32 0.0, %v1242
      %v1244 = vpop.f32.mrf.mxu0
      %1245 = vdwg.mxu0
      %v1246 = vadd.f32 %v997, %v1204
      %v1247 = vadd.f32 %v998, %v1217
      %v1248 = vadd.f32 %v999, %v1230
      %v1249 = vadd.f32 %v1000, %v1243
      %v1250 = vld [vmem:[#allocation3 + $0x40] sm:$0xff]
      %v1251 = vld [vmem:[#allocation3 + $0x48] sm:$0xff]
      %v1252 = vld [vmem:[#allocation3 + $0x50] sm:$0xff]
      %v1253 = vld [vmem:[#allocation3 + $0x58] sm:$0xff]
      %v1254 = vpack.c.bf16 %v983, %v983
      %v1255 = vld [vmem:[#allocation9] sm:$0xff]
      %v1256 = vld [vmem:[#allocation9 + $0x8] sm:$0xff]
      %v1257 = vld [vmem:[#allocation9 + $0x10] sm:$0xff]
      %v1258 = vld [vmem:[#allocation9 + $0x18] sm:$0xff]
      %v1259 = vld [vmem:[#allocation9 + $0x20] sm:$0xff]
      %v1260 = vld [vmem:[#allocation9 + $0x28] sm:$0xff]
      %v1261 = vld [vmem:[#allocation9 + $0x30] sm:$0xff]
      %v1262 = vld [vmem:[#allocation9 + $0x38] sm:$0xff]
      %v1263 = vld [vmem:[#allocation9 + $0x40] sm:$0xff]
      %v1264 = vld [vmem:[#allocation9 + $0x48] sm:$0xff]
      %v1265 = vld [vmem:[#allocation9 + $0x50] sm:$0xff]
      %v1266 = vld [vmem:[#allocation9 + $0x58] sm:$0xff]
      %v1267 = vld [vmem:[#allocation9 + $0x60] sm:$0xff]
      %v1268 = vld [vmem:[#allocation9 + $0x68] sm:$0xff]
      %v1269 = vld [vmem:[#allocation9 + $0x70] sm:$0xff]
      %v1270 = vld [vmem:[#allocation9 + $0x78] sm:$0xff]
      %v1271 = vld [vmem:[#allocation9 + $0x80] sm:$0xff]
      %v1272 = vld [vmem:[#allocation9 + $0x88] sm:$0xff]
      %v1273 = vld [vmem:[#allocation9 + $0x90] sm:$0xff]
      %v1274 = vld [vmem:[#allocation9 + $0x98] sm:$0xff]
      %v1275 = vld [vmem:[#allocation9 + $0xa0] sm:$0xff]
      %v1276 = vld [vmem:[#allocation9 + $0xa8] sm:$0xff]
      %v1277 = vld [vmem:[#allocation9 + $0xb0] sm:$0xff]
      %v1278 = vld [vmem:[#allocation9 + $0xb8] sm:$0xff]
      %v1279 = vld [vmem:[#allocation9 + $0xc0] sm:$0xff]
      %v1280 = vld [vmem:[#allocation9 + $0xc8] sm:$0xff]
      %v1281 = vld [vmem:[#allocation9 + $0xd0] sm:$0xff]
      %v1282 = vld [vmem:[#allocation9 + $0xd8] sm:$0xff]
      %v1283 = vld [vmem:[#allocation9 + $0xe0] sm:$0xff]
      %v1284 = vld [vmem:[#allocation9 + $0xe8] sm:$0xff]
      %v1285 = vld [vmem:[#allocation9 + $0xf0] sm:$0xff]
      %v1286 = vld [vmem:[#allocation9 + $0xf8] sm:$0xff]
      %v1319 = vunpack.c.l.b16 %v1255
      %v1320 = vunpack.c.h.b16 %v1255
      %v1321 = vunpack.c.l.b16 %v1256
      %v1322 = vunpack.c.h.b16 %v1256
      %v1323 = vunpack.c.l.b16 %v1257
      %v1324 = vunpack.c.h.b16 %v1257
      %v1325 = vunpack.c.l.b16 %v1258
      %v1326 = vunpack.c.h.b16 %v1258
      %v1327 = vunpack.c.l.b16 %v1259
      %v1328 = vunpack.c.h.b16 %v1259
      %v1329 = vunpack.c.l.b16 %v1260
      %v1330 = vunpack.c.h.b16 %v1260
      %v1331 = vunpack.c.l.b16 %v1261
      %v1332 = vunpack.c.h.b16 %v1261
      %v1333 = vunpack.c.l.b16 %v1262
      %v1334 = vunpack.c.h.b16 %v1262
      %v1335 = vunpack.c.l.b16 %v1263
      %v1336 = vunpack.c.h.b16 %v1263
      %v1337 = vunpack.c.l.b16 %v1264
      %v1338 = vunpack.c.h.b16 %v1264
      %v1339 = vunpack.c.l.b16 %v1265
      %v1340 = vunpack.c.h.b16 %v1265
      %v1341 = vunpack.c.l.b16 %v1266
      %v1342 = vunpack.c.h.b16 %v1266
      %v1343 = vunpack.c.l.b16 %v1267
      %v1344 = vunpack.c.h.b16 %v1267
      %v1345 = vunpack.c.l.b16 %v1268
      %v1346 = vunpack.c.h.b16 %v1268
      %v1347 = vunpack.c.l.b16 %v1269
      %v1348 = vunpack.c.h.b16 %v1269
      %v1349 = vunpack.c.l.b16 %v1270
      %v1350 = vunpack.c.h.b16 %v1270
      %v1351 = vunpack.c.l.b16 %v1271
      %v1352 = vunpack.c.h.b16 %v1271
      %v1353 = vunpack.c.l.b16 %v1272
      %v1354 = vunpack.c.h.b16 %v1272
      %v1355 = vunpack.c.l.b16 %v1273
      %v1356 = vunpack.c.h.b16 %v1273
      %v1357 = vunpack.c.l.b16 %v1274
      %v1358 = vunpack.c.h.b16 %v1274
      %v1359 = vunpack.c.l.b16 %v1275
      %v1360 = vunpack.c.h.b16 %v1275
      %v1361 = vunpack.c.l.b16 %v1276
      %v1362 = vunpack.c.h.b16 %v1276
      %v1363 = vunpack.c.l.b16 %v1277
      %v1364 = vunpack.c.h.b16 %v1277
      %v1365 = vunpack.c.l.b16 %v1278
      %v1366 = vunpack.c.h.b16 %v1278
      %v1367 = vunpack.c.l.b16 %v1279
      %v1368 = vunpack.c.h.b16 %v1279
      %v1369 = vunpack.c.l.b16 %v1280
      %v1370 = vunpack.c.h.b16 %v1280
      %v1371 = vunpack.c.l.b16 %v1281
      %v1372 = vunpack.c.h.b16 %v1281
      %v1373 = vunpack.c.l.b16 %v1282
      %v1374 = vunpack.c.h.b16 %v1282
      %v1375 = vunpack.c.l.b16 %v1283
      %v1376 = vunpack.c.h.b16 %v1283
      %v1377 = vunpack.c.l.b16 %v1284
      %v1378 = vunpack.c.h.b16 %v1284
      %v1379 = vunpack.c.l.b16 %v1285
      %v1380 = vunpack.c.h.b16 %v1285
      %v1381 = vunpack.c.l.b16 %v1286
      %v1382 = vunpack.c.h.b16 %v1286
      %v1383 = vpack.c.b16 %v1323, %v1319
      %v1384 = vpack.c.b16 %v1324, %v1320
      %v1385 = vpack.c.b16 %v1325, %v1321
      %v1386 = vpack.c.b16 %v1326, %v1322
      %v1387 = vpack.c.b16 %v1331, %v1327
      %v1388 = vpack.c.b16 %v1332, %v1328
      %v1389 = vpack.c.b16 %v1333, %v1329
      %v1390 = vpack.c.b16 %v1334, %v1330
      %v1391 = vpack.c.b16 %v1339, %v1335
      %v1392 = vpack.c.b16 %v1340, %v1336
      %v1393 = vpack.c.b16 %v1341, %v1337
      %v1394 = vpack.c.b16 %v1342, %v1338
      %v1395 = vpack.c.b16 %v1347, %v1343
      %v1396 = vpack.c.b16 %v1348, %v1344
      %v1397 = vpack.c.b16 %v1349, %v1345
      %v1398 = vpack.c.b16 %v1350, %v1346
      %v1399 = vpack.c.b16 %v1355, %v1351
      %v1400 = vpack.c.b16 %v1356, %v1352
      %v1401 = vpack.c.b16 %v1357, %v1353
      %v1402 = vpack.c.b16 %v1358, %v1354
      %v1403 = vpack.c.b16 %v1363, %v1359
      %v1404 = vpack.c.b16 %v1364, %v1360
      %v1405 = vpack.c.b16 %v1365, %v1361
      %v1406 = vpack.c.b16 %v1366, %v1362
      %v1407 = vpack.c.b16 %v1371, %v1367
      %v1408 = vpack.c.b16 %v1372, %v1368
      %v1409 = vpack.c.b16 %v1373, %v1369
      %v1410 = vpack.c.b16 %v1374, %v1370
      %v1411 = vpack.c.b16 %v1379, %v1375
      %v1412 = vpack.c.b16 %v1380, %v1376
      %v1413 = vpack.c.b16 %v1381, %v1377
      %v1414 = vpack.c.b16 %v1382, %v1378
      %1447 = vmatpush.bf16.msra.mxu0 %v1411
      %1448 = vmatpush.bf16.msra.mxu0 %v1407
      %1449 = vmatpush.bf16.msra.mxu0 %v1403
      %1450 = vmatpush.bf16.msra.mxu0 %v1399
      %1451 = vmatpush.bf16.msra.mxu0 %v1395
      %1452 = vmatpush.bf16.msra.mxu0 %v1391
      %1453 = vmatpush.bf16.msra.mxu0 %v1387
      %1454 = vmatpush.bf16.msra.mxu0 %v1383
      %1455 = vmatmul.bf16.gmra.mxu0 %v1254
      %v1456 = vpop.f32.mrf.mxu0
      %v1457 = vadd.f32 0.0, %v1456
      %v1458 = vpop.f32.mrf.mxu0
      %1459 = vdwg.mxu0
      %1460 = vmatpush.bf16.msra.mxu0 %v1412
      %1461 = vmatpush.bf16.msra.mxu0 %v1408
      %1462 = vmatpush.bf16.msra.mxu0 %v1404
      %1463 = vmatpush.bf16.msra.mxu0 %v1400
      %1464 = vmatpush.bf16.msra.mxu0 %v1396
      %1465 = vmatpush.bf16.msra.mxu0 %v1392
      %1466 = vmatpush.bf16.msra.mxu0 %v1388
      %1467 = vmatpush.bf16.msra.mxu0 %v1384
      %1468 = vmatmul.bf16.gmra.mxu0 %v1254
      %v1469 = vpop.f32.mrf.mxu0
      %v1470 = vadd.f32 0.0, %v1469
      %v1471 = vpop.f32.mrf.mxu0
      %1472 = vdwg.mxu0
      %1473 = vmatpush.bf16.msra.mxu0 %v1413
      %1474 = vmatpush.bf16.msra.mxu0 %v1409
      %1475 = vmatpush.bf16.msra.mxu0 %v1405
      %1476 = vmatpush.bf16.msra.mxu0 %v1401
      %1477 = vmatpush.bf16.msra.mxu0 %v1397
      %1478 = vmatpush.bf16.msra.mxu0 %v1393
      %1479 = vmatpush.bf16.msra.mxu0 %v1389
      %1480 = vmatpush.bf16.msra.mxu0 %v1385
      %1481 = vmatmul.bf16.gmra.mxu0 %v1254
      %v1482 = vpop.f32.mrf.mxu0
      %v1483 = vadd.f32 0.0, %v1482
      %v1484 = vpop.f32.mrf.mxu0
      %1485 = vdwg.mxu0
      %1486 = vmatpush.bf16.msra.mxu0 %v1414
      %1487 = vmatpush.bf16.msra.mxu0 %v1410
      %1488 = vmatpush.bf16.msra.mxu0 %v1406
      %1489 = vmatpush.bf16.msra.mxu0 %v1402
      %1490 = vmatpush.bf16.msra.mxu0 %v1398
      %1491 = vmatpush.bf16.msra.mxu0 %v1394
      %1492 = vmatpush.bf16.msra.mxu0 %v1390
      %1493 = vmatpush.bf16.msra.mxu0 %v1386
      %1494 = vmatmul.bf16.gmra.mxu0 %v1254
      %v1495 = vpop.f32.mrf.mxu0
      %v1496 = vadd.f32 0.0, %v1495
      %v1497 = vpop.f32.mrf.mxu0
      %1498 = vdwg.mxu0
      %v1499 = vadd.f32 %v1250, %v1457
      %v1500 = vadd.f32 %v1251, %v1470
      %v1501 = vadd.f32 %v1252, %v1483
      %v1502 = vadd.f32 %v1253, %v1496
      %v1503 = vmul.f32 %v1246, 0.5
      %v1504 = vtanh.pop %v1503
      %v1505 = vmul.f32 %v1504, 0.5
      %v1506 = vadd.f32 %v1505, 0.5
      %v1507 = vmul.f32 %v1247, 0.5
      %v1508 = vtanh.pop %v1507
      %v1509 = vmul.f32 %v1508, 0.5
      %v1510 = vadd.f32 %v1509, 0.5
      %v1511 = vtanh.pop %v1248
      %v1512 = vmul.f32 %v1249, 0.5
      %v1513 = vtanh.pop %v1512
      %v1514 = vmul.f32 %v1513, 0.5
      %v1515 = vadd.f32 %v1514, 0.5
      %v1516 = vmul.f32 %v1510, %v963
      %v1517 = vmul.f32 %v1506, %v1511
      %v1518 = vadd.f32 %v1516, %v1517
      %v1519 = vtanh.pop %v1518
      %v1520 = vmul.f32 %v1515, %v1519
      %v1521 = vmul.f32 %v1499, 0.5
      %v1522 = vtanh.pop %v1521
      %v1523 = vmul.f32 %v1522, 0.5
      %v1524 = vadd.f32 %v1523, 0.5
      %v1525 = vmul.f32 %v1500, 0.5
      %v1526 = vtanh.pop %v1525
      %v1527 = vmul.f32 %v1526, 0.5
      %v1528 = vadd.f32 %v1527, 0.5
      %v1529 = vtanh.pop %v1501
      %v1530 = vmul.f32 %v1502, 0.5
      %v1531 = vtanh.pop %v1530
      %v1532 = vmul.f32 %v1531, 0.5
      %v1533 = vadd.f32 %v1532, 0.5
      %v1534 = vmul.f32 %v1528, %v981
      %v1535 = vmul.f32 %v1524, %v1529
      %v1536 = vadd.f32 %v1534, %v1535
      %v1537 = vtanh.pop %v1536
      %v1538 = vmul.f32 %v1533, %v1537
      %s1539 = sadd.s32 %s90, 8
      %s1540 = sshra.s32 %s1539, 3
      %s1541 = sand.u32 %s1539, 7
      %s1542 = smul.u32 %s1540, 2
      %s1543 = smul.addr %s1542, 8
      %s1544 = scalar_lea.vmem [#allocation4], %s1543
      %1545 = vst [vmem:[%s1544] sm:$0xff] %v1520
      %s1546 = sadd.s32 %s92, 16
      %s1547 = sshra.s32 %s1546, 3
      %s1548 = sand.u32 %s1546, 7
      %s1549 = smul.u32 %s1547, 2
      %s1550 = smul.addr %s1549, 8
      %s1551 = scalar_lea.vmem [#allocation4], %s1550
      %1552 = vst [vmem:[%s1551 + $0x8] sm:$0xff] %v1538
      %v1553 = vld [vmem:[#allocation2 + $0x40] sm:$0xff]
      %v1554 = vld [vmem:[#allocation2 + $0x48] sm:$0xff]
      %v1555 = vld [vmem:[#allocation2 + $0x50] sm:$0xff]
      %v1556 = vld [vmem:[#allocation2 + $0x58] sm:$0xff]
      %v1557 = vpack.c.bf16 %v1520, %v1520
      %v1558 = vld [vmem:[%s3] sm:$0xff]
      %v1559 = vld [vmem:[%s3 + $0x8] sm:$0xff]
      %v1560 = vld [vmem:[%s3 + $0x10] sm:$0xff]
      %v1561 = vld [vmem:[%s3 + $0x18] sm:$0xff]
      %v1562 = vld [vmem:[%s3 + $0x20] sm:$0xff]
      %v1563 = vld [vmem:[%s3 + $0x28] sm:$0xff]
      %v1564 = vld [vmem:[%s3 + $0x30] sm:$0xff]
      %v1565 = vld [vmem:[%s3 + $0x38] sm:$0xff]
      %v1566 = vld [vmem:[%s3 + $0x40] sm:$0xff]
      %v1567 = vld [vmem:[%s3 + $0x48] sm:$0xff]
      %v1568 = vld [vmem:[%s3 + $0x50] sm:$0xff]
      %v1569 = vld [vmem:[%s3 + $0x58] sm:$0xff]
      %v1570 = vld [vmem:[%s3 + $0x60] sm:$0xff]
      %v1571 = vld [vmem:[%s3 + $0x68] sm:$0xff]
      %v1572 = vld [vmem:[%s3 + $0x70] sm:$0xff]
      %v1573 = vld [vmem:[%s3 + $0x78] sm:$0xff]
      %v1574 = vld [vmem:[%s3 + $0x80] sm:$0xff]
      %v1575 = vld [vmem:[%s3 + $0x88] sm:$0xff]
      %v1576 = vld [vmem:[%s3 + $0x90] sm:$0xff]
      %v1577 = vld [vmem:[%s3 + $0x98] sm:$0xff]
      %v1578 = vld [vmem:[%s3 + $0xa0] sm:$0xff]
      %v1579 = vld [vmem:[%s3 + $0xa8] sm:$0xff]
      %v1580 = vld [vmem:[%s3 + $0xb0] sm:$0xff]
      %v1581 = vld [vmem:[%s3 + $0xb8] sm:$0xff]
      %v1582 = vld [vmem:[%s3 + $0xc0] sm:$0xff]
      %v1583 = vld [vmem:[%s3 + $0xc8] sm:$0xff]
      %v1584 = vld [vmem:[%s3 + $0xd0] sm:$0xff]
      %v1585 = vld [vmem:[%s3 + $0xd8] sm:$0xff]
      %v1586 = vld [vmem:[%s3 + $0xe0] sm:$0xff]
      %v1587 = vld [vmem:[%s3 + $0xe8] sm:$0xff]
      %v1588 = vld [vmem:[%s3 + $0xf0] sm:$0xff]
      %v1589 = vld [vmem:[%s3 + $0xf8] sm:$0xff]
      %v1622 = vunpack.c.l.b16 %v1558
      %v1623 = vunpack.c.h.b16 %v1558
      %v1624 = vunpack.c.l.b16 %v1559
      %v1625 = vunpack.c.h.b16 %v1559
      %v1626 = vunpack.c.l.b16 %v1560
      %v1627 = vunpack.c.h.b16 %v1560
      %v1628 = vunpack.c.l.b16 %v1561
      %v1629 = vunpack.c.h.b16 %v1561
      %v1630 = vunpack.c.l.b16 %v1562
      %v1631 = vunpack.c.h.b16 %v1562
      %v1632 = vunpack.c.l.b16 %v1563
      %v1633 = vunpack.c.h.b16 %v1563
      %v1634 = vunpack.c.l.b16 %v1564
      %v1635 = vunpack.c.h.b16 %v1564
      %v1636 = vunpack.c.l.b16 %v1565
      %v1637 = vunpack.c.h.b16 %v1565
      %v1638 = vunpack.c.l.b16 %v1566
      %v1639 = vunpack.c.h.b16 %v1566
      %v1640 = vunpack.c.l.b16 %v1567
      %v1641 = vunpack.c.h.b16 %v1567
      %v1642 = vunpack.c.l.b16 %v1568
      %v1643 = vunpack.c.h.b16 %v1568
      %v1644 = vunpack.c.l.b16 %v1569
      %v1645 = vunpack.c.h.b16 %v1569
      %v1646 = vunpack.c.l.b16 %v1570
      %v1647 = vunpack.c.h.b16 %v1570
      %v1648 = vunpack.c.l.b16 %v1571
      %v1649 = vunpack.c.h.b16 %v1571
      %v1650 = vunpack.c.l.b16 %v1572
      %v1651 = vunpack.c.h.b16 %v1572
      %v1652 = vunpack.c.l.b16 %v1573
      %v1653 = vunpack.c.h.b16 %v1573
      %v1654 = vunpack.c.l.b16 %v1574
      %v1655 = vunpack.c.h.b16 %v1574
      %v1656 = vunpack.c.l.b16 %v1575
      %v1657 = vunpack.c.h.b16 %v1575
      %v1658 = vunpack.c.l.b16 %v1576
      %v1659 = vunpack.c.h.b16 %v1576
      %v1660 = vunpack.c.l.b16 %v1577
      %v1661 = vunpack.c.h.b16 %v1577
      %v1662 = vunpack.c.l.b16 %v1578
      %v1663 = vunpack.c.h.b16 %v1578
      %v1664 = vunpack.c.l.b16 %v1579
      %v1665 = vunpack.c.h.b16 %v1579
      %v1666 = vunpack.c.l.b16 %v1580
      %v1667 = vunpack.c.h.b16 %v1580
      %v1668 = vunpack.c.l.b16 %v1581
      %v1669 = vunpack.c.h.b16 %v1581
      %v1670 = vunpack.c.l.b16 %v1582
      %v1671 = vunpack.c.h.b16 %v1582
      %v1672 = vunpack.c.l.b16 %v1583
      %v1673 = vunpack.c.h.b16 %v1583
      %v1674 = vunpack.c.l.b16 %v1584
      %v1675 = vunpack.c.h.b16 %v1584
      %v1676 = vunpack.c.l.b16 %v1585
      %v1677 = vunpack.c.h.b16 %v1585
      %v1678 = vunpack.c.l.b16 %v1586
      %v1679 = vunpack.c.h.b16 %v1586
      %v1680 = vunpack.c.l.b16 %v1587
      %v1681 = vunpack.c.h.b16 %v1587
      %v1682 = vunpack.c.l.b16 %v1588
      %v1683 = vunpack.c.h.b16 %v1588
      %v1684 = vunpack.c.l.b16 %v1589
      %v1685 = vunpack.c.h.b16 %v1589
      %v1686 = vpack.c.b16 %v1626, %v1622
      %v1687 = vpack.c.b16 %v1627, %v1623
      %v1688 = vpack.c.b16 %v1628, %v1624
      %v1689 = vpack.c.b16 %v1629, %v1625
      %v1690 = vpack.c.b16 %v1634, %v1630
      %v1691 = vpack.c.b16 %v1635, %v1631
      %v1692 = vpack.c.b16 %v1636, %v1632
      %v1693 = vpack.c.b16 %v1637, %v1633
      %v1694 = vpack.c.b16 %v1642, %v1638
      %v1695 = vpack.c.b16 %v1643, %v1639
      %v1696 = vpack.c.b16 %v1644, %v1640
      %v1697 = vpack.c.b16 %v1645, %v1641
      %v1698 = vpack.c.b16 %v1650, %v1646
      %v1699 = vpack.c.b16 %v1651, %v1647
      %v1700 = vpack.c.b16 %v1652, %v1648
      %v1701 = vpack.c.b16 %v1653, %v1649
      %v1702 = vpack.c.b16 %v1658, %v1654
      %v1703 = vpack.c.b16 %v1659, %v1655
      %v1704 = vpack.c.b16 %v1660, %v1656
      %v1705 = vpack.c.b16 %v1661, %v1657
      %v1706 = vpack.c.b16 %v1666, %v1662
      %v1707 = vpack.c.b16 %v1667, %v1663
      %v1708 = vpack.c.b16 %v1668, %v1664
      %v1709 = vpack.c.b16 %v1669, %v1665
      %v1710 = vpack.c.b16 %v1674, %v1670
      %v1711 = vpack.c.b16 %v1675, %v1671
      %v1712 = vpack.c.b16 %v1676, %v1672
      %v1713 = vpack.c.b16 %v1677, %v1673
      %v1714 = vpack.c.b16 %v1682, %v1678
      %v1715 = vpack.c.b16 %v1683, %v1679
      %v1716 = vpack.c.b16 %v1684, %v1680
      %v1717 = vpack.c.b16 %v1685, %v1681
      %1750 = vmatpush.bf16.msra.mxu0 %v1714
      %1751 = vmatpush.bf16.msra.mxu0 %v1710
      %1752 = vmatpush.bf16.msra.mxu0 %v1706
      %1753 = vmatpush.bf16.msra.mxu0 %v1702
      %1754 = vmatpush.bf16.msra.mxu0 %v1698
      %1755 = vmatpush.bf16.msra.mxu0 %v1694
      %1756 = vmatpush.bf16.msra.mxu0 %v1690
      %1757 = vmatpush.bf16.msra.mxu0 %v1686
      %1758 = vmatmul.bf16.gmra.mxu0 %v1557
      %v1759 = vpop.f32.mrf.mxu0
      %v1760 = vadd.f32 0.0, %v1759
      %v1761 = vpop.f32.mrf.mxu0
      %1762 = vdwg.mxu0
      %1763 = vmatpush.bf16.msra.mxu0 %v1715
      %1764 = vmatpush.bf16.msra.mxu0 %v1711
      %1765 = vmatpush.bf16.msra.mxu0 %v1707
      %1766 = vmatpush.bf16.msra.mxu0 %v1703
      %1767 = vmatpush.bf16.msra.mxu0 %v1699
      %1768 = vmatpush.bf16.msra.mxu0 %v1695
      %1769 = vmatpush.bf16.msra.mxu0 %v1691
      %1770 = vmatpush.bf16.msra.mxu0 %v1687
      %1771 = vmatmul.bf16.gmra.mxu0 %v1557
      %v1772 = vpop.f32.mrf.mxu0
      %v1773 = vadd.f32 0.0, %v1772
      %v1774 = vpop.f32.mrf.mxu0
      %1775 = vdwg.mxu0
      %1776 = vmatpush.bf16.msra.mxu0 %v1716
      %1777 = vmatpush.bf16.msra.mxu0 %v1712
      %1778 = vmatpush.bf16.msra.mxu0 %v1708
      %1779 = vmatpush.bf16.msra.mxu0 %v1704
      %1780 = vmatpush.bf16.msra.mxu0 %v1700
      %1781 = vmatpush.bf16.msra.mxu0 %v1696
      %1782 = vmatpush.bf16.msra.mxu0 %v1692
      %1783 = vmatpush.bf16.msra.mxu0 %v1688
      %1784 = vmatmul.bf16.gmra.mxu0 %v1557
      %v1785 = vpop.f32.mrf.mxu0
      %v1786 = vadd.f32 0.0, %v1785
      %v1787 = vpop.f32.mrf.mxu0
      %1788 = vdwg.mxu0
      %1789 = vmatpush.bf16.msra.mxu0 %v1717
      %1790 = vmatpush.bf16.msra.mxu0 %v1713
      %1791 = vmatpush.bf16.msra.mxu0 %v1709
      %1792 = vmatpush.bf16.msra.mxu0 %v1705
      %1793 = vmatpush.bf16.msra.mxu0 %v1701
      %1794 = vmatpush.bf16.msra.mxu0 %v1697
      %1795 = vmatpush.bf16.msra.mxu0 %v1693
      %1796 = vmatpush.bf16.msra.mxu0 %v1689
      %1797 = vmatmul.bf16.gmra.mxu0 %v1557
      %v1798 = vpop.f32.mrf.mxu0
      %v1799 = vadd.f32 0.0, %v1798
      %v1800 = vpop.f32.mrf.mxu0
      %1801 = vdwg.mxu0
      %v1802 = vadd.f32 %v1553, %v1760
      %v1803 = vadd.f32 %v1554, %v1773
      %v1804 = vadd.f32 %v1555, %v1786
      %v1805 = vadd.f32 %v1556, %v1799
      %v1806 = vld [vmem:[#allocation3 + $0x20] sm:$0xff]
      %v1807 = vld [vmem:[#allocation3 + $0x28] sm:$0xff]
      %v1808 = vld [vmem:[#allocation3 + $0x30] sm:$0xff]
      %v1809 = vld [vmem:[#allocation3 + $0x38] sm:$0xff]
      %v1810 = vpack.c.bf16 %v1538, %v1538
      %v1811 = vld [vmem:[#allocation9] sm:$0xff]
      %v1812 = vld [vmem:[#allocation9 + $0x8] sm:$0xff]
      %v1813 = vld [vmem:[#allocation9 + $0x10] sm:$0xff]
      %v1814 = vld [vmem:[#allocation9 + $0x18] sm:$0xff]
      %v1815 = vld [vmem:[#allocation9 + $0x20] sm:$0xff]
      %v1816 = vld [vmem:[#allocation9 + $0x28] sm:$0xff]
      %v1817 = vld [vmem:[#allocation9 + $0x30] sm:$0xff]
      %v1818 = vld [vmem:[#allocation9 + $0x38] sm:$0xff]
      %v1819 = vld [vmem:[#allocation9 + $0x40] sm:$0xff]
      %v1820 = vld [vmem:[#allocation9 + $0x48] sm:$0xff]
      %v1821 = vld [vmem:[#allocation9 + $0x50] sm:$0xff]
      %v1822 = vld [vmem:[#allocation9 + $0x58] sm:$0xff]
      %v1823 = vld [vmem:[#allocation9 + $0x60] sm:$0xff]
      %v1824 = vld [vmem:[#allocation9 + $0x68] sm:$0xff]
      %v1825 = vld [vmem:[#allocation9 + $0x70] sm:$0xff]
      %v1826 = vld [vmem:[#allocation9 + $0x78] sm:$0xff]
      %v1827 = vld [vmem:[#allocation9 + $0x80] sm:$0xff]
      %v1828 = vld [vmem:[#allocation9 + $0x88] sm:$0xff]
      %v1829 = vld [vmem:[#allocation9 + $0x90] sm:$0xff]
      %v1830 = vld [vmem:[#allocation9 + $0x98] sm:$0xff]
      %v1831 = vld [vmem:[#allocation9 + $0xa0] sm:$0xff]
      %v1832 = vld [vmem:[#allocation9 + $0xa8] sm:$0xff]
      %v1833 = vld [vmem:[#allocation9 + $0xb0] sm:$0xff]
      %v1834 = vld [vmem:[#allocation9 + $0xb8] sm:$0xff]
      %v1835 = vld [vmem:[#allocation9 + $0xc0] sm:$0xff]
      %v1836 = vld [vmem:[#allocation9 + $0xc8] sm:$0xff]
      %v1837 = vld [vmem:[#allocation9 + $0xd0] sm:$0xff]
      %v1838 = vld [vmem:[#allocation9 + $0xd8] sm:$0xff]
      %v1839 = vld [vmem:[#allocation9 + $0xe0] sm:$0xff]
      %v1840 = vld [vmem:[#allocation9 + $0xe8] sm:$0xff]
      %v1841 = vld [vmem:[#allocation9 + $0xf0] sm:$0xff]
      %v1842 = vld [vmem:[#allocation9 + $0xf8] sm:$0xff]
      %v1875 = vunpack.c.l.b16 %v1811
      %v1876 = vunpack.c.h.b16 %v1811
      %v1877 = vunpack.c.l.b16 %v1812
      %v1878 = vunpack.c.h.b16 %v1812
      %v1879 = vunpack.c.l.b16 %v1813
      %v1880 = vunpack.c.h.b16 %v1813
      %v1881 = vunpack.c.l.b16 %v1814
      %v1882 = vunpack.c.h.b16 %v1814
      %v1883 = vunpack.c.l.b16 %v1815
      %v1884 = vunpack.c.h.b16 %v1815
      %v1885 = vunpack.c.l.b16 %v1816
      %v1886 = vunpack.c.h.b16 %v1816
      %v1887 = vunpack.c.l.b16 %v1817
      %v1888 = vunpack.c.h.b16 %v1817
      %v1889 = vunpack.c.l.b16 %v1818
      %v1890 = vunpack.c.h.b16 %v1818
      %v1891 = vunpack.c.l.b16 %v1819
      %v1892 = vunpack.c.h.b16 %v1819
      %v1893 = vunpack.c.l.b16 %v1820
      %v1894 = vunpack.c.h.b16 %v1820
      %v1895 = vunpack.c.l.b16 %v1821
      %v1896 = vunpack.c.h.b16 %v1821
      %v1897 = vunpack.c.l.b16 %v1822
      %v1898 = vunpack.c.h.b16 %v1822
      %v1899 = vunpack.c.l.b16 %v1823
      %v1900 = vunpack.c.h.b16 %v1823
      %v1901 = vunpack.c.l.b16 %v1824
      %v1902 = vunpack.c.h.b16 %v1824
      %v1903 = vunpack.c.l.b16 %v1825
      %v1904 = vunpack.c.h.b16 %v1825
      %v1905 = vunpack.c.l.b16 %v1826
      %v1906 = vunpack.c.h.b16 %v1826
      %v1907 = vunpack.c.l.b16 %v1827
      %v1908 = vunpack.c.h.b16 %v1827
      %v1909 = vunpack.c.l.b16 %v1828
      %v1910 = vunpack.c.h.b16 %v1828
      %v1911 = vunpack.c.l.b16 %v1829
      %v1912 = vunpack.c.h.b16 %v1829
      %v1913 = vunpack.c.l.b16 %v1830
      %v1914 = vunpack.c.h.b16 %v1830
      %v1915 = vunpack.c.l.b16 %v1831
      %v1916 = vunpack.c.h.b16 %v1831
      %v1917 = vunpack.c.l.b16 %v1832
      %v1918 = vunpack.c.h.b16 %v1832
      %v1919 = vunpack.c.l.b16 %v1833
      %v1920 = vunpack.c.h.b16 %v1833
      %v1921 = vunpack.c.l.b16 %v1834
      %v1922 = vunpack.c.h.b16 %v1834
      %v1923 = vunpack.c.l.b16 %v1835
      %v1924 = vunpack.c.h.b16 %v1835
      %v1925 = vunpack.c.l.b16 %v1836
      %v1926 = vunpack.c.h.b16 %v1836
      %v1927 = vunpack.c.l.b16 %v1837
      %v1928 = vunpack.c.h.b16 %v1837
      %v1929 = vunpack.c.l.b16 %v1838
      %v1930 = vunpack.c.h.b16 %v1838
      %v1931 = vunpack.c.l.b16 %v1839
      %v1932 = vunpack.c.h.b16 %v1839
      %v1933 = vunpack.c.l.b16 %v1840
      %v1934 = vunpack.c.h.b16 %v1840
      %v1935 = vunpack.c.l.b16 %v1841
      %v1936 = vunpack.c.h.b16 %v1841
      %v1937 = vunpack.c.l.b16 %v1842
      %v1938 = vunpack.c.h.b16 %v1842
      %v1939 = vpack.c.b16 %v1879, %v1875
      %v1940 = vpack.c.b16 %v1880, %v1876
      %v1941 = vpack.c.b16 %v1881, %v1877
      %v1942 = vpack.c.b16 %v1882, %v1878
      %v1943 = vpack.c.b16 %v1887, %v1883
      %v1944 = vpack.c.b16 %v1888, %v1884
      %v1945 = vpack.c.b16 %v1889, %v1885
      %v1946 = vpack.c.b16 %v1890, %v1886
      %v1947 = vpack.c.b16 %v1895, %v1891
      %v1948 = vpack.c.b16 %v1896, %v1892
      %v1949 = vpack.c.b16 %v1897, %v1893
      %v1950 = vpack.c.b16 %v1898, %v1894
      %v1951 = vpack.c.b16 %v1903, %v1899
      %v1952 = vpack.c.b16 %v1904, %v1900
      %v1953 = vpack.c.b16 %v1905, %v1901
      %v1954 = vpack.c.b16 %v1906, %v1902
      %v1955 = vpack.c.b16 %v1911, %v1907
      %v1956 = vpack.c.b16 %v1912, %v1908
      %v1957 = vpack.c.b16 %v1913, %v1909
      %v1958 = vpack.c.b16 %v1914, %v1910
      %v1959 = vpack.c.b16 %v1919, %v1915
      %v1960 = vpack.c.b16 %v1920, %v1916
      %v1961 = vpack.c.b16 %v1921, %v1917
      %v1962 = vpack.c.b16 %v1922, %v1918
      %v1963 = vpack.c.b16 %v1927, %v1923
      %v1964 = vpack.c.b16 %v1928, %v1924
      %v1965 = vpack.c.b16 %v1929, %v1925
      %v1966 = vpack.c.b16 %v1930, %v1926
      %v1967 = vpack.c.b16 %v1935, %v1931
      %v1968 = vpack.c.b16 %v1936, %v1932
      %v1969 = vpack.c.b16 %v1937, %v1933
      %v1970 = vpack.c.b16 %v1938, %v1934
      %2003 = vmatpush.bf16.msra.mxu0 %v1967
      %2004 = vmatpush.bf16.msra.mxu0 %v1963
      %2005 = vmatpush.bf16.msra.mxu0 %v1959
      %2006 = vmatpush.bf16.msra.mxu0 %v1955
      %2007 = vmatpush.bf16.msra.mxu0 %v1951
      %2008 = vmatpush.bf16.msra.mxu0 %v1947
      %2009 = vmatpush.bf16.msra.mxu0 %v1943
      %2010 = vmatpush.bf16.msra.mxu0 %v1939
      %2011 = vmatmul.bf16.gmra.mxu0 %v1810
      %v2012 = vpop.f32.mrf.mxu0
      %v2013 = vadd.f32 0.0, %v2012
      %v2014 = vpop.f32.mrf.mxu0
      %2015 = vdwg.mxu0
      %2016 = vmatpush.bf16.msra.mxu0 %v1968
      %2017 = vmatpush.bf16.msra.mxu0 %v1964
      %2018 = vmatpush.bf16.msra.mxu0 %v1960
      %2019 = vmatpush.bf16.msra.mxu0 %v1956
      %2020 = vmatpush.bf16.msra.mxu0 %v1952
      %2021 = vmatpush.bf16.msra.mxu0 %v1948
      %2022 = vmatpush.bf16.msra.mxu0 %v1944
      %2023 = vmatpush.bf16.msra.mxu0 %v1940
      %2024 = vmatmul.bf16.gmra.mxu0 %v1810
      %v2025 = vpop.f32.mrf.mxu0
      %v2026 = vadd.f32 0.0, %v2025
      %v2027 = vpop.f32.mrf.mxu0
      %2028 = vdwg.mxu0
      %2029 = vmatpush.bf16.msra.mxu0 %v1969
      %2030 = vmatpush.bf16.msra.mxu0 %v1965
      %2031 = vmatpush.bf16.msra.mxu0 %v1961
      %2032 = vmatpush.bf16.msra.mxu0 %v1957
      %2033 = vmatpush.bf16.msra.mxu0 %v1953
      %2034 = vmatpush.bf16.msra.mxu0 %v1949
      %2035 = vmatpush.bf16.msra.mxu0 %v1945
      %2036 = vmatpush.bf16.msra.mxu0 %v1941
      %2037 = vmatmul.bf16.gmra.mxu0 %v1810
      %v2038 = vpop.f32.mrf.mxu0
      %v2039 = vadd.f32 0.0, %v2038
      %v2040 = vpop.f32.mrf.mxu0
      %2041 = vdwg.mxu0
      %2042 = vmatpush.bf16.msra.mxu0 %v1970
      %2043 = vmatpush.bf16.msra.mxu0 %v1966
      %2044 = vmatpush.bf16.msra.mxu0 %v1962
      %2045 = vmatpush.bf16.msra.mxu0 %v1958
      %2046 = vmatpush.bf16.msra.mxu0 %v1954
      %2047 = vmatpush.bf16.msra.mxu0 %v1950
      %2048 = vmatpush.bf16.msra.mxu0 %v1946
      %2049 = vmatpush.bf16.msra.mxu0 %v1942
      %2050 = vmatmul.bf16.gmra.mxu0 %v1810
      %v2051 = vpop.f32.mrf.mxu0
      %v2052 = vadd.f32 0.0, %v2051
      %v2053 = vpop.f32.mrf.mxu0
      %2054 = vdwg.mxu0
      %v2055 = vadd.f32 %v1806, %v2013
      %v2056 = vadd.f32 %v1807, %v2026
      %v2057 = vadd.f32 %v1808, %v2039
      %v2058 = vadd.f32 %v1809, %v2052
      %v2059 = vmul.f32 %v1802, 0.5
      %v2060 = vtanh.pop %v2059
      %v2061 = vmul.f32 %v2060, 0.5
      %v2062 = vadd.f32 %v2061, 0.5
      %v2063 = vmul.f32 %v1803, 0.5
      %v2064 = vtanh.pop %v2063
      %v2065 = vmul.f32 %v2064, 0.5
      %v2066 = vadd.f32 %v2065, 0.5
      %v2067 = vtanh.pop %v1804
      %v2068 = vmul.f32 %v1805, 0.5
      %v2069 = vtanh.pop %v2068
      %v2070 = vmul.f32 %v2069, 0.5
      %v2071 = vadd.f32 %v2070, 0.5
      %v2072 = vmul.f32 %v2066, %v1518
      %v2073 = vmul.f32 %v2062, %v2067
      %v2074 = vadd.f32 %v2072, %v2073
      %v2075 = vtanh.pop %v2074
      %v2076 = vmul.f32 %v2071, %v2075
      %v2077 = vmul.f32 %v2055, 0.5
      %v2078 = vtanh.pop %v2077
      %v2079 = vmul.f32 %v2078, 0.5
      %v2080 = vadd.f32 %v2079, 0.5
      %v2081 = vmul.f32 %v2056, 0.5
      %v2082 = vtanh.pop %v2081
      %v2083 = vmul.f32 %v2082, 0.5
      %v2084 = vadd.f32 %v2083, 0.5
      %v2085 = vtanh.pop %v2057
      %v2086 = vmul.f32 %v2058, 0.5
      %v2087 = vtanh.pop %v2086
      %v2088 = vmul.f32 %v2087, 0.5
      %v2089 = vadd.f32 %v2088, 0.5
      %v2090 = vmul.f32 %v2084, %v1536
      %v2091 = vmul.f32 %v2080, %v2085
      %v2092 = vadd.f32 %v2090, %v2091
      %v2093 = vtanh.pop %v2092
      %v2094 = vmul.f32 %v2089, %v2093
      %s2095 = sadd.s32 %s90, 16
      %s2096 = sshra.s32 %s2095, 3
      %s2097 = sand.u32 %s2095, 7
      %s2098 = smul.u32 %s2096, 2
      %s2099 = smul.addr %s2098, 8
      %s2100 = scalar_lea.vmem [#allocation4], %s2099
      %2101 = vst [vmem:[%s2100] sm:$0xff] %v2076
      %s2102 = sadd.s32 %s92, 8
      %s2103 = sshra.s32 %s2102, 3
      %s2104 = sand.u32 %s2102, 7
      %s2105 = smul.u32 %s2103, 2
      %s2106 = smul.addr %s2105, 8
      %s2107 = scalar_lea.vmem [#allocation4], %s2106
      %2108 = vst [vmem:[%s2107 + $0x8] sm:$0xff] %v2094
      %v2109 = vld [vmem:[#allocation2 + $0x60] sm:$0xff]
      %v2110 = vld [vmem:[#allocation2 + $0x68] sm:$0xff]
      %v2111 = vld [vmem:[#allocation2 + $0x70] sm:$0xff]
      %v2112 = vld [vmem:[#allocation2 + $0x78] sm:$0xff]
      %v2113 = vpack.c.bf16 %v2076, %v2076
      %v2114 = vld [vmem:[%s3] sm:$0xff]
      %v2115 = vld [vmem:[%s3 + $0x8] sm:$0xff]
      %v2116 = vld [vmem:[%s3 + $0x10] sm:$0xff]
      %v2117 = vld [vmem:[%s3 + $0x18] sm:$0xff]
      %v2118 = vld [vmem:[%s3 + $0x20] sm:$0xff]
      %v2119 = vld [vmem:[%s3 + $0x28] sm:$0xff]
      %v2120 = vld [vmem:[%s3 + $0x30] sm:$0xff]
      %v2121 = vld [vmem:[%s3 + $0x38] sm:$0xff]
      %v2122 = vld [vmem:[%s3 + $0x40] sm:$0xff]
      %v2123 = vld [vmem:[%s3 + $0x48] sm:$0xff]
      %v2124 = vld [vmem:[%s3 + $0x50] sm:$0xff]
      %v2125 = vld [vmem:[%s3 + $0x58] sm:$0xff]
      %v2126 = vld [vmem:[%s3 + $0x60] sm:$0xff]
      %v2127 = vld [vmem:[%s3 + $0x68] sm:$0xff]
      %v2128 = vld [vmem:[%s3 + $0x70] sm:$0xff]
      %v2129 = vld [vmem:[%s3 + $0x78] sm:$0xff]
      %v2130 = vld [vmem:[%s3 + $0x80] sm:$0xff]
      %v2131 = vld [vmem:[%s3 + $0x88] sm:$0xff]
      %v2132 = vld [vmem:[%s3 + $0x90] sm:$0xff]
      %v2133 = vld [vmem:[%s3 + $0x98] sm:$0xff]
      %v2134 = vld [vmem:[%s3 + $0xa0] sm:$0xff]
      %v2135 = vld [vmem:[%s3 + $0xa8] sm:$0xff]
      %v2136 = vld [vmem:[%s3 + $0xb0] sm:$0xff]
      %v2137 = vld [vmem:[%s3 + $0xb8] sm:$0xff]
      %v2138 = vld [vmem:[%s3 + $0xc0] sm:$0xff]
      %v2139 = vld [vmem:[%s3 + $0xc8] sm:$0xff]
      %v2140 = vld [vmem:[%s3 + $0xd0] sm:$0xff]
      %v2141 = vld [vmem:[%s3 + $0xd8] sm:$0xff]
      %v2142 = vld [vmem:[%s3 + $0xe0] sm:$0xff]
      %v2143 = vld [vmem:[%s3 + $0xe8] sm:$0xff]
      %v2144 = vld [vmem:[%s3 + $0xf0] sm:$0xff]
      %v2145 = vld [vmem:[%s3 + $0xf8] sm:$0xff]
      %v2178 = vunpack.c.l.b16 %v2114
      %v2179 = vunpack.c.h.b16 %v2114
      %v2180 = vunpack.c.l.b16 %v2115
      %v2181 = vunpack.c.h.b16 %v2115
      %v2182 = vunpack.c.l.b16 %v2116
      %v2183 = vunpack.c.h.b16 %v2116
      %v2184 = vunpack.c.l.b16 %v2117
      %v2185 = vunpack.c.h.b16 %v2117
      %v2186 = vunpack.c.l.b16 %v2118
      %v2187 = vunpack.c.h.b16 %v2118
      %v2188 = vunpack.c.l.b16 %v2119
      %v2189 = vunpack.c.h.b16 %v2119
      %v2190 = vunpack.c.l.b16 %v2120
      %v2191 = vunpack.c.h.b16 %v2120
      %v2192 = vunpack.c.l.b16 %v2121
      %v2193 = vunpack.c.h.b16 %v2121
      %v2194 = vunpack.c.l.b16 %v2122
      %v2195 = vunpack.c.h.b16 %v2122
      %v2196 = vunpack.c.l.b16 %v2123
      %v2197 = vunpack.c.h.b16 %v2123
      %v2198 = vunpack.c.l.b16 %v2124
      %v2199 = vunpack.c.h.b16 %v2124
      %v2200 = vunpack.c.l.b16 %v2125
      %v2201 = vunpack.c.h.b16 %v2125
      %v2202 = vunpack.c.l.b16 %v2126
      %v2203 = vunpack.c.h.b16 %v2126
      %v2204 = vunpack.c.l.b16 %v2127
      %v2205 = vunpack.c.h.b16 %v2127
      %v2206 = vunpack.c.l.b16 %v2128
      %v2207 = vunpack.c.h.b16 %v2128
      %v2208 = vunpack.c.l.b16 %v2129
      %v2209 = vunpack.c.h.b16 %v2129
      %v2210 = vunpack.c.l.b16 %v2130
      %v2211 = vunpack.c.h.b16 %v2130
      %v2212 = vunpack.c.l.b16 %v2131
      %v2213 = vunpack.c.h.b16 %v2131
      %v2214 = vunpack.c.l.b16 %v2132
      %v2215 = vunpack.c.h.b16 %v2132
      %v2216 = vunpack.c.l.b16 %v2133
      %v2217 = vunpack.c.h.b16 %v2133
      %v2218 = vunpack.c.l.b16 %v2134
      %v2219 = vunpack.c.h.b16 %v2134
      %v2220 = vunpack.c.l.b16 %v2135
      %v2221 = vunpack.c.h.b16 %v2135
      %v2222 = vunpack.c.l.b16 %v2136
      %v2223 = vunpack.c.h.b16 %v2136
      %v2224 = vunpack.c.l.b16 %v2137
      %v2225 = vunpack.c.h.b16 %v2137
      %v2226 = vunpack.c.l.b16 %v2138
      %v2227 = vunpack.c.h.b16 %v2138
      %v2228 = vunpack.c.l.b16 %v2139
      %v2229 = vunpack.c.h.b16 %v2139
      %v2230 = vunpack.c.l.b16 %v2140
      %v2231 = vunpack.c.h.b16 %v2140
      %v2232 = vunpack.c.l.b16 %v2141
      %v2233 = vunpack.c.h.b16 %v2141
      %v2234 = vunpack.c.l.b16 %v2142
      %v2235 = vunpack.c.h.b16 %v2142
      %v2236 = vunpack.c.l.b16 %v2143
      %v2237 = vunpack.c.h.b16 %v2143
      %v2238 = vunpack.c.l.b16 %v2144
      %v2239 = vunpack.c.h.b16 %v2144
      %v2240 = vunpack.c.l.b16 %v2145
      %v2241 = vunpack.c.h.b16 %v2145
      %v2242 = vpack.c.b16 %v2182, %v2178
      %v2243 = vpack.c.b16 %v2183, %v2179
      %v2244 = vpack.c.b16 %v2184, %v2180
      %v2245 = vpack.c.b16 %v2185, %v2181
      %v2246 = vpack.c.b16 %v2190, %v2186
      %v2247 = vpack.c.b16 %v2191, %v2187
      %v2248 = vpack.c.b16 %v2192, %v2188
      %v2249 = vpack.c.b16 %v2193, %v2189
      %v2250 = vpack.c.b16 %v2198, %v2194
      %v2251 = vpack.c.b16 %v2199, %v2195
      %v2252 = vpack.c.b16 %v2200, %v2196
      %v2253 = vpack.c.b16 %v2201, %v2197
      %v2254 = vpack.c.b16 %v2206, %v2202
      %v2255 = vpack.c.b16 %v2207, %v2203
      %v2256 = vpack.c.b16 %v2208, %v2204
      %v2257 = vpack.c.b16 %v2209, %v2205
      %v2258 = vpack.c.b16 %v2214, %v2210
      %v2259 = vpack.c.b16 %v2215, %v2211
      %v2260 = vpack.c.b16 %v2216, %v2212
      %v2261 = vpack.c.b16 %v2217, %v2213
      %v2262 = vpack.c.b16 %v2222, %v2218
      %v2263 = vpack.c.b16 %v2223, %v2219
      %v2264 = vpack.c.b16 %v2224, %v2220
      %v2265 = vpack.c.b16 %v2225, %v2221
      %v2266 = vpack.c.b16 %v2230, %v2226
      %v2267 = vpack.c.b16 %v2231, %v2227
      %v2268 = vpack.c.b16 %v2232, %v2228
      %v2269 = vpack.c.b16 %v2233, %v2229
      %v2270 = vpack.c.b16 %v2238, %v2234
      %v2271 = vpack.c.b16 %v2239, %v2235
      %v2272 = vpack.c.b16 %v2240, %v2236
      %v2273 = vpack.c.b16 %v2241, %v2237
      %2306 = vmatpush.bf16.msra.mxu0 %v2270
      %2307 = vmatpush.bf16.msra.mxu0 %v2266
      %2308 = vmatpush.bf16.msra.mxu0 %v2262
      %2309 = vmatpush.bf16.msra.mxu0 %v2258
      %2310 = vmatpush.bf16.msra.mxu0 %v2254
      %2311 = vmatpush.bf16.msra.mxu0 %v2250
      %2312 = vmatpush.bf16.msra.mxu0 %v2246
      %2313 = vmatpush.bf16.msra.mxu0 %v2242
      %2314 = vmatmul.bf16.gmra.mxu0 %v2113
      %v2315 = vpop.f32.mrf.mxu0
      %v2316 = vadd.f32 0.0, %v2315
      %v2317 = vpop.f32.mrf.mxu0
      %2318 = vdwg.mxu0
      %2319 = vmatpush.bf16.msra.mxu0 %v2271
      %2320 = vmatpush.bf16.msra.mxu0 %v2267
      %2321 = vmatpush.bf16.msra.mxu0 %v2263
      %2322 = vmatpush.bf16.msra.mxu0 %v2259
      %2323 = vmatpush.bf16.msra.mxu0 %v2255
      %2324 = vmatpush.bf16.msra.mxu0 %v2251
      %2325 = vmatpush.bf16.msra.mxu0 %v2247
      %2326 = vmatpush.bf16.msra.mxu0 %v2243
      %2327 = vmatmul.bf16.gmra.mxu0 %v2113
      %v2328 = vpop.f32.mrf.mxu0
      %v2329 = vadd.f32 0.0, %v2328
      %v2330 = vpop.f32.mrf.mxu0
      %2331 = vdwg.mxu0
      %2332 = vmatpush.bf16.msra.mxu0 %v2272
      %2333 = vmatpush.bf16.msra.mxu0 %v2268
      %2334 = vmatpush.bf16.msra.mxu0 %v2264
      %2335 = vmatpush.bf16.msra.mxu0 %v2260
      %2336 = vmatpush.bf16.msra.mxu0 %v2256
      %2337 = vmatpush.bf16.msra.mxu0 %v2252
      %2338 = vmatpush.bf16.msra.mxu0 %v2248
      %2339 = vmatpush.bf16.msra.mxu0 %v2244
      %2340 = vmatmul.bf16.gmra.mxu0 %v2113
      %v2341 = vpop.f32.mrf.mxu0
      %v2342 = vadd.f32 0.0, %v2341
      %v2343 = vpop.f32.mrf.mxu0
      %2344 = vdwg.mxu0
      %2345 = vmatpush.bf16.msra.mxu0 %v2273
      %2346 = vmatpush.bf16.msra.mxu0 %v2269
      %2347 = vmatpush.bf16.msra.mxu0 %v2265
      %2348 = vmatpush.bf16.msra.mxu0 %v2261
      %2349 = vmatpush.bf16.msra.mxu0 %v2257
      %2350 = vmatpush.bf16.msra.mxu0 %v2253
      %2351 = vmatpush.bf16.msra.mxu0 %v2249
      %2352 = vmatpush.bf16.msra.mxu0 %v2245
      %2353 = vmatmul.bf16.gmra.mxu0 %v2113
      %v2354 = vpop.f32.mrf.mxu0
      %v2355 = vadd.f32 0.0, %v2354
      %v2356 = vpop.f32.mrf.mxu0
      %2357 = vdwg.mxu0
      %v2358 = vadd.f32 %v2109, %v2316
      %v2359 = vadd.f32 %v2110, %v2329
      %v2360 = vadd.f32 %v2111, %v2342
      %v2361 = vadd.f32 %v2112, %v2355
      %v2362 = vld [vmem:[#allocation3] sm:$0xff]
      %v2363 = vld [vmem:[#allocation3 + $0x8] sm:$0xff]
      %v2364 = vld [vmem:[#allocation3 + $0x10] sm:$0xff]
      %v2365 = vld [vmem:[#allocation3 + $0x18] sm:$0xff]
      %v2366 = vpack.c.bf16 %v2094, %v2094
      %v2367 = vld [vmem:[#allocation9] sm:$0xff]
      %v2368 = vld [vmem:[#allocation9 + $0x8] sm:$0xff]
      %v2369 = vld [vmem:[#allocation9 + $0x10] sm:$0xff]
      %v2370 = vld [vmem:[#allocation9 + $0x18] sm:$0xff]
      %v2371 = vld [vmem:[#allocation9 + $0x20] sm:$0xff]
      %v2372 = vld [vmem:[#allocation9 + $0x28] sm:$0xff]
      %v2373 = vld [vmem:[#allocation9 + $0x30] sm:$0xff]
      %v2374 = vld [vmem:[#allocation9 + $0x38] sm:$0xff]
      %v2375 = vld [vmem:[#allocation9 + $0x40] sm:$0xff]
      %v2376 = vld [vmem:[#allocation9 + $0x48] sm:$0xff]
      %v2377 = vld [vmem:[#allocation9 + $0x50] sm:$0xff]
      %v2378 = vld [vmem:[#allocation9 + $0x58] sm:$0xff]
      %v2379 = vld [vmem:[#allocation9 + $0x60] sm:$0xff]
      %v2380 = vld [vmem:[#allocation9 + $0x68] sm:$0xff]
      %v2381 = vld [vmem:[#allocation9 + $0x70] sm:$0xff]
      %v2382 = vld [vmem:[#allocation9 + $0x78] sm:$0xff]
      %v2383 = vld [vmem:[#allocation9 + $0x80] sm:$0xff]
      %v2384 = vld [vmem:[#allocation9 + $0x88] sm:$0xff]
      %v2385 = vld [vmem:[#allocation9 + $0x90] sm:$0xff]
      %v2386 = vld [vmem:[#allocation9 + $0x98] sm:$0xff]
      %v2387 = vld [vmem:[#allocation9 + $0xa0] sm:$0xff]
      %v2388 = vld [vmem:[#allocation9 + $0xa8] sm:$0xff]
      %v2389 = vld [vmem:[#allocation9 + $0xb0] sm:$0xff]
      %v2390 = vld [vmem:[#allocation9 + $0xb8] sm:$0xff]
      %v2391 = vld [vmem:[#allocation9 + $0xc0] sm:$0xff]
      %v2392 = vld [vmem:[#allocation9 + $0xc8] sm:$0xff]
      %v2393 = vld [vmem:[#allocation9 + $0xd0] sm:$0xff]
      %v2394 = vld [vmem:[#allocation9 + $0xd8] sm:$0xff]
      %v2395 = vld [vmem:[#allocation9 + $0xe0] sm:$0xff]
      %v2396 = vld [vmem:[#allocation9 + $0xe8] sm:$0xff]
      %v2397 = vld [vmem:[#allocation9 + $0xf0] sm:$0xff]
      %v2398 = vld [vmem:[#allocation9 + $0xf8] sm:$0xff]
      %v2431 = vunpack.c.l.b16 %v2367
      %v2432 = vunpack.c.h.b16 %v2367
      %v2433 = vunpack.c.l.b16 %v2368
      %v2434 = vunpack.c.h.b16 %v2368
      %v2435 = vunpack.c.l.b16 %v2369
      %v2436 = vunpack.c.h.b16 %v2369
      %v2437 = vunpack.c.l.b16 %v2370
      %v2438 = vunpack.c.h.b16 %v2370
      %v2439 = vunpack.c.l.b16 %v2371
      %v2440 = vunpack.c.h.b16 %v2371
      %v2441 = vunpack.c.l.b16 %v2372
      %v2442 = vunpack.c.h.b16 %v2372
      %v2443 = vunpack.c.l.b16 %v2373
      %v2444 = vunpack.c.h.b16 %v2373
      %v2445 = vunpack.c.l.b16 %v2374
      %v2446 = vunpack.c.h.b16 %v2374
      %v2447 = vunpack.c.l.b16 %v2375
      %v2448 = vunpack.c.h.b16 %v2375
      %v2449 = vunpack.c.l.b16 %v2376
      %v2450 = vunpack.c.h.b16 %v2376
      %v2451 = vunpack.c.l.b16 %v2377
      %v2452 = vunpack.c.h.b16 %v2377
      %v2453 = vunpack.c.l.b16 %v2378
      %v2454 = vunpack.c.h.b16 %v2378
      %v2455 = vunpack.c.l.b16 %v2379
      %v2456 = vunpack.c.h.b16 %v2379
      %v2457 = vunpack.c.l.b16 %v2380
      %v2458 = vunpack.c.h.b16 %v2380
      %v2459 = vunpack.c.l.b16 %v2381
      %v2460 = vunpack.c.h.b16 %v2381
      %v2461 = vunpack.c.l.b16 %v2382
      %v2462 = vunpack.c.h.b16 %v2382
      %v2463 = vunpack.c.l.b16 %v2383
      %v2464 = vunpack.c.h.b16 %v2383
      %v2465 = vunpack.c.l.b16 %v2384
      %v2466 = vunpack.c.h.b16 %v2384
      %v2467 = vunpack.c.l.b16 %v2385
      %v2468 = vunpack.c.h.b16 %v2385
      %v2469 = vunpack.c.l.b16 %v2386
      %v2470 = vunpack.c.h.b16 %v2386
      %v2471 = vunpack.c.l.b16 %v2387
      %v2472 = vunpack.c.h.b16 %v2387
      %v2473 = vunpack.c.l.b16 %v2388
      %v2474 = vunpack.c.h.b16 %v2388
      %v2475 = vunpack.c.l.b16 %v2389
      %v2476 = vunpack.c.h.b16 %v2389
      %v2477 = vunpack.c.l.b16 %v2390
      %v2478 = vunpack.c.h.b16 %v2390
      %v2479 = vunpack.c.l.b16 %v2391
      %v2480 = vunpack.c.h.b16 %v2391
      %v2481 = vunpack.c.l.b16 %v2392
      %v2482 = vunpack.c.h.b16 %v2392
      %v2483 = vunpack.c.l.b16 %v2393
      %v2484 = vunpack.c.h.b16 %v2393
      %v2485 = vunpack.c.l.b16 %v2394
      %v2486 = vunpack.c.h.b16 %v2394
      %v2487 = vunpack.c.l.b16 %v2395
      %v2488 = vunpack.c.h.b16 %v2395
      %v2489 = vunpack.c.l.b16 %v2396
      %v2490 = vunpack.c.h.b16 %v2396
      %v2491 = vunpack.c.l.b16 %v2397
      %v2492 = vunpack.c.h.b16 %v2397
      %v2493 = vunpack.c.l.b16 %v2398
      %v2494 = vunpack.c.h.b16 %v2398
      %v2495 = vpack.c.b16 %v2435, %v2431
      %v2496 = vpack.c.b16 %v2436, %v2432
      %v2497 = vpack.c.b16 %v2437, %v2433
      %v2498 = vpack.c.b16 %v2438, %v2434
      %v2499 = vpack.c.b16 %v2443, %v2439
      %v2500 = vpack.c.b16 %v2444, %v2440
      %v2501 = vpack.c.b16 %v2445, %v2441
      %v2502 = vpack.c.b16 %v2446, %v2442
      %v2503 = vpack.c.b16 %v2451, %v2447
      %v2504 = vpack.c.b16 %v2452, %v2448
      %v2505 = vpack.c.b16 %v2453, %v2449
      %v2506 = vpack.c.b16 %v2454, %v2450
      %v2507 = vpack.c.b16 %v2459, %v2455
      %v2508 = vpack.c.b16 %v2460, %v2456
      %v2509 = vpack.c.b16 %v2461, %v2457
      %v2510 = vpack.c.b16 %v2462, %v2458
      %v2511 = vpack.c.b16 %v2467, %v2463
      %v2512 = vpack.c.b16 %v2468, %v2464
      %v2513 = vpack.c.b16 %v2469, %v2465
      %v2514 = vpack.c.b16 %v2470, %v2466
      %v2515 = vpack.c.b16 %v2475, %v2471
      %v2516 = vpack.c.b16 %v2476, %v2472
      %v2517 = vpack.c.b16 %v2477, %v2473
      %v2518 = vpack.c.b16 %v2478, %v2474
      %v2519 = vpack.c.b16 %v2483, %v2479
      %v2520 = vpack.c.b16 %v2484, %v2480
      %v2521 = vpack.c.b16 %v2485, %v2481
      %v2522 = vpack.c.b16 %v2486, %v2482
      %v2523 = vpack.c.b16 %v2491, %v2487
      %v2524 = vpack.c.b16 %v2492, %v2488
      %v2525 = vpack.c.b16 %v2493, %v2489
      %v2526 = vpack.c.b16 %v2494, %v2490
      %2559 = vmatpush.bf16.msra.mxu0 %v2523
      %2560 = vmatpush.bf16.msra.mxu0 %v2519
      %2561 = vmatpush.bf16.msra.mxu0 %v2515
      %2562 = vmatpush.bf16.msra.mxu0 %v2511
      %2563 = vmatpush.bf16.msra.mxu0 %v2507
      %2564 = vmatpush.bf16.msra.mxu0 %v2503
      %2565 = vmatpush.bf16.msra.mxu0 %v2499
      %2566 = vmatpush.bf16.msra.mxu0 %v2495
      %2567 = vmatmul.bf16.gmra.mxu0 %v2366
      %v2568 = vpop.f32.mrf.mxu0
      %v2569 = vadd.f32 0.0, %v2568
      %v2570 = vpop.f32.mrf.mxu0
      %2571 = vdwg.mxu0
      %2572 = vmatpush.bf16.msra.mxu0 %v2524
      %2573 = vmatpush.bf16.msra.mxu0 %v2520
      %2574 = vmatpush.bf16.msra.mxu0 %v2516
      %2575 = vmatpush.bf16.msra.mxu0 %v2512
      %2576 = vmatpush.bf16.msra.mxu0 %v2508
      %2577 = vmatpush.bf16.msra.mxu0 %v2504
      %2578 = vmatpush.bf16.msra.mxu0 %v2500
      %2579 = vmatpush.bf16.msra.mxu0 %v2496
      %2580 = vmatmul.bf16.gmra.mxu0 %v2366
      %v2581 = vpop.f32.mrf.mxu0
      %v2582 = vadd.f32 0.0, %v2581
      %v2583 = vpop.f32.mrf.mxu0
      %2584 = vdwg.mxu0
      %2585 = vmatpush.bf16.msra.mxu0 %v2525
      %2586 = vmatpush.bf16.msra.mxu0 %v2521
      %2587 = vmatpush.bf16.msra.mxu0 %v2517
      %2588 = vmatpush.bf16.msra.mxu0 %v2513
      %2589 = vmatpush.bf16.msra.mxu0 %v2509
      %2590 = vmatpush.bf16.msra.mxu0 %v2505
      %2591 = vmatpush.bf16.msra.mxu0 %v2501
      %2592 = vmatpush.bf16.msra.mxu0 %v2497
      %2593 = vmatmul.bf16.gmra.mxu0 %v2366
      %v2594 = vpop.f32.mrf.mxu0
      %v2595 = vadd.f32 0.0, %v2594
      %v2596 = vpop.f32.mrf.mxu0
      %2597 = vdwg.mxu0
      %2598 = vmatpush.bf16.msra.mxu0 %v2526
      %2599 = vmatpush.bf16.msra.mxu0 %v2522
      %2600 = vmatpush.bf16.msra.mxu0 %v2518
      %2601 = vmatpush.bf16.msra.mxu0 %v2514
      %2602 = vmatpush.bf16.msra.mxu0 %v2510
      %2603 = vmatpush.bf16.msra.mxu0 %v2506
      %2604 = vmatpush.bf16.msra.mxu0 %v2502
      %2605 = vmatpush.bf16.msra.mxu0 %v2498
      %2606 = vmatmul.bf16.gmra.mxu0 %v2366
      %v2607 = vpop.f32.mrf.mxu0
      %v2608 = vadd.f32 0.0, %v2607
      %v2609 = vpop.f32.mrf.mxu0
      %2610 = vdwg.mxu0
      %v2611 = vadd.f32 %v2362, %v2569
      %v2612 = vadd.f32 %v2363, %v2582
      %v2613 = vadd.f32 %v2364, %v2595
      %v2614 = vadd.f32 %v2365, %v2608
      %v2615 = vmul.f32 %v2358, 0.5
      %v2616 = vtanh.pop %v2615
      %v2617 = vmul.f32 %v2616, 0.5
      %v2618 = vadd.f32 %v2617, 0.5
      %v2619 = vmul.f32 %v2359, 0.5
      %v2620 = vtanh.pop %v2619
      %v2621 = vmul.f32 %v2620, 0.5
      %v2622 = vadd.f32 %v2621, 0.5
      %v2623 = vtanh.pop %v2360
      %v2624 = vmul.f32 %v2361, 0.5
      %v2625 = vtanh.pop %v2624
      %v2626 = vmul.f32 %v2625, 0.5
      %v2627 = vadd.f32 %v2626, 0.5
      %v2628 = vmul.f32 %v2622, %v2074
      %v2629 = vmul.f32 %v2618, %v2623
      %v2630 = vadd.f32 %v2628, %v2629
      %v2631 = vtanh.pop %v2630
      %v2632 = vmul.f32 %v2627, %v2631
      %v2633 = vmul.f32 %v2611, 0.5
      %v2634 = vtanh.pop %v2633
      %v2635 = vmul.f32 %v2634, 0.5
      %v2636 = vadd.f32 %v2635, 0.5
      %v2637 = vmul.f32 %v2612, 0.5
      %v2638 = vtanh.pop %v2637
      %v2639 = vmul.f32 %v2638, 0.5
      %v2640 = vadd.f32 %v2639, 0.5
      %v2641 = vtanh.pop %v2613
      %v2642 = vmul.f32 %v2614, 0.5
      %v2643 = vtanh.pop %v2642
      %v2644 = vmul.f32 %v2643, 0.5
      %v2645 = vadd.f32 %v2644, 0.5
      %v2646 = vmul.f32 %v2640, %v2092
      %v2647 = vmul.f32 %v2636, %v2641
      %v2648 = vadd.f32 %v2646, %v2647
      %v2649 = vtanh.pop %v2648
      %v2650 = vmul.f32 %v2645, %v2649
      %s2651 = sadd.s32 %s90, 24
      %s2652 = sshra.s32 %s2651, 3
      %s2653 = sand.u32 %s2651, 7
      %s2654 = smul.u32 %s2652, 2
      %s2655 = smul.addr %s2654, 8
      %s2656 = scalar_lea.vmem [#allocation4], %s2655
      %2657 = vst [vmem:[%s2656] sm:$0xff] %v2632
      %s2658 = sshra.s32 %s92, 3
      %s2659 = sand.u32 %s92, 7
      %s2660 = smul.u32 %s2658, 2
      %s2661 = smul.addr %s2660, 8
      %s2662 = scalar_lea.vmem [#allocation4], %s2661
      %2663 = vst [vmem:[%s2662 + $0x8] sm:$0xff] %v2650
    $region54: #{_lambda_.2} parent=1 // loop_footer
      %s85 = sadd.s32 1, %s81
    $region55: #{_lambda_.2} parent=1 // loop_footer_branch
      %80 = sbr.rel target = $region51
    $region56: #{_lambda_.2} parent=1 // loop_exit
      _
    %v2664 = vld [vmem:[#allocation4] sm:$0xff]
    %v2665 = vld [vmem:[#allocation4 + $0x8] sm:$0xff]
    %v2666 = vld [vmem:[#allocation4 + $0x10] sm:$0xff]
    %v2667 = vld [vmem:[#allocation4 + $0x18] sm:$0xff]
    %v2668 = vld [vmem:[#allocation4 + $0x20] sm:$0xff]
    %v2669 = vld [vmem:[#allocation4 + $0x28] sm:$0xff]
    %v2670 = vld [vmem:[#allocation4 + $0x30] sm:$0xff]
    %v2671 = vld [vmem:[#allocation4 + $0x38] sm:$0xff]
    %v2672 = vld [vmem:[#allocation4 + $0x40] sm:$0xff]
    %v2673 = vld [vmem:[#allocation4 + $0x48] sm:$0xff]
    %v2674 = vld [vmem:[#allocation4 + $0x50] sm:$0xff]
    %v2675 = vld [vmem:[#allocation4 + $0x58] sm:$0xff]
    %v2676 = vld [vmem:[#allocation4 + $0x60] sm:$0xff]
    %v2677 = vld [vmem:[#allocation4 + $0x68] sm:$0xff]
    %v2678 = vld [vmem:[#allocation4 + $0x70] sm:$0xff]
    %v2679 = vld [vmem:[#allocation4 + $0x78] sm:$0xff]
    %v2680 = vpack.c.bf16 %v2666, %v2664
    %v2681 = vpack.c.bf16 %v2667, %v2665
    %v2682 = vpack.c.bf16 %v2670, %v2668
    %v2683 = vpack.c.bf16 %v2671, %v2669
    %v2684 = vpack.c.bf16 %v2674, %v2672
    %v2685 = vpack.c.bf16 %v2675, %v2673
    %v2686 = vpack.c.bf16 %v2678, %v2676
    %v2687 = vpack.c.bf16 %v2679, %v2677
    %v2688 = vld [vmem:[%s7] sm:$0xf]
    %v2689 = vld [vmem:[%s7 + $0x4] sm:$0xf]
    %v2690 = vld [vmem:[%s7 + $0x8] sm:$0xf]
    %v2691 = vld [vmem:[%s7 + $0xc] sm:$0xf]
    %v2692 = vld [vmem:[%s7 + $0x10] sm:$0xf]
    %v2693 = vld [vmem:[%s7 + $0x14] sm:$0xf]
    %v2694 = vld [vmem:[%s7 + $0x18] sm:$0xf]
    %v2695 = vld [vmem:[%s7 + $0x1c] sm:$0xf]
    %v2696 = vld [vmem:[%s7 + $0x20] sm:$0xf]
    %v2697 = vld [vmem:[%s7 + $0x24] sm:$0xf]
    %v2698 = vld [vmem:[%s7 + $0x28] sm:$0xf]
    %v2699 = vld [vmem:[%s7 + $0x2c] sm:$0xf]
    %v2700 = vld [vmem:[%s7 + $0x30] sm:$0xf]
    %v2701 = vld [vmem:[%s7 + $0x34] sm:$0xf]
    %v2702 = vld [vmem:[%s7 + $0x38] sm:$0xf]
    %v2703 = vld [vmem:[%s7 + $0x3c] sm:$0xf]
    %v2704 = vld [vmem:[%s7 + $0x40] sm:$0xf]
    %v2705 = vld [vmem:[%s7 + $0x44] sm:$0xf]
    %v2706 = vld [vmem:[%s7 + $0x48] sm:$0xf]
    %v2707 = vld [vmem:[%s7 + $0x4c] sm:$0xf]
    %v2708 = vld [vmem:[%s7 + $0x50] sm:$0xf]
    %v2709 = vld [vmem:[%s7 + $0x54] sm:$0xf]
    %v2710 = vld [vmem:[%s7 + $0x58] sm:$0xf]
    %v2711 = vld [vmem:[%s7 + $0x5c] sm:$0xf]
    %v2712 = vld [vmem:[%s7 + $0x60] sm:$0xf]
    %v2713 = vld [vmem:[%s7 + $0x64] sm:$0xf]
    %v2714 = vld [vmem:[%s7 + $0x68] sm:$0xf]
    %v2715 = vld [vmem:[%s7 + $0x6c] sm:$0xf]
    %v2716 = vld [vmem:[%s7 + $0x70] sm:$0xf]
    %v2717 = vld [vmem:[%s7 + $0x74] sm:$0xf]
    %v2718 = vld [vmem:[%s7 + $0x78] sm:$0xf]
    %v2719 = vld [vmem:[%s7 + $0x7c] sm:$0xf]
    %v2720 = vld [vmem:[%s8] sm:$0x1]
    %v2722 = vperm.slane %v2720, 0
    %v2756 = vunpack.c.l.b16 %v2688
    %v2757 = vunpack.c.l.b16 %v2689
    %v2758 = vunpack.c.l.b16 %v2690
    %v2759 = vunpack.c.l.b16 %v2691
    %v2760 = vunpack.c.l.b16 %v2692
    %v2761 = vunpack.c.l.b16 %v2693
    %v2762 = vunpack.c.l.b16 %v2694
    %v2763 = vunpack.c.l.b16 %v2695
    %v2764 = vunpack.c.l.b16 %v2696
    %v2765 = vunpack.c.l.b16 %v2697
    %v2766 = vunpack.c.l.b16 %v2698
    %v2767 = vunpack.c.l.b16 %v2699
    %v2768 = vunpack.c.l.b16 %v2700
    %v2769 = vunpack.c.l.b16 %v2701
    %v2770 = vunpack.c.l.b16 %v2702
    %v2771 = vunpack.c.l.b16 %v2703
    %v2772 = vunpack.c.l.b16 %v2704
    %v2773 = vunpack.c.l.b16 %v2705
    %v2774 = vunpack.c.l.b16 %v2706
    %v2775 = vunpack.c.l.b16 %v2707
    %v2776 = vunpack.c.l.b16 %v2708
    %v2777 = vunpack.c.l.b16 %v2709
    %v2778 = vunpack.c.l.b16 %v2710
    %v2779 = vunpack.c.l.b16 %v2711
    %v2780 = vunpack.c.l.b16 %v2712
    %v2781 = vunpack.c.l.b16 %v2713
    %v2782 = vunpack.c.l.b16 %v2714
    %v2783 = vunpack.c.l.b16 %v2715
    %v2784 = vunpack.c.l.b16 %v2716
    %v2785 = vunpack.c.l.b16 %v2717
    %v2786 = vunpack.c.l.b16 %v2718
    %v2787 = vunpack.c.l.b16 %v2719
    %v2788 = vpack.c.b16 %v2757, %v2756
    %v2789 = vpack.c.b16 %v2759, %v2758
    %v2790 = vpack.c.b16 %v2761, %v2760
    %v2791 = vpack.c.b16 %v2763, %v2762
    %v2792 = vpack.c.b16 %v2765, %v2764
    %v2793 = vpack.c.b16 %v2767, %v2766
    %v2794 = vpack.c.b16 %v2769, %v2768
    %v2795 = vpack.c.b16 %v2771, %v2770
    %v2796 = vpack.c.b16 %v2773, %v2772
    %v2797 = vpack.c.b16 %v2775, %v2774
    %v2798 = vpack.c.b16 %v2777, %v2776
    %v2799 = vpack.c.b16 %v2779, %v2778
    %v2800 = vpack.c.b16 %v2781, %v2780
    %v2801 = vpack.c.b16 %v2783, %v2782
    %v2802 = vpack.c.b16 %v2785, %v2784
    %v2803 = vpack.c.b16 %v2787, %v2786
    %2820 = vmatpush.bf16.msra.mxu0 %v2795
    %2821 = vmatpush.bf16.msra.mxu0 %v2794
    %2822 = vmatpush.bf16.msra.mxu0 %v2793
    %2823 = vmatpush.bf16.msra.mxu0 %v2792
    %2824 = vmatpush.bf16.msra.mxu0 %v2791
    %2825 = vmatpush.bf16.msra.mxu0 %v2790
    %2826 = vmatpush.bf16.msra.mxu0 %v2789
    %2827 = vmatpush.bf16.msra.mxu0 %v2788
    %2828 = vmatmul.bf16.gmra.mxu0 %v2680
    %v2829 = vpop.f32.mrf.mxu0
    %v2830 = vadd.f32 %v2722, %v2829
    %v2831 = vpop.f32.mrf.mxu0
    %v2832 = vadd.f32 %v2722, %v2831
    %2833 = vmatmul.bf16.gmra.mxu0 %v2682
    %v2834 = vpop.f32.mrf.mxu0
    %v2835 = vadd.f32 %v2722, %v2834
    %v2836 = vpop.f32.mrf.mxu0
    %v2837 = vadd.f32 %v2722, %v2836
    %2838 = vmatmul.bf16.gmra.mxu0 %v2684
    %v2839 = vpop.f32.mrf.mxu0
    %v2840 = vadd.f32 %v2722, %v2839
    %v2841 = vpop.f32.mrf.mxu0
    %v2842 = vadd.f32 %v2722, %v2841
    %2843 = vmatmul.bf16.gmra.mxu0 %v2686
    %v2844 = vpop.f32.mrf.mxu0
    %v2845 = vadd.f32 %v2722, %v2844
    %v2846 = vpop.f32.mrf.mxu0
    %v2847 = vadd.f32 %v2722, %v2846
    %2848 = vdwg.mxu0
    %2849 = vmatpush.bf16.msra.mxu0 %v2803
    %2850 = vmatpush.bf16.msra.mxu0 %v2802
    %2851 = vmatpush.bf16.msra.mxu0 %v2801
    %2852 = vmatpush.bf16.msra.mxu0 %v2800
    %2853 = vmatpush.bf16.msra.mxu0 %v2799
    %2854 = vmatpush.bf16.msra.mxu0 %v2798
    %2855 = vmatpush.bf16.msra.mxu0 %v2797
    %2856 = vmatpush.bf16.msra.mxu0 %v2796
    %2857 = vmatmul.bf16.gmra.mxu0 %v2681
    %v2858 = vpop.f32.mrf.mxu0
    %v2859 = vadd.f32 %v2830, %v2858
    %v2860 = vpop.f32.mrf.mxu0
    %v2861 = vadd.f32 %v2832, %v2860
    %2862 = vmatmul.bf16.gmra.mxu0 %v2683
    %v2863 = vpop.f32.mrf.mxu0
    %v2864 = vadd.f32 %v2835, %v2863
    %v2865 = vpop.f32.mrf.mxu0
    %v2866 = vadd.f32 %v2837, %v2865
    %2867 = vmatmul.bf16.gmra.mxu0 %v2685
    %v2868 = vpop.f32.mrf.mxu0
    %v2869 = vadd.f32 %v2840, %v2868
    %v2870 = vpop.f32.mrf.mxu0
    %v2871 = vadd.f32 %v2842, %v2870
    %2872 = vmatmul.bf16.gmra.mxu0 %v2687
    %v2873 = vpop.f32.mrf.mxu0
    %v2874 = vadd.f32 %v2845, %v2873
    %v2875 = vpop.f32.mrf.mxu0
    %v2876 = vadd.f32 %v2847, %v2875
    %2877 = vdwg.mxu0
    %2878 = vst [vmem:[%s9] sm:$0xff] %v2859
    %2879 = vst [vmem:[%s9 + $0x8] sm:$0xff] %v2861
    %2880 = vst [vmem:[%s9 + $0x10] sm:$0xff] %v2864
    %2881 = vst [vmem:[%s9 + $0x18] sm:$0xff] %v2866
    %2882 = vst [vmem:[%s9 + $0x20] sm:$0xff] %v2869
    %2883 = vst [vmem:[%s9 + $0x28] sm:$0xff] %v2871
    %2884 = vst [vmem:[%s9 + $0x30] sm:$0xff] %v2874
    %2885 = vst [vmem:[%s9 + $0x38] sm:$0xff] %v2876
    // Predicated region
    $region57: #{_lambda_.2} parent=1 // pred_check
      _
    $region58: #{_lambda_.2} parent=1 // pred_check_branch
      %2887 = sbr.rel (0) target = $region60
    $region59: #{_lambda_.2} parent=1 // pred_region
      _
    $region60: #{_lambda_.2} parent=1 // pred_fallthru
      _
    // Predicated region
    $region61: #{_lambda_.2} parent=1 // pred_check
      _
    $region62: #{_lambda_.2} parent=1 // pred_check_branch
      %2889 = sbr.rel (0) target = $region64
    $region63: #{_lambda_.2} parent=1 // pred_region
      _
    $region64: #{_lambda_.2} parent=1 // pred_fallthru
      _
    %2890 = vsyncpa [#allocation6], 1
    %2891 = vsyncpa [#allocation8], 1

// kernel: _lambda_.3
$region0: #{_lambda_.3}
  #allocation0 [shape = 'u32[]', space=smem, size = 0x4, offset = 0x4, fixed_abs, tag = 'smem constant byte address 0x4 - core index']
  #allocation1 [shape = 'u32[72,128]{1,0:T(1,128)}', space=vmem, size = 0x9000, scoped, tag = 'internal scratch']
  #allocation2 [shape = 'f32[32,512]{1,0:T(8,128)}', space=vmem, size = 0x10000, scoped, tag = 'scratch operand']
  #allocation3 [shape = 'f32[32,512]{1,0:T(8,128)}', space=vmem, size = 0x10000, scoped, tag = 'scratch operand']
  #allocation4 [shape = 'f32[64,256]{1,0:T(8,128)}', space=vmem, size = 0x10000, scoped, tag = 'scratch operand']
  %s0 = inlined_call_operand.vmem [shape: bf16[64,64], index: 0, kind: input, shape index: {}]
  %s1 = inlined_call_operand.vmem [shape: bf16[64,512], index: 1, kind: input, shape index: {}]
  %s2 = inlined_call_operand.vmem [shape: bf16[64,512], index: 2, kind: input, shape index: {}]
  %s3 = inlined_call_operand.vmem [shape: bf16[128,512], index: 3, kind: input, shape index: {}]
  %s4 = inlined_call_operand.vmem [shape: bf16[128,512], index: 4, kind: input, shape index: {}]
  %s5 = inlined_call_operand.vmem [shape: f32[1,512], index: 5, kind: input, shape index: {}]
  %s6 = inlined_call_operand.vmem [shape: f32[1,512], index: 6, kind: input, shape index: {}]
  %s7 = inlined_call_operand.vmem [shape: bf16[256,128], index: 7, kind: input, shape index: {}]
  %s8 = inlined_call_operand.vmem [shape: f32[1,128], index: 8, kind: input, shape index: {}]
  %s9 = inlined_call_operand.vmem [shape: f32[64,128], index: 9, kind: output, shape index: {}]
  %s10 = sld [smem:[#allocation0]]
  $region53: #{_lambda_.3} parent=0
    _
  %s12 = ssub.s32 1, %s10
  %s13 = scalar_select 0, %s12, %s10
  // Predicated region
  $region2: #{_lambda_.3} parent=0 // pred_check
    _
  $region3: #{_lambda_.3} parent=0 // pred_check_branch
    %15 = sbr.rel (0) target = $region5
  $region4: #{_lambda_.3} parent=0 // pred_region
    _
  $region5: #{_lambda_.3} parent=0 // pred_fallthru
    _
  // Predicated region
  $region6: #{_lambda_.3} parent=0 // pred_check
    _
  $region7: #{_lambda_.3} parent=0 // pred_check_branch
    %17 = sbr.rel (0) target = $region9
  $region8: #{_lambda_.3} parent=0 // pred_region
    _
  $region9: #{_lambda_.3} parent=0 // pred_fallthru
    _
  // Predicated region
  $region10: #{_lambda_.3} parent=0 // pred_check
    _
  $region11: #{_lambda_.3} parent=0 // pred_check_branch
    %19 = sbr.rel (0) target = $region13
  $region12: #{_lambda_.3} parent=0 // pred_region
    _
  $region13: #{_lambda_.3} parent=0 // pred_fallthru
    _
  // Predicated region
  $region14: #{_lambda_.3} parent=0 // pred_check
    _
  $region15: #{_lambda_.3} parent=0 // pred_check_branch
    %21 = sbr.rel (0) target = $region17
  $region16: #{_lambda_.3} parent=0 // pred_region
    _
  $region17: #{_lambda_.3} parent=0 // pred_fallthru
    _
  // Predicated region
  $region18: #{_lambda_.3} parent=0 // pred_check
    _
  $region19: #{_lambda_.3} parent=0 // pred_check_branch
    %23 = sbr.rel (0) target = $region21
  $region20: #{_lambda_.3} parent=0 // pred_region
    _
  $region21: #{_lambda_.3} parent=0 // pred_fallthru
    _
  // Predicated region
  $region22: #{_lambda_.3} parent=0 // pred_check
    _
  $region23: #{_lambda_.3} parent=0 // pred_check_branch
    %25 = sbr.rel (0) target = $region25
  $region24: #{_lambda_.3} parent=0 // pred_region
    _
  $region25: #{_lambda_.3} parent=0 // pred_fallthru
    _
  // Predicated region
  $region26: #{_lambda_.3} parent=0 // pred_check
    _
  $region27: #{_lambda_.3} parent=0 // pred_check_branch
    %27 = sbr.rel (0) target = $region29
  $region28: #{_lambda_.3} parent=0 // pred_region
    _
  $region29: #{_lambda_.3} parent=0 // pred_fallthru
    _
  // Predicated region
  $region30: #{_lambda_.3} parent=0 // pred_check
    _
  $region31: #{_lambda_.3} parent=0 // pred_check_branch
    %29 = sbr.rel (0) target = $region33
  $region32: #{_lambda_.3} parent=0 // pred_region
    _
  $region33: #{_lambda_.3} parent=0 // pred_fallthru
    _
  // Predicated region
  $region34: #{_lambda_.3} parent=0 // pred_check
    _
  $region35: #{_lambda_.3} parent=0 // pred_check_branch
    %31 = sbr.rel (0) target = $region37
  $region36: #{_lambda_.3} parent=0 // pred_region
    _
  $region37: #{_lambda_.3} parent=0 // pred_fallthru
    _
  loop: start=0, step=1, limit=2
  $region38: #{_lambda_.3} parent=0 // loop_pre_header
    _
  $region39: #{_lambda_.3} parent=0 // loop_header
    %s34 = sphi 0, %s38
    %p35 = scmp.ge.s32.totalorder %s34, 2
    %v39 = vphi 0.0, %v2681
    %v40 = vphi 0.0, %v2679
    %v41 = vphi 0.0, %v2699
    %v42 = vphi 0.0, %v2697
  $region40: #{_lambda_.3} parent=0 // loop_header_branch
    %37 = sbr.rel (%p35) target = $region44
  $region41: #{_lambda_.3} parent=0 // loop_body
    %s43 = smul.u32 %s34, 32
    %s44 = ssub.s32 1, %s34
    %s45 = smul.u32 %s44, 32
    %s46 = sshra.s32 %s43, 3
    %s47 = sand.u32 %s43, 7
    %s48 = smul.addr %s46, 4
    %s49 = scalar_lea.vmem %s0, %s48
    %v50 = vld [vmem:[%s49] sm:$0xf]
    %v51 = vld [vmem:[%s49 + $0x4] sm:$0xf]
    %v52 = vld [vmem:[%s49 + $0x8] sm:$0xf]
    %v53 = vld [vmem:[%s49 + $0xc] sm:$0xf]
    %v54 = vld [vmem:[%s1] sm:$0xff]
    %v55 = vld [vmem:[%s1 + $0x8] sm:$0xff]
    %v56 = vld [vmem:[%s1 + $0x10] sm:$0xff]
    %v57 = vld [vmem:[%s1 + $0x18] sm:$0xff]
    %v58 = vld [vmem:[%s1 + $0x20] sm:$0xff]
    %v59 = vld [vmem:[%s1 + $0x28] sm:$0xff]
    %v60 = vld [vmem:[%s1 + $0x30] sm:$0xff]
    %v61 = vld [vmem:[%s1 + $0x38] sm:$0xff]
    %v62 = vld [vmem:[%s1 + $0x40] sm:$0xff]
    %v63 = vld [vmem:[%s1 + $0x48] sm:$0xff]
    %v64 = vld [vmem:[%s1 + $0x50] sm:$0xff]
    %v65 = vld [vmem:[%s1 + $0x58] sm:$0xff]
    %v66 = vld [vmem:[%s1 + $0x60] sm:$0xff]
    %v67 = vld [vmem:[%s1 + $0x68] sm:$0xff]
    %v68 = vld [vmem:[%s1 + $0x70] sm:$0xff]
    %v69 = vld [vmem:[%s1 + $0x78] sm:$0xff]
    %v70 = vld [vmem:[%s5] sm:$0xf]
    %v72 = vperm.slane %v70, 0
    %v73 = vperm.slane %v70, 1
    %v74 = vperm.slane %v70, 2
    %v75 = vperm.slane %v70, 3
    %v84 = vunpack.c.l.b16 %v50
    %v85 = vunpack.c.l.b16 %v51
    %v86 = vunpack.c.l.b16 %v52
    %v87 = vunpack.c.l.b16 %v53
    %v88 = vpack.c.b16 %v85, %v84
    %v89 = vpack.c.b16 %v87, %v86
    %v106 = vunpack.c.l.b16 %v54
    %v107 = vunpack.c.h.b16 %v54
    %v108 = vunpack.c.l.b16 %v55
    %v109 = vunpack.c.h.b16 %v55
    %v110 = vunpack.c.l.b16 %v56
    %v111 = vunpack.c.h.b16 %v56
    %v112 = vunpack.c.l.b16 %v57
    %v113 = vunpack.c.h.b16 %v57
    %v114 = vunpack.c.l.b16 %v58
    %v115 = vunpack.c.h.b16 %v58
    %v116 = vunpack.c.l.b16 %v59
    %v117 = vunpack.c.h.b16 %v59
    %v118 = vunpack.c.l.b16 %v60
    %v119 = vunpack.c.h.b16 %v60
    %v120 = vunpack.c.l.b16 %v61
    %v121 = vunpack.c.h.b16 %v61
    %v122 = vunpack.c.l.b16 %v62
    %v123 = vunpack.c.h.b16 %v62
    %v124 = vunpack.c.l.b16 %v63
    %v125 = vunpack.c.h.b16 %v63
    %v126 = vunpack.c.l.b16 %v64
    %v127 = vunpack.c.h.b16 %v64
    %v128 = vunpack.c.l.b16 %v65
    %v129 = vunpack.c.h.b16 %v65
    %v130 = vunpack.c.l.b16 %v66
    %v131 = vunpack.c.h.b16 %v66
    %v132 = vunpack.c.l.b16 %v67
    %v133 = vunpack.c.h.b16 %v67
    %v134 = vunpack.c.l.b16 %v68
    %v135 = vunpack.c.h.b16 %v68
    %v136 = vunpack.c.l.b16 %v69
    %v137 = vunpack.c.h.b16 %v69
    %v138 = vpack.c.b16 %v110, %v106
    %v139 = vpack.c.b16 %v111, %v107
    %v140 = vpack.c.b16 %v112, %v108
    %v141 = vpack.c.b16 %v113, %v109
    %v142 = vpack.c.b16 %v118, %v114
    %v143 = vpack.c.b16 %v119, %v115
    %v144 = vpack.c.b16 %v120, %v116
    %v145 = vpack.c.b16 %v121, %v117
    %v146 = vpack.c.b16 %v126, %v122
    %v147 = vpack.c.b16 %v127, %v123
    %v148 = vpack.c.b16 %v128, %v124
    %v149 = vpack.c.b16 %v129, %v125
    %v150 = vpack.c.b16 %v134, %v130
    %v151 = vpack.c.b16 %v135, %v131
    %v152 = vpack.c.b16 %v136, %v132
    %v153 = vpack.c.b16 %v137, %v133
    %vm170 = vcmask 523264
    %v172 = vsel %vm170, %v88, 0
    %v175 = vsel %vm170, %v89, 0
    %177 = vmatpush.bf16.msra.mxu0 0
    %178 = vmatpush.bf16.msra.mxu0 0
    %179 = vmatpush.bf16.msra.mxu0 0
    %180 = vmatpush.bf16.msra.mxu0 0
    %181 = vmatpush.bf16.msra.mxu0 %v150
    %182 = vmatpush.bf16.msra.mxu0 %v146
    %183 = vmatpush.bf16.msra.mxu0 %v142
    %184 = vmatpush.bf16.msra.mxu0 %v138
    %185 = vmatmul.bf16.gmra.mxu0 %v172
    %v186 = vpop.f32.mrf.mxu0
    %v187 = vadd.f32 %v72, %v186
    %v188 = vpop.f32.mrf.mxu0
    %v189 = vadd.f32 %v72, %v188
    %190 = vmatmul.bf16.gmra.mxu0 %v175
    %v191 = vpop.f32.mrf.mxu0
    %v192 = vadd.f32 %v72, %v191
    %v193 = vpop.f32.mrf.mxu0
    %v194 = vadd.f32 %v72, %v193
    %195 = vdwg.mxu0
    %196 = vmatpush.bf16.msra.mxu0 0
    %197 = vmatpush.bf16.msra.mxu0 0
    %198 = vmatpush.bf16.msra.mxu0 0
    %199 = vmatpush.bf16.msra.mxu0 0
    %200 = vmatpush.bf16.msra.mxu0 %v151
    %201 = vmatpush.bf16.msra.mxu0 %v147
    %202 = vmatpush.bf16.msra.mxu0 %v143
    %203 = vmatpush.bf16.msra.mxu0 %v139
    %204 = vmatmul.bf16.gmra.mxu0 %v172
    %v205 = vpop.f32.mrf.mxu0
    %v206 = vadd.f32 %v73, %v205
    %v207 = vpop.f32.mrf.mxu0
    %v208 = vadd.f32 %v73, %v207
    %209 = vmatmul.bf16.gmra.mxu0 %v175
    %v210 = vpop.f32.mrf.mxu0
    %v211 = vadd.f32 %v73, %v210
    %v212 = vpop.f32.mrf.mxu0
    %v213 = vadd.f32 %v73, %v212
    %214 = vdwg.mxu0
    %215 = vmatpush.bf16.msra.mxu0 0
    %216 = vmatpush.bf16.msra.mxu0 0
    %217 = vmatpush.bf16.msra.mxu0 0
    %218 = vmatpush.bf16.msra.mxu0 0
    %219 = vmatpush.bf16.msra.mxu0 %v152
    %220 = vmatpush.bf16.msra.mxu0 %v148
    %221 = vmatpush.bf16.msra.mxu0 %v144
    %222 = vmatpush.bf16.msra.mxu0 %v140
    %223 = vmatmul.bf16.gmra.mxu0 %v172
    %v224 = vpop.f32.mrf.mxu0
    %v225 = vadd.f32 %v74, %v224
    %v226 = vpop.f32.mrf.mxu0
    %v227 = vadd.f32 %v74, %v226
    %228 = vmatmul.bf16.gmra.mxu0 %v175
    %v229 = vpop.f32.mrf.mxu0
    %v230 = vadd.f32 %v74, %v229
    %v231 = vpop.f32.mrf.mxu0
    %v232 = vadd.f32 %v74, %v231
    %233 = vdwg.mxu0
    %234 = vmatpush.bf16.msra.mxu0 0
    %235 = vmatpush.bf16.msra.mxu0 0
    %236 = vmatpush.bf16.msra.mxu0 0
    %237 = vmatpush.bf16.msra.mxu0 0
    %238 = vmatpush.bf16.msra.mxu0 %v153
    %239 = vmatpush.bf16.msra.mxu0 %v149
    %240 = vmatpush.bf16.msra.mxu0 %v145
    %241 = vmatpush.bf16.msra.mxu0 %v141
    %242 = vmatmul.bf16.gmra.mxu0 %v172
    %v243 = vpop.f32.mrf.mxu0
    %v244 = vadd.f32 %v75, %v243
    %v245 = vpop.f32.mrf.mxu0
    %v246 = vadd.f32 %v75, %v245
    %247 = vmatmul.bf16.gmra.mxu0 %v175
    %v248 = vpop.f32.mrf.mxu0
    %v249 = vadd.f32 %v75, %v248
    %v250 = vpop.f32.mrf.mxu0
    %v251 = vadd.f32 %v75, %v250
    %252 = vdwg.mxu0
    %253 = vst [vmem:[#allocation2] sm:$0xff] %v187
    %254 = vst [vmem:[#allocation2 + $0x8] sm:$0xff] %v206
    %255 = vst [vmem:[#allocation2 + $0x10] sm:$0xff] %v225
    %256 = vst [vmem:[#allocation2 + $0x18] sm:$0xff] %v244
    %257 = vst [vmem:[#allocation2 + $0x20] sm:$0xff] %v189
    %258 = vst [vmem:[#allocation2 + $0x28] sm:$0xff] %v208
    %259 = vst [vmem:[#allocation2 + $0x30] sm:$0xff] %v227
    %260 = vst [vmem:[#allocation2 + $0x38] sm:$0xff] %v246
    %261 = vst [vmem:[#allocation2 + $0x40] sm:$0xff] %v192
    %262 = vst [vmem:[#allocation2 + $0x48] sm:$0xff] %v211
    %263 = vst [vmem:[#allocation2 + $0x50] sm:$0xff] %v230
    %264 = vst [vmem:[#allocation2 + $0x58] sm:$0xff] %v249
    %265 = vst [vmem:[#allocation2 + $0x60] sm:$0xff] %v194
    %266 = vst [vmem:[#allocation2 + $0x68] sm:$0xff] %v213
    %267 = vst [vmem:[#allocation2 + $0x70] sm:$0xff] %v232
    %268 = vst [vmem:[#allocation2 + $0x78] sm:$0xff] %v251
    %s269 = sshra.s32 %s45, 3
    %s270 = sand.u32 %s45, 7
    %s271 = smul.addr %s269, 4
    %s272 = scalar_lea.vmem %s0, %s271
    %v273 = vld [vmem:[%s272] sm:$0xf]
    %v274 = vld [vmem:[%s272 + $0x4] sm:$0xf]
    %v275 = vld [vmem:[%s272 + $0x8] sm:$0xf]
    %v276 = vld [vmem:[%s272 + $0xc] sm:$0xf]
    %v277 = vld [vmem:[%s2] sm:$0xff]
    %v278 = vld [vmem:[%s2 + $0x8] sm:$0xff]
    %v279 = vld [vmem:[%s2 + $0x10] sm:$0xff]
    %v280 = vld [vmem:[%s2 + $0x18] sm:$0xff]
    %v281 = vld [vmem:[%s2 + $0x20] sm:$0xff]
    %v282 = vld [vmem:[%s2 + $0x28] sm:$0xff]
    %v283 = vld [vmem:[%s2 + $0x30] sm:$0xff]
    %v284 = vld [vmem:[%s2 + $0x38] sm:$0xff]
    %v285 = vld [vmem:[%s2 + $0x40] sm:$0xff]
    %v286 = vld [vmem:[%s2 + $0x48] sm:$0xff]
    %v287 = vld [vmem:[%s2 + $0x50] sm:$0xff]
    %v288 = vld [vmem:[%s2 + $0x58] sm:$0xff]
    %v289 = vld [vmem:[%s2 + $0x60] sm:$0xff]
    %v290 = vld [vmem:[%s2 + $0x68] sm:$0xff]
    %v291 = vld [vmem:[%s2 + $0x70] sm:$0xff]
    %v292 = vld [vmem:[%s2 + $0x78] sm:$0xff]
    %v293 = vld [vmem:[%s6] sm:$0xf]
    %v295 = vperm.slane %v293, 0
    %v296 = vperm.slane %v293, 1
    %v297 = vperm.slane %v293, 2
    %v298 = vperm.slane %v293, 3
    %v307 = vunpack.c.l.b16 %v273
    %v308 = vunpack.c.l.b16 %v274
    %v309 = vunpack.c.l.b16 %v275
    %v310 = vunpack.c.l.b16 %v276
    %v311 = vpack.c.b16 %v308, %v307
    %v312 = vpack.c.b16 %v310, %v309
    %v329 = vunpack.c.l.b16 %v277
    %v330 = vunpack.c.h.b16 %v277
    %v331 = vunpack.c.l.b16 %v278
    %v332 = vunpack.c.h.b16 %v278
    %v333 = vunpack.c.l.b16 %v279
    %v334 = vunpack.c.h.b16 %v279
    %v335 = vunpack.c.l.b16 %v280
    %v336 = vunpack.c.h.b16 %v280
    %v337 = vunpack.c.l.b16 %v281
    %v338 = vunpack.c.h.b16 %v281
    %v339 = vunpack.c.l.b16 %v282
    %v340 = vunpack.c.h.b16 %v282
    %v341 = vunpack.c.l.b16 %v283
    %v342 = vunpack.c.h.b16 %v283
    %v343 = vunpack.c.l.b16 %v284
    %v344 = vunpack.c.h.b16 %v284
    %v345 = vunpack.c.l.b16 %v285
    %v346 = vunpack.c.h.b16 %v285
    %v347 = vunpack.c.l.b16 %v286
    %v348 = vunpack.c.h.b16 %v286
    %v349 = vunpack.c.l.b16 %v287
    %v350 = vunpack.c.h.b16 %v287
    %v351 = vunpack.c.l.b16 %v288
    %v352 = vunpack.c.h.b16 %v288
    %v353 = vunpack.c.l.b16 %v289
    %v354 = vunpack.c.h.b16 %v289
    %v355 = vunpack.c.l.b16 %v290
    %v356 = vunpack.c.h.b16 %v290
    %v357 = vunpack.c.l.b16 %v291
    %v358 = vunpack.c.h.b16 %v291
    %v359 = vunpack.c.l.b16 %v292
    %v360 = vunpack.c.h.b16 %v292
    %v361 = vpack.c.b16 %v333, %v329
    %v362 = vpack.c.b16 %v334, %v330
    %v363 = vpack.c.b16 %v335, %v331
    %v364 = vpack.c.b16 %v336, %v332
    %v365 = vpack.c.b16 %v341, %v337
    %v366 = vpack.c.b16 %v342, %v338
    %v367 = vpack.c.b16 %v343, %v339
    %v368 = vpack.c.b16 %v344, %v340
    %v369 = vpack.c.b16 %v349, %v345
    %v370 = vpack.c.b16 %v350, %v346
    %v371 = vpack.c.b16 %v351, %v347
    %v372 = vpack.c.b16 %v352, %v348
    %v373 = vpack.c.b16 %v357, %v353
    %v374 = vpack.c.b16 %v358, %v354
    %v375 = vpack.c.b16 %v359, %v355
    %v376 = vpack.c.b16 %v360, %v356
    %v394 = vsel %vm170, %v311, 0
    %v397 = vsel %vm170, %v312, 0
    %399 = vmatpush.bf16.msra.mxu0 0
    %400 = vmatpush.bf16.msra.mxu0 0
    %401 = vmatpush.bf16.msra.mxu0 0
    %402 = vmatpush.bf16.msra.mxu0 0
    %403 = vmatpush.bf16.msra.mxu0 %v373
    %404 = vmatpush.bf16.msra.mxu0 %v369
    %405 = vmatpush.bf16.msra.mxu0 %v365
    %406 = vmatpush.bf16.msra.mxu0 %v361
    %407 = vmatmul.bf16.gmra.mxu0 %v394
    %v408 = vpop.f32.mrf.mxu0
    %v409 = vadd.f32 %v295, %v408
    %v410 = vpop.f32.mrf.mxu0
    %v411 = vadd.f32 %v295, %v410
    %412 = vmatmul.bf16.gmra.mxu0 %v397
    %v413 = vpop.f32.mrf.mxu0
    %v414 = vadd.f32 %v295, %v413
    %v415 = vpop.f32.mrf.mxu0
    %v416 = vadd.f32 %v295, %v415
    %417 = vdwg.mxu0
    %418 = vmatpush.bf16.msra.mxu0 0
    %419 = vmatpush.bf16.msra.mxu0 0
    %420 = vmatpush.bf16.msra.mxu0 0
    %421 = vmatpush.bf16.msra.mxu0 0
    %422 = vmatpush.bf16.msra.mxu0 %v374
    %423 = vmatpush.bf16.msra.mxu0 %v370
    %424 = vmatpush.bf16.msra.mxu0 %v366
    %425 = vmatpush.bf16.msra.mxu0 %v362
    %426 = vmatmul.bf16.gmra.mxu0 %v394
    %v427 = vpop.f32.mrf.mxu0
    %v428 = vadd.f32 %v296, %v427
    %v429 = vpop.f32.mrf.mxu0
    %v430 = vadd.f32 %v296, %v429
    %431 = vmatmul.bf16.gmra.mxu0 %v397
    %v432 = vpop.f32.mrf.mxu0
    %v433 = vadd.f32 %v296, %v432
    %v434 = vpop.f32.mrf.mxu0
    %v435 = vadd.f32 %v296, %v434
    %436 = vdwg.mxu0
    %437 = vmatpush.bf16.msra.mxu0 0
    %438 = vmatpush.bf16.msra.mxu0 0
    %439 = vmatpush.bf16.msra.mxu0 0
    %440 = vmatpush.bf16.msra.mxu0 0
    %441 = vmatpush.bf16.msra.mxu0 %v375
    %442 = vmatpush.bf16.msra.mxu0 %v371
    %443 = vmatpush.bf16.msra.mxu0 %v367
    %444 = vmatpush.bf16.msra.mxu0 %v363
    %445 = vmatmul.bf16.gmra.mxu0 %v394
    %v446 = vpop.f32.mrf.mxu0
    %v447 = vadd.f32 %v297, %v446
    %v448 = vpop.f32.mrf.mxu0
    %v449 = vadd.f32 %v297, %v448
    %450 = vmatmul.bf16.gmra.mxu0 %v397
    %v451 = vpop.f32.mrf.mxu0
    %v452 = vadd.f32 %v297, %v451
    %v453 = vpop.f32.mrf.mxu0
    %v454 = vadd.f32 %v297, %v453
    %455 = vdwg.mxu0
    %456 = vmatpush.bf16.msra.mxu0 0
    %457 = vmatpush.bf16.msra.mxu0 0
    %458 = vmatpush.bf16.msra.mxu0 0
    %459 = vmatpush.bf16.msra.mxu0 0
    %460 = vmatpush.bf16.msra.mxu0 %v376
    %461 = vmatpush.bf16.msra.mxu0 %v372
    %462 = vmatpush.bf16.msra.mxu0 %v368
    %463 = vmatpush.bf16.msra.mxu0 %v364
    %464 = vmatmul.bf16.gmra.mxu0 %v394
    %v465 = vpop.f32.mrf.mxu0
    %v466 = vadd.f32 %v298, %v465
    %v467 = vpop.f32.mrf.mxu0
    %v468 = vadd.f32 %v298, %v467
    %469 = vmatmul.bf16.gmra.mxu0 %v397
    %v470 = vpop.f32.mrf.mxu0
    %v471 = vadd.f32 %v298, %v470
    %v472 = vpop.f32.mrf.mxu0
    %v473 = vadd.f32 %v298, %v472
    %474 = vdwg.mxu0
    %475 = vst [vmem:[#allocation3] sm:$0xff] %v409
    %476 = vst [vmem:[#allocation3 + $0x8] sm:$0xff] %v428
    %477 = vst [vmem:[#allocation3 + $0x10] sm:$0xff] %v447
    %478 = vst [vmem:[#allocation3 + $0x18] sm:$0xff] %v466
    %479 = vst [vmem:[#allocation3 + $0x20] sm:$0xff] %v411
    %480 = vst [vmem:[#allocation3 + $0x28] sm:$0xff] %v430
    %481 = vst [vmem:[#allocation3 + $0x30] sm:$0xff] %v449
    %482 = vst [vmem:[#allocation3 + $0x38] sm:$0xff] %v468
    %483 = vst [vmem:[#allocation3 + $0x40] sm:$0xff] %v414
    %484 = vst [vmem:[#allocation3 + $0x48] sm:$0xff] %v433
    %485 = vst [vmem:[#allocation3 + $0x50] sm:$0xff] %v452
    %486 = vst [vmem:[#allocation3 + $0x58] sm:$0xff] %v471
    %487 = vst [vmem:[#allocation3 + $0x60] sm:$0xff] %v416
    %488 = vst [vmem:[#allocation3 + $0x68] sm:$0xff] %v435
    %489 = vst [vmem:[#allocation3 + $0x70] sm:$0xff] %v454
    %490 = vst [vmem:[#allocation3 + $0x78] sm:$0xff] %v473
    %v491 = vld [vmem:[#allocation2] sm:$0xff]
    %v492 = vld [vmem:[#allocation2 + $0x8] sm:$0xff]
    %v493 = vld [vmem:[#allocation2 + $0x10] sm:$0xff]
    %v494 = vld [vmem:[#allocation2 + $0x18] sm:$0xff]
    %v495 = vpack.c.bf16 %v39, %v39
    %v496 = vld [vmem:[%s3] sm:$0xff]
    %v497 = vld [vmem:[%s3 + $0x8] sm:$0xff]
    %v498 = vld [vmem:[%s3 + $0x10] sm:$0xff]
    %v499 = vld [vmem:[%s3 + $0x18] sm:$0xff]
    %v500 = vld [vmem:[%s3 + $0x20] sm:$0xff]
    %v501 = vld [vmem:[%s3 + $0x28] sm:$0xff]
    %v502 = vld [vmem:[%s3 + $0x30] sm:$0xff]
    %v503 = vld [vmem:[%s3 + $0x38] sm:$0xff]
    %v504 = vld [vmem:[%s3 + $0x40] sm:$0xff]
    %v505 = vld [vmem:[%s3 + $0x48] sm:$0xff]
    %v506 = vld [vmem:[%s3 + $0x50] sm:$0xff]
    %v507 = vld [vmem:[%s3 + $0x58] sm:$0xff]
    %v508 = vld [vmem:[%s3 + $0x60] sm:$0xff]
    %v509 = vld [vmem:[%s3 + $0x68] sm:$0xff]
    %v510 = vld [vmem:[%s3 + $0x70] sm:$0xff]
    %v511 = vld [vmem:[%s3 + $0x78] sm:$0xff]
    %v512 = vld [vmem:[%s3 + $0x80] sm:$0xff]
    %v513 = vld [vmem:[%s3 + $0x88] sm:$0xff]
    %v514 = vld [vmem:[%s3 + $0x90] sm:$0xff]
    %v515 = vld [vmem:[%s3 + $0x98] sm:$0xff]
    %v516 = vld [vmem:[%s3 + $0xa0] sm:$0xff]
    %v517 = vld [vmem:[%s3 + $0xa8] sm:$0xff]
    %v518 = vld [vmem:[%s3 + $0xb0] sm:$0xff]
    %v519 = vld [vmem:[%s3 + $0xb8] sm:$0xff]
    %v520 = vld [vmem:[%s3 + $0xc0] sm:$0xff]
    %v521 = vld [vmem:[%s3 + $0xc8] sm:$0xff]
    %v522 = vld [vmem:[%s3 + $0xd0] sm:$0xff]
    %v523 = vld [vmem:[%s3 + $0xd8] sm:$0xff]
    %v524 = vld [vmem:[%s3 + $0xe0] sm:$0xff]
    %v525 = vld [vmem:[%s3 + $0xe8] sm:$0xff]
    %v526 = vld [vmem:[%s3 + $0xf0] sm:$0xff]
    %v527 = vld [vmem:[%s3 + $0xf8] sm:$0xff]
    %v560 = vunpack.c.l.b16 %v496
    %v561 = vunpack.c.h.b16 %v496
    %v562 = vunpack.c.l.b16 %v497
    %v563 = vunpack.c.h.b16 %v497
    %v564 = vunpack.c.l.b16 %v498
    %v565 = vunpack.c.h.b16 %v498
    %v566 = vunpack.c.l.b16 %v499
    %v567 = vunpack.c.h.b16 %v499
    %v568 = vunpack.c.l.b16 %v500
    %v569 = vunpack.c.h.b16 %v500
    %v570 = vunpack.c.l.b16 %v501
    %v571 = vunpack.c.h.b16 %v501
    %v572 = vunpack.c.l.b16 %v502
    %v573 = vunpack.c.h.b16 %v502
    %v574 = vunpack.c.l.b16 %v503
    %v575 = vunpack.c.h.b16 %v503
    %v576 = vunpack.c.l.b16 %v504
    %v577 = vunpack.c.h.b16 %v504
    %v578 = vunpack.c.l.b16 %v505
    %v579 = vunpack.c.h.b16 %v505
    %v580 = vunpack.c.l.b16 %v506
    %v581 = vunpack.c.h.b16 %v506
    %v582 = vunpack.c.l.b16 %v507
    %v583 = vunpack.c.h.b16 %v507
    %v584 = vunpack.c.l.b16 %v508
    %v585 = vunpack.c.h.b16 %v508
    %v586 = vunpack.c.l.b16 %v509
    %v587 = vunpack.c.h.b16 %v509
    %v588 = vunpack.c.l.b16 %v510
    %v589 = vunpack.c.h.b16 %v510
    %v590 = vunpack.c.l.b16 %v511
    %v591 = vunpack.c.h.b16 %v511
    %v592 = vunpack.c.l.b16 %v512
    %v593 = vunpack.c.h.b16 %v512
    %v594 = vunpack.c.l.b16 %v513
    %v595 = vunpack.c.h.b16 %v513
    %v596 = vunpack.c.l.b16 %v514
    %v597 = vunpack.c.h.b16 %v514
    %v598 = vunpack.c.l.b16 %v515
    %v599 = vunpack.c.h.b16 %v515
    %v600 = vunpack.c.l.b16 %v516
    %v601 = vunpack.c.h.b16 %v516
    %v602 = vunpack.c.l.b16 %v517
    %v603 = vunpack.c.h.b16 %v517
    %v604 = vunpack.c.l.b16 %v518
    %v605 = vunpack.c.h.b16 %v518
    %v606 = vunpack.c.l.b16 %v519
    %v607 = vunpack.c.h.b16 %v519
    %v608 = vunpack.c.l.b16 %v520
    %v609 = vunpack.c.h.b16 %v520
    %v610 = vunpack.c.l.b16 %v521
    %v611 = vunpack.c.h.b16 %v521
    %v612 = vunpack.c.l.b16 %v522
    %v613 = vunpack.c.h.b16 %v522
    %v614 = vunpack.c.l.b16 %v523
    %v615 = vunpack.c.h.b16 %v523
    %v616 = vunpack.c.l.b16 %v524
    %v617 = vunpack.c.h.b16 %v524
    %v618 = vunpack.c.l.b16 %v525
    %v619 = vunpack.c.h.b16 %v525
    %v620 = vunpack.c.l.b16 %v526
    %v621 = vunpack.c.h.b16 %v526
    %v622 = vunpack.c.l.b16 %v527
    %v623 = vunpack.c.h.b16 %v527
    %v624 = vpack.c.b16 %v564, %v560
    %v625 = vpack.c.b16 %v565, %v561
    %v626 = vpack.c.b16 %v566, %v562
    %v627 = vpack.c.b16 %v567, %v563
    %v628 = vpack.c.b16 %v572, %v568
    %v629 = vpack.c.b16 %v573, %v569
    %v630 = vpack.c.b16 %v574, %v570
    %v631 = vpack.c.b16 %v575, %v571
    %v632 = vpack.c.b16 %v580, %v576
    %v633 = vpack.c.b16 %v581, %v577
    %v634 = vpack.c.b16 %v582, %v578
    %v635 = vpack.c.b16 %v583, %v579
    %v636 = vpack.c.b16 %v588, %v584
    %v637 = vpack.c.b16 %v589, %v585
    %v638 = vpack.c.b16 %v590, %v586
    %v639 = vpack.c.b16 %v591, %v587
    %v640 = vpack.c.b16 %v596, %v592
    %v641 = vpack.c.b16 %v597, %v593
    %v642 = vpack.c.b16 %v598, %v594
    %v643 = vpack.c.b16 %v599, %v595
    %v644 = vpack.c.b16 %v604, %v600
    %v645 = vpack.c.b16 %v605, %v601
    %v646 = vpack.c.b16 %v606, %v602
    %v647 = vpack.c.b16 %v607, %v603
    %v648 = vpack.c.b16 %v612, %v608
    %v649 = vpack.c.b16 %v613, %v609
    %v650 = vpack.c.b16 %v614, %v610
    %v651 = vpack.c.b16 %v615, %v611
    %v652 = vpack.c.b16 %v620, %v616
    %v653 = vpack.c.b16 %v621, %v617
    %v654 = vpack.c.b16 %v622, %v618
    %v655 = vpack.c.b16 %v623, %v619
    %688 = vmatpush.bf16.msra.mxu0 %v652
    %689 = vmatpush.bf16.msra.mxu0 %v648
    %690 = vmatpush.bf16.msra.mxu0 %v644
    %691 = vmatpush.bf16.msra.mxu0 %v640
    %692 = vmatpush.bf16.msra.mxu0 %v636
    %693 = vmatpush.bf16.msra.mxu0 %v632
    %694 = vmatpush.bf16.msra.mxu0 %v628
    %695 = vmatpush.bf16.msra.mxu0 %v624
    %696 = vmatmul.bf16.gmra.mxu0 %v495
    %v697 = vpop.f32.mrf.mxu0
    %v698 = vadd.f32 0.0, %v697
    %v699 = vpop.f32.mrf.mxu0
    %700 = vdwg.mxu0
    %701 = vmatpush.bf16.msra.mxu0 %v653
    %702 = vmatpush.bf16.msra.mxu0 %v649
    %703 = vmatpush.bf16.msra.mxu0 %v645
    %704 = vmatpush.bf16.msra.mxu0 %v641
    %705 = vmatpush.bf16.msra.mxu0 %v637
    %706 = vmatpush.bf16.msra.mxu0 %v633
    %707 = vmatpush.bf16.msra.mxu0 %v629
    %708 = vmatpush.bf16.msra.mxu0 %v625
    %709 = vmatmul.bf16.gmra.mxu0 %v495
    %v710 = vpop.f32.mrf.mxu0
    %v711 = vadd.f32 0.0, %v710
    %v712 = vpop.f32.mrf.mxu0
    %713 = vdwg.mxu0
    %714 = vmatpush.bf16.msra.mxu0 %v654
    %715 = vmatpush.bf16.msra.mxu0 %v650
    %716 = vmatpush.bf16.msra.mxu0 %v646
    %717 = vmatpush.bf16.msra.mxu0 %v642
    %718 = vmatpush.bf16.msra.mxu0 %v638
    %719 = vmatpush.bf16.msra.mxu0 %v634
    %720 = vmatpush.bf16.msra.mxu0 %v630
    %721 = vmatpush.bf16.msra.mxu0 %v626
    %722 = vmatmul.bf16.gmra.mxu0 %v495
    %v723 = vpop.f32.mrf.mxu0
    %v724 = vadd.f32 0.0, %v723
    %v725 = vpop.f32.mrf.mxu0
    %726 = vdwg.mxu0
    %727 = vmatpush.bf16.msra.mxu0 %v655
    %728 = vmatpush.bf16.msra.mxu0 %v651
    %729 = vmatpush.bf16.msra.mxu0 %v647
    %730 = vmatpush.bf16.msra.mxu0 %v643
    %731 = vmatpush.bf16.msra.mxu0 %v639
    %732 = vmatpush.bf16.msra.mxu0 %v635
    %733 = vmatpush.bf16.msra.mxu0 %v631
    %734 = vmatpush.bf16.msra.mxu0 %v627
    %735 = vmatmul.bf16.gmra.mxu0 %v495
    %v736 = vpop.f32.mrf.mxu0
    %v737 = vadd.f32 0.0, %v736
    %v738 = vpop.f32.mrf.mxu0
    %739 = vdwg.mxu0
    %v740 = vadd.f32 %v491, %v698
    %v741 = vadd.f32 %v492, %v711
    %v742 = vadd.f32 %v493, %v724
    %v743 = vadd.f32 %v494, %v737
    %v744 = vld [vmem:[#allocation3 + $0x60] sm:$0xff]
    %v745 = vld [vmem:[#allocation3 + $0x68] sm:$0xff]
    %v746 = vld [vmem:[#allocation3 + $0x70] sm:$0xff]
    %v747 = vld [vmem:[#allocation3 + $0x78] sm:$0xff]
    %v748 = vpack.c.bf16 %v41, %v41
    %v749 = vld [vmem:[%s4] sm:$0xff]
    %v750 = vld [vmem:[%s4 + $0x8] sm:$0xff]
    %v751 = vld [vmem:[%s4 + $0x10] sm:$0xff]
    %v752 = vld [vmem:[%s4 + $0x18] sm:$0xff]
    %v753 = vld [vmem:[%s4 + $0x20] sm:$0xff]
    %v754 = vld [vmem:[%s4 + $0x28] sm:$0xff]
    %v755 = vld [vmem:[%s4 + $0x30] sm:$0xff]
    %v756 = vld [vmem:[%s4 + $0x38] sm:$0xff]
    %v757 = vld [vmem:[%s4 + $0x40] sm:$0xff]
    %v758 = vld [vmem:[%s4 + $0x48] sm:$0xff]
    %v759 = vld [vmem:[%s4 + $0x50] sm:$0xff]
    %v760 = vld [vmem:[%s4 + $0x58] sm:$0xff]
    %v761 = vld [vmem:[%s4 + $0x60] sm:$0xff]
    %v762 = vld [vmem:[%s4 + $0x68] sm:$0xff]
    %v763 = vld [vmem:[%s4 + $0x70] sm:$0xff]
    %v764 = vld [vmem:[%s4 + $0x78] sm:$0xff]
    %v765 = vld [vmem:[%s4 + $0x80] sm:$0xff]
    %v766 = vld [vmem:[%s4 + $0x88] sm:$0xff]
    %v767 = vld [vmem:[%s4 + $0x90] sm:$0xff]
    %v768 = vld [vmem:[%s4 + $0x98] sm:$0xff]
    %v769 = vld [vmem:[%s4 + $0xa0] sm:$0xff]
    %v770 = vld [vmem:[%s4 + $0xa8] sm:$0xff]
    %v771 = vld [vmem:[%s4 + $0xb0] sm:$0xff]
    %v772 = vld [vmem:[%s4 + $0xb8] sm:$0xff]
    %v773 = vld [vmem:[%s4 + $0xc0] sm:$0xff]
    %v774 = vld [vmem:[%s4 + $0xc8] sm:$0xff]
    %v775 = vld [vmem:[%s4 + $0xd0] sm:$0xff]
    %v776 = vld [vmem:[%s4 + $0xd8] sm:$0xff]
    %v777 = vld [vmem:[%s4 + $0xe0] sm:$0xff]
    %v778 = vld [vmem:[%s4 + $0xe8] sm:$0xff]
    %v779 = vld [vmem:[%s4 + $0xf0] sm:$0xff]
    %v780 = vld [vmem:[%s4 + $0xf8] sm:$0xff]
    %v813 = vunpack.c.l.b16 %v749
    %v814 = vunpack.c.h.b16 %v749
    %v815 = vunpack.c.l.b16 %v750
    %v816 = vunpack.c.h.b16 %v750
    %v817 = vunpack.c.l.b16 %v751
    %v818 = vunpack.c.h.b16 %v751
    %v819 = vunpack.c.l.b16 %v752
    %v820 = vunpack.c.h.b16 %v752
    %v821 = vunpack.c.l.b16 %v753
    %v822 = vunpack.c.h.b16 %v753
    %v823 = vunpack.c.l.b16 %v754
    %v824 = vunpack.c.h.b16 %v754
    %v825 = vunpack.c.l.b16 %v755
    %v826 = vunpack.c.h.b16 %v755
    %v827 = vunpack.c.l.b16 %v756
    %v828 = vunpack.c.h.b16 %v756
    %v829 = vunpack.c.l.b16 %v757
    %v830 = vunpack.c.h.b16 %v757
    %v831 = vunpack.c.l.b16 %v758
    %v832 = vunpack.c.h.b16 %v758
    %v833 = vunpack.c.l.b16 %v759
    %v834 = vunpack.c.h.b16 %v759
    %v835 = vunpack.c.l.b16 %v760
    %v836 = vunpack.c.h.b16 %v760
    %v837 = vunpack.c.l.b16 %v761
    %v838 = vunpack.c.h.b16 %v761
    %v839 = vunpack.c.l.b16 %v762
    %v840 = vunpack.c.h.b16 %v762
    %v841 = vunpack.c.l.b16 %v763
    %v842 = vunpack.c.h.b16 %v763
    %v843 = vunpack.c.l.b16 %v764
    %v844 = vunpack.c.h.b16 %v764
    %v845 = vunpack.c.l.b16 %v765
    %v846 = vunpack.c.h.b16 %v765
    %v847 = vunpack.c.l.b16 %v766
    %v848 = vunpack.c.h.b16 %v766
    %v849 = vunpack.c.l.b16 %v767
    %v850 = vunpack.c.h.b16 %v767
    %v851 = vunpack.c.l.b16 %v768
    %v852 = vunpack.c.h.b16 %v768
    %v853 = vunpack.c.l.b16 %v769
    %v854 = vunpack.c.h.b16 %v769
    %v855 = vunpack.c.l.b16 %v770
    %v856 = vunpack.c.h.b16 %v770
    %v857 = vunpack.c.l.b16 %v771
    %v858 = vunpack.c.h.b16 %v771
    %v859 = vunpack.c.l.b16 %v772
    %v860 = vunpack.c.h.b16 %v772
    %v861 = vunpack.c.l.b16 %v773
    %v862 = vunpack.c.h.b16 %v773
    %v863 = vunpack.c.l.b16 %v774
    %v864 = vunpack.c.h.b16 %v774
    %v865 = vunpack.c.l.b16 %v775
    %v866 = vunpack.c.h.b16 %v775
    %v867 = vunpack.c.l.b16 %v776
    %v868 = vunpack.c.h.b16 %v776
    %v869 = vunpack.c.l.b16 %v777
    %v870 = vunpack.c.h.b16 %v777
    %v871 = vunpack.c.l.b16 %v778
    %v872 = vunpack.c.h.b16 %v778
    %v873 = vunpack.c.l.b16 %v779
    %v874 = vunpack.c.h.b16 %v779
    %v875 = vunpack.c.l.b16 %v780
    %v876 = vunpack.c.h.b16 %v780
    %v877 = vpack.c.b16 %v817, %v813
    %v878 = vpack.c.b16 %v818, %v814
    %v879 = vpack.c.b16 %v819, %v815
    %v880 = vpack.c.b16 %v820, %v816
    %v881 = vpack.c.b16 %v825, %v821
    %v882 = vpack.c.b16 %v826, %v822
    %v883 = vpack.c.b16 %v827, %v823
    %v884 = vpack.c.b16 %v828, %v824
    %v885 = vpack.c.b16 %v833, %v829
    %v886 = vpack.c.b16 %v834, %v830
    %v887 = vpack.c.b16 %v835, %v831
    %v888 = vpack.c.b16 %v836, %v832
    %v889 = vpack.c.b16 %v841, %v837
    %v890 = vpack.c.b16 %v842, %v838
    %v891 = vpack.c.b16 %v843, %v839
    %v892 = vpack.c.b16 %v844, %v840
    %v893 = vpack.c.b16 %v849, %v845
    %v894 = vpack.c.b16 %v850, %v846
    %v895 = vpack.c.b16 %v851, %v847
    %v896 = vpack.c.b16 %v852, %v848
    %v897 = vpack.c.b16 %v857, %v853
    %v898 = vpack.c.b16 %v858, %v854
    %v899 = vpack.c.b16 %v859, %v855
    %v900 = vpack.c.b16 %v860, %v856
    %v901 = vpack.c.b16 %v865, %v861
    %v902 = vpack.c.b16 %v866, %v862
    %v903 = vpack.c.b16 %v867, %v863
    %v904 = vpack.c.b16 %v868, %v864
    %v905 = vpack.c.b16 %v873, %v869
    %v906 = vpack.c.b16 %v874, %v870
    %v907 = vpack.c.b16 %v875, %v871
    %v908 = vpack.c.b16 %v876, %v872
    %941 = vmatpush.bf16.msra.mxu0 %v905
    %942 = vmatpush.bf16.msra.mxu0 %v901
    %943 = vmatpush.bf16.msra.mxu0 %v897
    %944 = vmatpush.bf16.msra.mxu0 %v893
    %945 = vmatpush.bf16.msra.mxu0 %v889
    %946 = vmatpush.bf16.msra.mxu0 %v885
    %947 = vmatpush.bf16.msra.mxu0 %v881
    %948 = vmatpush.bf16.msra.mxu0 %v877
    %949 = vmatmul.bf16.gmra.mxu0 %v748
    %v950 = vpop.f32.mrf.mxu0
    %v951 = vadd.f32 0.0, %v950
    %v952 = vpop.f32.mrf.mxu0
    %953 = vdwg.mxu0
    %954 = vmatpush.bf16.msra.mxu0 %v906
    %955 = vmatpush.bf16.msra.mxu0 %v902
    %956 = vmatpush.bf16.msra.mxu0 %v898
    %957 = vmatpush.bf16.msra.mxu0 %v894
    %958 = vmatpush.bf16.msra.mxu0 %v890
    %959 = vmatpush.bf16.msra.mxu0 %v886
    %960 = vmatpush.bf16.msra.mxu0 %v882
    %961 = vmatpush.bf16.msra.mxu0 %v878
    %962 = vmatmul.bf16.gmra.mxu0 %v748
    %v963 = vpop.f32.mrf.mxu0
    %v964 = vadd.f32 0.0, %v963
    %v965 = vpop.f32.mrf.mxu0
    %966 = vdwg.mxu0
    %967 = vmatpush.bf16.msra.mxu0 %v907
    %968 = vmatpush.bf16.msra.mxu0 %v903
    %969 = vmatpush.bf16.msra.mxu0 %v899
    %970 = vmatpush.bf16.msra.mxu0 %v895
    %971 = vmatpush.bf16.msra.mxu0 %v891
    %972 = vmatpush.bf16.msra.mxu0 %v887
    %973 = vmatpush.bf16.msra.mxu0 %v883
    %974 = vmatpush.bf16.msra.mxu0 %v879
    %975 = vmatmul.bf16.gmra.mxu0 %v748
    %v976 = vpop.f32.mrf.mxu0
    %v977 = vadd.f32 0.0, %v976
    %v978 = vpop.f32.mrf.mxu0
    %979 = vdwg.mxu0
    %980 = vmatpush.bf16.msra.mxu0 %v908
    %981 = vmatpush.bf16.msra.mxu0 %v904
    %982 = vmatpush.bf16.msra.mxu0 %v900
    %983 = vmatpush.bf16.msra.mxu0 %v896
    %984 = vmatpush.bf16.msra.mxu0 %v892
    %985 = vmatpush.bf16.msra.mxu0 %v888
    %986 = vmatpush.bf16.msra.mxu0 %v884
    %987 = vmatpush.bf16.msra.mxu0 %v880
    %988 = vmatmul.bf16.gmra.mxu0 %v748
    %v989 = vpop.f32.mrf.mxu0
    %v990 = vadd.f32 0.0, %v989
    %v991 = vpop.f32.mrf.mxu0
    %992 = vdwg.mxu0
    %v993 = vadd.f32 %v744, %v951
    %v994 = vadd.f32 %v745, %v964
    %v995 = vadd.f32 %v746, %v977
    %v996 = vadd.f32 %v747, %v990
    %v997 = vmul.f32 %v740, 0.5
    %v998 = vtanh.pop %v997
    %v999 = vmul.f32 %v998, 0.5
    %v1000 = vadd.f32 %v999, 0.5
    %v1001 = vmul.f32 %v741, 0.5
    %v1002 = vtanh.pop %v1001
    %v1003 = vmul.f32 %v1002, 0.5
    %v1004 = vadd.f32 %v1003, 0.5
    %v1005 = vtanh.pop %v742
    %v1006 = vmul.f32 %v743, 0.5
    %v1007 = vtanh.pop %v1006
    %v1008 = vmul.f32 %v1007, 0.5
    %v1009 = vadd.f32 %v1008, 0.5
    %v1010 = vmul.f32 %v1004, %v40
    %v1011 = vmul.f32 %v1000, %v1005
    %v1012 = vadd.f32 %v1010, %v1011
    %v1013 = vtanh.pop %v1012
    %v1014 = vmul.f32 %v1009, %v1013
    %v1015 = vmul.f32 %v993, 0.5
    %v1016 = vtanh.pop %v1015
    %v1017 = vmul.f32 %v1016, 0.5
    %v1018 = vadd.f32 %v1017, 0.5
    %v1019 = vmul.f32 %v994, 0.5
    %v1020 = vtanh.pop %v1019
    %v1021 = vmul.f32 %v1020, 0.5
    %v1022 = vadd.f32 %v1021, 0.5
    %v1023 = vtanh.pop %v995
    %v1024 = vmul.f32 %v996, 0.5
    %v1025 = vtanh.pop %v1024
    %v1026 = vmul.f32 %v1025, 0.5
    %v1027 = vadd.f32 %v1026, 0.5
    %v1028 = vmul.f32 %v1022, %v42
    %v1029 = vmul.f32 %v1018, %v1023
    %v1030 = vadd.f32 %v1028, %v1029
    %v1031 = vtanh.pop %v1030
    %v1032 = vmul.f32 %v1027, %v1031
    %s1033 = sshra.s32 %s43, 3
    %s1034 = sand.u32 %s43, 7
    %s1035 = smul.u32 %s1033, 2
    %s1036 = smul.addr %s1035, 8
    %s1037 = scalar_lea.vmem [#allocation4], %s1036
    %1038 = vst [vmem:[%s1037] sm:$0xff] %v1014
    %s1039 = sadd.s32 %s45, 24
    %s1040 = sshra.s32 %s1039, 3
    %s1041 = sand.u32 %s1039, 7
    %s1042 = smul.u32 %s1040, 2
    %s1043 = smul.addr %s1042, 8
    %s1044 = scalar_lea.vmem [#allocation4], %s1043
    %1045 = vst [vmem:[%s1044 + $0x8] sm:$0xff] %v1032
    %v1046 = vld [vmem:[#allocation2 + $0x20] sm:$0xff]
    %v1047 = vld [vmem:[#allocation2 + $0x28] sm:$0xff]
    %v1048 = vld [vmem:[#allocation2 + $0x30] sm:$0xff]
    %v1049 = vld [vmem:[#allocation2 + $0x38] sm:$0xff]
    %v1050 = vpack.c.bf16 %v1014, %v1014
    %v1051 = vld [vmem:[%s3] sm:$0xff]
    %v1052 = vld [vmem:[%s3 + $0x8] sm:$0xff]
    %v1053 = vld [vmem:[%s3 + $0x10] sm:$0xff]
    %v1054 = vld [vmem:[%s3 + $0x18] sm:$0xff]
    %v1055 = vld [vmem:[%s3 + $0x20] sm:$0xff]
    %v1056 = vld [vmem:[%s3 + $0x28] sm:$0xff]
    %v1057 = vld [vmem:[%s3 + $0x30] sm:$0xff]
    %v1058 = vld [vmem:[%s3 + $0x38] sm:$0xff]
    %v1059 = vld [vmem:[%s3 + $0x40] sm:$0xff]
    %v1060 = vld [vmem:[%s3 + $0x48] sm:$0xff]
    %v1061 = vld [vmem:[%s3 + $0x50] sm:$0xff]
    %v1062 = vld [vmem:[%s3 + $0x58] sm:$0xff]
    %v1063 = vld [vmem:[%s3 + $0x60] sm:$0xff]
    %v1064 = vld [vmem:[%s3 + $0x68] sm:$0xff]
    %v1065 = vld [vmem:[%s3 + $0x70] sm:$0xff]
    %v1066 = vld [vmem:[%s3 + $0x78] sm:$0xff]
    %v1067 = vld [vmem:[%s3 + $0x80] sm:$0xff]
    %v1068 = vld [vmem:[%s3 + $0x88] sm:$0xff]
    %v1069 = vld [vmem:[%s3 + $0x90] sm:$0xff]
    %v1070 = vld [vmem:[%s3 + $0x98] sm:$0xff]
    %v1071 = vld [vmem:[%s3 + $0xa0] sm:$0xff]
    %v1072 = vld [vmem:[%s3 + $0xa8] sm:$0xff]
    %v1073 = vld [vmem:[%s3 + $0xb0] sm:$0xff]
    %v1074 = vld [vmem:[%s3 + $0xb8] sm:$0xff]
    %v1075 = vld [vmem:[%s3 + $0xc0] sm:$0xff]
    %v1076 = vld [vmem:[%s3 + $0xc8] sm:$0xff]
    %v1077 = vld [vmem:[%s3 + $0xd0] sm:$0xff]
    %v1078 = vld [vmem:[%s3 + $0xd8] sm:$0xff]
    %v1079 = vld [vmem:[%s3 + $0xe0] sm:$0xff]
    %v1080 = vld [vmem:[%s3 + $0xe8] sm:$0xff]
    %v1081 = vld [vmem:[%s3 + $0xf0] sm:$0xff]
    %v1082 = vld [vmem:[%s3 + $0xf8] sm:$0xff]
    %v1115 = vunpack.c.l.b16 %v1051
    %v1116 = vunpack.c.h.b16 %v1051
    %v1117 = vunpack.c.l.b16 %v1052
    %v1118 = vunpack.c.h.b16 %v1052
    %v1119 = vunpack.c.l.b16 %v1053
    %v1120 = vunpack.c.h.b16 %v1053
    %v1121 = vunpack.c.l.b16 %v1054
    %v1122 = vunpack.c.h.b16 %v1054
    %v1123 = vunpack.c.l.b16 %v1055
    %v1124 = vunpack.c.h.b16 %v1055
    %v1125 = vunpack.c.l.b16 %v1056
    %v1126 = vunpack.c.h.b16 %v1056
    %v1127 = vunpack.c.l.b16 %v1057
    %v1128 = vunpack.c.h.b16 %v1057
    %v1129 = vunpack.c.l.b16 %v1058
    %v1130 = vunpack.c.h.b16 %v1058
    %v1131 = vunpack.c.l.b16 %v1059
    %v1132 = vunpack.c.h.b16 %v1059
    %v1133 = vunpack.c.l.b16 %v1060
    %v1134 = vunpack.c.h.b16 %v1060
    %v1135 = vunpack.c.l.b16 %v1061
    %v1136 = vunpack.c.h.b16 %v1061
    %v1137 = vunpack.c.l.b16 %v1062
    %v1138 = vunpack.c.h.b16 %v1062
    %v1139 = vunpack.c.l.b16 %v1063
    %v1140 = vunpack.c.h.b16 %v1063
    %v1141 = vunpack.c.l.b16 %v1064
    %v1142 = vunpack.c.h.b16 %v1064
    %v1143 = vunpack.c.l.b16 %v1065
    %v1144 = vunpack.c.h.b16 %v1065
    %v1145 = vunpack.c.l.b16 %v1066
    %v1146 = vunpack.c.h.b16 %v1066
    %v1147 = vunpack.c.l.b16 %v1067
    %v1148 = vunpack.c.h.b16 %v1067
    %v1149 = vunpack.c.l.b16 %v1068
    %v1150 = vunpack.c.h.b16 %v1068
    %v1151 = vunpack.c.l.b16 %v1069
    %v1152 = vunpack.c.h.b16 %v1069
    %v1153 = vunpack.c.l.b16 %v1070
    %v1154 = vunpack.c.h.b16 %v1070
    %v1155 = vunpack.c.l.b16 %v1071
    %v1156 = vunpack.c.h.b16 %v1071
    %v1157 = vunpack.c.l.b16 %v1072
    %v1158 = vunpack.c.h.b16 %v1072
    %v1159 = vunpack.c.l.b16 %v1073
    %v1160 = vunpack.c.h.b16 %v1073
    %v1161 = vunpack.c.l.b16 %v1074
    %v1162 = vunpack.c.h.b16 %v1074
    %v1163 = vunpack.c.l.b16 %v1075
    %v1164 = vunpack.c.h.b16 %v1075
    %v1165 = vunpack.c.l.b16 %v1076
    %v1166 = vunpack.c.h.b16 %v1076
    %v1167 = vunpack.c.l.b16 %v1077
    %v1168 = vunpack.c.h.b16 %v1077
    %v1169 = vunpack.c.l.b16 %v1078
    %v1170 = vunpack.c.h.b16 %v1078
    %v1171 = vunpack.c.l.b16 %v1079
    %v1172 = vunpack.c.h.b16 %v1079
    %v1173 = vunpack.c.l.b16 %v1080
    %v1174 = vunpack.c.h.b16 %v1080
    %v1175 = vunpack.c.l.b16 %v1081
    %v1176 = vunpack.c.h.b16 %v1081
    %v1177 = vunpack.c.l.b16 %v1082
    %v1178 = vunpack.c.h.b16 %v1082
    %v1179 = vpack.c.b16 %v1119, %v1115
    %v1180 = vpack.c.b16 %v1120, %v1116
    %v1181 = vpack.c.b16 %v1121, %v1117
    %v1182 = vpack.c.b16 %v1122, %v1118
    %v1183 = vpack.c.b16 %v1127, %v1123
    %v1184 = vpack.c.b16 %v1128, %v1124
    %v1185 = vpack.c.b16 %v1129, %v1125
    %v1186 = vpack.c.b16 %v1130, %v1126
    %v1187 = vpack.c.b16 %v1135, %v1131
    %v1188 = vpack.c.b16 %v1136, %v1132
    %v1189 = vpack.c.b16 %v1137, %v1133
    %v1190 = vpack.c.b16 %v1138, %v1134
    %v1191 = vpack.c.b16 %v1143, %v1139
    %v1192 = vpack.c.b16 %v1144, %v1140
    %v1193 = vpack.c.b16 %v1145, %v1141
    %v1194 = vpack.c.b16 %v1146, %v1142
    %v1195 = vpack.c.b16 %v1151, %v1147
    %v1196 = vpack.c.b16 %v1152, %v1148
    %v1197 = vpack.c.b16 %v1153, %v1149
    %v1198 = vpack.c.b16 %v1154, %v1150
    %v1199 = vpack.c.b16 %v1159, %v1155
    %v1200 = vpack.c.b16 %v1160, %v1156
    %v1201 = vpack.c.b16 %v1161, %v1157
    %v1202 = vpack.c.b16 %v1162, %v1158
    %v1203 = vpack.c.b16 %v1167, %v1163
    %v1204 = vpack.c.b16 %v1168, %v1164
    %v1205 = vpack.c.b16 %v1169, %v1165
    %v1206 = vpack.c.b16 %v1170, %v1166
    %v1207 = vpack.c.b16 %v1175, %v1171
    %v1208 = vpack.c.b16 %v1176, %v1172
    %v1209 = vpack.c.b16 %v1177, %v1173
    %v1210 = vpack.c.b16 %v1178, %v1174
    %1243 = vmatpush.bf16.msra.mxu0 %v1207
    %1244 = vmatpush.bf16.msra.mxu0 %v1203
    %1245 = vmatpush.bf16.msra.mxu0 %v1199
    %1246 = vmatpush.bf16.msra.mxu0 %v1195
    %1247 = vmatpush.bf16.msra.mxu0 %v1191
    %1248 = vmatpush.bf16.msra.mxu0 %v1187
    %1249 = vmatpush.bf16.msra.mxu0 %v1183
    %1250 = vmatpush.bf16.msra.mxu0 %v1179
    %1251 = vmatmul.bf16.gmra.mxu0 %v1050
    %v1252 = vpop.f32.mrf.mxu0
    %v1253 = vadd.f32 0.0, %v1252
    %v1254 = vpop.f32.mrf.mxu0
    %1255 = vdwg.mxu0
    %1256 = vmatpush.bf16.msra.mxu0 %v1208
    %1257 = vmatpush.bf16.msra.mxu0 %v1204
    %1258 = vmatpush.bf16.msra.mxu0 %v1200
    %1259 = vmatpush.bf16.msra.mxu0 %v1196
    %1260 = vmatpush.bf16.msra.mxu0 %v1192
    %1261 = vmatpush.bf16.msra.mxu0 %v1188
    %1262 = vmatpush.bf16.msra.mxu0 %v1184
    %1263 = vmatpush.bf16.msra.mxu0 %v1180
    %1264 = vmatmul.bf16.gmra.mxu0 %v1050
    %v1265 = vpop.f32.mrf.mxu0
    %v1266 = vadd.f32 0.0, %v1265
    %v1267 = vpop.f32.mrf.mxu0
    %1268 = vdwg.mxu0
    %1269 = vmatpush.bf16.msra.mxu0 %v1209
    %1270 = vmatpush.bf16.msra.mxu0 %v1205
    %1271 = vmatpush.bf16.msra.mxu0 %v1201
    %1272 = vmatpush.bf16.msra.mxu0 %v1197
    %1273 = vmatpush.bf16.msra.mxu0 %v1193
    %1274 = vmatpush.bf16.msra.mxu0 %v1189
    %1275 = vmatpush.bf16.msra.mxu0 %v1185
    %1276 = vmatpush.bf16.msra.mxu0 %v1181
    %1277 = vmatmul.bf16.gmra.mxu0 %v1050
    %v1278 = vpop.f32.mrf.mxu0
    %v1279 = vadd.f32 0.0, %v1278
    %v1280 = vpop.f32.mrf.mxu0
    %1281 = vdwg.mxu0
    %1282 = vmatpush.bf16.msra.mxu0 %v1210
    %1283 = vmatpush.bf16.msra.mxu0 %v1206
    %1284 = vmatpush.bf16.msra.mxu0 %v1202
    %1285 = vmatpush.bf16.msra.mxu0 %v1198
    %1286 = vmatpush.bf16.msra.mxu0 %v1194
    %1287 = vmatpush.bf16.msra.mxu0 %v1190
    %1288 = vmatpush.bf16.msra.mxu0 %v1186
    %1289 = vmatpush.bf16.msra.mxu0 %v1182
    %1290 = vmatmul.bf16.gmra.mxu0 %v1050
    %v1291 = vpop.f32.mrf.mxu0
    %v1292 = vadd.f32 0.0, %v1291
    %v1293 = vpop.f32.mrf.mxu0
    %1294 = vdwg.mxu0
    %v1295 = vadd.f32 %v1046, %v1253
    %v1296 = vadd.f32 %v1047, %v1266
    %v1297 = vadd.f32 %v1048, %v1279
    %v1298 = vadd.f32 %v1049, %v1292
    %v1299 = vld [vmem:[#allocation3 + $0x40] sm:$0xff]
    %v1300 = vld [vmem:[#allocation3 + $0x48] sm:$0xff]
    %v1301 = vld [vmem:[#allocation3 + $0x50] sm:$0xff]
    %v1302 = vld [vmem:[#allocation3 + $0x58] sm:$0xff]
    %v1303 = vpack.c.bf16 %v1032, %v1032
    %v1304 = vld [vmem:[%s4] sm:$0xff]
    %v1305 = vld [vmem:[%s4 + $0x8] sm:$0xff]
    %v1306 = vld [vmem:[%s4 + $0x10] sm:$0xff]
    %v1307 = vld [vmem:[%s4 + $0x18] sm:$0xff]
    %v1308 = vld [vmem:[%s4 + $0x20] sm:$0xff]
    %v1309 = vld [vmem:[%s4 + $0x28] sm:$0xff]
    %v1310 = vld [vmem:[%s4 + $0x30] sm:$0xff]
    %v1311 = vld [vmem:[%s4 + $0x38] sm:$0xff]
    %v1312 = vld [vmem:[%s4 + $0x40] sm:$0xff]
    %v1313 = vld [vmem:[%s4 + $0x48] sm:$0xff]
    %v1314 = vld [vmem:[%s4 + $0x50] sm:$0xff]
    %v1315 = vld [vmem:[%s4 + $0x58] sm:$0xff]
    %v1316 = vld [vmem:[%s4 + $0x60] sm:$0xff]
    %v1317 = vld [vmem:[%s4 + $0x68] sm:$0xff]
    %v1318 = vld [vmem:[%s4 + $0x70] sm:$0xff]
    %v1319 = vld [vmem:[%s4 + $0x78] sm:$0xff]
    %v1320 = vld [vmem:[%s4 + $0x80] sm:$0xff]
    %v1321 = vld [vmem:[%s4 + $0x88] sm:$0xff]
    %v1322 = vld [vmem:[%s4 + $0x90] sm:$0xff]
    %v1323 = vld [vmem:[%s4 + $0x98] sm:$0xff]
    %v1324 = vld [vmem:[%s4 + $0xa0] sm:$0xff]
    %v1325 = vld [vmem:[%s4 + $0xa8] sm:$0xff]
    %v1326 = vld [vmem:[%s4 + $0xb0] sm:$0xff]
    %v1327 = vld [vmem:[%s4 + $0xb8] sm:$0xff]
    %v1328 = vld [vmem:[%s4 + $0xc0] sm:$0xff]
    %v1329 = vld [vmem:[%s4 + $0xc8] sm:$0xff]
    %v1330 = vld [vmem:[%s4 + $0xd0] sm:$0xff]
    %v1331 = vld [vmem:[%s4 + $0xd8] sm:$0xff]
    %v1332 = vld [vmem:[%s4 + $0xe0] sm:$0xff]
    %v1333 = vld [vmem:[%s4 + $0xe8] sm:$0xff]
    %v1334 = vld [vmem:[%s4 + $0xf0] sm:$0xff]
    %v1335 = vld [vmem:[%s4 + $0xf8] sm:$0xff]
    %v1368 = vunpack.c.l.b16 %v1304
    %v1369 = vunpack.c.h.b16 %v1304
    %v1370 = vunpack.c.l.b16 %v1305
    %v1371 = vunpack.c.h.b16 %v1305
    %v1372 = vunpack.c.l.b16 %v1306
    %v1373 = vunpack.c.h.b16 %v1306
    %v1374 = vunpack.c.l.b16 %v1307
    %v1375 = vunpack.c.h.b16 %v1307
    %v1376 = vunpack.c.l.b16 %v1308
    %v1377 = vunpack.c.h.b16 %v1308
    %v1378 = vunpack.c.l.b16 %v1309
    %v1379 = vunpack.c.h.b16 %v1309
    %v1380 = vunpack.c.l.b16 %v1310
    %v1381 = vunpack.c.h.b16 %v1310
    %v1382 = vunpack.c.l.b16 %v1311
    %v1383 = vunpack.c.h.b16 %v1311
    %v1384 = vunpack.c.l.b16 %v1312
    %v1385 = vunpack.c.h.b16 %v1312
    %v1386 = vunpack.c.l.b16 %v1313
    %v1387 = vunpack.c.h.b16 %v1313
    %v1388 = vunpack.c.l.b16 %v1314
    %v1389 = vunpack.c.h.b16 %v1314
    %v1390 = vunpack.c.l.b16 %v1315
    %v1391 = vunpack.c.h.b16 %v1315
    %v1392 = vunpack.c.l.b16 %v1316
    %v1393 = vunpack.c.h.b16 %v1316
    %v1394 = vunpack.c.l.b16 %v1317
    %v1395 = vunpack.c.h.b16 %v1317
    %v1396 = vunpack.c.l.b16 %v1318
    %v1397 = vunpack.c.h.b16 %v1318
    %v1398 = vunpack.c.l.b16 %v1319
    %v1399 = vunpack.c.h.b16 %v1319
    %v1400 = vunpack.c.l.b16 %v1320
    %v1401 = vunpack.c.h.b16 %v1320
    %v1402 = vunpack.c.l.b16 %v1321
    %v1403 = vunpack.c.h.b16 %v1321
    %v1404 = vunpack.c.l.b16 %v1322
    %v1405 = vunpack.c.h.b16 %v1322
    %v1406 = vunpack.c.l.b16 %v1323
    %v1407 = vunpack.c.h.b16 %v1323
    %v1408 = vunpack.c.l.b16 %v1324
    %v1409 = vunpack.c.h.b16 %v1324
    %v1410 = vunpack.c.l.b16 %v1325
    %v1411 = vunpack.c.h.b16 %v1325
    %v1412 = vunpack.c.l.b16 %v1326
    %v1413 = vunpack.c.h.b16 %v1326
    %v1414 = vunpack.c.l.b16 %v1327
    %v1415 = vunpack.c.h.b16 %v1327
    %v1416 = vunpack.c.l.b16 %v1328
    %v1417 = vunpack.c.h.b16 %v1328
    %v1418 = vunpack.c.l.b16 %v1329
    %v1419 = vunpack.c.h.b16 %v1329
    %v1420 = vunpack.c.l.b16 %v1330
    %v1421 = vunpack.c.h.b16 %v1330
    %v1422 = vunpack.c.l.b16 %v1331
    %v1423 = vunpack.c.h.b16 %v1331
    %v1424 = vunpack.c.l.b16 %v1332
    %v1425 = vunpack.c.h.b16 %v1332
    %v1426 = vunpack.c.l.b16 %v1333
    %v1427 = vunpack.c.h.b16 %v1333
    %v1428 = vunpack.c.l.b16 %v1334
    %v1429 = vunpack.c.h.b16 %v1334
    %v1430 = vunpack.c.l.b16 %v1335
    %v1431 = vunpack.c.h.b16 %v1335
    %v1432 = vpack.c.b16 %v1372, %v1368
    %v1433 = vpack.c.b16 %v1373, %v1369
    %v1434 = vpack.c.b16 %v1374, %v1370
    %v1435 = vpack.c.b16 %v1375, %v1371
    %v1436 = vpack.c.b16 %v1380, %v1376
    %v1437 = vpack.c.b16 %v1381, %v1377
    %v1438 = vpack.c.b16 %v1382, %v1378
    %v1439 = vpack.c.b16 %v1383, %v1379
    %v1440 = vpack.c.b16 %v1388, %v1384
    %v1441 = vpack.c.b16 %v1389, %v1385
    %v1442 = vpack.c.b16 %v1390, %v1386
    %v1443 = vpack.c.b16 %v1391, %v1387
    %v1444 = vpack.c.b16 %v1396, %v1392
    %v1445 = vpack.c.b16 %v1397, %v1393
    %v1446 = vpack.c.b16 %v1398, %v1394
    %v1447 = vpack.c.b16 %v1399, %v1395
    %v1448 = vpack.c.b16 %v1404, %v1400
    %v1449 = vpack.c.b16 %v1405, %v1401
    %v1450 = vpack.c.b16 %v1406, %v1402
    %v1451 = vpack.c.b16 %v1407, %v1403
    %v1452 = vpack.c.b16 %v1412, %v1408
    %v1453 = vpack.c.b16 %v1413, %v1409
    %v1454 = vpack.c.b16 %v1414, %v1410
    %v1455 = vpack.c.b16 %v1415, %v1411
    %v1456 = vpack.c.b16 %v1420, %v1416
    %v1457 = vpack.c.b16 %v1421, %v1417
    %v1458 = vpack.c.b16 %v1422, %v1418
    %v1459 = vpack.c.b16 %v1423, %v1419
    %v1460 = vpack.c.b16 %v1428, %v1424
    %v1461 = vpack.c.b16 %v1429, %v1425
    %v1462 = vpack.c.b16 %v1430, %v1426
    %v1463 = vpack.c.b16 %v1431, %v1427
    %1496 = vmatpush.bf16.msra.mxu0 %v1460
    %1497 = vmatpush.bf16.msra.mxu0 %v1456
    %1498 = vmatpush.bf16.msra.mxu0 %v1452
    %1499 = vmatpush.bf16.msra.mxu0 %v1448
    %1500 = vmatpush.bf16.msra.mxu0 %v1444
    %1501 = vmatpush.bf16.msra.mxu0 %v1440
    %1502 = vmatpush.bf16.msra.mxu0 %v1436
    %1503 = vmatpush.bf16.msra.mxu0 %v1432
    %1504 = vmatmul.bf16.gmra.mxu0 %v1303
    %v1505 = vpop.f32.mrf.mxu0
    %v1506 = vadd.f32 0.0, %v1505
    %v1507 = vpop.f32.mrf.mxu0
    %1508 = vdwg.mxu0
    %1509 = vmatpush.bf16.msra.mxu0 %v1461
    %1510 = vmatpush.bf16.msra.mxu0 %v1457
    %1511 = vmatpush.bf16.msra.mxu0 %v1453
    %1512 = vmatpush.bf16.msra.mxu0 %v1449
    %1513 = vmatpush.bf16.msra.mxu0 %v1445
    %1514 = vmatpush.bf16.msra.mxu0 %v1441
    %1515 = vmatpush.bf16.msra.mxu0 %v1437
    %1516 = vmatpush.bf16.msra.mxu0 %v1433
    %1517 = vmatmul.bf16.gmra.mxu0 %v1303
    %v1518 = vpop.f32.mrf.mxu0
    %v1519 = vadd.f32 0.0, %v1518
    %v1520 = vpop.f32.mrf.mxu0
    %1521 = vdwg.mxu0
    %1522 = vmatpush.bf16.msra.mxu0 %v1462
    %1523 = vmatpush.bf16.msra.mxu0 %v1458
    %1524 = vmatpush.bf16.msra.mxu0 %v1454
    %1525 = vmatpush.bf16.msra.mxu0 %v1450
    %1526 = vmatpush.bf16.msra.mxu0 %v1446
    %1527 = vmatpush.bf16.msra.mxu0 %v1442
    %1528 = vmatpush.bf16.msra.mxu0 %v1438
    %1529 = vmatpush.bf16.msra.mxu0 %v1434
    %1530 = vmatmul.bf16.gmra.mxu0 %v1303
    %v1531 = vpop.f32.mrf.mxu0
    %v1532 = vadd.f32 0.0, %v1531
    %v1533 = vpop.f32.mrf.mxu0
    %1534 = vdwg.mxu0
    %1535 = vmatpush.bf16.msra.mxu0 %v1463
    %1536 = vmatpush.bf16.msra.mxu0 %v1459
    %1537 = vmatpush.bf16.msra.mxu0 %v1455
    %1538 = vmatpush.bf16.msra.mxu0 %v1451
    %1539 = vmatpush.bf16.msra.mxu0 %v1447
    %1540 = vmatpush.bf16.msra.mxu0 %v1443
    %1541 = vmatpush.bf16.msra.mxu0 %v1439
    %1542 = vmatpush.bf16.msra.mxu0 %v1435
    %1543 = vmatmul.bf16.gmra.mxu0 %v1303
    %v1544 = vpop.f32.mrf.mxu0
    %v1545 = vadd.f32 0.0, %v1544
    %v1546 = vpop.f32.mrf.mxu0
    %1547 = vdwg.mxu0
    %v1548 = vadd.f32 %v1299, %v1506
    %v1549 = vadd.f32 %v1300, %v1519
    %v1550 = vadd.f32 %v1301, %v1532
    %v1551 = vadd.f32 %v1302, %v1545
    %v1552 = vmul.f32 %v1295, 0.5
    %v1553 = vtanh.pop %v1552
    %v1554 = vmul.f32 %v1553, 0.5
    %v1555 = vadd.f32 %v1554, 0.5
    %v1556 = vmul.f32 %v1296, 0.5
    %v1557 = vtanh.pop %v1556
    %v1558 = vmul.f32 %v1557, 0.5
    %v1559 = vadd.f32 %v1558, 0.5
    %v1560 = vtanh.pop %v1297
    %v1561 = vmul.f32 %v1298, 0.5
    %v1562 = vtanh.pop %v1561
    %v1563 = vmul.f32 %v1562, 0.5
    %v1564 = vadd.f32 %v1563, 0.5
    %v1565 = vmul.f32 %v1559, %v1012
    %v1566 = vmul.f32 %v1555, %v1560
    %v1567 = vadd.f32 %v1565, %v1566
    %v1568 = vtanh.pop %v1567
    %v1569 = vmul.f32 %v1564, %v1568
    %v1570 = vmul.f32 %v1548, 0.5
    %v1571 = vtanh.pop %v1570
    %v1572 = vmul.f32 %v1571, 0.5
    %v1573 = vadd.f32 %v1572, 0.5
    %v1574 = vmul.f32 %v1549, 0.5
    %v1575 = vtanh.pop %v1574
    %v1576 = vmul.f32 %v1575, 0.5
    %v1577 = vadd.f32 %v1576, 0.5
    %v1578 = vtanh.pop %v1550
    %v1579 = vmul.f32 %v1551, 0.5
    %v1580 = vtanh.pop %v1579
    %v1581 = vmul.f32 %v1580, 0.5
    %v1582 = vadd.f32 %v1581, 0.5
    %v1583 = vmul.f32 %v1577, %v1030
    %v1584 = vmul.f32 %v1573, %v1578
    %v1585 = vadd.f32 %v1583, %v1584
    %v1586 = vtanh.pop %v1585
    %v1587 = vmul.f32 %v1582, %v1586
    %s1588 = sadd.s32 %s43, 8
    %s1589 = sshra.s32 %s1588, 3
    %s1590 = sand.u32 %s1588, 7
    %s1591 = smul.u32 %s1589, 2
    %s1592 = smul.addr %s1591, 8
    %s1593 = scalar_lea.vmem [#allocation4], %s1592
    %1594 = vst [vmem:[%s1593] sm:$0xff] %v1569
    %s1595 = sadd.s32 %s45, 16
    %s1596 = sshra.s32 %s1595, 3
    %s1597 = sand.u32 %s1595, 7
    %s1598 = smul.u32 %s1596, 2
    %s1599 = smul.addr %s1598, 8
    %s1600 = scalar_lea.vmem [#allocation4], %s1599
    %1601 = vst [vmem:[%s1600 + $0x8] sm:$0xff] %v1587
    %v1602 = vld [vmem:[#allocation2 + $0x40] sm:$0xff]
    %v1603 = vld [vmem:[#allocation2 + $0x48] sm:$0xff]
    %v1604 = vld [vmem:[#allocation2 + $0x50] sm:$0xff]
    %v1605 = vld [vmem:[#allocation2 + $0x58] sm:$0xff]
    %v1606 = vpack.c.bf16 %v1569, %v1569
    %v1607 = vld [vmem:[%s3] sm:$0xff]
    %v1608 = vld [vmem:[%s3 + $0x8] sm:$0xff]
    %v1609 = vld [vmem:[%s3 + $0x10] sm:$0xff]
    %v1610 = vld [vmem:[%s3 + $0x18] sm:$0xff]
    %v1611 = vld [vmem:[%s3 + $0x20] sm:$0xff]
    %v1612 = vld [vmem:[%s3 + $0x28] sm:$0xff]
    %v1613 = vld [vmem:[%s3 + $0x30] sm:$0xff]
    %v1614 = vld [vmem:[%s3 + $0x38] sm:$0xff]
    %v1615 = vld [vmem:[%s3 + $0x40] sm:$0xff]
    %v1616 = vld [vmem:[%s3 + $0x48] sm:$0xff]
    %v1617 = vld [vmem:[%s3 + $0x50] sm:$0xff]
    %v1618 = vld [vmem:[%s3 + $0x58] sm:$0xff]
    %v1619 = vld [vmem:[%s3 + $0x60] sm:$0xff]
    %v1620 = vld [vmem:[%s3 + $0x68] sm:$0xff]
    %v1621 = vld [vmem:[%s3 + $0x70] sm:$0xff]
    %v1622 = vld [vmem:[%s3 + $0x78] sm:$0xff]
    %v1623 = vld [vmem:[%s3 + $0x80] sm:$0xff]
    %v1624 = vld [vmem:[%s3 + $0x88] sm:$0xff]
    %v1625 = vld [vmem:[%s3 + $0x90] sm:$0xff]
    %v1626 = vld [vmem:[%s3 + $0x98] sm:$0xff]
    %v1627 = vld [vmem:[%s3 + $0xa0] sm:$0xff]
    %v1628 = vld [vmem:[%s3 + $0xa8] sm:$0xff]
    %v1629 = vld [vmem:[%s3 + $0xb0] sm:$0xff]
    %v1630 = vld [vmem:[%s3 + $0xb8] sm:$0xff]
    %v1631 = vld [vmem:[%s3 + $0xc0] sm:$0xff]
    %v1632 = vld [vmem:[%s3 + $0xc8] sm:$0xff]
    %v1633 = vld [vmem:[%s3 + $0xd0] sm:$0xff]
    %v1634 = vld [vmem:[%s3 + $0xd8] sm:$0xff]
    %v1635 = vld [vmem:[%s3 + $0xe0] sm:$0xff]
    %v1636 = vld [vmem:[%s3 + $0xe8] sm:$0xff]
    %v1637 = vld [vmem:[%s3 + $0xf0] sm:$0xff]
    %v1638 = vld [vmem:[%s3 + $0xf8] sm:$0xff]
    %v1671 = vunpack.c.l.b16 %v1607
    %v1672 = vunpack.c.h.b16 %v1607
    %v1673 = vunpack.c.l.b16 %v1608
    %v1674 = vunpack.c.h.b16 %v1608
    %v1675 = vunpack.c.l.b16 %v1609
    %v1676 = vunpack.c.h.b16 %v1609
    %v1677 = vunpack.c.l.b16 %v1610
    %v1678 = vunpack.c.h.b16 %v1610
    %v1679 = vunpack.c.l.b16 %v1611
    %v1680 = vunpack.c.h.b16 %v1611
    %v1681 = vunpack.c.l.b16 %v1612
    %v1682 = vunpack.c.h.b16 %v1612
    %v1683 = vunpack.c.l.b16 %v1613
    %v1684 = vunpack.c.h.b16 %v1613
    %v1685 = vunpack.c.l.b16 %v1614
    %v1686 = vunpack.c.h.b16 %v1614
    %v1687 = vunpack.c.l.b16 %v1615
    %v1688 = vunpack.c.h.b16 %v1615
    %v1689 = vunpack.c.l.b16 %v1616
    %v1690 = vunpack.c.h.b16 %v1616
    %v1691 = vunpack.c.l.b16 %v1617
    %v1692 = vunpack.c.h.b16 %v1617
    %v1693 = vunpack.c.l.b16 %v1618
    %v1694 = vunpack.c.h.b16 %v1618
    %v1695 = vunpack.c.l.b16 %v1619
    %v1696 = vunpack.c.h.b16 %v1619
    %v1697 = vunpack.c.l.b16 %v1620
    %v1698 = vunpack.c.h.b16 %v1620
    %v1699 = vunpack.c.l.b16 %v1621
    %v1700 = vunpack.c.h.b16 %v1621
    %v1701 = vunpack.c.l.b16 %v1622
    %v1702 = vunpack.c.h.b16 %v1622
    %v1703 = vunpack.c.l.b16 %v1623
    %v1704 = vunpack.c.h.b16 %v1623
    %v1705 = vunpack.c.l.b16 %v1624
    %v1706 = vunpack.c.h.b16 %v1624
    %v1707 = vunpack.c.l.b16 %v1625
    %v1708 = vunpack.c.h.b16 %v1625
    %v1709 = vunpack.c.l.b16 %v1626
    %v1710 = vunpack.c.h.b16 %v1626
    %v1711 = vunpack.c.l.b16 %v1627
    %v1712 = vunpack.c.h.b16 %v1627
    %v1713 = vunpack.c.l.b16 %v1628
    %v1714 = vunpack.c.h.b16 %v1628
    %v1715 = vunpack.c.l.b16 %v1629
    %v1716 = vunpack.c.h.b16 %v1629
    %v1717 = vunpack.c.l.b16 %v1630
    %v1718 = vunpack.c.h.b16 %v1630
    %v1719 = vunpack.c.l.b16 %v1631
    %v1720 = vunpack.c.h.b16 %v1631
    %v1721 = vunpack.c.l.b16 %v1632
    %v1722 = vunpack.c.h.b16 %v1632
    %v1723 = vunpack.c.l.b16 %v1633
    %v1724 = vunpack.c.h.b16 %v1633
    %v1725 = vunpack.c.l.b16 %v1634
    %v1726 = vunpack.c.h.b16 %v1634
    %v1727 = vunpack.c.l.b16 %v1635
    %v1728 = vunpack.c.h.b16 %v1635
    %v1729 = vunpack.c.l.b16 %v1636
    %v1730 = vunpack.c.h.b16 %v1636
    %v1731 = vunpack.c.l.b16 %v1637
    %v1732 = vunpack.c.h.b16 %v1637
    %v1733 = vunpack.c.l.b16 %v1638
    %v1734 = vunpack.c.h.b16 %v1638
    %v1735 = vpack.c.b16 %v1675, %v1671
    %v1736 = vpack.c.b16 %v1676, %v1672
    %v1737 = vpack.c.b16 %v1677, %v1673
    %v1738 = vpack.c.b16 %v1678, %v1674
    %v1739 = vpack.c.b16 %v1683, %v1679
    %v1740 = vpack.c.b16 %v1684, %v1680
    %v1741 = vpack.c.b16 %v1685, %v1681
    %v1742 = vpack.c.b16 %v1686, %v1682
    %v1743 = vpack.c.b16 %v1691, %v1687
    %v1744 = vpack.c.b16 %v1692, %v1688
    %v1745 = vpack.c.b16 %v1693, %v1689
    %v1746 = vpack.c.b16 %v1694, %v1690
    %v1747 = vpack.c.b16 %v1699, %v1695
    %v1748 = vpack.c.b16 %v1700, %v1696
    %v1749 = vpack.c.b16 %v1701, %v1697
    %v1750 = vpack.c.b16 %v1702, %v1698
    %v1751 = vpack.c.b16 %v1707, %v1703
    %v1752 = vpack.c.b16 %v1708, %v1704
    %v1753 = vpack.c.b16 %v1709, %v1705
    %v1754 = vpack.c.b16 %v1710, %v1706
    %v1755 = vpack.c.b16 %v1715, %v1711
    %v1756 = vpack.c.b16 %v1716, %v1712
    %v1757 = vpack.c.b16 %v1717, %v1713
    %v1758 = vpack.c.b16 %v1718, %v1714
    %v1759 = vpack.c.b16 %v1723, %v1719
    %v1760 = vpack.c.b16 %v1724, %v1720
    %v1761 = vpack.c.b16 %v1725, %v1721
    %v1762 = vpack.c.b16 %v1726, %v1722
    %v1763 = vpack.c.b16 %v1731, %v1727
    %v1764 = vpack.c.b16 %v1732, %v1728
    %v1765 = vpack.c.b16 %v1733, %v1729
    %v1766 = vpack.c.b16 %v1734, %v1730
    %1799 = vmatpush.bf16.msra.mxu0 %v1763
    %1800 = vmatpush.bf16.msra.mxu0 %v1759
    %1801 = vmatpush.bf16.msra.mxu0 %v1755
    %1802 = vmatpush.bf16.msra.mxu0 %v1751
    %1803 = vmatpush.bf16.msra.mxu0 %v1747
    %1804 = vmatpush.bf16.msra.mxu0 %v1743
    %1805 = vmatpush.bf16.msra.mxu0 %v1739
    %1806 = vmatpush.bf16.msra.mxu0 %v1735
    %1807 = vmatmul.bf16.gmra.mxu0 %v1606
    %v1808 = vpop.f32.mrf.mxu0
    %v1809 = vadd.f32 0.0, %v1808
    %v1810 = vpop.f32.mrf.mxu0
    %1811 = vdwg.mxu0
    %1812 = vmatpush.bf16.msra.mxu0 %v1764
    %1813 = vmatpush.bf16.msra.mxu0 %v1760
    %1814 = vmatpush.bf16.msra.mxu0 %v1756
    %1815 = vmatpush.bf16.msra.mxu0 %v1752
    %1816 = vmatpush.bf16.msra.mxu0 %v1748
    %1817 = vmatpush.bf16.msra.mxu0 %v1744
    %1818 = vmatpush.bf16.msra.mxu0 %v1740
    %1819 = vmatpush.bf16.msra.mxu0 %v1736
    %1820 = vmatmul.bf16.gmra.mxu0 %v1606
    %v1821 = vpop.f32.mrf.mxu0
    %v1822 = vadd.f32 0.0, %v1821
    %v1823 = vpop.f32.mrf.mxu0
    %1824 = vdwg.mxu0
    %1825 = vmatpush.bf16.msra.mxu0 %v1765
    %1826 = vmatpush.bf16.msra.mxu0 %v1761
    %1827 = vmatpush.bf16.msra.mxu0 %v1757
    %1828 = vmatpush.bf16.msra.mxu0 %v1753
    %1829 = vmatpush.bf16.msra.mxu0 %v1749
    %1830 = vmatpush.bf16.msra.mxu0 %v1745
    %1831 = vmatpush.bf16.msra.mxu0 %v1741
    %1832 = vmatpush.bf16.msra.mxu0 %v1737
    %1833 = vmatmul.bf16.gmra.mxu0 %v1606
    %v1834 = vpop.f32.mrf.mxu0
    %v1835 = vadd.f32 0.0, %v1834
    %v1836 = vpop.f32.mrf.mxu0
    %1837 = vdwg.mxu0
    %1838 = vmatpush.bf16.msra.mxu0 %v1766
    %1839 = vmatpush.bf16.msra.mxu0 %v1762
    %1840 = vmatpush.bf16.msra.mxu0 %v1758
    %1841 = vmatpush.bf16.msra.mxu0 %v1754
    %1842 = vmatpush.bf16.msra.mxu0 %v1750
    %1843 = vmatpush.bf16.msra.mxu0 %v1746
    %1844 = vmatpush.bf16.msra.mxu0 %v1742
    %1845 = vmatpush.bf16.msra.mxu0 %v1738
    %1846 = vmatmul.bf16.gmra.mxu0 %v1606
    %v1847 = vpop.f32.mrf.mxu0
    %v1848 = vadd.f32 0.0, %v1847
    %v1849 = vpop.f32.mrf.mxu0
    %1850 = vdwg.mxu0
    %v1851 = vadd.f32 %v1602, %v1809
    %v1852 = vadd.f32 %v1603, %v1822
    %v1853 = vadd.f32 %v1604, %v1835
    %v1854 = vadd.f32 %v1605, %v1848
    %v1855 = vld [vmem:[#allocation3 + $0x20] sm:$0xff]
    %v1856 = vld [vmem:[#allocation3 + $0x28] sm:$0xff]
    %v1857 = vld [vmem:[#allocation3 + $0x30] sm:$0xff]
    %v1858 = vld [vmem:[#allocation3 + $0x38] sm:$0xff]
    %v1859 = vpack.c.bf16 %v1587, %v1587
    %v1860 = vld [vmem:[%s4] sm:$0xff]
    %v1861 = vld [vmem:[%s4 + $0x8] sm:$0xff]
    %v1862 = vld [vmem:[%s4 + $0x10] sm:$0xff]
    %v1863 = vld [vmem:[%s4 + $0x18] sm:$0xff]
    %v1864 = vld [vmem:[%s4 + $0x20] sm:$0xff]
    %v1865 = vld [vmem:[%s4 + $0x28] sm:$0xff]
    %v1866 = vld [vmem:[%s4 + $0x30] sm:$0xff]
    %v1867 = vld [vmem:[%s4 + $0x38] sm:$0xff]
    %v1868 = vld [vmem:[%s4 + $0x40] sm:$0xff]
    %v1869 = vld [vmem:[%s4 + $0x48] sm:$0xff]
    %v1870 = vld [vmem:[%s4 + $0x50] sm:$0xff]
    %v1871 = vld [vmem:[%s4 + $0x58] sm:$0xff]
    %v1872 = vld [vmem:[%s4 + $0x60] sm:$0xff]
    %v1873 = vld [vmem:[%s4 + $0x68] sm:$0xff]
    %v1874 = vld [vmem:[%s4 + $0x70] sm:$0xff]
    %v1875 = vld [vmem:[%s4 + $0x78] sm:$0xff]
    %v1876 = vld [vmem:[%s4 + $0x80] sm:$0xff]
    %v1877 = vld [vmem:[%s4 + $0x88] sm:$0xff]
    %v1878 = vld [vmem:[%s4 + $0x90] sm:$0xff]
    %v1879 = vld [vmem:[%s4 + $0x98] sm:$0xff]
    %v1880 = vld [vmem:[%s4 + $0xa0] sm:$0xff]
    %v1881 = vld [vmem:[%s4 + $0xa8] sm:$0xff]
    %v1882 = vld [vmem:[%s4 + $0xb0] sm:$0xff]
    %v1883 = vld [vmem:[%s4 + $0xb8] sm:$0xff]
    %v1884 = vld [vmem:[%s4 + $0xc0] sm:$0xff]
    %v1885 = vld [vmem:[%s4 + $0xc8] sm:$0xff]
    %v1886 = vld [vmem:[%s4 + $0xd0] sm:$0xff]
    %v1887 = vld [vmem:[%s4 + $0xd8] sm:$0xff]
    %v1888 = vld [vmem:[%s4 + $0xe0] sm:$0xff]
    %v1889 = vld [vmem:[%s4 + $0xe8] sm:$0xff]
    %v1890 = vld [vmem:[%s4 + $0xf0] sm:$0xff]
    %v1891 = vld [vmem:[%s4 + $0xf8] sm:$0xff]
    %v1924 = vunpack.c.l.b16 %v1860
    %v1925 = vunpack.c.h.b16 %v1860
    %v1926 = vunpack.c.l.b16 %v1861
    %v1927 = vunpack.c.h.b16 %v1861
    %v1928 = vunpack.c.l.b16 %v1862
    %v1929 = vunpack.c.h.b16 %v1862
    %v1930 = vunpack.c.l.b16 %v1863
    %v1931 = vunpack.c.h.b16 %v1863
    %v1932 = vunpack.c.l.b16 %v1864
    %v1933 = vunpack.c.h.b16 %v1864
    %v1934 = vunpack.c.l.b16 %v1865
    %v1935 = vunpack.c.h.b16 %v1865
    %v1936 = vunpack.c.l.b16 %v1866
    %v1937 = vunpack.c.h.b16 %v1866
    %v1938 = vunpack.c.l.b16 %v1867
    %v1939 = vunpack.c.h.b16 %v1867
    %v1940 = vunpack.c.l.b16 %v1868
    %v1941 = vunpack.c.h.b16 %v1868
    %v1942 = vunpack.c.l.b16 %v1869
    %v1943 = vunpack.c.h.b16 %v1869
    %v1944 = vunpack.c.l.b16 %v1870
    %v1945 = vunpack.c.h.b16 %v1870
    %v1946 = vunpack.c.l.b16 %v1871
    %v1947 = vunpack.c.h.b16 %v1871
    %v1948 = vunpack.c.l.b16 %v1872
    %v1949 = vunpack.c.h.b16 %v1872
    %v1950 = vunpack.c.l.b16 %v1873
    %v1951 = vunpack.c.h.b16 %v1873
    %v1952 = vunpack.c.l.b16 %v1874
    %v1953 = vunpack.c.h.b16 %v1874
    %v1954 = vunpack.c.l.b16 %v1875
    %v1955 = vunpack.c.h.b16 %v1875
    %v1956 = vunpack.c.l.b16 %v1876
    %v1957 = vunpack.c.h.b16 %v1876
    %v1958 = vunpack.c.l.b16 %v1877
    %v1959 = vunpack.c.h.b16 %v1877
    %v1960 = vunpack.c.l.b16 %v1878
    %v1961 = vunpack.c.h.b16 %v1878
    %v1962 = vunpack.c.l.b16 %v1879
    %v1963 = vunpack.c.h.b16 %v1879
    %v1964 = vunpack.c.l.b16 %v1880
    %v1965 = vunpack.c.h.b16 %v1880
    %v1966 = vunpack.c.l.b16 %v1881
    %v1967 = vunpack.c.h.b16 %v1881
    %v1968 = vunpack.c.l.b16 %v1882
    %v1969 = vunpack.c.h.b16 %v1882
    %v1970 = vunpack.c.l.b16 %v1883
    %v1971 = vunpack.c.h.b16 %v1883
    %v1972 = vunpack.c.l.b16 %v1884
    %v1973 = vunpack.c.h.b16 %v1884
    %v1974 = vunpack.c.l.b16 %v1885
    %v1975 = vunpack.c.h.b16 %v1885
    %v1976 = vunpack.c.l.b16 %v1886
    %v1977 = vunpack.c.h.b16 %v1886
    %v1978 = vunpack.c.l.b16 %v1887
    %v1979 = vunpack.c.h.b16 %v1887
    %v1980 = vunpack.c.l.b16 %v1888
    %v1981 = vunpack.c.h.b16 %v1888
    %v1982 = vunpack.c.l.b16 %v1889
    %v1983 = vunpack.c.h.b16 %v1889
    %v1984 = vunpack.c.l.b16 %v1890
    %v1985 = vunpack.c.h.b16 %v1890
    %v1986 = vunpack.c.l.b16 %v1891
    %v1987 = vunpack.c.h.b16 %v1891
    %v1988 = vpack.c.b16 %v1928, %v1924
    %v1989 = vpack.c.b16 %v1929, %v1925
    %v1990 = vpack.c.b16 %v1930, %v1926
    %v1991 = vpack.c.b16 %v1931, %v1927
    %v1992 = vpack.c.b16 %v1936, %v1932
    %v1993 = vpack.c.b16 %v1937, %v1933
    %v1994 = vpack.c.b16 %v1938, %v1934
    %v1995 = vpack.c.b16 %v1939, %v1935
    %v1996 = vpack.c.b16 %v1944, %v1940
    %v1997 = vpack.c.b16 %v1945, %v1941
    %v1998 = vpack.c.b16 %v1946, %v1942
    %v1999 = vpack.c.b16 %v1947, %v1943
    %v2000 = vpack.c.b16 %v1952, %v1948
    %v2001 = vpack.c.b16 %v1953, %v1949
    %v2002 = vpack.c.b16 %v1954, %v1950
    %v2003 = vpack.c.b16 %v1955, %v1951
    %v2004 = vpack.c.b16 %v1960, %v1956
    %v2005 = vpack.c.b16 %v1961, %v1957
    %v2006 = vpack.c.b16 %v1962, %v1958
    %v2007 = vpack.c.b16 %v1963, %v1959
    %v2008 = vpack.c.b16 %v1968, %v1964
    %v2009 = vpack.c.b16 %v1969, %v1965
    %v2010 = vpack.c.b16 %v1970, %v1966
    %v2011 = vpack.c.b16 %v1971, %v1967
    %v2012 = vpack.c.b16 %v1976, %v1972
    %v2013 = vpack.c.b16 %v1977, %v1973
    %v2014 = vpack.c.b16 %v1978, %v1974
    %v2015 = vpack.c.b16 %v1979, %v1975
    %v2016 = vpack.c.b16 %v1984, %v1980
    %v2017 = vpack.c.b16 %v1985, %v1981
    %v2018 = vpack.c.b16 %v1986, %v1982
    %v2019 = vpack.c.b16 %v1987, %v1983
    %2052 = vmatpush.bf16.msra.mxu0 %v2016
    %2053 = vmatpush.bf16.msra.mxu0 %v2012
    %2054 = vmatpush.bf16.msra.mxu0 %v2008
    %2055 = vmatpush.bf16.msra.mxu0 %v2004
    %2056 = vmatpush.bf16.msra.mxu0 %v2000
    %2057 = vmatpush.bf16.msra.mxu0 %v1996
    %2058 = vmatpush.bf16.msra.mxu0 %v1992
    %2059 = vmatpush.bf16.msra.mxu0 %v1988
    %2060 = vmatmul.bf16.gmra.mxu0 %v1859
    %v2061 = vpop.f32.mrf.mxu0
    %v2062 = vadd.f32 0.0, %v2061
    %v2063 = vpop.f32.mrf.mxu0
    %2064 = vdwg.mxu0
    %2065 = vmatpush.bf16.msra.mxu0 %v2017
    %2066 = vmatpush.bf16.msra.mxu0 %v2013
    %2067 = vmatpush.bf16.msra.mxu0 %v2009
    %2068 = vmatpush.bf16.msra.mxu0 %v2005
    %2069 = vmatpush.bf16.msra.mxu0 %v2001
    %2070 = vmatpush.bf16.msra.mxu0 %v1997
    %2071 = vmatpush.bf16.msra.mxu0 %v1993
    %2072 = vmatpush.bf16.msra.mxu0 %v1989
    %2073 = vmatmul.bf16.gmra.mxu0 %v1859
    %v2074 = vpop.f32.mrf.mxu0
    %v2075 = vadd.f32 0.0, %v2074
    %v2076 = vpop.f32.mrf.mxu0
    %2077 = vdwg.mxu0
    %2078 = vmatpush.bf16.msra.mxu0 %v2018
    %2079 = vmatpush.bf16.msra.mxu0 %v2014
    %2080 = vmatpush.bf16.msra.mxu0 %v2010
    %2081 = vmatpush.bf16.msra.mxu0 %v2006
    %2082 = vmatpush.bf16.msra.mxu0 %v2002
    %2083 = vmatpush.bf16.msra.mxu0 %v1998
    %2084 = vmatpush.bf16.msra.mxu0 %v1994
    %2085 = vmatpush.bf16.msra.mxu0 %v1990
    %2086 = vmatmul.bf16.gmra.mxu0 %v1859
    %v2087 = vpop.f32.mrf.mxu0
    %v2088 = vadd.f32 0.0, %v2087
    %v2089 = vpop.f32.mrf.mxu0
    %2090 = vdwg.mxu0
    %2091 = vmatpush.bf16.msra.mxu0 %v2019
    %2092 = vmatpush.bf16.msra.mxu0 %v2015
    %2093 = vmatpush.bf16.msra.mxu0 %v2011
    %2094 = vmatpush.bf16.msra.mxu0 %v2007
    %2095 = vmatpush.bf16.msra.mxu0 %v2003
    %2096 = vmatpush.bf16.msra.mxu0 %v1999
    %2097 = vmatpush.bf16.msra.mxu0 %v1995
    %2098 = vmatpush.bf16.msra.mxu0 %v1991
    %2099 = vmatmul.bf16.gmra.mxu0 %v1859
    %v2100 = vpop.f32.mrf.mxu0
    %v2101 = vadd.f32 0.0, %v2100
    %v2102 = vpop.f32.mrf.mxu0
    %2103 = vdwg.mxu0
    %v2104 = vadd.f32 %v1855, %v2062
    %v2105 = vadd.f32 %v1856, %v2075
    %v2106 = vadd.f32 %v1857, %v2088
    %v2107 = vadd.f32 %v1858, %v2101
    %v2108 = vmul.f32 %v1851, 0.5
    %v2109 = vtanh.pop %v2108
    %v2110 = vmul.f32 %v2109, 0.5
    %v2111 = vadd.f32 %v2110, 0.5
    %v2112 = vmul.f32 %v1852, 0.5
    %v2113 = vtanh.pop %v2112
    %v2114 = vmul.f32 %v2113, 0.5
    %v2115 = vadd.f32 %v2114, 0.5
    %v2116 = vtanh.pop %v1853
    %v2117 = vmul.f32 %v1854, 0.5
    %v2118 = vtanh.pop %v2117
    %v2119 = vmul.f32 %v2118, 0.5
    %v2120 = vadd.f32 %v2119, 0.5
    %v2121 = vmul.f32 %v2115, %v1567
    %v2122 = vmul.f32 %v2111, %v2116
    %v2123 = vadd.f32 %v2121, %v2122
    %v2124 = vtanh.pop %v2123
    %v2125 = vmul.f32 %v2120, %v2124
    %v2126 = vmul.f32 %v2104, 0.5
    %v2127 = vtanh.pop %v2126
    %v2128 = vmul.f32 %v2127, 0.5
    %v2129 = vadd.f32 %v2128, 0.5
    %v2130 = vmul.f32 %v2105, 0.5
    %v2131 = vtanh.pop %v2130
    %v2132 = vmul.f32 %v2131, 0.5
    %v2133 = vadd.f32 %v2132, 0.5
    %v2134 = vtanh.pop %v2106
    %v2135 = vmul.f32 %v2107, 0.5
    %v2136 = vtanh.pop %v2135
    %v2137 = vmul.f32 %v2136, 0.5
    %v2138 = vadd.f32 %v2137, 0.5
    %v2139 = vmul.f32 %v2133, %v1585
    %v2140 = vmul.f32 %v2129, %v2134
    %v2141 = vadd.f32 %v2139, %v2140
    %v2142 = vtanh.pop %v2141
    %v2143 = vmul.f32 %v2138, %v2142
    %s2144 = sadd.s32 %s43, 16
    %s2145 = sshra.s32 %s2144, 3
    %s2146 = sand.u32 %s2144, 7
    %s2147 = smul.u32 %s2145, 2
    %s2148 = smul.addr %s2147, 8
    %s2149 = scalar_lea.vmem [#allocation4], %s2148
    %2150 = vst [vmem:[%s2149] sm:$0xff] %v2125
    %s2151 = sadd.s32 %s45, 8
    %s2152 = sshra.s32 %s2151, 3
    %s2153 = sand.u32 %s2151, 7
    %s2154 = smul.u32 %s2152, 2
    %s2155 = smul.addr %s2154, 8
    %s2156 = scalar_lea.vmem [#allocation4], %s2155
    %2157 = vst [vmem:[%s2156 + $0x8] sm:$0xff] %v2143
    %v2158 = vld [vmem:[#allocation2 + $0x60] sm:$0xff]
    %v2159 = vld [vmem:[#allocation2 + $0x68] sm:$0xff]
    %v2160 = vld [vmem:[#allocation2 + $0x70] sm:$0xff]
    %v2161 = vld [vmem:[#allocation2 + $0x78] sm:$0xff]
    %v2162 = vpack.c.bf16 %v2125, %v2125
    %v2163 = vld [vmem:[%s3] sm:$0xff]
    %v2164 = vld [vmem:[%s3 + $0x8] sm:$0xff]
    %v2165 = vld [vmem:[%s3 + $0x10] sm:$0xff]
    %v2166 = vld [vmem:[%s3 + $0x18] sm:$0xff]
    %v2167 = vld [vmem:[%s3 + $0x20] sm:$0xff]
    %v2168 = vld [vmem:[%s3 + $0x28] sm:$0xff]
    %v2169 = vld [vmem:[%s3 + $0x30] sm:$0xff]
    %v2170 = vld [vmem:[%s3 + $0x38] sm:$0xff]
    %v2171 = vld [vmem:[%s3 + $0x40] sm:$0xff]
    %v2172 = vld [vmem:[%s3 + $0x48] sm:$0xff]
    %v2173 = vld [vmem:[%s3 + $0x50] sm:$0xff]
    %v2174 = vld [vmem:[%s3 + $0x58] sm:$0xff]
    %v2175 = vld [vmem:[%s3 + $0x60] sm:$0xff]
    %v2176 = vld [vmem:[%s3 + $0x68] sm:$0xff]
    %v2177 = vld [vmem:[%s3 + $0x70] sm:$0xff]
    %v2178 = vld [vmem:[%s3 + $0x78] sm:$0xff]
    %v2179 = vld [vmem:[%s3 + $0x80] sm:$0xff]
    %v2180 = vld [vmem:[%s3 + $0x88] sm:$0xff]
    %v2181 = vld [vmem:[%s3 + $0x90] sm:$0xff]
    %v2182 = vld [vmem:[%s3 + $0x98] sm:$0xff]
    %v2183 = vld [vmem:[%s3 + $0xa0] sm:$0xff]
    %v2184 = vld [vmem:[%s3 + $0xa8] sm:$0xff]
    %v2185 = vld [vmem:[%s3 + $0xb0] sm:$0xff]
    %v2186 = vld [vmem:[%s3 + $0xb8] sm:$0xff]
    %v2187 = vld [vmem:[%s3 + $0xc0] sm:$0xff]
    %v2188 = vld [vmem:[%s3 + $0xc8] sm:$0xff]
    %v2189 = vld [vmem:[%s3 + $0xd0] sm:$0xff]
    %v2190 = vld [vmem:[%s3 + $0xd8] sm:$0xff]
    %v2191 = vld [vmem:[%s3 + $0xe0] sm:$0xff]
    %v2192 = vld [vmem:[%s3 + $0xe8] sm:$0xff]
    %v2193 = vld [vmem:[%s3 + $0xf0] sm:$0xff]
    %v2194 = vld [vmem:[%s3 + $0xf8] sm:$0xff]
    %v2227 = vunpack.c.l.b16 %v2163
    %v2228 = vunpack.c.h.b16 %v2163
    %v2229 = vunpack.c.l.b16 %v2164
    %v2230 = vunpack.c.h.b16 %v2164
    %v2231 = vunpack.c.l.b16 %v2165
    %v2232 = vunpack.c.h.b16 %v2165
    %v2233 = vunpack.c.l.b16 %v2166
    %v2234 = vunpack.c.h.b16 %v2166
    %v2235 = vunpack.c.l.b16 %v2167
    %v2236 = vunpack.c.h.b16 %v2167
    %v2237 = vunpack.c.l.b16 %v2168
    %v2238 = vunpack.c.h.b16 %v2168
    %v2239 = vunpack.c.l.b16 %v2169
    %v2240 = vunpack.c.h.b16 %v2169
    %v2241 = vunpack.c.l.b16 %v2170
    %v2242 = vunpack.c.h.b16 %v2170
    %v2243 = vunpack.c.l.b16 %v2171
    %v2244 = vunpack.c.h.b16 %v2171
    %v2245 = vunpack.c.l.b16 %v2172
    %v2246 = vunpack.c.h.b16 %v2172
    %v2247 = vunpack.c.l.b16 %v2173
    %v2248 = vunpack.c.h.b16 %v2173
    %v2249 = vunpack.c.l.b16 %v2174
    %v2250 = vunpack.c.h.b16 %v2174
    %v2251 = vunpack.c.l.b16 %v2175
    %v2252 = vunpack.c.h.b16 %v2175
    %v2253 = vunpack.c.l.b16 %v2176
    %v2254 = vunpack.c.h.b16 %v2176
    %v2255 = vunpack.c.l.b16 %v2177
    %v2256 = vunpack.c.h.b16 %v2177
    %v2257 = vunpack.c.l.b16 %v2178
    %v2258 = vunpack.c.h.b16 %v2178
    %v2259 = vunpack.c.l.b16 %v2179
    %v2260 = vunpack.c.h.b16 %v2179
    %v2261 = vunpack.c.l.b16 %v2180
    %v2262 = vunpack.c.h.b16 %v2180
    %v2263 = vunpack.c.l.b16 %v2181
    %v2264 = vunpack.c.h.b16 %v2181
    %v2265 = vunpack.c.l.b16 %v2182
    %v2266 = vunpack.c.h.b16 %v2182
    %v2267 = vunpack.c.l.b16 %v2183
    %v2268 = vunpack.c.h.b16 %v2183
    %v2269 = vunpack.c.l.b16 %v2184
    %v2270 = vunpack.c.h.b16 %v2184
    %v2271 = vunpack.c.l.b16 %v2185
    %v2272 = vunpack.c.h.b16 %v2185
    %v2273 = vunpack.c.l.b16 %v2186
    %v2274 = vunpack.c.h.b16 %v2186
    %v2275 = vunpack.c.l.b16 %v2187
    %v2276 = vunpack.c.h.b16 %v2187
    %v2277 = vunpack.c.l.b16 %v2188
    %v2278 = vunpack.c.h.b16 %v2188
    %v2279 = vunpack.c.l.b16 %v2189
    %v2280 = vunpack.c.h.b16 %v2189
    %v2281 = vunpack.c.l.b16 %v2190
    %v2282 = vunpack.c.h.b16 %v2190
    %v2283 = vunpack.c.l.b16 %v2191
    %v2284 = vunpack.c.h.b16 %v2191
    %v2285 = vunpack.c.l.b16 %v2192
    %v2286 = vunpack.c.h.b16 %v2192
    %v2287 = vunpack.c.l.b16 %v2193
    %v2288 = vunpack.c.h.b16 %v2193
    %v2289 = vunpack.c.l.b16 %v2194
    %v2290 = vunpack.c.h.b16 %v2194
    %v2291 = vpack.c.b16 %v2231, %v2227
    %v2292 = vpack.c.b16 %v2232, %v2228
    %v2293 = vpack.c.b16 %v2233, %v2229
    %v2294 = vpack.c.b16 %v2234, %v2230
    %v2295 = vpack.c.b16 %v2239, %v2235
    %v2296 = vpack.c.b16 %v2240, %v2236
    %v2297 = vpack.c.b16 %v2241, %v2237
    %v2298 = vpack.c.b16 %v2242, %v2238
    %v2299 = vpack.c.b16 %v2247, %v2243
    %v2300 = vpack.c.b16 %v2248, %v2244
    %v2301 = vpack.c.b16 %v2249, %v2245
    %v2302 = vpack.c.b16 %v2250, %v2246
    %v2303 = vpack.c.b16 %v2255, %v2251
    %v2304 = vpack.c.b16 %v2256, %v2252
    %v2305 = vpack.c.b16 %v2257, %v2253
    %v2306 = vpack.c.b16 %v2258, %v2254
    %v2307 = vpack.c.b16 %v2263, %v2259
    %v2308 = vpack.c.b16 %v2264, %v2260
    %v2309 = vpack.c.b16 %v2265, %v2261
    %v2310 = vpack.c.b16 %v2266, %v2262
    %v2311 = vpack.c.b16 %v2271, %v2267
    %v2312 = vpack.c.b16 %v2272, %v2268
    %v2313 = vpack.c.b16 %v2273, %v2269
    %v2314 = vpack.c.b16 %v2274, %v2270
    %v2315 = vpack.c.b16 %v2279, %v2275
    %v2316 = vpack.c.b16 %v2280, %v2276
    %v2317 = vpack.c.b16 %v2281, %v2277
    %v2318 = vpack.c.b16 %v2282, %v2278
    %v2319 = vpack.c.b16 %v2287, %v2283
    %v2320 = vpack.c.b16 %v2288, %v2284
    %v2321 = vpack.c.b16 %v2289, %v2285
    %v2322 = vpack.c.b16 %v2290, %v2286
    %2355 = vmatpush.bf16.msra.mxu0 %v2319
    %2356 = vmatpush.bf16.msra.mxu0 %v2315
    %2357 = vmatpush.bf16.msra.mxu0 %v2311
    %2358 = vmatpush.bf16.msra.mxu0 %v2307
    %2359 = vmatpush.bf16.msra.mxu0 %v2303
    %2360 = vmatpush.bf16.msra.mxu0 %v2299
    %2361 = vmatpush.bf16.msra.mxu0 %v2295
    %2362 = vmatpush.bf16.msra.mxu0 %v2291
    %2363 = vmatmul.bf16.gmra.mxu0 %v2162
    %v2364 = vpop.f32.mrf.mxu0
    %v2365 = vadd.f32 0.0, %v2364
    %v2366 = vpop.f32.mrf.mxu0
    %2367 = vdwg.mxu0
    %2368 = vmatpush.bf16.msra.mxu0 %v2320
    %2369 = vmatpush.bf16.msra.mxu0 %v2316
    %2370 = vmatpush.bf16.msra.mxu0 %v2312
    %2371 = vmatpush.bf16.msra.mxu0 %v2308
    %2372 = vmatpush.bf16.msra.mxu0 %v2304
    %2373 = vmatpush.bf16.msra.mxu0 %v2300
    %2374 = vmatpush.bf16.msra.mxu0 %v2296
    %2375 = vmatpush.bf16.msra.mxu0 %v2292
    %2376 = vmatmul.bf16.gmra.mxu0 %v2162
    %v2377 = vpop.f32.mrf.mxu0
    %v2378 = vadd.f32 0.0, %v2377
    %v2379 = vpop.f32.mrf.mxu0
    %2380 = vdwg.mxu0
    %2381 = vmatpush.bf16.msra.mxu0 %v2321
    %2382 = vmatpush.bf16.msra.mxu0 %v2317
    %2383 = vmatpush.bf16.msra.mxu0 %v2313
    %2384 = vmatpush.bf16.msra.mxu0 %v2309
    %2385 = vmatpush.bf16.msra.mxu0 %v2305
    %2386 = vmatpush.bf16.msra.mxu0 %v2301
    %2387 = vmatpush.bf16.msra.mxu0 %v2297
    %2388 = vmatpush.bf16.msra.mxu0 %v2293
    %2389 = vmatmul.bf16.gmra.mxu0 %v2162
    %v2390 = vpop.f32.mrf.mxu0
    %v2391 = vadd.f32 0.0, %v2390
    %v2392 = vpop.f32.mrf.mxu0
    %2393 = vdwg.mxu0
    %2394 = vmatpush.bf16.msra.mxu0 %v2322
    %2395 = vmatpush.bf16.msra.mxu0 %v2318
    %2396 = vmatpush.bf16.msra.mxu0 %v2314
    %2397 = vmatpush.bf16.msra.mxu0 %v2310
    %2398 = vmatpush.bf16.msra.mxu0 %v2306
    %2399 = vmatpush.bf16.msra.mxu0 %v2302
    %2400 = vmatpush.bf16.msra.mxu0 %v2298
    %2401 = vmatpush.bf16.msra.mxu0 %v2294
    %2402 = vmatmul.bf16.gmra.mxu0 %v2162
    %v2403 = vpop.f32.mrf.mxu0
    %v2404 = vadd.f32 0.0, %v2403
    %v2405 = vpop.f32.mrf.mxu0
    %2406 = vdwg.mxu0
    %v2407 = vadd.f32 %v2158, %v2365
    %v2408 = vadd.f32 %v2159, %v2378
    %v2409 = vadd.f32 %v2160, %v2391
    %v2410 = vadd.f32 %v2161, %v2404
    %v2411 = vld [vmem:[#allocation3] sm:$0xff]
    %v2412 = vld [vmem:[#allocation3 + $0x8] sm:$0xff]
    %v2413 = vld [vmem:[#allocation3 + $0x10] sm:$0xff]
    %v2414 = vld [vmem:[#allocation3 + $0x18] sm:$0xff]
    %v2415 = vpack.c.bf16 %v2143, %v2143
    %v2416 = vld [vmem:[%s4] sm:$0xff]
    %v2417 = vld [vmem:[%s4 + $0x8] sm:$0xff]
    %v2418 = vld [vmem:[%s4 + $0x10] sm:$0xff]
    %v2419 = vld [vmem:[%s4 + $0x18] sm:$0xff]
    %v2420 = vld [vmem:[%s4 + $0x20] sm:$0xff]
    %v2421 = vld [vmem:[%s4 + $0x28] sm:$0xff]
    %v2422 = vld [vmem:[%s4 + $0x30] sm:$0xff]
    %v2423 = vld [vmem:[%s4 + $0x38] sm:$0xff]
    %v2424 = vld [vmem:[%s4 + $0x40] sm:$0xff]
    %v2425 = vld [vmem:[%s4 + $0x48] sm:$0xff]
    %v2426 = vld [vmem:[%s4 + $0x50] sm:$0xff]
    %v2427 = vld [vmem:[%s4 + $0x58] sm:$0xff]
    %v2428 = vld [vmem:[%s4 + $0x60] sm:$0xff]
    %v2429 = vld [vmem:[%s4 + $0x68] sm:$0xff]
    %v2430 = vld [vmem:[%s4 + $0x70] sm:$0xff]
    %v2431 = vld [vmem:[%s4 + $0x78] sm:$0xff]
    %v2432 = vld [vmem:[%s4 + $0x80] sm:$0xff]
    %v2433 = vld [vmem:[%s4 + $0x88] sm:$0xff]
    %v2434 = vld [vmem:[%s4 + $0x90] sm:$0xff]
    %v2435 = vld [vmem:[%s4 + $0x98] sm:$0xff]
    %v2436 = vld [vmem:[%s4 + $0xa0] sm:$0xff]
    %v2437 = vld [vmem:[%s4 + $0xa8] sm:$0xff]
    %v2438 = vld [vmem:[%s4 + $0xb0] sm:$0xff]
    %v2439 = vld [vmem:[%s4 + $0xb8] sm:$0xff]
    %v2440 = vld [vmem:[%s4 + $0xc0] sm:$0xff]
    %v2441 = vld [vmem:[%s4 + $0xc8] sm:$0xff]
    %v2442 = vld [vmem:[%s4 + $0xd0] sm:$0xff]
    %v2443 = vld [vmem:[%s4 + $0xd8] sm:$0xff]
    %v2444 = vld [vmem:[%s4 + $0xe0] sm:$0xff]
    %v2445 = vld [vmem:[%s4 + $0xe8] sm:$0xff]
    %v2446 = vld [vmem:[%s4 + $0xf0] sm:$0xff]
    %v2447 = vld [vmem:[%s4 + $0xf8] sm:$0xff]
    %v2480 = vunpack.c.l.b16 %v2416
    %v2481 = vunpack.c.h.b16 %v2416
    %v2482 = vunpack.c.l.b16 %v2417
    %v2483 = vunpack.c.h.b16 %v2417
    %v2484 = vunpack.c.l.b16 %v2418
    %v2485 = vunpack.c.h.b16 %v2418
    %v2486 = vunpack.c.l.b16 %v2419
    %v2487 = vunpack.c.h.b16 %v2419
    %v2488 = vunpack.c.l.b16 %v2420
    %v2489 = vunpack.c.h.b16 %v2420
    %v2490 = vunpack.c.l.b16 %v2421
    %v2491 = vunpack.c.h.b16 %v2421
    %v2492 = vunpack.c.l.b16 %v2422
    %v2493 = vunpack.c.h.b16 %v2422
    %v2494 = vunpack.c.l.b16 %v2423
    %v2495 = vunpack.c.h.b16 %v2423
    %v2496 = vunpack.c.l.b16 %v2424
    %v2497 = vunpack.c.h.b16 %v2424
    %v2498 = vunpack.c.l.b16 %v2425
    %v2499 = vunpack.c.h.b16 %v2425
    %v2500 = vunpack.c.l.b16 %v2426
    %v2501 = vunpack.c.h.b16 %v2426
    %v2502 = vunpack.c.l.b16 %v2427
    %v2503 = vunpack.c.h.b16 %v2427
    %v2504 = vunpack.c.l.b16 %v2428
    %v2505 = vunpack.c.h.b16 %v2428
    %v2506 = vunpack.c.l.b16 %v2429
    %v2507 = vunpack.c.h.b16 %v2429
    %v2508 = vunpack.c.l.b16 %v2430
    %v2509 = vunpack.c.h.b16 %v2430
    %v2510 = vunpack.c.l.b16 %v2431
    %v2511 = vunpack.c.h.b16 %v2431
    %v2512 = vunpack.c.l.b16 %v2432
    %v2513 = vunpack.c.h.b16 %v2432
    %v2514 = vunpack.c.l.b16 %v2433
    %v2515 = vunpack.c.h.b16 %v2433
    %v2516 = vunpack.c.l.b16 %v2434
    %v2517 = vunpack.c.h.b16 %v2434
    %v2518 = vunpack.c.l.b16 %v2435
    %v2519 = vunpack.c.h.b16 %v2435
    %v2520 = vunpack.c.l.b16 %v2436
    %v2521 = vunpack.c.h.b16 %v2436
    %v2522 = vunpack.c.l.b16 %v2437
    %v2523 = vunpack.c.h.b16 %v2437
    %v2524 = vunpack.c.l.b16 %v2438
    %v2525 = vunpack.c.h.b16 %v2438
    %v2526 = vunpack.c.l.b16 %v2439
    %v2527 = vunpack.c.h.b16 %v2439
    %v2528 = vunpack.c.l.b16 %v2440
    %v2529 = vunpack.c.h.b16 %v2440
    %v2530 = vunpack.c.l.b16 %v2441
    %v2531 = vunpack.c.h.b16 %v2441
    %v2532 = vunpack.c.l.b16 %v2442
    %v2533 = vunpack.c.h.b16 %v2442
    %v2534 = vunpack.c.l.b16 %v2443
    %v2535 = vunpack.c.h.b16 %v2443
    %v2536 = vunpack.c.l.b16 %v2444
    %v2537 = vunpack.c.h.b16 %v2444
    %v2538 = vunpack.c.l.b16 %v2445
    %v2539 = vunpack.c.h.b16 %v2445
    %v2540 = vunpack.c.l.b16 %v2446
    %v2541 = vunpack.c.h.b16 %v2446
    %v2542 = vunpack.c.l.b16 %v2447
    %v2543 = vunpack.c.h.b16 %v2447
    %v2544 = vpack.c.b16 %v2484, %v2480
    %v2545 = vpack.c.b16 %v2485, %v2481
    %v2546 = vpack.c.b16 %v2486, %v2482
    %v2547 = vpack.c.b16 %v2487, %v2483
    %v2548 = vpack.c.b16 %v2492, %v2488
    %v2549 = vpack.c.b16 %v2493, %v2489
    %v2550 = vpack.c.b16 %v2494, %v2490
    %v2551 = vpack.c.b16 %v2495, %v2491
    %v2552 = vpack.c.b16 %v2500, %v2496
    %v2553 = vpack.c.b16 %v2501, %v2497
    %v2554 = vpack.c.b16 %v2502, %v2498
    %v2555 = vpack.c.b16 %v2503, %v2499
    %v2556 = vpack.c.b16 %v2508, %v2504
    %v2557 = vpack.c.b16 %v2509, %v2505
    %v2558 = vpack.c.b16 %v2510, %v2506
    %v2559 = vpack.c.b16 %v2511, %v2507
    %v2560 = vpack.c.b16 %v2516, %v2512
    %v2561 = vpack.c.b16 %v2517, %v2513
    %v2562 = vpack.c.b16 %v2518, %v2514
    %v2563 = vpack.c.b16 %v2519, %v2515
    %v2564 = vpack.c.b16 %v2524, %v2520
    %v2565 = vpack.c.b16 %v2525, %v2521
    %v2566 = vpack.c.b16 %v2526, %v2522
    %v2567 = vpack.c.b16 %v2527, %v2523
    %v2568 = vpack.c.b16 %v2532, %v2528
    %v2569 = vpack.c.b16 %v2533, %v2529
    %v2570 = vpack.c.b16 %v2534, %v2530
    %v2571 = vpack.c.b16 %v2535, %v2531
    %v2572 = vpack.c.b16 %v2540, %v2536
    %v2573 = vpack.c.b16 %v2541, %v2537
    %v2574 = vpack.c.b16 %v2542, %v2538
    %v2575 = vpack.c.b16 %v2543, %v2539
    %2608 = vmatpush.bf16.msra.mxu0 %v2572
    %2609 = vmatpush.bf16.msra.mxu0 %v2568
    %2610 = vmatpush.bf16.msra.mxu0 %v2564
    %2611 = vmatpush.bf16.msra.mxu0 %v2560
    %2612 = vmatpush.bf16.msra.mxu0 %v2556
    %2613 = vmatpush.bf16.msra.mxu0 %v2552
    %2614 = vmatpush.bf16.msra.mxu0 %v2548
    %2615 = vmatpush.bf16.msra.mxu0 %v2544
    %2616 = vmatmul.bf16.gmra.mxu0 %v2415
    %v2617 = vpop.f32.mrf.mxu0
    %v2618 = vadd.f32 0.0, %v2617
    %v2619 = vpop.f32.mrf.mxu0
    %2620 = vdwg.mxu0
    %2621 = vmatpush.bf16.msra.mxu0 %v2573
    %2622 = vmatpush.bf16.msra.mxu0 %v2569
    %2623 = vmatpush.bf16.msra.mxu0 %v2565
    %2624 = vmatpush.bf16.msra.mxu0 %v2561
    %2625 = vmatpush.bf16.msra.mxu0 %v2557
    %2626 = vmatpush.bf16.msra.mxu0 %v2553
    %2627 = vmatpush.bf16.msra.mxu0 %v2549
    %2628 = vmatpush.bf16.msra.mxu0 %v2545
    %2629 = vmatmul.bf16.gmra.mxu0 %v2415
    %v2630 = vpop.f32.mrf.mxu0
    %v2631 = vadd.f32 0.0, %v2630
    %v2632 = vpop.f32.mrf.mxu0
    %2633 = vdwg.mxu0
    %2634 = vmatpush.bf16.msra.mxu0 %v2574
    %2635 = vmatpush.bf16.msra.mxu0 %v2570
    %2636 = vmatpush.bf16.msra.mxu0 %v2566
    %2637 = vmatpush.bf16.msra.mxu0 %v2562
    %2638 = vmatpush.bf16.msra.mxu0 %v2558
    %2639 = vmatpush.bf16.msra.mxu0 %v2554
    %2640 = vmatpush.bf16.msra.mxu0 %v2550
    %2641 = vmatpush.bf16.msra.mxu0 %v2546
    %2642 = vmatmul.bf16.gmra.mxu0 %v2415
    %v2643 = vpop.f32.mrf.mxu0
    %v2644 = vadd.f32 0.0, %v2643
    %v2645 = vpop.f32.mrf.mxu0
    %2646 = vdwg.mxu0
    %2647 = vmatpush.bf16.msra.mxu0 %v2575
    %2648 = vmatpush.bf16.msra.mxu0 %v2571
    %2649 = vmatpush.bf16.msra.mxu0 %v2567
    %2650 = vmatpush.bf16.msra.mxu0 %v2563
    %2651 = vmatpush.bf16.msra.mxu0 %v2559
    %2652 = vmatpush.bf16.msra.mxu0 %v2555
    %2653 = vmatpush.bf16.msra.mxu0 %v2551
    %2654 = vmatpush.bf16.msra.mxu0 %v2547
    %2655 = vmatmul.bf16.gmra.mxu0 %v2415
    %v2656 = vpop.f32.mrf.mxu0
    %v2657 = vadd.f32 0.0, %v2656
    %v2658 = vpop.f32.mrf.mxu0
    %2659 = vdwg.mxu0
    %v2660 = vadd.f32 %v2411, %v2618
    %v2661 = vadd.f32 %v2412, %v2631
    %v2662 = vadd.f32 %v2413, %v2644
    %v2663 = vadd.f32 %v2414, %v2657
    %v2664 = vmul.f32 %v2407, 0.5
    %v2665 = vtanh.pop %v2664
    %v2666 = vmul.f32 %v2665, 0.5
    %v2667 = vadd.f32 %v2666, 0.5
    %v2668 = vmul.f32 %v2408, 0.5
    %v2669 = vtanh.pop %v2668
    %v2670 = vmul.f32 %v2669, 0.5
    %v2671 = vadd.f32 %v2670, 0.5
    %v2672 = vtanh.pop %v2409
    %v2673 = vmul.f32 %v2410, 0.5
    %v2674 = vtanh.pop %v2673
    %v2675 = vmul.f32 %v2674, 0.5
    %v2676 = vadd.f32 %v2675, 0.5
    %v2677 = vmul.f32 %v2671, %v2123
    %v2678 = vmul.f32 %v2667, %v2672
    %v2679 = vadd.f32 %v2677, %v2678
    %v2680 = vtanh.pop %v2679
    %v2681 = vmul.f32 %v2676, %v2680
    %v2682 = vmul.f32 %v2660, 0.5
    %v2683 = vtanh.pop %v2682
    %v2684 = vmul.f32 %v2683, 0.5
    %v2685 = vadd.f32 %v2684, 0.5
    %v2686 = vmul.f32 %v2661, 0.5
    %v2687 = vtanh.pop %v2686
    %v2688 = vmul.f32 %v2687, 0.5
    %v2689 = vadd.f32 %v2688, 0.5
    %v2690 = vtanh.pop %v2662
    %v2691 = vmul.f32 %v2663, 0.5
    %v2692 = vtanh.pop %v2691
    %v2693 = vmul.f32 %v2692, 0.5
    %v2694 = vadd.f32 %v2693, 0.5
    %v2695 = vmul.f32 %v2689, %v2141
    %v2696 = vmul.f32 %v2685, %v2690
    %v2697 = vadd.f32 %v2695, %v2696
    %v2698 = vtanh.pop %v2697
    %v2699 = vmul.f32 %v2694, %v2698
    %s2700 = sadd.s32 %s43, 24
    %s2701 = sshra.s32 %s2700, 3
    %s2702 = sand.u32 %s2700, 7
    %s2703 = smul.u32 %s2701, 2
    %s2704 = smul.addr %s2703, 8
    %s2705 = scalar_lea.vmem [#allocation4], %s2704
    %2706 = vst [vmem:[%s2705] sm:$0xff] %v2681
    %s2707 = sshra.s32 %s45, 3
    %s2708 = sand.u32 %s45, 7
    %s2709 = smul.u32 %s2707, 2
    %s2710 = smul.addr %s2709, 8
    %s2711 = scalar_lea.vmem [#allocation4], %s2710
    %2712 = vst [vmem:[%s2711 + $0x8] sm:$0xff] %v2699
  $region42: #{_lambda_.3} parent=0 // loop_footer
    %s38 = sadd.s32 1, %s34
  $region43: #{_lambda_.3} parent=0 // loop_footer_branch
    %33 = sbr.rel target = $region39
  $region44: #{_lambda_.3} parent=0 // loop_exit
    _
  %v2713 = vld [vmem:[#allocation4] sm:$0xff]
  %v2714 = vld [vmem:[#allocation4 + $0x8] sm:$0xff]
  %v2715 = vld [vmem:[#allocation4 + $0x10] sm:$0xff]
  %v2716 = vld [vmem:[#allocation4 + $0x18] sm:$0xff]
  %v2717 = vld [vmem:[#allocation4 + $0x20] sm:$0xff]
  %v2718 = vld [vmem:[#allocation4 + $0x28] sm:$0xff]
  %v2719 = vld [vmem:[#allocation4 + $0x30] sm:$0xff]
  %v2720 = vld [vmem:[#allocation4 + $0x38] sm:$0xff]
  %v2721 = vld [vmem:[#allocation4 + $0x40] sm:$0xff]
  %v2722 = vld [vmem:[#allocation4 + $0x48] sm:$0xff]
  %v2723 = vld [vmem:[#allocation4 + $0x50] sm:$0xff]
  %v2724 = vld [vmem:[#allocation4 + $0x58] sm:$0xff]
  %v2725 = vld [vmem:[#allocation4 + $0x60] sm:$0xff]
  %v2726 = vld [vmem:[#allocation4 + $0x68] sm:$0xff]
  %v2727 = vld [vmem:[#allocation4 + $0x70] sm:$0xff]
  %v2728 = vld [vmem:[#allocation4 + $0x78] sm:$0xff]
  %v2729 = vpack.c.bf16 %v2715, %v2713
  %v2730 = vpack.c.bf16 %v2716, %v2714
  %v2731 = vpack.c.bf16 %v2719, %v2717
  %v2732 = vpack.c.bf16 %v2720, %v2718
  %v2733 = vpack.c.bf16 %v2723, %v2721
  %v2734 = vpack.c.bf16 %v2724, %v2722
  %v2735 = vpack.c.bf16 %v2727, %v2725
  %v2736 = vpack.c.bf16 %v2728, %v2726
  %v2737 = vld [vmem:[%s7] sm:$0xf]
  %v2738 = vld [vmem:[%s7 + $0x4] sm:$0xf]
  %v2739 = vld [vmem:[%s7 + $0x8] sm:$0xf]
  %v2740 = vld [vmem:[%s7 + $0xc] sm:$0xf]
  %v2741 = vld [vmem:[%s7 + $0x10] sm:$0xf]
  %v2742 = vld [vmem:[%s7 + $0x14] sm:$0xf]
  %v2743 = vld [vmem:[%s7 + $0x18] sm:$0xf]
  %v2744 = vld [vmem:[%s7 + $0x1c] sm:$0xf]
  %v2745 = vld [vmem:[%s7 + $0x20] sm:$0xf]
  %v2746 = vld [vmem:[%s7 + $0x24] sm:$0xf]
  %v2747 = vld [vmem:[%s7 + $0x28] sm:$0xf]
  %v2748 = vld [vmem:[%s7 + $0x2c] sm:$0xf]
  %v2749 = vld [vmem:[%s7 + $0x30] sm:$0xf]
  %v2750 = vld [vmem:[%s7 + $0x34] sm:$0xf]
  %v2751 = vld [vmem:[%s7 + $0x38] sm:$0xf]
  %v2752 = vld [vmem:[%s7 + $0x3c] sm:$0xf]
  %v2753 = vld [vmem:[%s7 + $0x40] sm:$0xf]
  %v2754 = vld [vmem:[%s7 + $0x44] sm:$0xf]
  %v2755 = vld [vmem:[%s7 + $0x48] sm:$0xf]
  %v2756 = vld [vmem:[%s7 + $0x4c] sm:$0xf]
  %v2757 = vld [vmem:[%s7 + $0x50] sm:$0xf]
  %v2758 = vld [vmem:[%s7 + $0x54] sm:$0xf]
  %v2759 = vld [vmem:[%s7 + $0x58] sm:$0xf]
  %v2760 = vld [vmem:[%s7 + $0x5c] sm:$0xf]
  %v2761 = vld [vmem:[%s7 + $0x60] sm:$0xf]
  %v2762 = vld [vmem:[%s7 + $0x64] sm:$0xf]
  %v2763 = vld [vmem:[%s7 + $0x68] sm:$0xf]
  %v2764 = vld [vmem:[%s7 + $0x6c] sm:$0xf]
  %v2765 = vld [vmem:[%s7 + $0x70] sm:$0xf]
  %v2766 = vld [vmem:[%s7 + $0x74] sm:$0xf]
  %v2767 = vld [vmem:[%s7 + $0x78] sm:$0xf]
  %v2768 = vld [vmem:[%s7 + $0x7c] sm:$0xf]
  %v2769 = vld [vmem:[%s8] sm:$0x1]
  %v2771 = vperm.slane %v2769, 0
  %v2805 = vunpack.c.l.b16 %v2737
  %v2806 = vunpack.c.l.b16 %v2738
  %v2807 = vunpack.c.l.b16 %v2739
  %v2808 = vunpack.c.l.b16 %v2740
  %v2809 = vunpack.c.l.b16 %v2741
  %v2810 = vunpack.c.l.b16 %v2742
  %v2811 = vunpack.c.l.b16 %v2743
  %v2812 = vunpack.c.l.b16 %v2744
  %v2813 = vunpack.c.l.b16 %v2745
  %v2814 = vunpack.c.l.b16 %v2746
  %v2815 = vunpack.c.l.b16 %v2747
  %v2816 = vunpack.c.l.b16 %v2748
  %v2817 = vunpack.c.l.b16 %v2749
  %v2818 = vunpack.c.l.b16 %v2750
  %v2819 = vunpack.c.l.b16 %v2751
  %v2820 = vunpack.c.l.b16 %v2752
  %v2821 = vunpack.c.l.b16 %v2753
  %v2822 = vunpack.c.l.b16 %v2754
  %v2823 = vunpack.c.l.b16 %v2755
  %v2824 = vunpack.c.l.b16 %v2756
  %v2825 = vunpack.c.l.b16 %v2757
  %v2826 = vunpack.c.l.b16 %v2758
  %v2827 = vunpack.c.l.b16 %v2759
  %v2828 = vunpack.c.l.b16 %v2760
  %v2829 = vunpack.c.l.b16 %v2761
  %v2830 = vunpack.c.l.b16 %v2762
  %v2831 = vunpack.c.l.b16 %v2763
  %v2832 = vunpack.c.l.b16 %v2764
  %v2833 = vunpack.c.l.b16 %v2765
  %v2834 = vunpack.c.l.b16 %v2766
  %v2835 = vunpack.c.l.b16 %v2767
  %v2836 = vunpack.c.l.b16 %v2768
  %v2837 = vpack.c.b16 %v2806, %v2805
  %v2838 = vpack.c.b16 %v2808, %v2807
  %v2839 = vpack.c.b16 %v2810, %v2809
  %v2840 = vpack.c.b16 %v2812, %v2811
  %v2841 = vpack.c.b16 %v2814, %v2813
  %v2842 = vpack.c.b16 %v2816, %v2815
  %v2843 = vpack.c.b16 %v2818, %v2817
  %v2844 = vpack.c.b16 %v2820, %v2819
  %v2845 = vpack.c.b16 %v2822, %v2821
  %v2846 = vpack.c.b16 %v2824, %v2823
  %v2847 = vpack.c.b16 %v2826, %v2825
  %v2848 = vpack.c.b16 %v2828, %v2827
  %v2849 = vpack.c.b16 %v2830, %v2829
  %v2850 = vpack.c.b16 %v2832, %v2831
  %v2851 = vpack.c.b16 %v2834, %v2833
  %v2852 = vpack.c.b16 %v2836, %v2835
  %2869 = vmatpush.bf16.msra.mxu0 %v2844
  %2870 = vmatpush.bf16.msra.mxu0 %v2843
  %2871 = vmatpush.bf16.msra.mxu0 %v2842
  %2872 = vmatpush.bf16.msra.mxu0 %v2841
  %2873 = vmatpush.bf16.msra.mxu0 %v2840
  %2874 = vmatpush.bf16.msra.mxu0 %v2839
  %2875 = vmatpush.bf16.msra.mxu0 %v2838
  %2876 = vmatpush.bf16.msra.mxu0 %v2837
  %2877 = vmatmul.bf16.gmra.mxu0 %v2729
  %v2878 = vpop.f32.mrf.mxu0
  %v2879 = vadd.f32 %v2771, %v2878
  %v2880 = vpop.f32.mrf.mxu0
  %v2881 = vadd.f32 %v2771, %v2880
  %2882 = vmatmul.bf16.gmra.mxu0 %v2731
  %v2883 = vpop.f32.mrf.mxu0
  %v2884 = vadd.f32 %v2771, %v2883
  %v2885 = vpop.f32.mrf.mxu0
  %v2886 = vadd.f32 %v2771, %v2885
  %2887 = vmatmul.bf16.gmra.mxu0 %v2733
  %v2888 = vpop.f32.mrf.mxu0
  %v2889 = vadd.f32 %v2771, %v2888
  %v2890 = vpop.f32.mrf.mxu0
  %v2891 = vadd.f32 %v2771, %v2890
  %2892 = vmatmul.bf16.gmra.mxu0 %v2735
  %v2893 = vpop.f32.mrf.mxu0
  %v2894 = vadd.f32 %v2771, %v2893
  %v2895 = vpop.f32.mrf.mxu0
  %v2896 = vadd.f32 %v2771, %v2895
  %2897 = vdwg.mxu0
  %2898 = vmatpush.bf16.msra.mxu0 %v2852
  %2899 = vmatpush.bf16.msra.mxu0 %v2851
  %2900 = vmatpush.bf16.msra.mxu0 %v2850
  %2901 = vmatpush.bf16.msra.mxu0 %v2849
  %2902 = vmatpush.bf16.msra.mxu0 %v2848
  %2903 = vmatpush.bf16.msra.mxu0 %v2847
  %2904 = vmatpush.bf16.msra.mxu0 %v2846
  %2905 = vmatpush.bf16.msra.mxu0 %v2845
  %2906 = vmatmul.bf16.gmra.mxu0 %v2730
  %v2907 = vpop.f32.mrf.mxu0
  %v2908 = vadd.f32 %v2879, %v2907
  %v2909 = vpop.f32.mrf.mxu0
  %v2910 = vadd.f32 %v2881, %v2909
  %2911 = vmatmul.bf16.gmra.mxu0 %v2732
  %v2912 = vpop.f32.mrf.mxu0
  %v2913 = vadd.f32 %v2884, %v2912
  %v2914 = vpop.f32.mrf.mxu0
  %v2915 = vadd.f32 %v2886, %v2914
  %2916 = vmatmul.bf16.gmra.mxu0 %v2734
  %v2917 = vpop.f32.mrf.mxu0
  %v2918 = vadd.f32 %v2889, %v2917
  %v2919 = vpop.f32.mrf.mxu0
  %v2920 = vadd.f32 %v2891, %v2919
  %2921 = vmatmul.bf16.gmra.mxu0 %v2736
  %v2922 = vpop.f32.mrf.mxu0
  %v2923 = vadd.f32 %v2894, %v2922
  %v2924 = vpop.f32.mrf.mxu0
  %v2925 = vadd.f32 %v2896, %v2924
  %2926 = vdwg.mxu0
  %2927 = vst [vmem:[%s9] sm:$0xff] %v2908
  %2928 = vst [vmem:[%s9 + $0x8] sm:$0xff] %v2910
  %2929 = vst [vmem:[%s9 + $0x10] sm:$0xff] %v2913
  %2930 = vst [vmem:[%s9 + $0x18] sm:$0xff] %v2915
  %2931 = vst [vmem:[%s9 + $0x20] sm:$0xff] %v2918
  %2932 = vst [vmem:[%s9 + $0x28] sm:$0xff] %v2920
  %2933 = vst [vmem:[%s9 + $0x30] sm:$0xff] %v2923
  %2934 = vst [vmem:[%s9 + $0x38] sm:$0xff] %v2925
  // Predicated region
  $region45: #{_lambda_.3} parent=0 // pred_check
    _
  $region46: #{_lambda_.3} parent=0 // pred_check_branch
    %2936 = sbr.rel (0) target = $region48
  $region47: #{_lambda_.3} parent=0 // pred_region
    _
  $region48: #{_lambda_.3} parent=0 // pred_fallthru
    _
  // Predicated region
  $region49: #{_lambda_.3} parent=0 // pred_check
    _
  $region50: #{_lambda_.3} parent=0 // pred_check_branch
    %2938 = sbr.rel (0) target = $region52
  $region51: #{_lambda_.3} parent=0 // pred_region
    _
  $region52: #{_lambda_.3} parent=0 // pred_fallthru
    _

</llo_original>
